<compile_context>
chip_gen: v6e
topology: v6e:2x2x1
jax: 0.10.0
libtpu: 0.0.40
codegen_flags: <defaults>
</compile_context>

<pallas_src>
import math
import jax
import jax.numpy as jnp
from jax.experimental import pallas as pl
from jax.experimental.pallas import tpu as pltpu

EPS = 1e-5
LANES = 128   # padded output-channel width (one full vreg lane group)


def _basic_block_kernel(x_ref, w1_ref, w2_ref, wl_ref,
                        g1_ref, b1_ref, g2_ref, b2_ref, gl_ref, bl_ref,
                        alpha_ref, o_ref, pad_ref):
    # x_ref  : (N, H, W, C)      input activation, NHWC, real channels only, f32
    # w1/w2  : (9, C, Cp) bf16   dense-packed 3x3 weights, tap t = ky*3 + kx
    # wl     : (C, Cp)    bf16   1x1 local conv weight (in, out), lane padded
    # g*/b*  : (1, Cp)    f32    BN affine params, zero padded past C
    # alpha  : (1, 1)     f32    SMEM scalar
    # o_ref  : (N, H, W, C)      output, NHWC (wrapper only transposes)
    # pad_ref: (N, H+2, W+2, C)  VMEM scratch: zero-halo padded activation, f32
    N, H, W, C = x_ref.shape
    Cp = g1_ref.shape[-1]
    NHW = N * H * W
    inv_n = 1.0 / float(NHW)
    f32, bf16 = jnp.float32, jnp.bfloat16
    Hp, Wp = H + 2, W + 2

    def bn(v, g_ref, b_ref):
        # one-pass training-mode BatchNorm2d: biased stats over (N, H, W).
        # Zero-padded output lanes stay exactly zero (gamma = beta = 0 there).
        m = jnp.sum(v, axis=0, keepdims=True) * inv_n
        ms = jnp.sum(v * v, axis=0, keepdims=True) * inv_n
        var = jnp.maximum(ms - m * m, 0.0)
        return (v - m) * jax.lax.rsqrt(var + EPS) * g_ref[...] + b_ref[...]

    def conv3x3_bn(w_ref, g_ref, b_ref):
        # dense-K 3x3 conv: nine (NHW, C) x (C, Cp) bf16 matmuls accumulated
        # into one f32 accumulator, fed directly from the halo buffer.
        acc = jnp.zeros((NHW, Cp), f32)
        for t in range(9):
            dy, dx = divmod(t, 3)
            slab = pad_ref[:, dy:dy + H, dx:dx + W, :]            # (N, H, W, C)
            slab = slab.reshape(NHW, C).astype(bf16)
            acc = acc + jnp.dot(slab, w_ref[t],
                                preferred_element_type=f32)       # (NHW, Cp)
        return bn(acc, g_ref, b_ref)

    # ---- stage 0: zero only the 1-px halo ring (stays zero for both convs) --
    zr = jnp.zeros((N, 1, Wp, C), f32)
    pad_ref[:, 0:1, :, :] = zr
    pad_ref[:, Hp - 1:Hp, :, :] = zr
    zc = jnp.zeros((N, Hp, 1, C), f32)
    pad_ref[:, :, 0:1, :] = zc
    pad_ref[:, :, Wp - 1:Wp, :] = zc

    # ---- out = bn2(conv2(bn1(conv1(x)))) ----
    pad_ref[:, 1:H + 1, 1:W + 1, :] = x_ref[...]
    out = conv3x3_bn(w1_ref, g1_ref, b1_ref)                      # (NHW, Cp)
    pad_ref[:, 1:H + 1, 1:W + 1, :] = out[:, :C].reshape(N, H, W, C)
    out = conv3x3_bn(w2_ref, g2_ref, b2_ref)                      # (NHW, Cp)

    # ---- polynomial tail (identity shortcut, norm_x = identity) ----
    x_c = x_ref[...].reshape(NHW, C)                               # (NHW, C)
    out_c = out[:, :C]                                             # (NHW, C)
    out1 = out_c + x_c                                             # 1st order + shortcut
    so = (out_c * x_c).astype(bf16)                                # 2nd-order Hadamard
    so = jnp.dot(so, wl_ref[...], preferred_element_type=f32)      # lconv0 -> (NHW, Cp)
    so = bn(so, gl_ref, bl_ref)                                    # lbn0
    y = out1 + alpha_ref[0, 0] * so[:, :C]
    o_ref[...] = y.reshape(N, H, W, C).astype(o_ref.dtype)


def _pack_conv3x3(w_oihw, cp):
    """(O, I, 3, 3) OIHW -> (9, I, cp) bf16; tap index t = ky*3 + kx."""
    o, i, kh, kw = w_oihw.shape
    w = jnp.transpose(w_oihw, (2, 3, 1, 0)).reshape(kh * kw, i, o)
    return (jnp.zeros((kh * kw, i, cp), jnp.bfloat16)
            .at[:, :, :o].set(w.astype(jnp.bfloat16)))


def _pad_vec(v, cp):
    return jnp.zeros((1, cp), v.dtype).at[0, :v.shape[0]].set(v)


def basic_block_forward(x_nchw, p):
    N, C, H, W = x_nchw.shape
    NHW = N * H * W
    cp = LANES
    assert C <= cp
    f32 = jnp.float32

    x_nhwc = jnp.transpose(x_nchw, (0, 2, 3, 1))                   # boundary transpose
    w1 = _pack_conv3x3(p['w1'], cp)                                # (9, C, cp) bf16
    w2 = _pack_conv3x3(p['w2'], cp)
    wl = (jnp.zeros((C, cp), jnp.bfloat16)
          .at[:, :C].set(p['wl'].T.astype(jnp.bfloat16)))          # (in, out) bf16

    vmem = pl.BlockSpec(memory_space=pltpu.MemorySpace.VMEM)
    smem = pl.BlockSpec(memory_space=pltpu.MemorySpace.SMEM)

    # VMEM budget from actual buffer sizes (pad scratch is (8,128)-tiled f32,
    # plus f32 value temps and the small dense inputs); cap at 32 MiB which is
    # valid on v5e / v6e (128 MiB physical) and v7x (64 MiB per TensorCore).
    pad_phys = N * (H + 2) * (-(-(W + 2) // 8) * 8) * 128 * 4
    live_vals = 8 * NHW * cp * 4
    io_bytes = 4 * (x_nhwc.size + NHW * C + 6 * cp) + 2 * (w1.size + w2.size + wl.size)
    vmem_limit = int(min(32 << 20, max(8 << 20, 4 * (pad_phys + live_vals + io_bytes))))

    flops = int(2 * 9 * 2 * NHW * C * cp          # two 3x3 convs (tap matmuls)
                + 2 * NHW * C * cp                # 1x1 lconv
                + 40 * NHW * cp)                  # BN + polynomial elementwise
    bytes_accessed = int(4 * (x_nhwc.size + NHW * C + 6 * cp + 1)
                         + 2 * (w1.size + w2.size + wl.size))

    out_nhwc = pl.pallas_call(
        _basic_block_kernel,
        out_shape=jax.ShapeDtypeStruct((N, H, W, C), x_nchw.dtype),
        in_specs=[vmem] * 10 + [smem],
        out_specs=vmem,
        scratch_shapes=[
            pltpu.VMEM((N, H + 2, W + 2, C), f32),   # zero-halo activation (real channels only)
        ],
        compiler_params=pltpu.CompilerParams(vmem_limit_bytes=vmem_limit),
        cost_estimate=pl.CostEstimate(flops=flops, transcendentals=3 * cp,
                                      bytes_accessed=bytes_accessed),
    )(x_nhwc, w1, w2, wl,
      _pad_vec(p['g1'], cp), _pad_vec(p['b1'], cp),
      _pad_vec(p['g2'], cp), _pad_vec(p['b2'], cp),
      _pad_vec(p['gl'], cp), _pad_vec(p['bl'], cp),
      jnp.asarray(p['alpha'], f32).reshape(1, 1))

    # tiny boundary transpose: (N, H, W, C) -> (N, C, H, W)
    return jnp.transpose(out_nhwc, (0, 3, 1, 2))


# ----------------------------------------------------------------------------
# Pure-JAX reference (correctness check only)
# ----------------------------------------------------------------------------
def basic_block_reference(x, p):
    def conv3x3(v, w):
        return jax.lax.conv_general_dilated(
            v, w, window_strides=(1, 1), padding=((1, 1), (1, 1)),
            dimension_numbers=('NCHW', 'OIHW', 'NCHW'))

    def bn(v, g, b):
        m = jnp.mean(v, axis=(0, 2, 3), keepdims=True)
        var = jnp.mean((v - m) ** 2, axis=(0, 2, 3), keepdims=True)
        return (v - m) * jax.lax.rsqrt(var + EPS) * g.reshape(1, -1, 1, 1) \
            + b.reshape(1, -1, 1, 1)

    out = bn(conv3x3(x, p['w1']), p['g1'], p['b1'])
    out = bn(conv3x3(out, p['w2']), p['g2'], p['b2'])
    out1 = out + x
    so = out * x
    so = jnp.einsum('oi,nihw->nohw', p['wl'], so)
    so = bn(so, p['gl'], p['bl'])
    return out1 + p['alpha'] * so


if __name__ == "__main__":
    N, C, H, W = 2, 4, 16, 16          # in_planes = planes = 4, stride = 1
    key = jax.random.PRNGKey(0)
    ks = jax.random.split(key, 10)

    params = {
        # conv1 / conv2 : 3x3, no bias, OIHW (PyTorch layout)
        'w1': jax.random.normal(ks[0], (C, C, 3, 3), jnp.float32) / math.sqrt(9 * C),
        'w2': jax.random.normal(ks[1], (C, C, 3, 3), jnp.float32) / math.sqrt(9 * C),
        # BN affine params (bn1, bn2, lbn0)
        'g1': 1.0 + 0.1 * jax.random.normal(ks[2], (C,), jnp.float32),
        'b1': 0.1 * jax.random.normal(ks[3], (C,), jnp.float32),
        'g2': 1.0 + 0.1 * jax.random.normal(ks[4], (C,), jnp.float32),
        'b2': 0.1 * jax.random.normal(ks[5], (C,), jnp.float32),
        'gl': 1.0 + 0.1 * jax.random.normal(ks[6], (C,), jnp.float32),
        'bl': 0.1 * jax.random.normal(ks[7], (C,), jnp.float32),
        # lconv0 : 1x1 conv weight, (out, in)
        'wl': jax.random.normal(ks[8], (C, C), jnp.float32) / math.sqrt(C),
        # the module initializes alpha to zero; a nonzero deterministic value
        # keeps the second-order path exercised in the test.
        'alpha': jnp.float32(0.25),
    }
    x = jax.random.normal(ks[9], (N, C, H, W), jnp.float32)

    out = jax.block_until_ready(basic_block_forward(x, params))
    ref = jax.block_until_ready(basic_block_reference(x, params))

    assert out.shape == (N, C, H, W) and out.dtype == jnp.float32
    max_err = float(jnp.max(jnp.abs(out - ref)))
    # bf16 MXU operands (per perf review) vs. an all-f32 reference:
    # relaxed absolute tolerance on unit-scale outputs.
    assert max_err < 5e-2, f"mismatch vs reference: max abs err = {max_err}"
    print("KERNEL_OK")
</pallas_src>

<mosaic_0001>
module attributes {stable_mosaic.version = 11 : i64} {
  func.func @_basic_block_kernel(%arg0: memref<2x16x16x4xf32, #tpu.memory_space<vmem>>, %arg1: memref<9x4x128xbf16, #tpu.memory_space<vmem>>, %arg2: memref<9x4x128xbf16, #tpu.memory_space<vmem>>, %arg3: memref<4x128xbf16, #tpu.memory_space<vmem>>, %arg4: memref<1x128xf32, #tpu.memory_space<vmem>>, %arg5: memref<1x128xf32, #tpu.memory_space<vmem>>, %arg6: memref<1x128xf32, #tpu.memory_space<vmem>>, %arg7: memref<1x128xf32, #tpu.memory_space<vmem>>, %arg8: memref<1x128xf32, #tpu.memory_space<vmem>>, %arg9: memref<1x128xf32, #tpu.memory_space<vmem>>, %arg10: memref<1x1xf32, #tpu.memory_space<smem>>, %arg11: memref<2x16x16x4xf32, #tpu.memory_space<vmem>>, %arg12: memref<2x18x18x4xf32, #tpu.memory_space<vmem>>) attributes {dimension_semantics = [], scalar_prefetch = 0 : i64, scratch_operands = 1 : i64, tpu.core_type = #tpu.core_type<tc>} {
    %cst = arith.constant 0.000000e+00 : f32
    %0 = vector.broadcast %cst : f32 to vector<2x1x18x4xf32>
    %c0 = arith.constant 0 : index
    %c0_0 = arith.constant 0 : index
    %c0_1 = arith.constant 0 : index
    %c0_2 = arith.constant 0 : index
    %1 = vector.load %arg12[%c0, %c0_0, %c0_1, %c0_2] : memref<2x18x18x4xf32, #tpu.memory_space<vmem>>, vector<2x1x18x4xf32>
    tpu.vector_store %arg12[%c0, %c0_0, %c0_1, %c0_2], %0 {strides = array<i32>} : memref<2x18x18x4xf32, #tpu.memory_space<vmem>>, vector<2x1x18x4xf32>,
    %c0_3 = arith.constant 0 : index
    %c17 = arith.constant 17 : index
    %c0_4 = arith.constant 0 : index
    %c0_5 = arith.constant 0 : index
    %2 = vector.load %arg12[%c0_3, %c17, %c0_4, %c0_5] : memref<2x18x18x4xf32, #tpu.memory_space<vmem>>, vector<2x1x18x4xf32>
    tpu.vector_store %arg12[%c0_3, %c17, %c0_4, %c0_5], %0 {strides = array<i32>} : memref<2x18x18x4xf32, #tpu.memory_space<vmem>>, vector<2x1x18x4xf32>,
    %cst_6 = arith.constant 0.000000e+00 : f32
    %3 = vector.broadcast %cst_6 : f32 to vector<2x18x1x4xf32>
    %c0_7 = arith.constant 0 : index
    %c0_8 = arith.constant 0 : index
    %c0_9 = arith.constant 0 : index
    %c0_10 = arith.constant 0 : index
    %4 = vector.load %arg12[%c0_7, %c0_8, %c0_9, %c0_10] : memref<2x18x18x4xf32, #tpu.memory_space<vmem>>, vector<2x18x1x4xf32>
    tpu.vector_store %arg12[%c0_7, %c0_8, %c0_9, %c0_10], %3 {strides = array<i32>} : memref<2x18x18x4xf32, #tpu.memory_space<vmem>>, vector<2x18x1x4xf32>,
    %c0_11 = arith.constant 0 : index
    %c0_12 = arith.constant 0 : index
    %c17_13 = arith.constant 17 : index
    %c0_14 = arith.constant 0 : index
    %5 = vector.load %arg12[%c0_11, %c0_12, %c17_13, %c0_14] : memref<2x18x18x4xf32, #tpu.memory_space<vmem>>, vector<2x18x1x4xf32>
    tpu.vector_store %arg12[%c0_11, %c0_12, %c17_13, %c0_14], %3 {strides = array<i32>} : memref<2x18x18x4xf32, #tpu.memory_space<vmem>>, vector<2x18x1x4xf32>,
    %c0_15 = arith.constant 0 : index
    %c0_16 = arith.constant 0 : index
    %c0_17 = arith.constant 0 : index
    %c0_18 = arith.constant 0 : index
    %6 = vector.load %arg0[%c0_15, %c0_16, %c0_17, %c0_18] : memref<2x16x16x4xf32, #tpu.memory_space<vmem>>, vector<2x16x16x4xf32>
    %c0_19 = arith.constant 0 : index
    %c1 = arith.constant 1 : index
    %c1_20 = arith.constant 1 : index
    %c0_21 = arith.constant 0 : index
    %7 = vector.load %arg12[%c0_19, %c1, %c1_20, %c0_21] : memref<2x18x18x4xf32, #tpu.memory_space<vmem>>, vector<2x16x16x4xf32>
    tpu.vector_store %arg12[%c0_19, %c1, %c1_20, %c0_21], %6 {strides = array<i32>} : memref<2x18x18x4xf32, #tpu.memory_space<vmem>>, vector<2x16x16x4xf32>,
    %cst_22 = arith.constant 0.000000e+00 : f32
    %8 = vector.broadcast %cst_22 : f32 to vector<512x128xf32>
    %c0_23 = arith.constant 0 : index
    %c0_24 = arith.constant 0 : index
    %c0_25 = arith.constant 0 : index
    %c0_26 = arith.constant 0 : index
    %9 = vector.load %arg12[%c0_23, %c0_24, %c0_25, %c0_26] : memref<2x18x18x4xf32, #tpu.memory_space<vmem>>, vector<2x16x16x4xf32>
    %10 = vector.shape_cast %9 : vector<2x16x16x4xf32> to vector<512x4xf32>
    %11 = arith.truncf %10 : vector<512x4xf32> to vector<512x4xbf16>
    %c0_27 = arith.constant 0 : index
    %c0_28 = arith.constant 0 : index
    %c0_29 = arith.constant 0 : index
    %12 = vector.load %arg1[%c0_27, %c0_28, %c0_29] : memref<9x4x128xbf16, #tpu.memory_space<vmem>>, vector<1x4x128xbf16>
    %13 = vector.shape_cast %12 : vector<1x4x128xbf16> to vector<4x128xbf16>
    %cst_30 = arith.constant dense<0.000000e+00> : vector<512x128xf32>
    %14 = tpu.matmul %11, %13, %cst_30 {dimension_numbers = #tpu.dot_dimension_numbers<[1], [0], [0], [1], [0, 0, 1, 1], [], []>} : vector<512x4xbf16>, vector<4x128xbf16>, vector<512x128xf32> -> vector<512x128xf32>
    %15 = arith.addf %8, %14 : vector<512x128xf32>
    %c0_31 = arith.constant 0 : index
    %c0_32 = arith.constant 0 : index
    %c1_33 = arith.constant 1 : index
    %c0_34 = arith.constant 0 : index
    %16 = vector.load %arg12[%c0_31, %c0_32, %c1_33, %c0_34] : memref<2x18x18x4xf32, #tpu.memory_space<vmem>>, vector<2x16x16x4xf32>
    %17 = vector.shape_cast %16 : vector<2x16x16x4xf32> to vector<512x4xf32>
    %18 = arith.truncf %17 : vector<512x4xf32> to vector<512x4xbf16>
    %c1_35 = arith.constant 1 : index
    %c0_36 = arith.constant 0 : index
    %c0_37 = arith.constant 0 : index
    %19 = vector.load %arg1[%c1_35, %c0_36, %c0_37] : memref<9x4x128xbf16, #tpu.memory_space<vmem>>, vector<1x4x128xbf16>
    %20 = vector.shape_cast %19 : vector<1x4x128xbf16> to vector<4x128xbf16>
    %cst_38 = arith.constant dense<0.000000e+00> : vector<512x128xf32>
    %21 = tpu.matmul %18, %20, %cst_38 {dimension_numbers = #tpu.dot_dimension_numbers<[1], [0], [0], [1], [0, 0, 1, 1], [], []>} : vector<512x4xbf16>, vector<4x128xbf16>, vector<512x128xf32> -> vector<512x128xf32>
    %22 = arith.addf %15, %21 : vector<512x128xf32>
    %c0_39 = arith.constant 0 : index
    %c0_40 = arith.constant 0 : index
    %c2 = arith.constant 2 : index
    %c0_41 = arith.constant 0 : index
    %23 = vector.load %arg12[%c0_39, %c0_40, %c2, %c0_41] : memref<2x18x18x4xf32, #tpu.memory_space<vmem>>, vector<2x16x16x4xf32>
    %24 = vector.shape_cast %23 : vector<2x16x16x4xf32> to vector<512x4xf32>
    %25 = arith.truncf %24 : vector<512x4xf32> to vector<512x4xbf16>
    %c2_42 = arith.constant 2 : index
    %c0_43 = arith.constant 0 : index
    %c0_44 = arith.constant 0 : index
    %26 = vector.load %arg1[%c2_42, %c0_43, %c0_44] : memref<9x4x128xbf16, #tpu.memory_space<vmem>>, vector<1x4x128xbf16>
    %27 = vector.shape_cast %26 : vector<1x4x128xbf16> to vector<4x128xbf16>
    %cst_45 = arith.constant dense<0.000000e+00> : vector<512x128xf32>
    %28 = tpu.matmul %25, %27, %cst_45 {dimension_numbers = #tpu.dot_dimension_numbers<[1], [0], [0], [1], [0, 0, 1, 1], [], []>} : vector<512x4xbf16>, vector<4x128xbf16>, vector<512x128xf32> -> vector<512x128xf32>
    %29 = arith.addf %22, %28 : vector<512x128xf32>
    %c0_46 = arith.constant 0 : index
    %c1_47 = arith.constant 1 : index
    %c0_48 = arith.constant 0 : index
    %c0_49 = arith.constant 0 : index
    %30 = vector.load %arg12[%c0_46, %c1_47, %c0_48, %c0_49] : memref<2x18x18x4xf32, #tpu.memory_space<vmem>>, vector<2x16x16x4xf32>
    %31 = vector.shape_cast %30 : vector<2x16x16x4xf32> to vector<512x4xf32>
    %32 = arith.truncf %31 : vector<512x4xf32> to vector<512x4xbf16>
    %c3 = arith.constant 3 : index
    %c0_50 = arith.constant 0 : index
    %c0_51 = arith.constant 0 : index
    %33 = vector.load %arg1[%c3, %c0_50, %c0_51] : memref<9x4x128xbf16, #tpu.memory_space<vmem>>, vector<1x4x128xbf16>
    %34 = vector.shape_cast %33 : vector<1x4x128xbf16> to vector<4x128xbf16>
    %cst_52 = arith.constant dense<0.000000e+00> : vector<512x128xf32>
    %35 = tpu.matmul %32, %34, %cst_52 {dimension_numbers = #tpu.dot_dimension_numbers<[1], [0], [0], [1], [0, 0, 1, 1], [], []>} : vector<512x4xbf16>, vector<4x128xbf16>, vector<512x128xf32> -> vector<512x128xf32>
    %36 = arith.addf %29, %35 : vector<512x128xf32>
    %c0_53 = arith.constant 0 : index
    %c1_54 = arith.constant 1 : index
    %c1_55 = arith.constant 1 : index
    %c0_56 = arith.constant 0 : index
    %37 = vector.load %arg12[%c0_53, %c1_54, %c1_55, %c0_56] : memref<2x18x18x4xf32, #tpu.memory_space<vmem>>, vector<2x16x16x4xf32>
    %38 = vector.shape_cast %37 : vector<2x16x16x4xf32> to vector<512x4xf32>
    %39 = arith.truncf %38 : vector<512x4xf32> to vector<512x4xbf16>
    %c4 = arith.constant 4 : index
    %c0_57 = arith.constant 0 : index
    %c0_58 = arith.constant 0 : index
    %40 = vector.load %arg1[%c4, %c0_57, %c0_58] : memref<9x4x128xbf16, #tpu.memory_space<vmem>>, vector<1x4x128xbf16>
    %41 = vector.shape_cast %40 : vector<1x4x128xbf16> to vector<4x128xbf16>
    %cst_59 = arith.constant dense<0.000000e+00> : vector<512x128xf32>
    %42 = tpu.matmul %39, %41, %cst_59 {dimension_numbers = #tpu.dot_dimension_numbers<[1], [0], [0], [1], [0, 0, 1, 1], [], []>} : vector<512x4xbf16>, vector<4x128xbf16>, vector<512x128xf32> -> vector<512x128xf32>
    %43 = arith.addf %36, %42 : vector<512x128xf32>
    %c0_60 = arith.constant 0 : index
    %c1_61 = arith.constant 1 : index
    %c2_62 = arith.constant 2 : index
    %c0_63 = arith.constant 0 : index
    %44 = vector.load %arg12[%c0_60, %c1_61, %c2_62, %c0_63] : memref<2x18x18x4xf32, #tpu.memory_space<vmem>>, vector<2x16x16x4xf32>
    %45 = vector.shape_cast %44 : vector<2x16x16x4xf32> to vector<512x4xf32>
    %46 = arith.truncf %45 : vector<512x4xf32> to vector<512x4xbf16>
    %c5 = arith.constant 5 : index
    %c0_64 = arith.constant 0 : index
    %c0_65 = arith.constant 0 : index
    %47 = vector.load %arg1[%c5, %c0_64, %c0_65] : memref<9x4x128xbf16, #tpu.memory_space<vmem>>, vector<1x4x128xbf16>
    %48 = vector.shape_cast %47 : vector<1x4x128xbf16> to vector<4x128xbf16>
    %cst_66 = arith.constant dense<0.000000e+00> : vector<512x128xf32>
    %49 = tpu.matmul %46, %48, %cst_66 {dimension_numbers = #tpu.dot_dimension_numbers<[1], [0], [0], [1], [0, 0, 1, 1], [], []>} : vector<512x4xbf16>, vector<4x128xbf16>, vector<512x128xf32> -> vector<512x128xf32>
    %50 = arith.addf %43, %49 : vector<512x128xf32>
    %c0_67 = arith.constant 0 : index
    %c2_68 = arith.constant 2 : index
    %c0_69 = arith.constant 0 : index
    %c0_70 = arith.constant 0 : index
    %51 = vector.load %arg12[%c0_67, %c2_68, %c0_69, %c0_70] : memref<2x18x18x4xf32, #tpu.memory_space<vmem>>, vector<2x16x16x4xf32>
    %52 = vector.shape_cast %51 : vector<2x16x16x4xf32> to vector<512x4xf32>
    %53 = arith.truncf %52 : vector<512x4xf32> to vector<512x4xbf16>
    %c6 = arith.constant 6 : index
    %c0_71 = arith.constant 0 : index
    %c0_72 = arith.constant 0 : index
    %54 = vector.load %arg1[%c6, %c0_71, %c0_72] : memref<9x4x128xbf16, #tpu.memory_space<vmem>>, vector<1x4x128xbf16>
    %55 = vector.shape_cast %54 : vector<1x4x128xbf16> to vector<4x128xbf16>
    %cst_73 = arith.constant dense<0.000000e+00> : vector<512x128xf32>
    %56 = tpu.matmul %53, %55, %cst_73 {dimension_numbers = #tpu.dot_dimension_numbers<[1], [0], [0], [1], [0, 0, 1, 1], [], []>} : vector<512x4xbf16>, vector<4x128xbf16>, vector<512x128xf32> -> vector<512x128xf32>
    %57 = arith.addf %50, %56 : vector<512x128xf32>
    %c0_74 = arith.constant 0 : index
    %c2_75 = arith.constant 2 : index
    %c1_76 = arith.constant 1 : index
    %c0_77 = arith.constant 0 : index
    %58 = vector.load %arg12[%c0_74, %c2_75, %c1_76, %c0_77] : memref<2x18x18x4xf32, #tpu.memory_space<vmem>>, vector<2x16x16x4xf32>
    %59 = vector.shape_cast %58 : vector<2x16x16x4xf32> to vector<512x4xf32>
    %60 = arith.truncf %59 : vector<512x4xf32> to vector<512x4xbf16>
    %c7 = arith.constant 7 : index
    %c0_78 = arith.constant 0 : index
    %c0_79 = arith.constant 0 : index
    %61 = vector.load %arg1[%c7, %c0_78, %c0_79] : memref<9x4x128xbf16, #tpu.memory_space<vmem>>, vector<1x4x128xbf16>
    %62 = vector.shape_cast %61 : vector<1x4x128xbf16> to vector<4x128xbf16>
    %cst_80 = arith.constant dense<0.000000e+00> : vector<512x128xf32>
    %63 = tpu.matmul %60, %62, %cst_80 {dimension_numbers = #tpu.dot_dimension_numbers<[1], [0], [0], [1], [0, 0, 1, 1], [], []>} : vector<512x4xbf16>, vector<4x128xbf16>, vector<512x128xf32> -> vector<512x128xf32>
    %64 = arith.addf %57, %63 : vector<512x128xf32>
    %c0_81 = arith.constant 0 : index
    %c2_82 = arith.constant 2 : index
    %c2_83 = arith.constant 2 : index
    %c0_84 = arith.constant 0 : index
    %65 = vector.load %arg12[%c0_81, %c2_82, %c2_83, %c0_84] : memref<2x18x18x4xf32, #tpu.memory_space<vmem>>, vector<2x16x16x4xf32>
    %66 = vector.shape_cast %65 : vector<2x16x16x4xf32> to vector<512x4xf32>
    %67 = arith.truncf %66 : vector<512x4xf32> to vector<512x4xbf16>
    %c8 = arith.constant 8 : index
    %c0_85 = arith.constant 0 : index
    %c0_86 = arith.constant 0 : index
    %68 = vector.load %arg1[%c8, %c0_85, %c0_86] : memref<9x4x128xbf16, #tpu.memory_space<vmem>>, vector<1x4x128xbf16>
    %69 = vector.shape_cast %68 : vector<1x4x128xbf16> to vector<4x128xbf16>
    %cst_87 = arith.constant dense<0.000000e+00> : vector<512x128xf32>
    %70 = tpu.matmul %67, %69, %cst_87 {dimension_numbers = #tpu.dot_dimension_numbers<[1], [0], [0], [1], [0, 0, 1, 1], [], []>} : vector<512x4xbf16>, vector<4x128xbf16>, vector<512x128xf32> -> vector<512x128xf32>
    %71 = arith.addf %64, %70 : vector<512x128xf32>
    %cst_88 = arith.constant dense<0.000000e+00> : vector<128xf32>
    %72 = vector.multi_reduction <add>, %71, %cst_88 [0] : vector<512x128xf32> to vector<128xf32>
    %73 = vector.shape_cast %72 : vector<128xf32> to vector<1x128xf32>
    %cst_89 = arith.constant 0.001953125 : f32
    %74 = vector.broadcast %cst_89 : f32 to vector<1x128xf32>
    %75 = arith.mulf %73, %74 : vector<1x128xf32>
    %76 = arith.mulf %71, %71 : vector<512x128xf32>
    %cst_90 = arith.constant dense<0.000000e+00> : vector<128xf32>
    %77 = vector.multi_reduction <add>, %76, %cst_90 [0] : vector<512x128xf32> to vector<128xf32>
    %78 = vector.shape_cast %77 : vector<128xf32> to vector<1x128xf32>
    %cst_91 = arith.constant 0.001953125 : f32
    %79 = vector.broadcast %cst_91 : f32 to vector<1x128xf32>
    %80 = arith.mulf %78, %79 : vector<1x128xf32>
    %81 = arith.mulf %75, %75 : vector<1x128xf32>
    %82 = arith.subf %80, %81 : vector<1x128xf32>
    %cst_92 = arith.constant 0.000000e+00 : f32
    %83 = vector.broadcast %cst_92 : f32 to vector<1x128xf32>
    %84 = arith.maximumf %82, %83 : vector<1x128xf32>
    %85 = vector.broadcast %75 : vector<1x128xf32> to vector<512x128xf32>
    %86 = arith.subf %71, %85 : vector<512x128xf32>
    %cst_93 = arith.constant 9.99999974E-6 : f32
    %87 = vector.broadcast %cst_93 : f32 to vector<1x128xf32>
    %88 = arith.addf %84, %87 : vector<1x128xf32>
    %89 = math.rsqrt %88 : vector<1x128xf32>
    %90 = vector.broadcast %89 : vector<1x128xf32> to vector<512x128xf32>
    %91 = arith.mulf %86, %90 : vector<512x128xf32>
    %c0_94 = arith.constant 0 : index
    %c0_95 = arith.constant 0 : index
    %92 = vector.load %arg4[%c0_94, %c0_95] : memref<1x128xf32, #tpu.memory_space<vmem>>, vector<1x128xf32>
    %93 = vector.broadcast %92 : vector<1x128xf32> to vector<512x128xf32>
    %94 = arith.mulf %91, %93 : vector<512x128xf32>
    %c0_96 = arith.constant 0 : index
    %c0_97 = arith.constant 0 : index
    %95 = vector.load %arg5[%c0_96, %c0_97] : memref<1x128xf32, #tpu.memory_space<vmem>>, vector<1x128xf32>
    %96 = vector.broadcast %95 : vector<1x128xf32> to vector<512x128xf32>
    %97 = arith.addf %94, %96 : vector<512x128xf32>
    %98 = vector.extract_strided_slice %97 {offsets = [0, 0], sizes = [512, 4], strides = [1, 1]} : vector<512x128xf32> to vector<512x4xf32>
    %99 = vector.shape_cast %98 : vector<512x4xf32> to vector<2x16x16x4xf32>
    %c0_98 = arith.constant 0 : index
    %c1_99 = arith.constant 1 : index
    %c1_100 = arith.constant 1 : index
    %c0_101 = arith.constant 0 : index
    %100 = vector.load %arg12[%c0_98, %c1_99, %c1_100, %c0_101] : memref<2x18x18x4xf32, #tpu.memory_space<vmem>>, vector<2x16x16x4xf32>
    tpu.vector_store %arg12[%c0_98, %c1_99, %c1_100, %c0_101], %99 {strides = array<i32>} : memref<2x18x18x4xf32, #tpu.memory_space<vmem>>, vector<2x16x16x4xf32>,
    %cst_102 = arith.constant 0.000000e+00 : f32
    %101 = vector.broadcast %cst_102 : f32 to vector<512x128xf32>
    %c0_103 = arith.constant 0 : index
    %c0_104 = arith.constant 0 : index
    %c0_105 = arith.constant 0 : index
    %c0_106 = arith.constant 0 : index
    %102 = vector.load %arg12[%c0_103, %c0_104, %c0_105, %c0_106] : memref<2x18x18x4xf32, #tpu.memory_space<vmem>>, vector<2x16x16x4xf32>
    %103 = vector.shape_cast %102 : vector<2x16x16x4xf32> to vector<512x4xf32>
    %104 = arith.truncf %103 : vector<512x4xf32> to vector<512x4xbf16>
    %c0_107 = arith.constant 0 : index
    %c0_108 = arith.constant 0 : index
    %c0_109 = arith.constant 0 : index
    %105 = vector.load %arg2[%c0_107, %c0_108, %c0_109] : memref<9x4x128xbf16, #tpu.memory_space<vmem>>, vector<1x4x128xbf16>
    %106 = vector.shape_cast %105 : vector<1x4x128xbf16> to vector<4x128xbf16>
    %cst_110 = arith.constant dense<0.000000e+00> : vector<512x128xf32>
    %107 = tpu.matmul %104, %106, %cst_110 {dimension_numbers = #tpu.dot_dimension_numbers<[1], [0], [0], [1], [0, 0, 1, 1], [], []>} : vector<512x4xbf16>, vector<4x128xbf16>, vector<512x128xf32> -> vector<512x128xf32>
    %108 = arith.addf %101, %107 : vector<512x128xf32>
    %c0_111 = arith.constant 0 : index
    %c0_112 = arith.constant 0 : index
    %c1_113 = arith.constant 1 : index
    %c0_114 = arith.constant 0 : index
    %109 = vector.load %arg12[%c0_111, %c0_112, %c1_113, %c0_114] : memref<2x18x18x4xf32, #tpu.memory_space<vmem>>, vector<2x16x16x4xf32>
    %110 = vector.shape_cast %109 : vector<2x16x16x4xf32> to vector<512x4xf32>
    %111 = arith.truncf %110 : vector<512x4xf32> to vector<512x4xbf16>
    %c1_115 = arith.constant 1 : index
    %c0_116 = arith.constant 0 : index
    %c0_117 = arith.constant 0 : index
    %112 = vector.load %arg2[%c1_115, %c0_116, %c0_117] : memref<9x4x128xbf16, #tpu.memory_space<vmem>>, vector<1x4x128xbf16>
    %113 = vector.shape_cast %112 : vector<1x4x128xbf16> to vector<4x128xbf16>
    %cst_118 = arith.constant dense<0.000000e+00> : vector<512x128xf32>
    %114 = tpu.matmul %111, %113, %cst_118 {dimension_numbers = #tpu.dot_dimension_numbers<[1], [0], [0], [1], [0, 0, 1, 1], [], []>} : vector<512x4xbf16>, vector<4x128xbf16>, vector<512x128xf32> -> vector<512x128xf32>
    %115 = arith.addf %108, %114 : vector<512x128xf32>
    %c0_119 = arith.constant 0 : index
    %c0_120 = arith.constant 0 : index
    %c2_121 = arith.constant 2 : index
    %c0_122 = arith.constant 0 : index
    %116 = vector.load %arg12[%c0_119, %c0_120, %c2_121, %c0_122] : memref<2x18x18x4xf32, #tpu.memory_space<vmem>>, vector<2x16x16x4xf32>
    %117 = vector.shape_cast %116 : vector<2x16x16x4xf32> to vector<512x4xf32>
    %118 = arith.truncf %117 : vector<512x4xf32> to vector<512x4xbf16>
    %c2_123 = arith.constant 2 : index
    %c0_124 = arith.constant 0 : index
    %c0_125 = arith.constant 0 : index
    %119 = vector.load %arg2[%c2_123, %c0_124, %c0_125] : memref<9x4x128xbf16, #tpu.memory_space<vmem>>, vector<1x4x128xbf16>
    %120 = vector.shape_cast %119 : vector<1x4x128xbf16> to vector<4x128xbf16>
    %cst_126 = arith.constant dense<0.000000e+00> : vector<512x128xf32>
    %121 = tpu.matmul %118, %120, %cst_126 {dimension_numbers = #tpu.dot_dimension_numbers<[1], [0], [0], [1], [0, 0, 1, 1], [], []>} : vector<512x4xbf16>, vector<4x128xbf16>, vector<512x128xf32> -> vector<512x128xf32>
    %122 = arith.addf %115, %121 : vector<512x128xf32>
    %c0_127 = arith.constant 0 : index
    %c1_128 = arith.constant 1 : index
    %c0_129 = arith.constant 0 : index
    %c0_130 = arith.constant 0 : index
    %123 = vector.load %arg12[%c0_127, %c1_128, %c0_129, %c0_130] : memref<2x18x18x4xf32, #tpu.memory_space<vmem>>, vector<2x16x16x4xf32>
    %124 = vector.shape_cast %123 : vector<2x16x16x4xf32> to vector<512x4xf32>
    %125 = arith.truncf %124 : vector<512x4xf32> to vector<512x4xbf16>
    %c3_131 = arith.constant 3 : index
    %c0_132 = arith.constant 0 : index
    %c0_133 = arith.constant 0 : index
    %126 = vector.load %arg2[%c3_131, %c0_132, %c0_133] : memref<9x4x128xbf16, #tpu.memory_space<vmem>>, vector<1x4x128xbf16>
    %127 = vector.shape_cast %126 : vector<1x4x128xbf16> to vector<4x128xbf16>
    %cst_134 = arith.constant dense<0.000000e+00> : vector<512x128xf32>
    %128 = tpu.matmul %125, %127, %cst_134 {dimension_numbers = #tpu.dot_dimension_numbers<[1], [0], [0], [1], [0, 0, 1, 1], [], []>} : vector<512x4xbf16>, vector<4x128xbf16>, vector<512x128xf32> -> vector<512x128xf32>
    %129 = arith.addf %122, %128 : vector<512x128xf32>
    %c0_135 = arith.constant 0 : index
    %c1_136 = arith.constant 1 : index
    %c1_137 = arith.constant 1 : index
    %c0_138 = arith.constant 0 : index
    %130 = vector.load %arg12[%c0_135, %c1_136, %c1_137, %c0_138] : memref<2x18x18x4xf32, #tpu.memory_space<vmem>>, vector<2x16x16x4xf32>
    %131 = vector.shape_cast %130 : vector<2x16x16x4xf32> to vector<512x4xf32>
    %132 = arith.truncf %131 : vector<512x4xf32> to vector<512x4xbf16>
    %c4_139 = arith.constant 4 : index
    %c0_140 = arith.constant 0 : index
    %c0_141 = arith.constant 0 : index
    %133 = vector.load %arg2[%c4_139, %c0_140, %c0_141] : memref<9x4x128xbf16, #tpu.memory_space<vmem>>, vector<1x4x128xbf16>
    %134 = vector.shape_cast %133 : vector<1x4x128xbf16> to vector<4x128xbf16>
    %cst_142 = arith.constant dense<0.000000e+00> : vector<512x128xf32>
    %135 = tpu.matmul %132, %134, %cst_142 {dimension_numbers = #tpu.dot_dimension_numbers<[1], [0], [0], [1], [0, 0, 1, 1], [], []>} : vector<512x4xbf16>, vector<4x128xbf16>, vector<512x128xf32> -> vector<512x128xf32>
    %136 = arith.addf %129, %135 : vector<512x128xf32>
    %c0_143 = arith.constant 0 : index
    %c1_144 = arith.constant 1 : index
    %c2_145 = arith.constant 2 : index
    %c0_146 = arith.constant 0 : index
    %137 = vector.load %arg12[%c0_143, %c1_144, %c2_145, %c0_146] : memref<2x18x18x4xf32, #tpu.memory_space<vmem>>, vector<2x16x16x4xf32>
    %138 = vector.shape_cast %137 : vector<2x16x16x4xf32> to vector<512x4xf32>
    %139 = arith.truncf %138 : vector<512x4xf32> to vector<512x4xbf16>
    %c5_147 = arith.constant 5 : index
    %c0_148 = arith.constant 0 : index
    %c0_149 = arith.constant 0 : index
    %140 = vector.load %arg2[%c5_147, %c0_148, %c0_149] : memref<9x4x128xbf16, #tpu.memory_space<vmem>>, vector<1x4x128xbf16>
    %141 = vector.shape_cast %140 : vector<1x4x128xbf16> to vector<4x128xbf16>
    %cst_150 = arith.constant dense<0.000000e+00> : vector<512x128xf32>
    %142 = tpu.matmul %139, %141, %cst_150 {dimension_numbers = #tpu.dot_dimension_numbers<[1], [0], [0], [1], [0, 0, 1, 1], [], []>} : vector<512x4xbf16>, vector<4x128xbf16>, vector<512x128xf32> -> vector<512x128xf32>
    %143 = arith.addf %136, %142 : vector<512x128xf32>
    %c0_151 = arith.constant 0 : index
    %c2_152 = arith.constant 2 : index
    %c0_153 = arith.constant 0 : index
    %c0_154 = arith.constant 0 : index
    %144 = vector.load %arg12[%c0_151, %c2_152, %c0_153, %c0_154] : memref<2x18x18x4xf32, #tpu.memory_space<vmem>>, vector<2x16x16x4xf32>
    %145 = vector.shape_cast %144 : vector<2x16x16x4xf32> to vector<512x4xf32>
    %146 = arith.truncf %145 : vector<512x4xf32> to vector<512x4xbf16>
    %c6_155 = arith.constant 6 : index
    %c0_156 = arith.constant 0 : index
    %c0_157 = arith.constant 0 : index
    %147 = vector.load %arg2[%c6_155, %c0_156, %c0_157] : memref<9x4x128xbf16, #tpu.memory_space<vmem>>, vector<1x4x128xbf16>
    %148 = vector.shape_cast %147 : vector<1x4x128xbf16> to vector<4x128xbf16>
    %cst_158 = arith.constant dense<0.000000e+00> : vector<512x128xf32>
    %149 = tpu.matmul %146, %148, %cst_158 {dimension_numbers = #tpu.dot_dimension_numbers<[1], [0], [0], [1], [0, 0, 1, 1], [], []>} : vector<512x4xbf16>, vector<4x128xbf16>, vector<512x128xf32> -> vector<512x128xf32>
    %150 = arith.addf %143, %149 : vector<512x128xf32>
    %c0_159 = arith.constant 0 : index
    %c2_160 = arith.constant 2 : index
    %c1_161 = arith.constant 1 : index
    %c0_162 = arith.constant 0 : index
    %151 = vector.load %arg12[%c0_159, %c2_160, %c1_161, %c0_162] : memref<2x18x18x4xf32, #tpu.memory_space<vmem>>, vector<2x16x16x4xf32>
    %152 = vector.shape_cast %151 : vector<2x16x16x4xf32> to vector<512x4xf32>
    %153 = arith.truncf %152 : vector<512x4xf32> to vector<512x4xbf16>
    %c7_163 = arith.constant 7 : index
    %c0_164 = arith.constant 0 : index
    %c0_165 = arith.constant 0 : index
    %154 = vector.load %arg2[%c7_163, %c0_164, %c0_165] : memref<9x4x128xbf16, #tpu.memory_space<vmem>>, vector<1x4x128xbf16>
    %155 = vector.shape_cast %154 : vector<1x4x128xbf16> to vector<4x128xbf16>
    %cst_166 = arith.constant dense<0.000000e+00> : vector<512x128xf32>
    %156 = tpu.matmul %153, %155, %cst_166 {dimension_numbers = #tpu.dot_dimension_numbers<[1], [0], [0], [1], [0, 0, 1, 1], [], []>} : vector<512x4xbf16>, vector<4x128xbf16>, vector<512x128xf32> -> vector<512x128xf32>
    %157 = arith.addf %150, %156 : vector<512x128xf32>
    %c0_167 = arith.constant 0 : index
    %c2_168 = arith.constant 2 : index
    %c2_169 = arith.constant 2 : index
    %c0_170 = arith.constant 0 : index
    %158 = vector.load %arg12[%c0_167, %c2_168, %c2_169, %c0_170] : memref<2x18x18x4xf32, #tpu.memory_space<vmem>>, vector<2x16x16x4xf32>
    %159 = vector.shape_cast %158 : vector<2x16x16x4xf32> to vector<512x4xf32>
    %160 = arith.truncf %159 : vector<512x4xf32> to vector<512x4xbf16>
    %c8_171 = arith.constant 8 : index
    %c0_172 = arith.constant 0 : index
    %c0_173 = arith.constant 0 : index
    %161 = vector.load %arg2[%c8_171, %c0_172, %c0_173] : memref<9x4x128xbf16, #tpu.memory_space<vmem>>, vector<1x4x128xbf16>
    %162 = vector.shape_cast %161 : vector<1x4x128xbf16> to vector<4x128xbf16>
    %cst_174 = arith.constant dense<0.000000e+00> : vector<512x128xf32>
    %163 = tpu.matmul %160, %162, %cst_174 {dimension_numbers = #tpu.dot_dimension_numbers<[1], [0], [0], [1], [0, 0, 1, 1], [], []>} : vector<512x4xbf16>, vector<4x128xbf16>, vector<512x128xf32> -> vector<512x128xf32>
    %164 = arith.addf %157, %163 : vector<512x128xf32>
    %cst_175 = arith.constant dense<0.000000e+00> : vector<128xf32>
    %165 = vector.multi_reduction <add>, %164, %cst_175 [0] : vector<512x128xf32> to vector<128xf32>
    %166 = vector.shape_cast %165 : vector<128xf32> to vector<1x128xf32>
    %cst_176 = arith.constant 0.001953125 : f32
    %167 = vector.broadcast %cst_176 : f32 to vector<1x128xf32>
    %168 = arith.mulf %166, %167 : vector<1x128xf32>
    %169 = arith.mulf %164, %164 : vector<512x128xf32>
    %cst_177 = arith.constant dense<0.000000e+00> : vector<128xf32>
    %170 = vector.multi_reduction <add>, %169, %cst_177 [0] : vector<512x128xf32> to vector<128xf32>
    %171 = vector.shape_cast %170 : vector<128xf32> to vector<1x128xf32>
    %cst_178 = arith.constant 0.001953125 : f32
    %172 = vector.broadcast %cst_178 : f32 to vector<1x128xf32>
    %173 = arith.mulf %171, %172 : vector<1x128xf32>
    %174 = arith.mulf %168, %168 : vector<1x128xf32>
    %175 = arith.subf %173, %174 : vector<1x128xf32>
    %cst_179 = arith.constant 0.000000e+00 : f32
    %176 = vector.broadcast %cst_179 : f32 to vector<1x128xf32>
    %177 = arith.maximumf %175, %176 : vector<1x128xf32>
    %178 = vector.broadcast %168 : vector<1x128xf32> to vector<512x128xf32>
    %179 = arith.subf %164, %178 : vector<512x128xf32>
    %cst_180 = arith.constant 9.99999974E-6 : f32
    %180 = vector.broadcast %cst_180 : f32 to vector<1x128xf32>
    %181 = arith.addf %177, %180 : vector<1x128xf32>
    %182 = math.rsqrt %181 : vector<1x128xf32>
    %183 = vector.broadcast %182 : vector<1x128xf32> to vector<512x128xf32>
    %184 = arith.mulf %179, %183 : vector<512x128xf32>
    %c0_181 = arith.constant 0 : index
    %c0_182 = arith.constant 0 : index
    %185 = vector.load %arg6[%c0_181, %c0_182] : memref<1x128xf32, #tpu.memory_space<vmem>>, vector<1x128xf32>
    %186 = vector.broadcast %185 : vector<1x128xf32> to vector<512x128xf32>
    %187 = arith.mulf %184, %186 : vector<512x128xf32>
    %c0_183 = arith.constant 0 : index
    %c0_184 = arith.constant 0 : index
    %188 = vector.load %arg7[%c0_183, %c0_184] : memref<1x128xf32, #tpu.memory_space<vmem>>, vector<1x128xf32>
    %189 = vector.broadcast %188 : vector<1x128xf32> to vector<512x128xf32>
    %190 = arith.addf %187, %189 : vector<512x128xf32>
    %c0_185 = arith.constant 0 : index
    %c0_186 = arith.constant 0 : index
    %c0_187 = arith.constant 0 : index
    %c0_188 = arith.constant 0 : index
    %191 = vector.load %arg0[%c0_185, %c0_186, %c0_187, %c0_188] : memref<2x16x16x4xf32, #tpu.memory_space<vmem>>, vector<2x16x16x4xf32>
    %192 = vector.shape_cast %191 : vector<2x16x16x4xf32> to vector<512x4xf32>
    %193 = vector.extract_strided_slice %190 {offsets = [0, 0], sizes = [512, 4], strides = [1, 1]} : vector<512x128xf32> to vector<512x4xf32>
    %194 = arith.addf %193, %192 : vector<512x4xf32>
    %195 = arith.mulf %193, %192 : vector<512x4xf32>
    %196 = arith.truncf %195 : vector<512x4xf32> to vector<512x4xbf16>
    %c0_189 = arith.constant 0 : index
    %c0_190 = arith.constant 0 : index
    %197 = vector.load %arg3[%c0_189, %c0_190] : memref<4x128xbf16, #tpu.memory_space<vmem>>, vector<4x128xbf16>
    %cst_191 = arith.constant dense<0.000000e+00> : vector<512x128xf32>
    %198 = tpu.matmul %196, %197, %cst_191 {dimension_numbers = #tpu.dot_dimension_numbers<[1], [0], [0], [1], [0, 0, 1, 1], [], []>} : vector<512x4xbf16>, vector<4x128xbf16>, vector<512x128xf32> -> vector<512x128xf32>
    %cst_192 = arith.constant dense<0.000000e+00> : vector<128xf32>
    %199 = vector.multi_reduction <add>, %198, %cst_192 [0] : vector<512x128xf32> to vector<128xf32>
    %200 = vector.shape_cast %199 : vector<128xf32> to vector<1x128xf32>
    %cst_193 = arith.constant 0.001953125 : f32
    %201 = vector.broadcast %cst_193 : f32 to vector<1x128xf32>
    %202 = arith.mulf %200, %201 : vector<1x128xf32>
    %203 = arith.mulf %198, %198 : vector<512x128xf32>
    %cst_194 = arith.constant dense<0.000000e+00> : vector<128xf32>
    %204 = vector.multi_reduction <add>, %203, %cst_194 [0] : vector<512x128xf32> to vector<128xf32>
    %205 = vector.shape_cast %204 : vector<128xf32> to vector<1x128xf32>
    %cst_195 = arith.constant 0.001953125 : f32
    %206 = vector.broadcast %cst_195 : f32 to vector<1x128xf32>
    %207 = arith.mulf %205, %206 : vector<1x128xf32>
    %208 = arith.mulf %202, %202 : vector<1x128xf32>
    %209 = arith.subf %207, %208 : vector<1x128xf32>
    %cst_196 = arith.constant 0.000000e+00 : f32
    %210 = vector.broadcast %cst_196 : f32 to vector<1x128xf32>
    %211 = arith.maximumf %209, %210 : vector<1x128xf32>
    %212 = vector.broadcast %202 : vector<1x128xf32> to vector<512x128xf32>
    %213 = arith.subf %198, %212 : vector<512x128xf32>
    %cst_197 = arith.constant 9.99999974E-6 : f32
    %214 = vector.broadcast %cst_197 : f32 to vector<1x128xf32>
    %215 = arith.addf %211, %214 : vector<1x128xf32>
    %216 = math.rsqrt %215 : vector<1x128xf32>
    %217 = vector.broadcast %216 : vector<1x128xf32> to vector<512x128xf32>
    %218 = arith.mulf %213, %217 : vector<512x128xf32>
    %c0_198 = arith.constant 0 : index
    %c0_199 = arith.constant 0 : index
    %219 = vector.load %arg8[%c0_198, %c0_199] : memref<1x128xf32, #tpu.memory_space<vmem>>, vector<1x128xf32>
    %220 = vector.broadcast %219 : vector<1x128xf32> to vector<512x128xf32>
    %221 = arith.mulf %218, %220 : vector<512x128xf32>
    %c0_200 = arith.constant 0 : index
    %c0_201 = arith.constant 0 : index
    %222 = vector.load %arg9[%c0_200, %c0_201] : memref<1x128xf32, #tpu.memory_space<vmem>>, vector<1x128xf32>
    %223 = vector.broadcast %222 : vector<1x128xf32> to vector<512x128xf32>
    %224 = arith.addf %221, %223 : vector<512x128xf32>
    %c0_202 = arith.constant 0 : index
    %c0_203 = arith.constant 0 : index
    %225 = memref.load %arg10[%c0_202, %c0_203] : memref<1x1xf32, #tpu.memory_space<smem>>
    %226 = vector.extract_strided_slice %224 {offsets = [0, 0], sizes = [512, 4], strides = [1, 1]} : vector<512x128xf32> to vector<512x4xf32>
    %227 = vector.broadcast %225 : f32 to vector<512x4xf32>
    %228 = arith.mulf %227, %226 : vector<512x4xf32>
    %229 = arith.addf %194, %228 : vector<512x4xf32>
    %230 = vector.shape_cast %229 : vector<512x4xf32> to vector<2x16x16x4xf32>
    %c0_204 = arith.constant 0 : index
    %c0_205 = arith.constant 0 : index
    %c0_206 = arith.constant 0 : index
    %c0_207 = arith.constant 0 : index
    %231 = vector.load %arg11[%c0_204, %c0_205, %c0_206, %c0_207] : memref<2x16x16x4xf32, #tpu.memory_space<vmem>>, vector<2x16x16x4xf32>
    tpu.vector_store %arg11[%c0_204, %c0_205, %c0_206, %c0_207], %230 {strides = array<i32>} : memref<2x16x16x4xf32, #tpu.memory_space<vmem>>, vector<2x16x16x4xf32>,
    return
  }
}

</mosaic_0001>

<llo_original>
// kernel: tpu_custom_call.1
$region0: #{tpu_custom_call.1}
  #allocation0 [shape = 'u32[]', space=smem, size = 0x4, offset = 0x4, fixed_abs, tag = 'smem constant byte address 0x4 - core index']
  #allocation1 [shape = 'u32[144,128]{1,0:T(1,128)}', space=vmem, size = 0x12000, scoped, tag = 'internal scratch']
  #allocation2 [shape = 'f32[2,18,18,4]{3,2,1,0:T(8,128)}', space=vmem, size = 0x6c000, scoped, tag = 'scratch operand']
  #allocation3 [shape = 'f32[1,1]{1,0:T(1,128)S(6)}', space=smem, size = 0x200, scoped, tag = 'scoped memory for tpu_custom_call.1']
  %s0 = inlined_call_operand.vmem [shape: f32[2,16,16,4], index: 0, kind: input, shape index: {}]
  %s1 = inlined_call_operand.vmem [shape: bf16[9,4,128], index: 1, kind: input, shape index: {}]
  %s2 = inlined_call_operand.vmem [shape: bf16[9,4,128], index: 2, kind: input, shape index: {}]
  %s3 = inlined_call_operand.vmem [shape: bf16[4,128], index: 3, kind: input, shape index: {}]
  %s4 = inlined_call_operand.vmem [shape: f32[1,128], index: 4, kind: input, shape index: {}]
  %s5 = inlined_call_operand.vmem [shape: f32[1,128], index: 5, kind: input, shape index: {}]
  %s6 = inlined_call_operand.vmem [shape: f32[1,128], index: 6, kind: input, shape index: {}]
  %s7 = inlined_call_operand.vmem [shape: f32[1,128], index: 7, kind: input, shape index: {}]
  %s8 = inlined_call_operand.vmem [shape: f32[1,128], index: 8, kind: input, shape index: {}]
  %s9 = inlined_call_operand.vmem [shape: f32[1,128], index: 9, kind: input, shape index: {}]
  %s10 = inlined_call_operand.<no memory space> [shape: f32[1,1], index: 10, kind: input, shape index: {}]
  %s11 = inlined_call_operand.vmem [shape: f32[2,16,16,4], index: 11, kind: output, shape index: {}]
  %s12 = sld [smem:[#allocation0]]
  $region54: #{tpu_custom_call.1} parent=0
    _
  %s14 = ssub.s32 1, %s12
  %s15 = scalar_select 0, %s14, %s12
  %16 = sst [smem:[#allocation3]] %s10
  // Predicated region
  $region2: #{tpu_custom_call.1} parent=0 // pred_check
    _
  $region3: #{tpu_custom_call.1} parent=0 // pred_check_branch
    %18 = sbr.rel (0) target = $region5
  $region4: #{tpu_custom_call.1} parent=0 // pred_region
    _
  $region5: #{tpu_custom_call.1} parent=0 // pred_fallthru
    _
  // Predicated region
  $region6: #{tpu_custom_call.1} parent=0 // pred_check
    _
  $region7: #{tpu_custom_call.1} parent=0 // pred_check_branch
    %20 = sbr.rel (0) target = $region9
  $region8: #{tpu_custom_call.1} parent=0 // pred_region
    _
  $region9: #{tpu_custom_call.1} parent=0 // pred_fallthru
    _
  // Predicated region
  $region10: #{tpu_custom_call.1} parent=0 // pred_check
    _
  $region11: #{tpu_custom_call.1} parent=0 // pred_check_branch
    %22 = sbr.rel (0) target = $region13
  $region12: #{tpu_custom_call.1} parent=0 // pred_region
    _
  $region13: #{tpu_custom_call.1} parent=0 // pred_fallthru
    _
  // Predicated region
  $region14: #{tpu_custom_call.1} parent=0 // pred_check
    _
  $region15: #{tpu_custom_call.1} parent=0 // pred_check_branch
    %24 = sbr.rel (0) target = $region17
  $region16: #{tpu_custom_call.1} parent=0 // pred_region
    _
  $region17: #{tpu_custom_call.1} parent=0 // pred_fallthru
    _
  // Predicated region
  $region18: #{tpu_custom_call.1} parent=0 // pred_check
    _
  $region19: #{tpu_custom_call.1} parent=0 // pred_check_branch
    %26 = sbr.rel (0) target = $region21
  $region20: #{tpu_custom_call.1} parent=0 // pred_region
    _
  $region21: #{tpu_custom_call.1} parent=0 // pred_fallthru
    _
  // Predicated region
  $region22: #{tpu_custom_call.1} parent=0 // pred_check
    _
  $region23: #{tpu_custom_call.1} parent=0 // pred_check_branch
    %28 = sbr.rel (0) target = $region25
  $region24: #{tpu_custom_call.1} parent=0 // pred_region
    _
  $region25: #{tpu_custom_call.1} parent=0 // pred_fallthru
    _
  // Predicated region
  $region26: #{tpu_custom_call.1} parent=0 // pred_check
    _
  $region27: #{tpu_custom_call.1} parent=0 // pred_check_branch
    %30 = sbr.rel (0) target = $region29
  $region28: #{tpu_custom_call.1} parent=0 // pred_region
    _
  $region29: #{tpu_custom_call.1} parent=0 // pred_fallthru
    _
  // Predicated region
  $region30: #{tpu_custom_call.1} parent=0 // pred_check
    _
  $region31: #{tpu_custom_call.1} parent=0 // pred_check_branch
    %32 = sbr.rel (0) target = $region33
  $region32: #{tpu_custom_call.1} parent=0 // pred_region
    _
  $region33: #{tpu_custom_call.1} parent=0 // pred_fallthru
    _
  // Predicated region
  $region34: #{tpu_custom_call.1} parent=0 // pred_check
    _
  $region35: #{tpu_custom_call.1} parent=0 // pred_check_branch
    %34 = sbr.rel (0) target = $region37
  $region36: #{tpu_custom_call.1} parent=0 // pred_region
    _
  $region37: #{tpu_custom_call.1} parent=0 // pred_fallthru
    _
  // Predicated region
  $region38: #{tpu_custom_call.1} parent=0 // pred_check
    _
  $region39: #{tpu_custom_call.1} parent=0 // pred_check_branch
    %36 = sbr.rel (0) target = $region41
  $region40: #{tpu_custom_call.1} parent=0 // pred_region
    _
  $region41: #{tpu_custom_call.1} parent=0 // pred_fallthru
    _
  // Predicated region
  $region42: #{tpu_custom_call.1} parent=0 // pred_check
    _
  $region43: #{tpu_custom_call.1} parent=0 // pred_check_branch
    %38 = sbr.rel (0) target = $region45
  $region44: #{tpu_custom_call.1} parent=0 // pred_region
    _
  $region45: #{tpu_custom_call.1} parent=0 // pred_fallthru
    _
  %vm40 = vcmask 31744
  %41 = vst.msk [vmem:[#allocation2] sm:$0xff] %vm40, 0.0
  %42 = vst.msk [vmem:[#allocation2 + $0x8] sm:$0xff] %vm40, 0.0
  %vm43 = vcmask 25600
  %44 = vst.msk [vmem:[#allocation2 + $0x10] sm:$0x3] %vm43, 0.0
  %45 = vst.msk [vmem:[#allocation2 + $0x1b0] sm:$0xff] %vm40, 0.0
  %46 = vst.msk [vmem:[#allocation2 + $0x1b8] sm:$0xff] %vm40, 0.0
  %47 = vst.msk [vmem:[#allocation2 + $0x1c0] sm:$0x3] %vm43, 0.0
  %s48 = scalar_lea.vmem [#allocation2], 408
  %49 = vst.msk [vmem:[%s48] sm:$0xff] %vm40, 0.0
  %50 = vst.msk [vmem:[%s48 + $0x8] sm:$0xff] %vm40, 0.0
  %51 = vst.msk [vmem:[%s48 + $0x10] sm:$0x3] %vm43, 0.0
  %52 = vst.msk [vmem:[%s48 + $0x1b0] sm:$0xff] %vm40, 0.0
  %53 = vst.msk [vmem:[%s48 + $0x1b8] sm:$0xff] %vm40, 0.0
  %54 = vst.msk [vmem:[%s48 + $0x1c0] sm:$0x3] %vm43, 0.0
  %vm55 = vcmask 24576
  %56 = vst.msk [vmem:[#allocation2] sm:$0x1] %vm55, 0.0
  %57 = vst.msk [vmem:[#allocation2 + $0x18] sm:$0x1] %vm55, 0.0
  %58 = vst.msk [vmem:[#allocation2 + $0x30] sm:$0x1] %vm55, 0.0
  %59 = vst.msk [vmem:[#allocation2 + $0x48] sm:$0x1] %vm55, 0.0
  %60 = vst.msk [vmem:[#allocation2 + $0x60] sm:$0x1] %vm55, 0.0
  %61 = vst.msk [vmem:[#allocation2 + $0x78] sm:$0x1] %vm55, 0.0
  %62 = vst.msk [vmem:[#allocation2 + $0x90] sm:$0x1] %vm55, 0.0
  %63 = vst.msk [vmem:[#allocation2 + $0xa8] sm:$0x1] %vm55, 0.0
  %64 = vst.msk [vmem:[#allocation2 + $0xc0] sm:$0x1] %vm55, 0.0
  %65 = vst.msk [vmem:[#allocation2 + $0xd8] sm:$0x1] %vm55, 0.0
  %66 = vst.msk [vmem:[#allocation2 + $0xf0] sm:$0x1] %vm55, 0.0
  %67 = vst.msk [vmem:[#allocation2 + $0x108] sm:$0x1] %vm55, 0.0
  %68 = vst.msk [vmem:[#allocation2 + $0x120] sm:$0x1] %vm55, 0.0
  %69 = vst.msk [vmem:[#allocation2 + $0x138] sm:$0x1] %vm55, 0.0
  %70 = vst.msk [vmem:[#allocation2 + $0x150] sm:$0x1] %vm55, 0.0
  %71 = vst.msk [vmem:[#allocation2 + $0x168] sm:$0x1] %vm55, 0.0
  %72 = vst.msk [vmem:[#allocation2 + $0x180] sm:$0x1] %vm55, 0.0
  %73 = vst.msk [vmem:[#allocation2 + $0x198] sm:$0x1] %vm55, 0.0
  %74 = vst.msk [vmem:[#allocation2 + $0x1b0] sm:$0x1] %vm55, 0.0
  %75 = vst.msk [vmem:[#allocation2 + $0x1c8] sm:$0x1] %vm55, 0.0
  %76 = vst.msk [vmem:[#allocation2 + $0x1e0] sm:$0x1] %vm55, 0.0
  %77 = vst.msk [vmem:[#allocation2 + $0x1f8] sm:$0x1] %vm55, 0.0
  %78 = vst.msk [vmem:[#allocation2 + $0x210] sm:$0x1] %vm55, 0.0
  %79 = vst.msk [vmem:[#allocation2 + $0x228] sm:$0x1] %vm55, 0.0
  %80 = vst.msk [vmem:[#allocation2 + $0x240] sm:$0x1] %vm55, 0.0
  %81 = vst.msk [vmem:[#allocation2 + $0x258] sm:$0x1] %vm55, 0.0
  %82 = vst.msk [vmem:[#allocation2 + $0x270] sm:$0x1] %vm55, 0.0
  %83 = vst.msk [vmem:[#allocation2 + $0x288] sm:$0x1] %vm55, 0.0
  %84 = vst.msk [vmem:[#allocation2 + $0x2a0] sm:$0x1] %vm55, 0.0
  %85 = vst.msk [vmem:[#allocation2 + $0x2b8] sm:$0x1] %vm55, 0.0
  %86 = vst.msk [vmem:[#allocation2 + $0x2d0] sm:$0x1] %vm55, 0.0
  %87 = vst.msk [vmem:[#allocation2 + $0x2e8] sm:$0x1] %vm55, 0.0
  %88 = vst.msk [vmem:[#allocation2 + $0x300] sm:$0x1] %vm55, 0.0
  %89 = vst.msk [vmem:[#allocation2 + $0x318] sm:$0x1] %vm55, 0.0
  %90 = vst.msk [vmem:[#allocation2 + $0x330] sm:$0x1] %vm55, 0.0
  %91 = vst.msk [vmem:[#allocation2 + $0x348] sm:$0x1] %vm55, 0.0
  %92 = vst.msk [vmem:[#allocation2 + $0x11] sm:$0x1] %vm55, 0.0
  %93 = vst.msk [vmem:[#allocation2 + $0x29] sm:$0x1] %vm55, 0.0
  %94 = vst.msk [vmem:[#allocation2 + $0x41] sm:$0x1] %vm55, 0.0
  %95 = vst.msk [vmem:[#allocation2 + $0x59] sm:$0x1] %vm55, 0.0
  %96 = vst.msk [vmem:[#allocation2 + $0x71] sm:$0x1] %vm55, 0.0
  %97 = vst.msk [vmem:[#allocation2 + $0x89] sm:$0x1] %vm55, 0.0
  %98 = vst.msk [vmem:[#allocation2 + $0xa1] sm:$0x1] %vm55, 0.0
  %99 = vst.msk [vmem:[#allocation2 + $0xb9] sm:$0x1] %vm55, 0.0
  %100 = vst.msk [vmem:[#allocation2 + $0xd1] sm:$0x1] %vm55, 0.0
  %101 = vst.msk [vmem:[#allocation2 + $0xe9] sm:$0x1] %vm55, 0.0
  %102 = vst.msk [vmem:[#allocation2 + $0x101] sm:$0x1] %vm55, 0.0
  %103 = vst.msk [vmem:[#allocation2 + $0x119] sm:$0x1] %vm55, 0.0
  %104 = vst.msk [vmem:[#allocation2 + $0x131] sm:$0x1] %vm55, 0.0
  %105 = vst.msk [vmem:[#allocation2 + $0x149] sm:$0x1] %vm55, 0.0
  %106 = vst.msk [vmem:[#allocation2 + $0x161] sm:$0x1] %vm55, 0.0
  %107 = vst.msk [vmem:[#allocation2 + $0x179] sm:$0x1] %vm55, 0.0
  %108 = vst.msk [vmem:[#allocation2 + $0x191] sm:$0x1] %vm55, 0.0
  %109 = vst.msk [vmem:[#allocation2 + $0x1a9] sm:$0x1] %vm55, 0.0
  %110 = vst.msk [vmem:[#allocation2 + $0x1c1] sm:$0x1] %vm55, 0.0
  %111 = vst.msk [vmem:[#allocation2 + $0x1d9] sm:$0x1] %vm55, 0.0
  %112 = vst.msk [vmem:[#allocation2 + $0x1f1] sm:$0x1] %vm55, 0.0
  %113 = vst.msk [vmem:[#allocation2 + $0x209] sm:$0x1] %vm55, 0.0
  %114 = vst.msk [vmem:[#allocation2 + $0x221] sm:$0x1] %vm55, 0.0
  %115 = vst.msk [vmem:[#allocation2 + $0x239] sm:$0x1] %vm55, 0.0
  %116 = vst.msk [vmem:[#allocation2 + $0x251] sm:$0x1] %vm55, 0.0
  %117 = vst.msk [vmem:[#allocation2 + $0x269] sm:$0x1] %vm55, 0.0
  %118 = vst.msk [vmem:[#allocation2 + $0x281] sm:$0x1] %vm55, 0.0
  %119 = vst.msk [vmem:[#allocation2 + $0x299] sm:$0x1] %vm55, 0.0
  %120 = vst.msk [vmem:[#allocation2 + $0x2b1] sm:$0x1] %vm55, 0.0
  %121 = vst.msk [vmem:[#allocation2 + $0x2c9] sm:$0x1] %vm55, 0.0
  %122 = vst.msk [vmem:[#allocation2 + $0x2e1] sm:$0x1] %vm55, 0.0
  %123 = vst.msk [vmem:[#allocation2 + $0x2f9] sm:$0x1] %vm55, 0.0
  %124 = vst.msk [vmem:[#allocation2 + $0x311] sm:$0x1] %vm55, 0.0
  %125 = vst.msk [vmem:[#allocation2 + $0x329] sm:$0x1] %vm55, 0.0
  %126 = vst.msk [vmem:[#allocation2 + $0x341] sm:$0x1] %vm55, 0.0
  %127 = vst.msk [vmem:[#allocation2 + $0x359] sm:$0x1] %vm55, 0.0
  %v128 = vld [vmem:[%s0] sm:$0xff]
  %v129 = vld [vmem:[%s0 + $0x8] sm:$0xff]
  %v130 = vld [vmem:[%s0 + $0x10] sm:$0xff]
  %v131 = vld [vmem:[%s0 + $0x18] sm:$0xff]
  %v132 = vld [vmem:[%s0 + $0x20] sm:$0xff]
  %v133 = vld [vmem:[%s0 + $0x28] sm:$0xff]
  %v134 = vld [vmem:[%s0 + $0x30] sm:$0xff]
  %v135 = vld [vmem:[%s0 + $0x38] sm:$0xff]
  %v136 = vld [vmem:[%s0 + $0x40] sm:$0xff]
  %v137 = vld [vmem:[%s0 + $0x48] sm:$0xff]
  %v138 = vld [vmem:[%s0 + $0x50] sm:$0xff]
  %v139 = vld [vmem:[%s0 + $0x58] sm:$0xff]
  %v140 = vld [vmem:[%s0 + $0x60] sm:$0xff]
  %v141 = vld [vmem:[%s0 + $0x68] sm:$0xff]
  %v142 = vld [vmem:[%s0 + $0x70] sm:$0xff]
  %v143 = vld [vmem:[%s0 + $0x78] sm:$0xff]
  %v144 = vld [vmem:[%s0 + $0x80] sm:$0xff]
  %v145 = vld [vmem:[%s0 + $0x88] sm:$0xff]
  %v146 = vld [vmem:[%s0 + $0x90] sm:$0xff]
  %v147 = vld [vmem:[%s0 + $0x98] sm:$0xff]
  %v148 = vld [vmem:[%s0 + $0xa0] sm:$0xff]
  %v149 = vld [vmem:[%s0 + $0xa8] sm:$0xff]
  %v150 = vld [vmem:[%s0 + $0xb0] sm:$0xff]
  %v151 = vld [vmem:[%s0 + $0xb8] sm:$0xff]
  %v152 = vld [vmem:[%s0 + $0xc0] sm:$0xff]
  %v153 = vld [vmem:[%s0 + $0xc8] sm:$0xff]
  %v154 = vld [vmem:[%s0 + $0xd0] sm:$0xff]
  %v155 = vld [vmem:[%s0 + $0xd8] sm:$0xff]
  %v156 = vld [vmem:[%s0 + $0xe0] sm:$0xff]
  %v157 = vld [vmem:[%s0 + $0xe8] sm:$0xff]
  %v158 = vld [vmem:[%s0 + $0xf0] sm:$0xff]
  %v159 = vld [vmem:[%s0 + $0xf8] sm:$0xff]
  %v160 = vld [vmem:[%s0 + $0x100] sm:$0xff]
  %v161 = vld [vmem:[%s0 + $0x108] sm:$0xff]
  %v162 = vld [vmem:[%s0 + $0x110] sm:$0xff]
  %v163 = vld [vmem:[%s0 + $0x118] sm:$0xff]
  %v164 = vld [vmem:[%s0 + $0x120] sm:$0xff]
  %v165 = vld [vmem:[%s0 + $0x128] sm:$0xff]
  %v166 = vld [vmem:[%s0 + $0x130] sm:$0xff]
  %v167 = vld [vmem:[%s0 + $0x138] sm:$0xff]
  %v168 = vld [vmem:[%s0 + $0x140] sm:$0xff]
  %v169 = vld [vmem:[%s0 + $0x148] sm:$0xff]
  %v170 = vld [vmem:[%s0 + $0x150] sm:$0xff]
  %v171 = vld [vmem:[%s0 + $0x158] sm:$0xff]
  %v172 = vld [vmem:[%s0 + $0x160] sm:$0xff]
  %v173 = vld [vmem:[%s0 + $0x168] sm:$0xff]
  %v174 = vld [vmem:[%s0 + $0x170] sm:$0xff]
  %v175 = vld [vmem:[%s0 + $0x178] sm:$0xff]
  %v176 = vld [vmem:[%s0 + $0x180] sm:$0xff]
  %v177 = vld [vmem:[%s0 + $0x188] sm:$0xff]
  %v178 = vld [vmem:[%s0 + $0x190] sm:$0xff]
  %v179 = vld [vmem:[%s0 + $0x198] sm:$0xff]
  %v180 = vld [vmem:[%s0 + $0x1a0] sm:$0xff]
  %v181 = vld [vmem:[%s0 + $0x1a8] sm:$0xff]
  %v182 = vld [vmem:[%s0 + $0x1b0] sm:$0xff]
  %v183 = vld [vmem:[%s0 + $0x1b8] sm:$0xff]
  %v184 = vld [vmem:[%s0 + $0x1c0] sm:$0xff]
  %v185 = vld [vmem:[%s0 + $0x1c8] sm:$0xff]
  %v186 = vld [vmem:[%s0 + $0x1d0] sm:$0xff]
  %v187 = vld [vmem:[%s0 + $0x1d8] sm:$0xff]
  %v188 = vld [vmem:[%s0 + $0x1e0] sm:$0xff]
  %v189 = vld [vmem:[%s0 + $0x1e8] sm:$0xff]
  %v190 = vld [vmem:[%s0 + $0x1f0] sm:$0xff]
  %v191 = vld [vmem:[%s0 + $0x1f8] sm:$0xff]
  %s192 = scalar_lea.vmem [#allocation2], 24
  %193 = vst.msk [vmem:[%s192 + $0x1] sm:$0xff] %vm40, %v128
  %194 = vst.msk [vmem:[%s192 + $0x9] sm:$0xff] %vm40, %v129
  %195 = vst.msk [vmem:[%s192 + $0x19] sm:$0xff] %vm40, %v130
  %196 = vst.msk [vmem:[%s192 + $0x21] sm:$0xff] %vm40, %v131
  %197 = vst.msk [vmem:[%s192 + $0x31] sm:$0xff] %vm40, %v132
  %198 = vst.msk [vmem:[%s192 + $0x39] sm:$0xff] %vm40, %v133
  %199 = vst.msk [vmem:[%s192 + $0x49] sm:$0xff] %vm40, %v134
  %200 = vst.msk [vmem:[%s192 + $0x51] sm:$0xff] %vm40, %v135
  %201 = vst.msk [vmem:[%s192 + $0x61] sm:$0xff] %vm40, %v136
  %202 = vst.msk [vmem:[%s192 + $0x69] sm:$0xff] %vm40, %v137
  %203 = vst.msk [vmem:[%s192 + $0x79] sm:$0xff] %vm40, %v138
  %204 = vst.msk [vmem:[%s192 + $0x81] sm:$0xff] %vm40, %v139
  %205 = vst.msk [vmem:[%s192 + $0x91] sm:$0xff] %vm40, %v140
  %206 = vst.msk [vmem:[%s192 + $0x99] sm:$0xff] %vm40, %v141
  %207 = vst.msk [vmem:[%s192 + $0xa9] sm:$0xff] %vm40, %v142
  %208 = vst.msk [vmem:[%s192 + $0xb1] sm:$0xff] %vm40, %v143
  %209 = vst.msk [vmem:[%s192 + $0xc1] sm:$0xff] %vm40, %v144
  %210 = vst.msk [vmem:[%s192 + $0xc9] sm:$0xff] %vm40, %v145
  %211 = vst.msk [vmem:[%s192 + $0xd9] sm:$0xff] %vm40, %v146
  %212 = vst.msk [vmem:[%s192 + $0xe1] sm:$0xff] %vm40, %v147
  %213 = vst.msk [vmem:[%s192 + $0xf1] sm:$0xff] %vm40, %v148
  %214 = vst.msk [vmem:[%s192 + $0xf9] sm:$0xff] %vm40, %v149
  %215 = vst.msk [vmem:[%s192 + $0x109] sm:$0xff] %vm40, %v150
  %216 = vst.msk [vmem:[%s192 + $0x111] sm:$0xff] %vm40, %v151
  %217 = vst.msk [vmem:[%s192 + $0x121] sm:$0xff] %vm40, %v152
  %218 = vst.msk [vmem:[%s192 + $0x129] sm:$0xff] %vm40, %v153
  %219 = vst.msk [vmem:[%s192 + $0x139] sm:$0xff] %vm40, %v154
  %220 = vst.msk [vmem:[%s192 + $0x141] sm:$0xff] %vm40, %v155
  %221 = vst.msk [vmem:[%s192 + $0x151] sm:$0xff] %vm40, %v156
  %222 = vst.msk [vmem:[%s192 + $0x159] sm:$0xff] %vm40, %v157
  %223 = vst.msk [vmem:[%s192 + $0x169] sm:$0xff] %vm40, %v158
  %224 = vst.msk [vmem:[%s192 + $0x171] sm:$0xff] %vm40, %v159
  %225 = vst.msk [vmem:[%s192 + $0x1b1] sm:$0xff] %vm40, %v160
  %226 = vst.msk [vmem:[%s192 + $0x1b9] sm:$0xff] %vm40, %v161
  %227 = vst.msk [vmem:[%s192 + $0x1c9] sm:$0xff] %vm40, %v162
  %228 = vst.msk [vmem:[%s192 + $0x1d1] sm:$0xff] %vm40, %v163
  %229 = vst.msk [vmem:[%s192 + $0x1e1] sm:$0xff] %vm40, %v164
  %230 = vst.msk [vmem:[%s192 + $0x1e9] sm:$0xff] %vm40, %v165
  %231 = vst.msk [vmem:[%s192 + $0x1f9] sm:$0xff] %vm40, %v166
  %232 = vst.msk [vmem:[%s192 + $0x201] sm:$0xff] %vm40, %v167
  %233 = vst.msk [vmem:[%s192 + $0x211] sm:$0xff] %vm40, %v168
  %234 = vst.msk [vmem:[%s192 + $0x219] sm:$0xff] %vm40, %v169
  %235 = vst.msk [vmem:[%s192 + $0x229] sm:$0xff] %vm40, %v170
  %236 = vst.msk [vmem:[%s192 + $0x231] sm:$0xff] %vm40, %v171
  %237 = vst.msk [vmem:[%s192 + $0x241] sm:$0xff] %vm40, %v172
  %238 = vst.msk [vmem:[%s192 + $0x249] sm:$0xff] %vm40, %v173
  %239 = vst.msk [vmem:[%s192 + $0x259] sm:$0xff] %vm40, %v174
  %240 = vst.msk [vmem:[%s192 + $0x261] sm:$0xff] %vm40, %v175
  %241 = vst.msk [vmem:[%s192 + $0x271] sm:$0xff] %vm40, %v176
  %242 = vst.msk [vmem:[%s192 + $0x279] sm:$0xff] %vm40, %v177
  %243 = vst.msk [vmem:[%s192 + $0x289] sm:$0xff] %vm40, %v178
  %244 = vst.msk [vmem:[%s192 + $0x291] sm:$0xff] %vm40, %v179
  %245 = vst.msk [vmem:[%s192 + $0x2a1] sm:$0xff] %vm40, %v180
  %246 = vst.msk [vmem:[%s192 + $0x2a9] sm:$0xff] %vm40, %v181
  %247 = vst.msk [vmem:[%s192 + $0x2b9] sm:$0xff] %vm40, %v182
  %248 = vst.msk [vmem:[%s192 + $0x2c1] sm:$0xff] %vm40, %v183
  %249 = vst.msk [vmem:[%s192 + $0x2d1] sm:$0xff] %vm40, %v184
  %250 = vst.msk [vmem:[%s192 + $0x2d9] sm:$0xff] %vm40, %v185
  %251 = vst.msk [vmem:[%s192 + $0x2e9] sm:$0xff] %vm40, %v186
  %252 = vst.msk [vmem:[%s192 + $0x2f1] sm:$0xff] %vm40, %v187
  %253 = vst.msk [vmem:[%s192 + $0x301] sm:$0xff] %vm40, %v188
  %254 = vst.msk [vmem:[%s192 + $0x309] sm:$0xff] %vm40, %v189
  %255 = vst.msk [vmem:[%s192 + $0x319] sm:$0xff] %vm40, %v190
  %256 = vst.msk [vmem:[%s192 + $0x321] sm:$0xff] %vm40, %v191
  %v257 = vld [vmem:[#allocation2] sm:$0xff]
  %v258 = vld [vmem:[#allocation2 + $0x8] sm:$0xff]
  %v259 = vld [vmem:[#allocation2 + $0x18] sm:$0xff]
  %v260 = vld [vmem:[#allocation2 + $0x20] sm:$0xff]
  %v261 = vld [vmem:[#allocation2 + $0x30] sm:$0xff]
  %v262 = vld [vmem:[#allocation2 + $0x38] sm:$0xff]
  %v263 = vld [vmem:[#allocation2 + $0x48] sm:$0xff]
  %v264 = vld [vmem:[#allocation2 + $0x50] sm:$0xff]
  %v265 = vld [vmem:[#allocation2 + $0x60] sm:$0xff]
  %v266 = vld [vmem:[#allocation2 + $0x68] sm:$0xff]
  %v267 = vld [vmem:[#allocation2 + $0x78] sm:$0xff]
  %v268 = vld [vmem:[#allocation2 + $0x80] sm:$0xff]
  %v269 = vld [vmem:[#allocation2 + $0x90] sm:$0xff]
  %v270 = vld [vmem:[#allocation2 + $0x98] sm:$0xff]
  %v271 = vld [vmem:[#allocation2 + $0xa8] sm:$0xff]
  %v272 = vld [vmem:[#allocation2 + $0xb0] sm:$0xff]
  %v273 = vld [vmem:[#allocation2 + $0xc0] sm:$0xff]
  %v274 = vld [vmem:[#allocation2 + $0xc8] sm:$0xff]
  %v275 = vld [vmem:[#allocation2 + $0xd8] sm:$0xff]
  %v276 = vld [vmem:[#allocation2 + $0xe0] sm:$0xff]
  %v277 = vld [vmem:[#allocation2 + $0xf0] sm:$0xff]
  %v278 = vld [vmem:[#allocation2 + $0xf8] sm:$0xff]
  %v279 = vld [vmem:[#allocation2 + $0x108] sm:$0xff]
  %v280 = vld [vmem:[#allocation2 + $0x110] sm:$0xff]
  %v281 = vld [vmem:[#allocation2 + $0x120] sm:$0xff]
  %v282 = vld [vmem:[#allocation2 + $0x128] sm:$0xff]
  %v283 = vld [vmem:[#allocation2 + $0x138] sm:$0xff]
  %v284 = vld [vmem:[#allocation2 + $0x140] sm:$0xff]
  %v285 = vld [vmem:[#allocation2 + $0x150] sm:$0xff]
  %v286 = vld [vmem:[#allocation2 + $0x158] sm:$0xff]
  %v287 = vld [vmem:[#allocation2 + $0x168] sm:$0xff]
  %v288 = vld [vmem:[#allocation2 + $0x170] sm:$0xff]
  %v289 = vld [vmem:[#allocation2 + $0x1b0] sm:$0xff]
  %v290 = vld [vmem:[#allocation2 + $0x1b8] sm:$0xff]
  %v291 = vld [vmem:[#allocation2 + $0x1c8] sm:$0xff]
  %v292 = vld [vmem:[#allocation2 + $0x1d0] sm:$0xff]
  %v293 = vld [vmem:[#allocation2 + $0x1e0] sm:$0xff]
  %v294 = vld [vmem:[#allocation2 + $0x1e8] sm:$0xff]
  %v295 = vld [vmem:[#allocation2 + $0x1f8] sm:$0xff]
  %v296 = vld [vmem:[#allocation2 + $0x200] sm:$0xff]
  %v297 = vld [vmem:[#allocation2 + $0x210] sm:$0xff]
  %v298 = vld [vmem:[#allocation2 + $0x218] sm:$0xff]
  %v299 = vld [vmem:[#allocation2 + $0x228] sm:$0xff]
  %v300 = vld [vmem:[#allocation2 + $0x230] sm:$0xff]
  %v301 = vld [vmem:[#allocation2 + $0x240] sm:$0xff]
  %v302 = vld [vmem:[#allocation2 + $0x248] sm:$0xff]
  %v303 = vld [vmem:[#allocation2 + $0x258] sm:$0xff]
  %v304 = vld [vmem:[#allocation2 + $0x260] sm:$0xff]
  %v305 = vld [vmem:[#allocation2 + $0x270] sm:$0xff]
  %v306 = vld [vmem:[#allocation2 + $0x278] sm:$0xff]
  %v307 = vld [vmem:[#allocation2 + $0x288] sm:$0xff]
  %v308 = vld [vmem:[#allocation2 + $0x290] sm:$0xff]
  %v309 = vld [vmem:[#allocation2 + $0x2a0] sm:$0xff]
  %v310 = vld [vmem:[#allocation2 + $0x2a8] sm:$0xff]
  %v311 = vld [vmem:[#allocation2 + $0x2b8] sm:$0xff]
  %v312 = vld [vmem:[#allocation2 + $0x2c0] sm:$0xff]
  %v313 = vld [vmem:[#allocation2 + $0x2d0] sm:$0xff]
  %v314 = vld [vmem:[#allocation2 + $0x2d8] sm:$0xff]
  %v315 = vld [vmem:[#allocation2 + $0x2e8] sm:$0xff]
  %v316 = vld [vmem:[#allocation2 + $0x2f0] sm:$0xff]
  %v317 = vld [vmem:[#allocation2 + $0x300] sm:$0xff]
  %v318 = vld [vmem:[#allocation2 + $0x308] sm:$0xff]
  %v319 = vld [vmem:[#allocation2 + $0x318] sm:$0xff]
  %v320 = vld [vmem:[#allocation2 + $0x320] sm:$0xff]
  %v321 = vpack.c.bf16 %v258, %v257
  %v322 = vpack.c.bf16 %v260, %v259
  %v323 = vpack.c.bf16 %v262, %v261
  %v324 = vpack.c.bf16 %v264, %v263
  %v325 = vpack.c.bf16 %v266, %v265
  %v326 = vpack.c.bf16 %v268, %v267
  %v327 = vpack.c.bf16 %v270, %v269
  %v328 = vpack.c.bf16 %v272, %v271
  %v329 = vpack.c.bf16 %v274, %v273
  %v330 = vpack.c.bf16 %v276, %v275
  %v331 = vpack.c.bf16 %v278, %v277
  %v332 = vpack.c.bf16 %v280, %v279
  %v333 = vpack.c.bf16 %v282, %v281
  %v334 = vpack.c.bf16 %v284, %v283
  %v335 = vpack.c.bf16 %v286, %v285
  %v336 = vpack.c.bf16 %v288, %v287
  %v337 = vpack.c.bf16 %v290, %v289
  %v338 = vpack.c.bf16 %v292, %v291
  %v339 = vpack.c.bf16 %v294, %v293
  %v340 = vpack.c.bf16 %v296, %v295
  %v341 = vpack.c.bf16 %v298, %v297
  %v342 = vpack.c.bf16 %v300, %v299
  %v343 = vpack.c.bf16 %v302, %v301
  %v344 = vpack.c.bf16 %v304, %v303
  %v345 = vpack.c.bf16 %v306, %v305
  %v346 = vpack.c.bf16 %v308, %v307
  %v347 = vpack.c.bf16 %v310, %v309
  %v348 = vpack.c.bf16 %v312, %v311
  %v349 = vpack.c.bf16 %v314, %v313
  %v350 = vpack.c.bf16 %v316, %v315
  %v351 = vpack.c.bf16 %v318, %v317
  %v352 = vpack.c.bf16 %v320, %v319
  %v353 = vld [vmem:[%s1] sm:$0x3]
  %v354 = vld [vmem:[#allocation2 + $0x1] sm:$0xff]
  %v355 = vld [vmem:[#allocation2 + $0x9] sm:$0xff]
  %v356 = vld [vmem:[#allocation2 + $0x19] sm:$0xff]
  %v357 = vld [vmem:[#allocation2 + $0x21] sm:$0xff]
  %v358 = vld [vmem:[#allocation2 + $0x31] sm:$0xff]
  %v359 = vld [vmem:[#allocation2 + $0x39] sm:$0xff]
  %v360 = vld [vmem:[#allocation2 + $0x49] sm:$0xff]
  %v361 = vld [vmem:[#allocation2 + $0x51] sm:$0xff]
  %v362 = vld [vmem:[#allocation2 + $0x61] sm:$0xff]
  %v363 = vld [vmem:[#allocation2 + $0x69] sm:$0xff]
  %v364 = vld [vmem:[#allocation2 + $0x79] sm:$0xff]
  %v365 = vld [vmem:[#allocation2 + $0x81] sm:$0xff]
  %v366 = vld [vmem:[#allocation2 + $0x91] sm:$0xff]
  %v367 = vld [vmem:[#allocation2 + $0x99] sm:$0xff]
  %v368 = vld [vmem:[#allocation2 + $0xa9] sm:$0xff]
  %v369 = vld [vmem:[#allocation2 + $0xb1] sm:$0xff]
  %v370 = vld [vmem:[#allocation2 + $0xc1] sm:$0xff]
  %v371 = vld [vmem:[#allocation2 + $0xc9] sm:$0xff]
  %v372 = vld [vmem:[#allocation2 + $0xd9] sm:$0xff]
  %v373 = vld [vmem:[#allocation2 + $0xe1] sm:$0xff]
  %v374 = vld [vmem:[#allocation2 + $0xf1] sm:$0xff]
  %v375 = vld [vmem:[#allocation2 + $0xf9] sm:$0xff]
  %v376 = vld [vmem:[#allocation2 + $0x109] sm:$0xff]
  %v377 = vld [vmem:[#allocation2 + $0x111] sm:$0xff]
  %v378 = vld [vmem:[#allocation2 + $0x121] sm:$0xff]
  %v379 = vld [vmem:[#allocation2 + $0x129] sm:$0xff]
  %v380 = vld [vmem:[#allocation2 + $0x139] sm:$0xff]
  %v381 = vld [vmem:[#allocation2 + $0x141] sm:$0xff]
  %v382 = vld [vmem:[#allocation2 + $0x151] sm:$0xff]
  %v383 = vld [vmem:[#allocation2 + $0x159] sm:$0xff]
  %v384 = vld [vmem:[#allocation2 + $0x169] sm:$0xff]
  %v385 = vld [vmem:[#allocation2 + $0x171] sm:$0xff]
  %v386 = vld [vmem:[#allocation2 + $0x1b1] sm:$0xff]
  %v387 = vld [vmem:[#allocation2 + $0x1b9] sm:$0xff]
  %v388 = vld [vmem:[#allocation2 + $0x1c9] sm:$0xff]
  %v389 = vld [vmem:[#allocation2 + $0x1d1] sm:$0xff]
  %v390 = vld [vmem:[#allocation2 + $0x1e1] sm:$0xff]
  %v391 = vld [vmem:[#allocation2 + $0x1e9] sm:$0xff]
  %v392 = vld [vmem:[#allocation2 + $0x1f9] sm:$0xff]
  %v393 = vld [vmem:[#allocation2 + $0x201] sm:$0xff]
  %v394 = vld [vmem:[#allocation2 + $0x211] sm:$0xff]
  %v395 = vld [vmem:[#allocation2 + $0x219] sm:$0xff]
  %v396 = vld [vmem:[#allocation2 + $0x229] sm:$0xff]
  %v397 = vld [vmem:[#allocation2 + $0x231] sm:$0xff]
  %v398 = vld [vmem:[#allocation2 + $0x241] sm:$0xff]
  %v399 = vld [vmem:[#allocation2 + $0x249] sm:$0xff]
  %v400 = vld [vmem:[#allocation2 + $0x259] sm:$0xff]
  %v401 = vld [vmem:[#allocation2 + $0x261] sm:$0xff]
  %v402 = vld [vmem:[#allocation2 + $0x271] sm:$0xff]
  %v403 = vld [vmem:[#allocation2 + $0x279] sm:$0xff]
  %v404 = vld [vmem:[#allocation2 + $0x289] sm:$0xff]
  %v405 = vld [vmem:[#allocation2 + $0x291] sm:$0xff]
  %v406 = vld [vmem:[#allocation2 + $0x2a1] sm:$0xff]
  %v407 = vld [vmem:[#allocation2 + $0x2a9] sm:$0xff]
  %v408 = vld [vmem:[#allocation2 + $0x2b9] sm:$0xff]
  %v409 = vld [vmem:[#allocation2 + $0x2c1] sm:$0xff]
  %v410 = vld [vmem:[#allocation2 + $0x2d1] sm:$0xff]
  %v411 = vld [vmem:[#allocation2 + $0x2d9] sm:$0xff]
  %v412 = vld [vmem:[#allocation2 + $0x2e9] sm:$0xff]
  %v413 = vld [vmem:[#allocation2 + $0x2f1] sm:$0xff]
  %v414 = vld [vmem:[#allocation2 + $0x301] sm:$0xff]
  %v415 = vld [vmem:[#allocation2 + $0x309] sm:$0xff]
  %v416 = vld [vmem:[#allocation2 + $0x319] sm:$0xff]
  %v417 = vld [vmem:[#allocation2 + $0x321] sm:$0xff]
  %v418 = vpack.c.bf16 %v355, %v354
  %v419 = vpack.c.bf16 %v357, %v356
  %v420 = vpack.c.bf16 %v359, %v358
  %v421 = vpack.c.bf16 %v361, %v360
  %v422 = vpack.c.bf16 %v363, %v362
  %v423 = vpack.c.bf16 %v365, %v364
  %v424 = vpack.c.bf16 %v367, %v366
  %v425 = vpack.c.bf16 %v369, %v368
  %v426 = vpack.c.bf16 %v371, %v370
  %v427 = vpack.c.bf16 %v373, %v372
  %v428 = vpack.c.bf16 %v375, %v374
  %v429 = vpack.c.bf16 %v377, %v376
  %v430 = vpack.c.bf16 %v379, %v378
  %v431 = vpack.c.bf16 %v381, %v380
  %v432 = vpack.c.bf16 %v383, %v382
  %v433 = vpack.c.bf16 %v385, %v384
  %v434 = vpack.c.bf16 %v387, %v386
  %v435 = vpack.c.bf16 %v389, %v388
  %v436 = vpack.c.bf16 %v391, %v390
  %v437 = vpack.c.bf16 %v393, %v392
  %v438 = vpack.c.bf16 %v395, %v394
  %v439 = vpack.c.bf16 %v397, %v396
  %v440 = vpack.c.bf16 %v399, %v398
  %v441 = vpack.c.bf16 %v401, %v400
  %v442 = vpack.c.bf16 %v403, %v402
  %v443 = vpack.c.bf16 %v405, %v404
  %v444 = vpack.c.bf16 %v407, %v406
  %v445 = vpack.c.bf16 %v409, %v408
  %v446 = vpack.c.bf16 %v411, %v410
  %v447 = vpack.c.bf16 %v413, %v412
  %v448 = vpack.c.bf16 %v415, %v414
  %v449 = vpack.c.bf16 %v417, %v416
  %s450 = scalar_lea.vmem %s1, 2
  %v451 = vld [vmem:[%s450] sm:$0x3]
  %v453 = vsel %vm40, %v418, 0
  %v456 = vsel %vm40, %v419, 0
  %v459 = vsel %vm40, %v420, 0
  %v462 = vsel %vm40, %v421, 0
  %v465 = vsel %vm40, %v422, 0
  %v468 = vsel %vm40, %v423, 0
  %v471 = vsel %vm40, %v424, 0
  %v474 = vsel %vm40, %v425, 0
  %v477 = vsel %vm40, %v426, 0
  %v480 = vsel %vm40, %v427, 0
  %v483 = vsel %vm40, %v428, 0
  %v486 = vsel %vm40, %v429, 0
  %v489 = vsel %vm40, %v430, 0
  %v492 = vsel %vm40, %v431, 0
  %v495 = vsel %vm40, %v432, 0
  %v498 = vsel %vm40, %v433, 0
  %v501 = vsel %vm40, %v434, 0
  %v504 = vsel %vm40, %v435, 0
  %v507 = vsel %vm40, %v436, 0
  %v510 = vsel %vm40, %v437, 0
  %v513 = vsel %vm40, %v438, 0
  %v516 = vsel %vm40, %v439, 0
  %v519 = vsel %vm40, %v440, 0
  %v522 = vsel %vm40, %v441, 0
  %v525 = vsel %vm40, %v442, 0
  %v528 = vsel %vm40, %v443, 0
  %v531 = vsel %vm40, %v444, 0
  %v534 = vsel %vm40, %v445, 0
  %v537 = vsel %vm40, %v446, 0
  %v540 = vsel %vm40, %v447, 0
  %v543 = vsel %vm40, %v448, 0
  %v546 = vsel %vm40, %v449, 0
  %vm548 = vcmask 1041408
  %v550 = vsel %vm548, %v451, 0
  %552 = vmatprep.subr.bf16.mxu0 0
  %553 = vmatpush1.bf16.msra.mxu0 0
  %554 = vmatprep.subr.bf16.mxu0 0
  %555 = vmatpush1.bf16.msra.mxu0 0
  %556 = vmatprep.subr.bf16.mxu0 0
  %557 = vmatpush1.bf16.msra.mxu0 0
  %558 = vmatprep.subr.bf16.mxu0 0
  %559 = vmatpush1.bf16.msra.mxu0 0
  %560 = vmatprep.subr.bf16.mxu0 0
  %561 = vmatpush1.bf16.msra.mxu0 0
  %562 = vmatprep.subr.bf16.mxu0 0
  %563 = vmatpush1.bf16.msra.mxu0 0
  %564 = vmatprep.subr.bf16.mxu0 0
  %565 = vmatpush1.bf16.msra.mxu0 0
  %566 = vmatprep.subr.bf16.mxu0 0
  %567 = vmatpush1.bf16.msra.mxu0 %v550
  %568 = vmatprep.subr.bf16.mxu0 0
  %569 = vmatpush2.bf16.msra.mxu0 0
  %570 = vmatprep.subr.bf16.mxu0 0
  %571 = vmatpush2.bf16.msra.mxu0 0
  %572 = vmatprep.subr.bf16.mxu0 0
  %573 = vmatpush2.bf16.msra.mxu0 0
  %574 = vmatprep.subr.bf16.mxu0 0
  %575 = vmatpush2.bf16.msra.mxu0 0
  %576 = vmatprep.subr.bf16.mxu0 0
  %577 = vmatpush2.bf16.msra.mxu0 0
  %578 = vmatprep.subr.bf16.mxu0 0
  %579 = vmatpush2.bf16.msra.mxu0 0
  %580 = vmatprep.subr.bf16.mxu0 0
  %581 = vmatpush2.bf16.msra.mxu0 0
  %582 = vmatprep.subr.bf16.mxu0 0
  %583 = vmatpush2.bf16.msra.mxu0 0
  %584 = vmatprep.mubr.bf16.mxu0 0
  %585 = vmatmul.mubr.bf16.gmra.mxu0 %v453
  %v586 = vpop.f32.mrf.mxu0
  %v587 = vadd.f32 0.0, %v586
  %v588 = vpop.f32.mrf.mxu0
  %v589 = vpop.f32.mrf.mxu0
  %v590 = vadd.f32 0.0, %v589
  %v591 = vpop.f32.mrf.mxu0
  %592 = vmatprep.mubr.bf16.mxu0 0
  %593 = vmatmul.mubr.bf16.gmra.mxu0 %v456
  %v594 = vpop.f32.mrf.mxu0
  %v595 = vadd.f32 0.0, %v594
  %v596 = vpop.f32.mrf.mxu0
  %v597 = vpop.f32.mrf.mxu0
  %v598 = vadd.f32 0.0, %v597
  %v599 = vpop.f32.mrf.mxu0
  %600 = vmatprep.mubr.bf16.mxu0 0
  %601 = vmatmul.mubr.bf16.gmra.mxu0 %v459
  %v602 = vpop.f32.mrf.mxu0
  %v603 = vadd.f32 0.0, %v602
  %v604 = vpop.f32.mrf.mxu0
  %v605 = vpop.f32.mrf.mxu0
  %v606 = vadd.f32 0.0, %v605
  %v607 = vpop.f32.mrf.mxu0
  %608 = vmatprep.mubr.bf16.mxu0 0
  %609 = vmatmul.mubr.bf16.gmra.mxu0 %v462
  %v610 = vpop.f32.mrf.mxu0
  %v611 = vadd.f32 0.0, %v610
  %v612 = vpop.f32.mrf.mxu0
  %v613 = vpop.f32.mrf.mxu0
  %v614 = vadd.f32 0.0, %v613
  %v615 = vpop.f32.mrf.mxu0
  %616 = vmatprep.mubr.bf16.mxu0 0
  %617 = vmatmul.mubr.bf16.gmra.mxu0 %v465
  %v618 = vpop.f32.mrf.mxu0
  %v619 = vadd.f32 0.0, %v618
  %v620 = vpop.f32.mrf.mxu0
  %v621 = vpop.f32.mrf.mxu0
  %v622 = vadd.f32 0.0, %v621
  %v623 = vpop.f32.mrf.mxu0
  %624 = vmatprep.mubr.bf16.mxu0 0
  %625 = vmatmul.mubr.bf16.gmra.mxu0 %v468
  %v626 = vpop.f32.mrf.mxu0
  %v627 = vadd.f32 0.0, %v626
  %v628 = vpop.f32.mrf.mxu0
  %v629 = vpop.f32.mrf.mxu0
  %v630 = vadd.f32 0.0, %v629
  %v631 = vpop.f32.mrf.mxu0
  %632 = vmatprep.mubr.bf16.mxu0 0
  %633 = vmatmul.mubr.bf16.gmra.mxu0 %v471
  %v634 = vpop.f32.mrf.mxu0
  %v635 = vadd.f32 0.0, %v634
  %v636 = vpop.f32.mrf.mxu0
  %v637 = vpop.f32.mrf.mxu0
  %v638 = vadd.f32 0.0, %v637
  %v639 = vpop.f32.mrf.mxu0
  %640 = vmatprep.mubr.bf16.mxu0 0
  %641 = vmatmul.mubr.bf16.gmra.mxu0 %v474
  %v642 = vpop.f32.mrf.mxu0
  %v643 = vadd.f32 0.0, %v642
  %v644 = vpop.f32.mrf.mxu0
  %v645 = vpop.f32.mrf.mxu0
  %v646 = vadd.f32 0.0, %v645
  %v647 = vpop.f32.mrf.mxu0
  %648 = vmatprep.mubr.bf16.mxu0 0
  %649 = vmatmul.mubr.bf16.gmra.mxu0 %v477
  %v650 = vpop.f32.mrf.mxu0
  %v651 = vadd.f32 0.0, %v650
  %v652 = vpop.f32.mrf.mxu0
  %v653 = vpop.f32.mrf.mxu0
  %v654 = vadd.f32 0.0, %v653
  %v655 = vpop.f32.mrf.mxu0
  %656 = vmatprep.mubr.bf16.mxu0 0
  %657 = vmatmul.mubr.bf16.gmra.mxu0 %v480
  %v658 = vpop.f32.mrf.mxu0
  %v659 = vadd.f32 0.0, %v658
  %v660 = vpop.f32.mrf.mxu0
  %v661 = vpop.f32.mrf.mxu0
  %v662 = vadd.f32 0.0, %v661
  %v663 = vpop.f32.mrf.mxu0
  %664 = vmatprep.mubr.bf16.mxu0 0
  %665 = vmatmul.mubr.bf16.gmra.mxu0 %v483
  %v666 = vpop.f32.mrf.mxu0
  %v667 = vadd.f32 0.0, %v666
  %v668 = vpop.f32.mrf.mxu0
  %v669 = vpop.f32.mrf.mxu0
  %v670 = vadd.f32 0.0, %v669
  %v671 = vpop.f32.mrf.mxu0
  %672 = vmatprep.mubr.bf16.mxu0 0
  %673 = vmatmul.mubr.bf16.gmra.mxu0 %v486
  %v674 = vpop.f32.mrf.mxu0
  %v675 = vadd.f32 0.0, %v674
  %v676 = vpop.f32.mrf.mxu0
  %v677 = vpop.f32.mrf.mxu0
  %v678 = vadd.f32 0.0, %v677
  %v679 = vpop.f32.mrf.mxu0
  %680 = vmatprep.mubr.bf16.mxu0 0
  %681 = vmatmul.mubr.bf16.gmra.mxu0 %v489
  %v682 = vpop.f32.mrf.mxu0
  %v683 = vadd.f32 0.0, %v682
  %v684 = vpop.f32.mrf.mxu0
  %v685 = vpop.f32.mrf.mxu0
  %v686 = vadd.f32 0.0, %v685
  %v687 = vpop.f32.mrf.mxu0
  %688 = vmatprep.mubr.bf16.mxu0 0
  %689 = vmatmul.mubr.bf16.gmra.mxu0 %v492
  %v690 = vpop.f32.mrf.mxu0
  %v691 = vadd.f32 0.0, %v690
  %v692 = vpop.f32.mrf.mxu0
  %v693 = vpop.f32.mrf.mxu0
  %v694 = vadd.f32 0.0, %v693
  %v695 = vpop.f32.mrf.mxu0
  %696 = vmatprep.mubr.bf16.mxu0 0
  %697 = vmatmul.mubr.bf16.gmra.mxu0 %v495
  %v698 = vpop.f32.mrf.mxu0
  %v699 = vadd.f32 0.0, %v698
  %v700 = vpop.f32.mrf.mxu0
  %v701 = vpop.f32.mrf.mxu0
  %v702 = vadd.f32 0.0, %v701
  %v703 = vpop.f32.mrf.mxu0
  %704 = vmatprep.mubr.bf16.mxu0 0
  %705 = vmatmul.mubr.bf16.gmra.mxu0 %v498
  %v706 = vpop.f32.mrf.mxu0
  %v707 = vadd.f32 0.0, %v706
  %v708 = vpop.f32.mrf.mxu0
  %v709 = vpop.f32.mrf.mxu0
  %v710 = vadd.f32 0.0, %v709
  %v711 = vpop.f32.mrf.mxu0
  %712 = vmatprep.mubr.bf16.mxu0 0
  %713 = vmatmul.mubr.bf16.gmra.mxu0 %v501
  %v714 = vpop.f32.mrf.mxu0
  %v715 = vadd.f32 0.0, %v714
  %v716 = vpop.f32.mrf.mxu0
  %v717 = vpop.f32.mrf.mxu0
  %v718 = vadd.f32 0.0, %v717
  %v719 = vpop.f32.mrf.mxu0
  %720 = vmatprep.mubr.bf16.mxu0 0
  %721 = vmatmul.mubr.bf16.gmra.mxu0 %v504
  %v722 = vpop.f32.mrf.mxu0
  %v723 = vadd.f32 0.0, %v722
  %v724 = vpop.f32.mrf.mxu0
  %v725 = vpop.f32.mrf.mxu0
  %v726 = vadd.f32 0.0, %v725
  %v727 = vpop.f32.mrf.mxu0
  %728 = vmatprep.mubr.bf16.mxu0 0
  %729 = vmatmul.mubr.bf16.gmra.mxu0 %v507
  %v730 = vpop.f32.mrf.mxu0
  %v731 = vadd.f32 0.0, %v730
  %v732 = vpop.f32.mrf.mxu0
  %v733 = vpop.f32.mrf.mxu0
  %v734 = vadd.f32 0.0, %v733
  %v735 = vpop.f32.mrf.mxu0
  %736 = vmatprep.mubr.bf16.mxu0 0
  %737 = vmatmul.mubr.bf16.gmra.mxu0 %v510
  %v738 = vpop.f32.mrf.mxu0
  %v739 = vadd.f32 0.0, %v738
  %v740 = vpop.f32.mrf.mxu0
  %v741 = vpop.f32.mrf.mxu0
  %v742 = vadd.f32 0.0, %v741
  %v743 = vpop.f32.mrf.mxu0
  %744 = vmatprep.mubr.bf16.mxu0 0
  %745 = vmatmul.mubr.bf16.gmra.mxu0 %v513
  %v746 = vpop.f32.mrf.mxu0
  %v747 = vadd.f32 0.0, %v746
  %v748 = vpop.f32.mrf.mxu0
  %v749 = vpop.f32.mrf.mxu0
  %v750 = vadd.f32 0.0, %v749
  %v751 = vpop.f32.mrf.mxu0
  %752 = vmatprep.mubr.bf16.mxu0 0
  %753 = vmatmul.mubr.bf16.gmra.mxu0 %v516
  %v754 = vpop.f32.mrf.mxu0
  %v755 = vadd.f32 0.0, %v754
  %v756 = vpop.f32.mrf.mxu0
  %v757 = vpop.f32.mrf.mxu0
  %v758 = vadd.f32 0.0, %v757
  %v759 = vpop.f32.mrf.mxu0
  %760 = vmatprep.mubr.bf16.mxu0 0
  %761 = vmatmul.mubr.bf16.gmra.mxu0 %v519
  %v762 = vpop.f32.mrf.mxu0
  %v763 = vadd.f32 0.0, %v762
  %v764 = vpop.f32.mrf.mxu0
  %v765 = vpop.f32.mrf.mxu0
  %v766 = vadd.f32 0.0, %v765
  %v767 = vpop.f32.mrf.mxu0
  %768 = vmatprep.mubr.bf16.mxu0 0
  %769 = vmatmul.mubr.bf16.gmra.mxu0 %v522
  %v770 = vpop.f32.mrf.mxu0
  %v771 = vadd.f32 0.0, %v770
  %v772 = vpop.f32.mrf.mxu0
  %v773 = vpop.f32.mrf.mxu0
  %v774 = vadd.f32 0.0, %v773
  %v775 = vpop.f32.mrf.mxu0
  %776 = vmatprep.mubr.bf16.mxu0 0
  %777 = vmatmul.mubr.bf16.gmra.mxu0 %v525
  %v778 = vpop.f32.mrf.mxu0
  %v779 = vadd.f32 0.0, %v778
  %v780 = vpop.f32.mrf.mxu0
  %v781 = vpop.f32.mrf.mxu0
  %v782 = vadd.f32 0.0, %v781
  %v783 = vpop.f32.mrf.mxu0
  %784 = vmatprep.mubr.bf16.mxu0 0
  %785 = vmatmul.mubr.bf16.gmra.mxu0 %v528
  %v786 = vpop.f32.mrf.mxu0
  %v787 = vadd.f32 0.0, %v786
  %v788 = vpop.f32.mrf.mxu0
  %v789 = vpop.f32.mrf.mxu0
  %v790 = vadd.f32 0.0, %v789
  %v791 = vpop.f32.mrf.mxu0
  %792 = vmatprep.mubr.bf16.mxu0 0
  %793 = vmatmul.mubr.bf16.gmra.mxu0 %v531
  %v794 = vpop.f32.mrf.mxu0
  %v795 = vadd.f32 0.0, %v794
  %v796 = vpop.f32.mrf.mxu0
  %v797 = vpop.f32.mrf.mxu0
  %v798 = vadd.f32 0.0, %v797
  %v799 = vpop.f32.mrf.mxu0
  %800 = vmatprep.mubr.bf16.mxu0 0
  %801 = vmatmul.mubr.bf16.gmra.mxu0 %v534
  %v802 = vpop.f32.mrf.mxu0
  %v803 = vadd.f32 0.0, %v802
  %v804 = vpop.f32.mrf.mxu0
  %v805 = vpop.f32.mrf.mxu0
  %v806 = vadd.f32 0.0, %v805
  %v807 = vpop.f32.mrf.mxu0
  %808 = vmatprep.mubr.bf16.mxu0 0
  %809 = vmatmul.mubr.bf16.gmra.mxu0 %v537
  %v810 = vpop.f32.mrf.mxu0
  %v811 = vadd.f32 0.0, %v810
  %v812 = vpop.f32.mrf.mxu0
  %v813 = vpop.f32.mrf.mxu0
  %v814 = vadd.f32 0.0, %v813
  %v815 = vpop.f32.mrf.mxu0
  %816 = vmatprep.mubr.bf16.mxu0 0
  %817 = vmatmul.mubr.bf16.gmra.mxu0 %v540
  %v818 = vpop.f32.mrf.mxu0
  %v819 = vadd.f32 0.0, %v818
  %v820 = vpop.f32.mrf.mxu0
  %v821 = vpop.f32.mrf.mxu0
  %v822 = vadd.f32 0.0, %v821
  %v823 = vpop.f32.mrf.mxu0
  %824 = vmatprep.mubr.bf16.mxu0 0
  %825 = vmatmul.mubr.bf16.gmra.mxu0 %v543
  %v826 = vpop.f32.mrf.mxu0
  %v827 = vadd.f32 0.0, %v826
  %v828 = vpop.f32.mrf.mxu0
  %v829 = vpop.f32.mrf.mxu0
  %v830 = vadd.f32 0.0, %v829
  %v831 = vpop.f32.mrf.mxu0
  %832 = vmatprep.mubr.bf16.mxu0 0
  %833 = vmatmul.mubr.bf16.gmra.mxu0 %v546
  %v834 = vpop.f32.mrf.mxu0
  %v835 = vadd.f32 0.0, %v834
  %v836 = vpop.f32.mrf.mxu0
  %v837 = vpop.f32.mrf.mxu0
  %v838 = vadd.f32 0.0, %v837
  %v839 = vpop.f32.mrf.mxu0
  %840 = vdwg.mxu0
  %v842 = vsel %vm40, %v321, 0
  %v845 = vsel %vm40, %v322, 0
  %v848 = vsel %vm40, %v323, 0
  %v851 = vsel %vm40, %v324, 0
  %v854 = vsel %vm40, %v325, 0
  %v857 = vsel %vm40, %v326, 0
  %v860 = vsel %vm40, %v327, 0
  %v863 = vsel %vm40, %v328, 0
  %v866 = vsel %vm40, %v329, 0
  %v869 = vsel %vm40, %v330, 0
  %v872 = vsel %vm40, %v331, 0
  %v875 = vsel %vm40, %v332, 0
  %v878 = vsel %vm40, %v333, 0
  %v881 = vsel %vm40, %v334, 0
  %v884 = vsel %vm40, %v335, 0
  %v887 = vsel %vm40, %v336, 0
  %v890 = vsel %vm40, %v337, 0
  %v893 = vsel %vm40, %v338, 0
  %v896 = vsel %vm40, %v339, 0
  %v899 = vsel %vm40, %v340, 0
  %v902 = vsel %vm40, %v341, 0
  %v905 = vsel %vm40, %v342, 0
  %v908 = vsel %vm40, %v343, 0
  %v911 = vsel %vm40, %v344, 0
  %v914 = vsel %vm40, %v345, 0
  %v917 = vsel %vm40, %v346, 0
  %v920 = vsel %vm40, %v347, 0
  %v923 = vsel %vm40, %v348, 0
  %v926 = vsel %vm40, %v349, 0
  %v929 = vsel %vm40, %v350, 0
  %v932 = vsel %vm40, %v351, 0
  %v935 = vsel %vm40, %v352, 0
  %v938 = vsel %vm548, %v353, 0
  %940 = vmatprep.subr.bf16.mxu0 0
  %941 = vmatpush1.bf16.msra.mxu0 0
  %942 = vmatprep.subr.bf16.mxu0 0
  %943 = vmatpush1.bf16.msra.mxu0 0
  %944 = vmatprep.subr.bf16.mxu0 0
  %945 = vmatpush1.bf16.msra.mxu0 0
  %946 = vmatprep.subr.bf16.mxu0 0
  %947 = vmatpush1.bf16.msra.mxu0 0
  %948 = vmatprep.subr.bf16.mxu0 0
  %949 = vmatpush1.bf16.msra.mxu0 0
  %950 = vmatprep.subr.bf16.mxu0 0
  %951 = vmatpush1.bf16.msra.mxu0 0
  %952 = vmatprep.subr.bf16.mxu0 0
  %953 = vmatpush1.bf16.msra.mxu0 0
  %954 = vmatprep.subr.bf16.mxu0 0
  %955 = vmatpush1.bf16.msra.mxu0 %v938
  %956 = vmatprep.subr.bf16.mxu0 0
  %957 = vmatpush2.bf16.msra.mxu0 0
  %958 = vmatprep.subr.bf16.mxu0 0
  %959 = vmatpush2.bf16.msra.mxu0 0
  %960 = vmatprep.subr.bf16.mxu0 0
  %961 = vmatpush2.bf16.msra.mxu0 0
  %962 = vmatprep.subr.bf16.mxu0 0
  %963 = vmatpush2.bf16.msra.mxu0 0
  %964 = vmatprep.subr.bf16.mxu0 0
  %965 = vmatpush2.bf16.msra.mxu0 0
  %966 = vmatprep.subr.bf16.mxu0 0
  %967 = vmatpush2.bf16.msra.mxu0 0
  %968 = vmatprep.subr.bf16.mxu0 0
  %969 = vmatpush2.bf16.msra.mxu0 0
  %970 = vmatprep.subr.bf16.mxu0 0
  %971 = vmatpush2.bf16.msra.mxu0 0
  %972 = vmatprep.mubr.bf16.mxu0 0
  %973 = vmatmul.mubr.bf16.gmra.mxu0 %v842
  %v974 = vpop.f32.mrf.mxu0
  %v975 = vadd.f32 %v587, %v974
  %v976 = vpop.f32.mrf.mxu0
  %v977 = vpop.f32.mrf.mxu0
  %v978 = vadd.f32 %v590, %v977
  %v979 = vpop.f32.mrf.mxu0
  %980 = vmatprep.mubr.bf16.mxu0 0
  %981 = vmatmul.mubr.bf16.gmra.mxu0 %v845
  %v982 = vpop.f32.mrf.mxu0
  %v983 = vadd.f32 %v595, %v982
  %v984 = vpop.f32.mrf.mxu0
  %v985 = vpop.f32.mrf.mxu0
  %v986 = vadd.f32 %v598, %v985
  %v987 = vpop.f32.mrf.mxu0
  %988 = vmatprep.mubr.bf16.mxu0 0
  %989 = vmatmul.mubr.bf16.gmra.mxu0 %v848
  %v990 = vpop.f32.mrf.mxu0
  %v991 = vadd.f32 %v603, %v990
  %v992 = vpop.f32.mrf.mxu0
  %v993 = vpop.f32.mrf.mxu0
  %v994 = vadd.f32 %v606, %v993
  %v995 = vpop.f32.mrf.mxu0
  %996 = vmatprep.mubr.bf16.mxu0 0
  %997 = vmatmul.mubr.bf16.gmra.mxu0 %v851
  %v998 = vpop.f32.mrf.mxu0
  %v999 = vadd.f32 %v611, %v998
  %v1000 = vpop.f32.mrf.mxu0
  %v1001 = vpop.f32.mrf.mxu0
  %v1002 = vadd.f32 %v614, %v1001
  %v1003 = vpop.f32.mrf.mxu0
  %1004 = vmatprep.mubr.bf16.mxu0 0
  %1005 = vmatmul.mubr.bf16.gmra.mxu0 %v854
  %v1006 = vpop.f32.mrf.mxu0
  %v1007 = vadd.f32 %v619, %v1006
  %v1008 = vpop.f32.mrf.mxu0
  %v1009 = vpop.f32.mrf.mxu0
  %v1010 = vadd.f32 %v622, %v1009
  %v1011 = vpop.f32.mrf.mxu0
  %1012 = vmatprep.mubr.bf16.mxu0 0
  %1013 = vmatmul.mubr.bf16.gmra.mxu0 %v857
  %v1014 = vpop.f32.mrf.mxu0
  %v1015 = vadd.f32 %v627, %v1014
  %v1016 = vpop.f32.mrf.mxu0
  %v1017 = vpop.f32.mrf.mxu0
  %v1018 = vadd.f32 %v630, %v1017
  %v1019 = vpop.f32.mrf.mxu0
  %1020 = vmatprep.mubr.bf16.mxu0 0
  %1021 = vmatmul.mubr.bf16.gmra.mxu0 %v860
  %v1022 = vpop.f32.mrf.mxu0
  %v1023 = vadd.f32 %v635, %v1022
  %v1024 = vpop.f32.mrf.mxu0
  %v1025 = vpop.f32.mrf.mxu0
  %v1026 = vadd.f32 %v638, %v1025
  %v1027 = vpop.f32.mrf.mxu0
  %1028 = vmatprep.mubr.bf16.mxu0 0
  %1029 = vmatmul.mubr.bf16.gmra.mxu0 %v863
  %v1030 = vpop.f32.mrf.mxu0
  %v1031 = vadd.f32 %v643, %v1030
  %v1032 = vpop.f32.mrf.mxu0
  %v1033 = vpop.f32.mrf.mxu0
  %v1034 = vadd.f32 %v646, %v1033
  %v1035 = vpop.f32.mrf.mxu0
  %1036 = vmatprep.mubr.bf16.mxu0 0
  %1037 = vmatmul.mubr.bf16.gmra.mxu0 %v866
  %v1038 = vpop.f32.mrf.mxu0
  %v1039 = vadd.f32 %v651, %v1038
  %v1040 = vpop.f32.mrf.mxu0
  %v1041 = vpop.f32.mrf.mxu0
  %v1042 = vadd.f32 %v654, %v1041
  %v1043 = vpop.f32.mrf.mxu0
  %1044 = vmatprep.mubr.bf16.mxu0 0
  %1045 = vmatmul.mubr.bf16.gmra.mxu0 %v869
  %v1046 = vpop.f32.mrf.mxu0
  %v1047 = vadd.f32 %v659, %v1046
  %v1048 = vpop.f32.mrf.mxu0
  %v1049 = vpop.f32.mrf.mxu0
  %v1050 = vadd.f32 %v662, %v1049
  %v1051 = vpop.f32.mrf.mxu0
  %1052 = vmatprep.mubr.bf16.mxu0 0
  %1053 = vmatmul.mubr.bf16.gmra.mxu0 %v872
  %v1054 = vpop.f32.mrf.mxu0
  %v1055 = vadd.f32 %v667, %v1054
  %v1056 = vpop.f32.mrf.mxu0
  %v1057 = vpop.f32.mrf.mxu0
  %v1058 = vadd.f32 %v670, %v1057
  %v1059 = vpop.f32.mrf.mxu0
  %1060 = vmatprep.mubr.bf16.mxu0 0
  %1061 = vmatmul.mubr.bf16.gmra.mxu0 %v875
  %v1062 = vpop.f32.mrf.mxu0
  %v1063 = vadd.f32 %v675, %v1062
  %v1064 = vpop.f32.mrf.mxu0
  %v1065 = vpop.f32.mrf.mxu0
  %v1066 = vadd.f32 %v678, %v1065
  %v1067 = vpop.f32.mrf.mxu0
  %1068 = vmatprep.mubr.bf16.mxu0 0
  %1069 = vmatmul.mubr.bf16.gmra.mxu0 %v878
  %v1070 = vpop.f32.mrf.mxu0
  %v1071 = vadd.f32 %v683, %v1070
  %v1072 = vpop.f32.mrf.mxu0
  %v1073 = vpop.f32.mrf.mxu0
  %v1074 = vadd.f32 %v686, %v1073
  %v1075 = vpop.f32.mrf.mxu0
  %1076 = vmatprep.mubr.bf16.mxu0 0
  %1077 = vmatmul.mubr.bf16.gmra.mxu0 %v881
  %v1078 = vpop.f32.mrf.mxu0
  %v1079 = vadd.f32 %v691, %v1078
  %v1080 = vpop.f32.mrf.mxu0
  %v1081 = vpop.f32.mrf.mxu0
  %v1082 = vadd.f32 %v694, %v1081
  %v1083 = vpop.f32.mrf.mxu0
  %1084 = vmatprep.mubr.bf16.mxu0 0
  %1085 = vmatmul.mubr.bf16.gmra.mxu0 %v884
  %v1086 = vpop.f32.mrf.mxu0
  %v1087 = vadd.f32 %v699, %v1086
  %v1088 = vpop.f32.mrf.mxu0
  %v1089 = vpop.f32.mrf.mxu0
  %v1090 = vadd.f32 %v702, %v1089
  %v1091 = vpop.f32.mrf.mxu0
  %1092 = vmatprep.mubr.bf16.mxu0 0
  %1093 = vmatmul.mubr.bf16.gmra.mxu0 %v887
  %v1094 = vpop.f32.mrf.mxu0
  %v1095 = vadd.f32 %v707, %v1094
  %v1096 = vpop.f32.mrf.mxu0
  %v1097 = vpop.f32.mrf.mxu0
  %v1098 = vadd.f32 %v710, %v1097
  %v1099 = vpop.f32.mrf.mxu0
  %1100 = vmatprep.mubr.bf16.mxu0 0
  %1101 = vmatmul.mubr.bf16.gmra.mxu0 %v890
  %v1102 = vpop.f32.mrf.mxu0
  %v1103 = vadd.f32 %v715, %v1102
  %v1104 = vpop.f32.mrf.mxu0
  %v1105 = vpop.f32.mrf.mxu0
  %v1106 = vadd.f32 %v718, %v1105
  %v1107 = vpop.f32.mrf.mxu0
  %1108 = vmatprep.mubr.bf16.mxu0 0
  %1109 = vmatmul.mubr.bf16.gmra.mxu0 %v893
  %v1110 = vpop.f32.mrf.mxu0
  %v1111 = vadd.f32 %v723, %v1110
  %v1112 = vpop.f32.mrf.mxu0
  %v1113 = vpop.f32.mrf.mxu0
  %v1114 = vadd.f32 %v726, %v1113
  %v1115 = vpop.f32.mrf.mxu0
  %1116 = vmatprep.mubr.bf16.mxu0 0
  %1117 = vmatmul.mubr.bf16.gmra.mxu0 %v896
  %v1118 = vpop.f32.mrf.mxu0
  %v1119 = vadd.f32 %v731, %v1118
  %v1120 = vpop.f32.mrf.mxu0
  %v1121 = vpop.f32.mrf.mxu0
  %v1122 = vadd.f32 %v734, %v1121
  %v1123 = vpop.f32.mrf.mxu0
  %1124 = vmatprep.mubr.bf16.mxu0 0
  %1125 = vmatmul.mubr.bf16.gmra.mxu0 %v899
  %v1126 = vpop.f32.mrf.mxu0
  %v1127 = vadd.f32 %v739, %v1126
  %v1128 = vpop.f32.mrf.mxu0
  %v1129 = vpop.f32.mrf.mxu0
  %v1130 = vadd.f32 %v742, %v1129
  %v1131 = vpop.f32.mrf.mxu0
  %1132 = vmatprep.mubr.bf16.mxu0 0
  %1133 = vmatmul.mubr.bf16.gmra.mxu0 %v902
  %v1134 = vpop.f32.mrf.mxu0
  %v1135 = vadd.f32 %v747, %v1134
  %v1136 = vpop.f32.mrf.mxu0
  %v1137 = vpop.f32.mrf.mxu0
  %v1138 = vadd.f32 %v750, %v1137
  %v1139 = vpop.f32.mrf.mxu0
  %1140 = vmatprep.mubr.bf16.mxu0 0
  %1141 = vmatmul.mubr.bf16.gmra.mxu0 %v905
  %v1142 = vpop.f32.mrf.mxu0
  %v1143 = vadd.f32 %v755, %v1142
  %v1144 = vpop.f32.mrf.mxu0
  %v1145 = vpop.f32.mrf.mxu0
  %v1146 = vadd.f32 %v758, %v1145
  %v1147 = vpop.f32.mrf.mxu0
  %1148 = vmatprep.mubr.bf16.mxu0 0
  %1149 = vmatmul.mubr.bf16.gmra.mxu0 %v908
  %v1150 = vpop.f32.mrf.mxu0
  %v1151 = vadd.f32 %v763, %v1150
  %v1152 = vpop.f32.mrf.mxu0
  %v1153 = vpop.f32.mrf.mxu0
  %v1154 = vadd.f32 %v766, %v1153
  %v1155 = vpop.f32.mrf.mxu0
  %1156 = vmatprep.mubr.bf16.mxu0 0
  %1157 = vmatmul.mubr.bf16.gmra.mxu0 %v911
  %v1158 = vpop.f32.mrf.mxu0
  %v1159 = vadd.f32 %v771, %v1158
  %v1160 = vpop.f32.mrf.mxu0
  %v1161 = vpop.f32.mrf.mxu0
  %v1162 = vadd.f32 %v774, %v1161
  %v1163 = vpop.f32.mrf.mxu0
  %1164 = vmatprep.mubr.bf16.mxu0 0
  %1165 = vmatmul.mubr.bf16.gmra.mxu0 %v914
  %v1166 = vpop.f32.mrf.mxu0
  %v1167 = vadd.f32 %v779, %v1166
  %v1168 = vpop.f32.mrf.mxu0
  %v1169 = vpop.f32.mrf.mxu0
  %v1170 = vadd.f32 %v782, %v1169
  %v1171 = vpop.f32.mrf.mxu0
  %1172 = vmatprep.mubr.bf16.mxu0 0
  %1173 = vmatmul.mubr.bf16.gmra.mxu0 %v917
  %v1174 = vpop.f32.mrf.mxu0
  %v1175 = vadd.f32 %v787, %v1174
  %v1176 = vpop.f32.mrf.mxu0
  %v1177 = vpop.f32.mrf.mxu0
  %v1178 = vadd.f32 %v790, %v1177
  %v1179 = vpop.f32.mrf.mxu0
  %1180 = vmatprep.mubr.bf16.mxu0 0
  %1181 = vmatmul.mubr.bf16.gmra.mxu0 %v920
  %v1182 = vpop.f32.mrf.mxu0
  %v1183 = vadd.f32 %v795, %v1182
  %v1184 = vpop.f32.mrf.mxu0
  %v1185 = vpop.f32.mrf.mxu0
  %v1186 = vadd.f32 %v798, %v1185
  %v1187 = vpop.f32.mrf.mxu0
  %1188 = vmatprep.mubr.bf16.mxu0 0
  %1189 = vmatmul.mubr.bf16.gmra.mxu0 %v923
  %v1190 = vpop.f32.mrf.mxu0
  %v1191 = vadd.f32 %v803, %v1190
  %v1192 = vpop.f32.mrf.mxu0
  %v1193 = vpop.f32.mrf.mxu0
  %v1194 = vadd.f32 %v806, %v1193
  %v1195 = vpop.f32.mrf.mxu0
  %1196 = vmatprep.mubr.bf16.mxu0 0
  %1197 = vmatmul.mubr.bf16.gmra.mxu0 %v926
  %v1198 = vpop.f32.mrf.mxu0
  %v1199 = vadd.f32 %v811, %v1198
  %v1200 = vpop.f32.mrf.mxu0
  %v1201 = vpop.f32.mrf.mxu0
  %v1202 = vadd.f32 %v814, %v1201
  %v1203 = vpop.f32.mrf.mxu0
  %1204 = vmatprep.mubr.bf16.mxu0 0
  %1205 = vmatmul.mubr.bf16.gmra.mxu0 %v929
  %v1206 = vpop.f32.mrf.mxu0
  %v1207 = vadd.f32 %v819, %v1206
  %v1208 = vpop.f32.mrf.mxu0
  %v1209 = vpop.f32.mrf.mxu0
  %v1210 = vadd.f32 %v822, %v1209
  %v1211 = vpop.f32.mrf.mxu0
  %1212 = vmatprep.mubr.bf16.mxu0 0
  %1213 = vmatmul.mubr.bf16.gmra.mxu0 %v932
  %v1214 = vpop.f32.mrf.mxu0
  %v1215 = vadd.f32 %v827, %v1214
  %v1216 = vpop.f32.mrf.mxu0
  %v1217 = vpop.f32.mrf.mxu0
  %v1218 = vadd.f32 %v830, %v1217
  %v1219 = vpop.f32.mrf.mxu0
  %1220 = vmatprep.mubr.bf16.mxu0 0
  %1221 = vmatmul.mubr.bf16.gmra.mxu0 %v935
  %v1222 = vpop.f32.mrf.mxu0
  %v1223 = vadd.f32 %v835, %v1222
  %v1224 = vpop.f32.mrf.mxu0
  %v1225 = vpop.f32.mrf.mxu0
  %v1226 = vadd.f32 %v838, %v1225
  %v1227 = vpop.f32.mrf.mxu0
  %1228 = vdwg.mxu0
  %v1229 = vld [vmem:[#allocation2 + $0x2] sm:$0xff]
  %v1230 = vld [vmem:[#allocation2 + $0xa] sm:$0xff]
  %v1231 = vld [vmem:[#allocation2 + $0x1a] sm:$0xff]
  %v1232 = vld [vmem:[#allocation2 + $0x22] sm:$0xff]
  %v1233 = vld [vmem:[#allocation2 + $0x32] sm:$0xff]
  %v1234 = vld [vmem:[#allocation2 + $0x3a] sm:$0xff]
  %v1235 = vld [vmem:[#allocation2 + $0x4a] sm:$0xff]
  %v1236 = vld [vmem:[#allocation2 + $0x52] sm:$0xff]
  %v1237 = vld [vmem:[#allocation2 + $0x62] sm:$0xff]
  %v1238 = vld [vmem:[#allocation2 + $0x6a] sm:$0xff]
  %v1239 = vld [vmem:[#allocation2 + $0x7a] sm:$0xff]
  %v1240 = vld [vmem:[#allocation2 + $0x82] sm:$0xff]
  %v1241 = vld [vmem:[#allocation2 + $0x92] sm:$0xff]
  %v1242 = vld [vmem:[#allocation2 + $0x9a] sm:$0xff]
  %v1243 = vld [vmem:[#allocation2 + $0xaa] sm:$0xff]
  %v1244 = vld [vmem:[#allocation2 + $0xb2] sm:$0xff]
  %v1245 = vld [vmem:[#allocation2 + $0xc2] sm:$0xff]
  %v1246 = vld [vmem:[#allocation2 + $0xca] sm:$0xff]
  %v1247 = vld [vmem:[#allocation2 + $0xda] sm:$0xff]
  %v1248 = vld [vmem:[#allocation2 + $0xe2] sm:$0xff]
  %v1249 = vld [vmem:[#allocation2 + $0xf2] sm:$0xff]
  %v1250 = vld [vmem:[#allocation2 + $0xfa] sm:$0xff]
  %v1251 = vld [vmem:[#allocation2 + $0x10a] sm:$0xff]
  %v1252 = vld [vmem:[#allocation2 + $0x112] sm:$0xff]
  %v1253 = vld [vmem:[#allocation2 + $0x122] sm:$0xff]
  %v1254 = vld [vmem:[#allocation2 + $0x12a] sm:$0xff]
  %v1255 = vld [vmem:[#allocation2 + $0x13a] sm:$0xff]
  %v1256 = vld [vmem:[#allocation2 + $0x142] sm:$0xff]
  %v1257 = vld [vmem:[#allocation2 + $0x152] sm:$0xff]
  %v1258 = vld [vmem:[#allocation2 + $0x15a] sm:$0xff]
  %v1259 = vld [vmem:[#allocation2 + $0x16a] sm:$0xff]
  %v1260 = vld [vmem:[#allocation2 + $0x172] sm:$0xff]
  %v1261 = vld [vmem:[#allocation2 + $0x1b2] sm:$0xff]
  %v1262 = vld [vmem:[#allocation2 + $0x1ba] sm:$0xff]
  %v1263 = vld [vmem:[#allocation2 + $0x1ca] sm:$0xff]
  %v1264 = vld [vmem:[#allocation2 + $0x1d2] sm:$0xff]
  %v1265 = vld [vmem:[#allocation2 + $0x1e2] sm:$0xff]
  %v1266 = vld [vmem:[#allocation2 + $0x1ea] sm:$0xff]
  %v1267 = vld [vmem:[#allocation2 + $0x1fa] sm:$0xff]
  %v1268 = vld [vmem:[#allocation2 + $0x202] sm:$0xff]
  %v1269 = vld [vmem:[#allocation2 + $0x212] sm:$0xff]
  %v1270 = vld [vmem:[#allocation2 + $0x21a] sm:$0xff]
  %v1271 = vld [vmem:[#allocation2 + $0x22a] sm:$0xff]
  %v1272 = vld [vmem:[#allocation2 + $0x232] sm:$0xff]
  %v1273 = vld [vmem:[#allocation2 + $0x242] sm:$0xff]
  %v1274 = vld [vmem:[#allocation2 + $0x24a] sm:$0xff]
  %v1275 = vld [vmem:[#allocation2 + $0x25a] sm:$0xff]
  %v1276 = vld [vmem:[#allocation2 + $0x262] sm:$0xff]
  %v1277 = vld [vmem:[#allocation2 + $0x272] sm:$0xff]
  %v1278 = vld [vmem:[#allocation2 + $0x27a] sm:$0xff]
  %v1279 = vld [vmem:[#allocation2 + $0x28a] sm:$0xff]
  %v1280 = vld [vmem:[#allocation2 + $0x292] sm:$0xff]
  %v1281 = vld [vmem:[#allocation2 + $0x2a2] sm:$0xff]
  %v1282 = vld [vmem:[#allocation2 + $0x2aa] sm:$0xff]
  %v1283 = vld [vmem:[#allocation2 + $0x2ba] sm:$0xff]
  %v1284 = vld [vmem:[#allocation2 + $0x2c2] sm:$0xff]
  %v1285 = vld [vmem:[#allocation2 + $0x2d2] sm:$0xff]
  %v1286 = vld [vmem:[#allocation2 + $0x2da] sm:$0xff]
  %v1287 = vld [vmem:[#allocation2 + $0x2ea] sm:$0xff]
  %v1288 = vld [vmem:[#allocation2 + $0x2f2] sm:$0xff]
  %v1289 = vld [vmem:[#allocation2 + $0x302] sm:$0xff]
  %v1290 = vld [vmem:[#allocation2 + $0x30a] sm:$0xff]
  %v1291 = vld [vmem:[#allocation2 + $0x31a] sm:$0xff]
  %v1292 = vld [vmem:[#allocation2 + $0x322] sm:$0xff]
  %v1293 = vpack.c.bf16 %v1230, %v1229
  %v1294 = vpack.c.bf16 %v1232, %v1231
  %v1295 = vpack.c.bf16 %v1234, %v1233
  %v1296 = vpack.c.bf16 %v1236, %v1235
  %v1297 = vpack.c.bf16 %v1238, %v1237
  %v1298 = vpack.c.bf16 %v1240, %v1239
  %v1299 = vpack.c.bf16 %v1242, %v1241
  %v1300 = vpack.c.bf16 %v1244, %v1243
  %v1301 = vpack.c.bf16 %v1246, %v1245
  %v1302 = vpack.c.bf16 %v1248, %v1247
  %v1303 = vpack.c.bf16 %v1250, %v1249
  %v1304 = vpack.c.bf16 %v1252, %v1251
  %v1305 = vpack.c.bf16 %v1254, %v1253
  %v1306 = vpack.c.bf16 %v1256, %v1255
  %v1307 = vpack.c.bf16 %v1258, %v1257
  %v1308 = vpack.c.bf16 %v1260, %v1259
  %v1309 = vpack.c.bf16 %v1262, %v1261
  %v1310 = vpack.c.bf16 %v1264, %v1263
  %v1311 = vpack.c.bf16 %v1266, %v1265
  %v1312 = vpack.c.bf16 %v1268, %v1267
  %v1313 = vpack.c.bf16 %v1270, %v1269
  %v1314 = vpack.c.bf16 %v1272, %v1271
  %v1315 = vpack.c.bf16 %v1274, %v1273
  %v1316 = vpack.c.bf16 %v1276, %v1275
  %v1317 = vpack.c.bf16 %v1278, %v1277
  %v1318 = vpack.c.bf16 %v1280, %v1279
  %v1319 = vpack.c.bf16 %v1282, %v1281
  %v1320 = vpack.c.bf16 %v1284, %v1283
  %v1321 = vpack.c.bf16 %v1286, %v1285
  %v1322 = vpack.c.bf16 %v1288, %v1287
  %v1323 = vpack.c.bf16 %v1290, %v1289
  %v1324 = vpack.c.bf16 %v1292, %v1291
  %s1325 = scalar_lea.vmem %s1, 4
  %v1326 = vld [vmem:[%s1325] sm:$0x3]
  %v1328 = vsel %vm40, %v1293, 0
  %v1331 = vsel %vm40, %v1294, 0
  %v1334 = vsel %vm40, %v1295, 0
  %v1337 = vsel %vm40, %v1296, 0
  %v1340 = vsel %vm40, %v1297, 0
  %v1343 = vsel %vm40, %v1298, 0
  %v1346 = vsel %vm40, %v1299, 0
  %v1349 = vsel %vm40, %v1300, 0
  %v1352 = vsel %vm40, %v1301, 0
  %v1355 = vsel %vm40, %v1302, 0
  %v1358 = vsel %vm40, %v1303, 0
  %v1361 = vsel %vm40, %v1304, 0
  %v1364 = vsel %vm40, %v1305, 0
  %v1367 = vsel %vm40, %v1306, 0
  %v1370 = vsel %vm40, %v1307, 0
  %v1373 = vsel %vm40, %v1308, 0
  %v1376 = vsel %vm40, %v1309, 0
  %v1379 = vsel %vm40, %v1310, 0
  %v1382 = vsel %vm40, %v1311, 0
  %v1385 = vsel %vm40, %v1312, 0
  %v1388 = vsel %vm40, %v1313, 0
  %v1391 = vsel %vm40, %v1314, 0
  %v1394 = vsel %vm40, %v1315, 0
  %v1397 = vsel %vm40, %v1316, 0
  %v1400 = vsel %vm40, %v1317, 0
  %v1403 = vsel %vm40, %v1318, 0
  %v1406 = vsel %vm40, %v1319, 0
  %v1409 = vsel %vm40, %v1320, 0
  %v1412 = vsel %vm40, %v1321, 0
  %v1415 = vsel %vm40, %v1322, 0
  %v1418 = vsel %vm40, %v1323, 0
  %v1421 = vsel %vm40, %v1324, 0
  %v1424 = vsel %vm548, %v1326, 0
  %1426 = vmatprep.subr.bf16.mxu0 0
  %1427 = vmatpush1.bf16.msra.mxu0 0
  %1428 = vmatprep.subr.bf16.mxu0 0
  %1429 = vmatpush1.bf16.msra.mxu0 0
  %1430 = vmatprep.subr.bf16.mxu0 0
  %1431 = vmatpush1.bf16.msra.mxu0 0
  %1432 = vmatprep.subr.bf16.mxu0 0
  %1433 = vmatpush1.bf16.msra.mxu0 0
  %1434 = vmatprep.subr.bf16.mxu0 0
  %1435 = vmatpush1.bf16.msra.mxu0 0
  %1436 = vmatprep.subr.bf16.mxu0 0
  %1437 = vmatpush1.bf16.msra.mxu0 0
  %1438 = vmatprep.subr.bf16.mxu0 0
  %1439 = vmatpush1.bf16.msra.mxu0 0
  %1440 = vmatprep.subr.bf16.mxu0 0
  %1441 = vmatpush1.bf16.msra.mxu0 %v1424
  %1442 = vmatprep.subr.bf16.mxu0 0
  %1443 = vmatpush2.bf16.msra.mxu0 0
  %1444 = vmatprep.subr.bf16.mxu0 0
  %1445 = vmatpush2.bf16.msra.mxu0 0
  %1446 = vmatprep.subr.bf16.mxu0 0
  %1447 = vmatpush2.bf16.msra.mxu0 0
  %1448 = vmatprep.subr.bf16.mxu0 0
  %1449 = vmatpush2.bf16.msra.mxu0 0
  %1450 = vmatprep.subr.bf16.mxu0 0
  %1451 = vmatpush2.bf16.msra.mxu0 0
  %1452 = vmatprep.subr.bf16.mxu0 0
  %1453 = vmatpush2.bf16.msra.mxu0 0
  %1454 = vmatprep.subr.bf16.mxu0 0
  %1455 = vmatpush2.bf16.msra.mxu0 0
  %1456 = vmatprep.subr.bf16.mxu0 0
  %1457 = vmatpush2.bf16.msra.mxu0 0
  %1458 = vmatprep.mubr.bf16.mxu0 0
  %1459 = vmatmul.mubr.bf16.gmra.mxu0 %v1328
  %v1460 = vpop.f32.mrf.mxu0
  %v1461 = vadd.f32 0.0, %v1460
  %v1462 = vpop.f32.mrf.mxu0
  %v1463 = vpop.f32.mrf.mxu0
  %v1464 = vadd.f32 0.0, %v1463
  %v1465 = vpop.f32.mrf.mxu0
  %1466 = vmatprep.mubr.bf16.mxu0 0
  %1467 = vmatmul.mubr.bf16.gmra.mxu0 %v1331
  %v1468 = vpop.f32.mrf.mxu0
  %v1469 = vadd.f32 0.0, %v1468
  %v1470 = vpop.f32.mrf.mxu0
  %v1471 = vpop.f32.mrf.mxu0
  %v1472 = vadd.f32 0.0, %v1471
  %v1473 = vpop.f32.mrf.mxu0
  %1474 = vmatprep.mubr.bf16.mxu0 0
  %1475 = vmatmul.mubr.bf16.gmra.mxu0 %v1334
  %v1476 = vpop.f32.mrf.mxu0
  %v1477 = vadd.f32 0.0, %v1476
  %v1478 = vpop.f32.mrf.mxu0
  %v1479 = vpop.f32.mrf.mxu0
  %v1480 = vadd.f32 0.0, %v1479
  %v1481 = vpop.f32.mrf.mxu0
  %1482 = vmatprep.mubr.bf16.mxu0 0
  %1483 = vmatmul.mubr.bf16.gmra.mxu0 %v1337
  %v1484 = vpop.f32.mrf.mxu0
  %v1485 = vadd.f32 0.0, %v1484
  %v1486 = vpop.f32.mrf.mxu0
  %v1487 = vpop.f32.mrf.mxu0
  %v1488 = vadd.f32 0.0, %v1487
  %v1489 = vpop.f32.mrf.mxu0
  %1490 = vmatprep.mubr.bf16.mxu0 0
  %1491 = vmatmul.mubr.bf16.gmra.mxu0 %v1340
  %v1492 = vpop.f32.mrf.mxu0
  %v1493 = vadd.f32 0.0, %v1492
  %v1494 = vpop.f32.mrf.mxu0
  %v1495 = vpop.f32.mrf.mxu0
  %v1496 = vadd.f32 0.0, %v1495
  %v1497 = vpop.f32.mrf.mxu0
  %1498 = vmatprep.mubr.bf16.mxu0 0
  %1499 = vmatmul.mubr.bf16.gmra.mxu0 %v1343
  %v1500 = vpop.f32.mrf.mxu0
  %v1501 = vadd.f32 0.0, %v1500
  %v1502 = vpop.f32.mrf.mxu0
  %v1503 = vpop.f32.mrf.mxu0
  %v1504 = vadd.f32 0.0, %v1503
  %v1505 = vpop.f32.mrf.mxu0
  %1506 = vmatprep.mubr.bf16.mxu0 0
  %1507 = vmatmul.mubr.bf16.gmra.mxu0 %v1346
  %v1508 = vpop.f32.mrf.mxu0
  %v1509 = vadd.f32 0.0, %v1508
  %v1510 = vpop.f32.mrf.mxu0
  %v1511 = vpop.f32.mrf.mxu0
  %v1512 = vadd.f32 0.0, %v1511
  %v1513 = vpop.f32.mrf.mxu0
  %1514 = vmatprep.mubr.bf16.mxu0 0
  %1515 = vmatmul.mubr.bf16.gmra.mxu0 %v1349
  %v1516 = vpop.f32.mrf.mxu0
  %v1517 = vadd.f32 0.0, %v1516
  %v1518 = vpop.f32.mrf.mxu0
  %v1519 = vpop.f32.mrf.mxu0
  %v1520 = vadd.f32 0.0, %v1519
  %v1521 = vpop.f32.mrf.mxu0
  %1522 = vmatprep.mubr.bf16.mxu0 0
  %1523 = vmatmul.mubr.bf16.gmra.mxu0 %v1352
  %v1524 = vpop.f32.mrf.mxu0
  %v1525 = vadd.f32 0.0, %v1524
  %v1526 = vpop.f32.mrf.mxu0
  %v1527 = vpop.f32.mrf.mxu0
  %v1528 = vadd.f32 0.0, %v1527
  %v1529 = vpop.f32.mrf.mxu0
  %1530 = vmatprep.mubr.bf16.mxu0 0
  %1531 = vmatmul.mubr.bf16.gmra.mxu0 %v1355
  %v1532 = vpop.f32.mrf.mxu0
  %v1533 = vadd.f32 0.0, %v1532
  %v1534 = vpop.f32.mrf.mxu0
  %v1535 = vpop.f32.mrf.mxu0
  %v1536 = vadd.f32 0.0, %v1535
  %v1537 = vpop.f32.mrf.mxu0
  %1538 = vmatprep.mubr.bf16.mxu0 0
  %1539 = vmatmul.mubr.bf16.gmra.mxu0 %v1358
  %v1540 = vpop.f32.mrf.mxu0
  %v1541 = vadd.f32 0.0, %v1540
  %v1542 = vpop.f32.mrf.mxu0
  %v1543 = vpop.f32.mrf.mxu0
  %v1544 = vadd.f32 0.0, %v1543
  %v1545 = vpop.f32.mrf.mxu0
  %1546 = vmatprep.mubr.bf16.mxu0 0
  %1547 = vmatmul.mubr.bf16.gmra.mxu0 %v1361
  %v1548 = vpop.f32.mrf.mxu0
  %v1549 = vadd.f32 0.0, %v1548
  %v1550 = vpop.f32.mrf.mxu0
  %v1551 = vpop.f32.mrf.mxu0
  %v1552 = vadd.f32 0.0, %v1551
  %v1553 = vpop.f32.mrf.mxu0
  %1554 = vmatprep.mubr.bf16.mxu0 0
  %1555 = vmatmul.mubr.bf16.gmra.mxu0 %v1364
  %v1556 = vpop.f32.mrf.mxu0
  %v1557 = vadd.f32 0.0, %v1556
  %v1558 = vpop.f32.mrf.mxu0
  %v1559 = vpop.f32.mrf.mxu0
  %v1560 = vadd.f32 0.0, %v1559
  %v1561 = vpop.f32.mrf.mxu0
  %1562 = vmatprep.mubr.bf16.mxu0 0
  %1563 = vmatmul.mubr.bf16.gmra.mxu0 %v1367
  %v1564 = vpop.f32.mrf.mxu0
  %v1565 = vadd.f32 0.0, %v1564
  %v1566 = vpop.f32.mrf.mxu0
  %v1567 = vpop.f32.mrf.mxu0
  %v1568 = vadd.f32 0.0, %v1567
  %v1569 = vpop.f32.mrf.mxu0
  %1570 = vmatprep.mubr.bf16.mxu0 0
  %1571 = vmatmul.mubr.bf16.gmra.mxu0 %v1370
  %v1572 = vpop.f32.mrf.mxu0
  %v1573 = vadd.f32 0.0, %v1572
  %v1574 = vpop.f32.mrf.mxu0
  %v1575 = vpop.f32.mrf.mxu0
  %v1576 = vadd.f32 0.0, %v1575
  %v1577 = vpop.f32.mrf.mxu0
  %1578 = vmatprep.mubr.bf16.mxu0 0
  %1579 = vmatmul.mubr.bf16.gmra.mxu0 %v1373
  %v1580 = vpop.f32.mrf.mxu0
  %v1581 = vadd.f32 0.0, %v1580
  %v1582 = vpop.f32.mrf.mxu0
  %v1583 = vpop.f32.mrf.mxu0
  %v1584 = vadd.f32 0.0, %v1583
  %v1585 = vpop.f32.mrf.mxu0
  %1586 = vmatprep.mubr.bf16.mxu0 0
  %1587 = vmatmul.mubr.bf16.gmra.mxu0 %v1376
  %v1588 = vpop.f32.mrf.mxu0
  %v1589 = vadd.f32 0.0, %v1588
  %v1590 = vpop.f32.mrf.mxu0
  %v1591 = vpop.f32.mrf.mxu0
  %v1592 = vadd.f32 0.0, %v1591
  %v1593 = vpop.f32.mrf.mxu0
  %1594 = vmatprep.mubr.bf16.mxu0 0
  %1595 = vmatmul.mubr.bf16.gmra.mxu0 %v1379
  %v1596 = vpop.f32.mrf.mxu0
  %v1597 = vadd.f32 0.0, %v1596
  %v1598 = vpop.f32.mrf.mxu0
  %v1599 = vpop.f32.mrf.mxu0
  %v1600 = vadd.f32 0.0, %v1599
  %v1601 = vpop.f32.mrf.mxu0
  %1602 = vmatprep.mubr.bf16.mxu0 0
  %1603 = vmatmul.mubr.bf16.gmra.mxu0 %v1382
  %v1604 = vpop.f32.mrf.mxu0
  %v1605 = vadd.f32 0.0, %v1604
  %v1606 = vpop.f32.mrf.mxu0
  %v1607 = vpop.f32.mrf.mxu0
  %v1608 = vadd.f32 0.0, %v1607
  %v1609 = vpop.f32.mrf.mxu0
  %1610 = vmatprep.mubr.bf16.mxu0 0
  %1611 = vmatmul.mubr.bf16.gmra.mxu0 %v1385
  %v1612 = vpop.f32.mrf.mxu0
  %v1613 = vadd.f32 0.0, %v1612
  %v1614 = vpop.f32.mrf.mxu0
  %v1615 = vpop.f32.mrf.mxu0
  %v1616 = vadd.f32 0.0, %v1615
  %v1617 = vpop.f32.mrf.mxu0
  %1618 = vmatprep.mubr.bf16.mxu0 0
  %1619 = vmatmul.mubr.bf16.gmra.mxu0 %v1388
  %v1620 = vpop.f32.mrf.mxu0
  %v1621 = vadd.f32 0.0, %v1620
  %v1622 = vpop.f32.mrf.mxu0
  %v1623 = vpop.f32.mrf.mxu0
  %v1624 = vadd.f32 0.0, %v1623
  %v1625 = vpop.f32.mrf.mxu0
  %1626 = vmatprep.mubr.bf16.mxu0 0
  %1627 = vmatmul.mubr.bf16.gmra.mxu0 %v1391
  %v1628 = vpop.f32.mrf.mxu0
  %v1629 = vadd.f32 0.0, %v1628
  %v1630 = vpop.f32.mrf.mxu0
  %v1631 = vpop.f32.mrf.mxu0
  %v1632 = vadd.f32 0.0, %v1631
  %v1633 = vpop.f32.mrf.mxu0
  %1634 = vmatprep.mubr.bf16.mxu0 0
  %1635 = vmatmul.mubr.bf16.gmra.mxu0 %v1394
  %v1636 = vpop.f32.mrf.mxu0
  %v1637 = vadd.f32 0.0, %v1636
  %v1638 = vpop.f32.mrf.mxu0
  %v1639 = vpop.f32.mrf.mxu0
  %v1640 = vadd.f32 0.0, %v1639
  %v1641 = vpop.f32.mrf.mxu0
  %1642 = vmatprep.mubr.bf16.mxu0 0
  %1643 = vmatmul.mubr.bf16.gmra.mxu0 %v1397
  %v1644 = vpop.f32.mrf.mxu0
  %v1645 = vadd.f32 0.0, %v1644
  %v1646 = vpop.f32.mrf.mxu0
  %v1647 = vpop.f32.mrf.mxu0
  %v1648 = vadd.f32 0.0, %v1647
  %v1649 = vpop.f32.mrf.mxu0
  %1650 = vmatprep.mubr.bf16.mxu0 0
  %1651 = vmatmul.mubr.bf16.gmra.mxu0 %v1400
  %v1652 = vpop.f32.mrf.mxu0
  %v1653 = vadd.f32 0.0, %v1652
  %v1654 = vpop.f32.mrf.mxu0
  %v1655 = vpop.f32.mrf.mxu0
  %v1656 = vadd.f32 0.0, %v1655
  %v1657 = vpop.f32.mrf.mxu0
  %1658 = vmatprep.mubr.bf16.mxu0 0
  %1659 = vmatmul.mubr.bf16.gmra.mxu0 %v1403
  %v1660 = vpop.f32.mrf.mxu0
  %v1661 = vadd.f32 0.0, %v1660
  %v1662 = vpop.f32.mrf.mxu0
  %v1663 = vpop.f32.mrf.mxu0
  %v1664 = vadd.f32 0.0, %v1663
  %v1665 = vpop.f32.mrf.mxu0
  %1666 = vmatprep.mubr.bf16.mxu0 0
  %1667 = vmatmul.mubr.bf16.gmra.mxu0 %v1406
  %v1668 = vpop.f32.mrf.mxu0
  %v1669 = vadd.f32 0.0, %v1668
  %v1670 = vpop.f32.mrf.mxu0
  %v1671 = vpop.f32.mrf.mxu0
  %v1672 = vadd.f32 0.0, %v1671
  %v1673 = vpop.f32.mrf.mxu0
  %1674 = vmatprep.mubr.bf16.mxu0 0
  %1675 = vmatmul.mubr.bf16.gmra.mxu0 %v1409
  %v1676 = vpop.f32.mrf.mxu0
  %v1677 = vadd.f32 0.0, %v1676
  %v1678 = vpop.f32.mrf.mxu0
  %v1679 = vpop.f32.mrf.mxu0
  %v1680 = vadd.f32 0.0, %v1679
  %v1681 = vpop.f32.mrf.mxu0
  %1682 = vmatprep.mubr.bf16.mxu0 0
  %1683 = vmatmul.mubr.bf16.gmra.mxu0 %v1412
  %v1684 = vpop.f32.mrf.mxu0
  %v1685 = vadd.f32 0.0, %v1684
  %v1686 = vpop.f32.mrf.mxu0
  %v1687 = vpop.f32.mrf.mxu0
  %v1688 = vadd.f32 0.0, %v1687
  %v1689 = vpop.f32.mrf.mxu0
  %1690 = vmatprep.mubr.bf16.mxu0 0
  %1691 = vmatmul.mubr.bf16.gmra.mxu0 %v1415
  %v1692 = vpop.f32.mrf.mxu0
  %v1693 = vadd.f32 0.0, %v1692
  %v1694 = vpop.f32.mrf.mxu0
  %v1695 = vpop.f32.mrf.mxu0
  %v1696 = vadd.f32 0.0, %v1695
  %v1697 = vpop.f32.mrf.mxu0
  %1698 = vmatprep.mubr.bf16.mxu0 0
  %1699 = vmatmul.mubr.bf16.gmra.mxu0 %v1418
  %v1700 = vpop.f32.mrf.mxu0
  %v1701 = vadd.f32 0.0, %v1700
  %v1702 = vpop.f32.mrf.mxu0
  %v1703 = vpop.f32.mrf.mxu0
  %v1704 = vadd.f32 0.0, %v1703
  %v1705 = vpop.f32.mrf.mxu0
  %1706 = vmatprep.mubr.bf16.mxu0 0
  %1707 = vmatmul.mubr.bf16.gmra.mxu0 %v1421
  %v1708 = vpop.f32.mrf.mxu0
  %v1709 = vadd.f32 0.0, %v1708
  %v1710 = vpop.f32.mrf.mxu0
  %v1711 = vpop.f32.mrf.mxu0
  %v1712 = vadd.f32 0.0, %v1711
  %v1713 = vpop.f32.mrf.mxu0
  %1714 = vdwg.mxu0
  %v1715 = vadd.f32 %v975, %v1461
  %v1716 = vadd.f32 %v978, %v1464
  %v1717 = vadd.f32 %v983, %v1469
  %v1718 = vadd.f32 %v986, %v1472
  %v1719 = vadd.f32 %v991, %v1477
  %v1720 = vadd.f32 %v994, %v1480
  %v1721 = vadd.f32 %v999, %v1485
  %v1722 = vadd.f32 %v1002, %v1488
  %v1723 = vadd.f32 %v1007, %v1493
  %v1724 = vadd.f32 %v1010, %v1496
  %v1725 = vadd.f32 %v1015, %v1501
  %v1726 = vadd.f32 %v1018, %v1504
  %v1727 = vadd.f32 %v1023, %v1509
  %v1728 = vadd.f32 %v1026, %v1512
  %v1729 = vadd.f32 %v1031, %v1517
  %v1730 = vadd.f32 %v1034, %v1520
  %v1731 = vadd.f32 %v1039, %v1525
  %v1732 = vadd.f32 %v1042, %v1528
  %v1733 = vadd.f32 %v1047, %v1533
  %v1734 = vadd.f32 %v1050, %v1536
  %v1735 = vadd.f32 %v1055, %v1541
  %v1736 = vadd.f32 %v1058, %v1544
  %v1737 = vadd.f32 %v1063, %v1549
  %v1738 = vadd.f32 %v1066, %v1552
  %v1739 = vadd.f32 %v1071, %v1557
  %v1740 = vadd.f32 %v1074, %v1560
  %v1741 = vadd.f32 %v1079, %v1565
  %v1742 = vadd.f32 %v1082, %v1568
  %v1743 = vadd.f32 %v1087, %v1573
  %v1744 = vadd.f32 %v1090, %v1576
  %v1745 = vadd.f32 %v1095, %v1581
  %v1746 = vadd.f32 %v1098, %v1584
  %v1747 = vadd.f32 %v1103, %v1589
  %v1748 = vadd.f32 %v1106, %v1592
  %v1749 = vadd.f32 %v1111, %v1597
  %v1750 = vadd.f32 %v1114, %v1600
  %v1751 = vadd.f32 %v1119, %v1605
  %v1752 = vadd.f32 %v1122, %v1608
  %v1753 = vadd.f32 %v1127, %v1613
  %v1754 = vadd.f32 %v1130, %v1616
  %v1755 = vadd.f32 %v1135, %v1621
  %v1756 = vadd.f32 %v1138, %v1624
  %v1757 = vadd.f32 %v1143, %v1629
  %v1758 = vadd.f32 %v1146, %v1632
  %v1759 = vadd.f32 %v1151, %v1637
  %v1760 = vadd.f32 %v1154, %v1640
  %v1761 = vadd.f32 %v1159, %v1645
  %v1762 = vadd.f32 %v1162, %v1648
  %v1763 = vadd.f32 %v1167, %v1653
  %v1764 = vadd.f32 %v1170, %v1656
  %v1765 = vadd.f32 %v1175, %v1661
  %v1766 = vadd.f32 %v1178, %v1664
  %v1767 = vadd.f32 %v1183, %v1669
  %v1768 = vadd.f32 %v1186, %v1672
  %v1769 = vadd.f32 %v1191, %v1677
  %v1770 = vadd.f32 %v1194, %v1680
  %v1771 = vadd.f32 %v1199, %v1685
  %v1772 = vadd.f32 %v1202, %v1688
  %v1773 = vadd.f32 %v1207, %v1693
  %v1774 = vadd.f32 %v1210, %v1696
  %v1775 = vadd.f32 %v1215, %v1701
  %v1776 = vadd.f32 %v1218, %v1704
  %v1777 = vadd.f32 %v1223, %v1709
  %v1778 = vadd.f32 %v1226, %v1712
  %v1779 = vld [vmem:[%s192] sm:$0xff]
  %v1780 = vld [vmem:[%s192 + $0x8] sm:$0xff]
  %v1781 = vld [vmem:[%s192 + $0x18] sm:$0xff]
  %v1782 = vld [vmem:[%s192 + $0x20] sm:$0xff]
  %v1783 = vld [vmem:[%s192 + $0x30] sm:$0xff]
  %v1784 = vld [vmem:[%s192 + $0x38] sm:$0xff]
  %v1785 = vld [vmem:[%s192 + $0x48] sm:$0xff]
  %v1786 = vld [vmem:[%s192 + $0x50] sm:$0xff]
  %v1787 = vld [vmem:[%s192 + $0x60] sm:$0xff]
  %v1788 = vld [vmem:[%s192 + $0x68] sm:$0xff]
  %v1789 = vld [vmem:[%s192 + $0x78] sm:$0xff]
  %v1790 = vld [vmem:[%s192 + $0x80] sm:$0xff]
  %v1791 = vld [vmem:[%s192 + $0x90] sm:$0xff]
  %v1792 = vld [vmem:[%s192 + $0x98] sm:$0xff]
  %v1793 = vld [vmem:[%s192 + $0xa8] sm:$0xff]
  %v1794 = vld [vmem:[%s192 + $0xb0] sm:$0xff]
  %v1795 = vld [vmem:[%s192 + $0xc0] sm:$0xff]
  %v1796 = vld [vmem:[%s192 + $0xc8] sm:$0xff]
  %v1797 = vld [vmem:[%s192 + $0xd8] sm:$0xff]
  %v1798 = vld [vmem:[%s192 + $0xe0] sm:$0xff]
  %v1799 = vld [vmem:[%s192 + $0xf0] sm:$0xff]
  %v1800 = vld [vmem:[%s192 + $0xf8] sm:$0xff]
  %v1801 = vld [vmem:[%s192 + $0x108] sm:$0xff]
  %v1802 = vld [vmem:[%s192 + $0x110] sm:$0xff]
  %v1803 = vld [vmem:[%s192 + $0x120] sm:$0xff]
  %v1804 = vld [vmem:[%s192 + $0x128] sm:$0xff]
  %v1805 = vld [vmem:[%s192 + $0x138] sm:$0xff]
  %v1806 = vld [vmem:[%s192 + $0x140] sm:$0xff]
  %v1807 = vld [vmem:[%s192 + $0x150] sm:$0xff]
  %v1808 = vld [vmem:[%s192 + $0x158] sm:$0xff]
  %v1809 = vld [vmem:[%s192 + $0x168] sm:$0xff]
  %v1810 = vld [vmem:[%s192 + $0x170] sm:$0xff]
  %v1811 = vld [vmem:[%s192 + $0x1b0] sm:$0xff]
  %v1812 = vld [vmem:[%s192 + $0x1b8] sm:$0xff]
  %v1813 = vld [vmem:[%s192 + $0x1c8] sm:$0xff]
  %v1814 = vld [vmem:[%s192 + $0x1d0] sm:$0xff]
  %v1815 = vld [vmem:[%s192 + $0x1e0] sm:$0xff]
  %v1816 = vld [vmem:[%s192 + $0x1e8] sm:$0xff]
  %v1817 = vld [vmem:[%s192 + $0x1f8] sm:$0xff]
  %v1818 = vld [vmem:[%s192 + $0x200] sm:$0xff]
  %v1819 = vld [vmem:[%s192 + $0x210] sm:$0xff]
  %v1820 = vld [vmem:[%s192 + $0x218] sm:$0xff]
  %v1821 = vld [vmem:[%s192 + $0x228] sm:$0xff]
  %v1822 = vld [vmem:[%s192 + $0x230] sm:$0xff]
  %v1823 = vld [vmem:[%s192 + $0x240] sm:$0xff]
  %v1824 = vld [vmem:[%s192 + $0x248] sm:$0xff]
  %v1825 = vld [vmem:[%s192 + $0x258] sm:$0xff]
  %v1826 = vld [vmem:[%s192 + $0x260] sm:$0xff]
  %v1827 = vld [vmem:[%s192 + $0x270] sm:$0xff]
  %v1828 = vld [vmem:[%s192 + $0x278] sm:$0xff]
  %v1829 = vld [vmem:[%s192 + $0x288] sm:$0xff]
  %v1830 = vld [vmem:[%s192 + $0x290] sm:$0xff]
  %v1831 = vld [vmem:[%s192 + $0x2a0] sm:$0xff]
  %v1832 = vld [vmem:[%s192 + $0x2a8] sm:$0xff]
  %v1833 = vld [vmem:[%s192 + $0x2b8] sm:$0xff]
  %v1834 = vld [vmem:[%s192 + $0x2c0] sm:$0xff]
  %v1835 = vld [vmem:[%s192 + $0x2d0] sm:$0xff]
  %v1836 = vld [vmem:[%s192 + $0x2d8] sm:$0xff]
  %v1837 = vld [vmem:[%s192 + $0x2e8] sm:$0xff]
  %v1838 = vld [vmem:[%s192 + $0x2f0] sm:$0xff]
  %v1839 = vld [vmem:[%s192 + $0x300] sm:$0xff]
  %v1840 = vld [vmem:[%s192 + $0x308] sm:$0xff]
  %v1841 = vld [vmem:[%s192 + $0x318] sm:$0xff]
  %v1842 = vld [vmem:[%s192 + $0x320] sm:$0xff]
  %v1843 = vpack.c.bf16 %v1780, %v1779
  %v1844 = vpack.c.bf16 %v1782, %v1781
  %v1845 = vpack.c.bf16 %v1784, %v1783
  %v1846 = vpack.c.bf16 %v1786, %v1785
  %v1847 = vpack.c.bf16 %v1788, %v1787
  %v1848 = vpack.c.bf16 %v1790, %v1789
  %v1849 = vpack.c.bf16 %v1792, %v1791
  %v1850 = vpack.c.bf16 %v1794, %v1793
  %v1851 = vpack.c.bf16 %v1796, %v1795
  %v1852 = vpack.c.bf16 %v1798, %v1797
  %v1853 = vpack.c.bf16 %v1800, %v1799
  %v1854 = vpack.c.bf16 %v1802, %v1801
  %v1855 = vpack.c.bf16 %v1804, %v1803
  %v1856 = vpack.c.bf16 %v1806, %v1805
  %v1857 = vpack.c.bf16 %v1808, %v1807
  %v1858 = vpack.c.bf16 %v1810, %v1809
  %v1859 = vpack.c.bf16 %v1812, %v1811
  %v1860 = vpack.c.bf16 %v1814, %v1813
  %v1861 = vpack.c.bf16 %v1816, %v1815
  %v1862 = vpack.c.bf16 %v1818, %v1817
  %v1863 = vpack.c.bf16 %v1820, %v1819
  %v1864 = vpack.c.bf16 %v1822, %v1821
  %v1865 = vpack.c.bf16 %v1824, %v1823
  %v1866 = vpack.c.bf16 %v1826, %v1825
  %v1867 = vpack.c.bf16 %v1828, %v1827
  %v1868 = vpack.c.bf16 %v1830, %v1829
  %v1869 = vpack.c.bf16 %v1832, %v1831
  %v1870 = vpack.c.bf16 %v1834, %v1833
  %v1871 = vpack.c.bf16 %v1836, %v1835
  %v1872 = vpack.c.bf16 %v1838, %v1837
  %v1873 = vpack.c.bf16 %v1840, %v1839
  %v1874 = vpack.c.bf16 %v1842, %v1841
  %s1875 = scalar_lea.vmem %s1, 6
  %v1876 = vld [vmem:[%s1875] sm:$0x3]
  %v1878 = vsel %vm40, %v1843, 0
  %v1881 = vsel %vm40, %v1844, 0
  %v1884 = vsel %vm40, %v1845, 0
  %v1887 = vsel %vm40, %v1846, 0
  %v1890 = vsel %vm40, %v1847, 0
  %v1893 = vsel %vm40, %v1848, 0
  %v1896 = vsel %vm40, %v1849, 0
  %v1899 = vsel %vm40, %v1850, 0
  %v1902 = vsel %vm40, %v1851, 0
  %v1905 = vsel %vm40, %v1852, 0
  %v1908 = vsel %vm40, %v1853, 0
  %v1911 = vsel %vm40, %v1854, 0
  %v1914 = vsel %vm40, %v1855, 0
  %v1917 = vsel %vm40, %v1856, 0
  %v1920 = vsel %vm40, %v1857, 0
  %v1923 = vsel %vm40, %v1858, 0
  %v1926 = vsel %vm40, %v1859, 0
  %v1929 = vsel %vm40, %v1860, 0
  %v1932 = vsel %vm40, %v1861, 0
  %v1935 = vsel %vm40, %v1862, 0
  %v1938 = vsel %vm40, %v1863, 0
  %v1941 = vsel %vm40, %v1864, 0
  %v1944 = vsel %vm40, %v1865, 0
  %v1947 = vsel %vm40, %v1866, 0
  %v1950 = vsel %vm40, %v1867, 0
  %v1953 = vsel %vm40, %v1868, 0
  %v1956 = vsel %vm40, %v1869, 0
  %v1959 = vsel %vm40, %v1870, 0
  %v1962 = vsel %vm40, %v1871, 0
  %v1965 = vsel %vm40, %v1872, 0
  %v1968 = vsel %vm40, %v1873, 0
  %v1971 = vsel %vm40, %v1874, 0
  %v1974 = vsel %vm548, %v1876, 0
  %1976 = vmatprep.subr.bf16.mxu0 0
  %1977 = vmatpush1.bf16.msra.mxu0 0
  %1978 = vmatprep.subr.bf16.mxu0 0
  %1979 = vmatpush1.bf16.msra.mxu0 0
  %1980 = vmatprep.subr.bf16.mxu0 0
  %1981 = vmatpush1.bf16.msra.mxu0 0
  %1982 = vmatprep.subr.bf16.mxu0 0
  %1983 = vmatpush1.bf16.msra.mxu0 0
  %1984 = vmatprep.subr.bf16.mxu0 0
  %1985 = vmatpush1.bf16.msra.mxu0 0
  %1986 = vmatprep.subr.bf16.mxu0 0
  %1987 = vmatpush1.bf16.msra.mxu0 0
  %1988 = vmatprep.subr.bf16.mxu0 0
  %1989 = vmatpush1.bf16.msra.mxu0 0
  %1990 = vmatprep.subr.bf16.mxu0 0
  %1991 = vmatpush1.bf16.msra.mxu0 %v1974
  %1992 = vmatprep.subr.bf16.mxu0 0
  %1993 = vmatpush2.bf16.msra.mxu0 0
  %1994 = vmatprep.subr.bf16.mxu0 0
  %1995 = vmatpush2.bf16.msra.mxu0 0
  %1996 = vmatprep.subr.bf16.mxu0 0
  %1997 = vmatpush2.bf16.msra.mxu0 0
  %1998 = vmatprep.subr.bf16.mxu0 0
  %1999 = vmatpush2.bf16.msra.mxu0 0
  %2000 = vmatprep.subr.bf16.mxu0 0
  %2001 = vmatpush2.bf16.msra.mxu0 0
  %2002 = vmatprep.subr.bf16.mxu0 0
  %2003 = vmatpush2.bf16.msra.mxu0 0
  %2004 = vmatprep.subr.bf16.mxu0 0
  %2005 = vmatpush2.bf16.msra.mxu0 0
  %2006 = vmatprep.subr.bf16.mxu0 0
  %2007 = vmatpush2.bf16.msra.mxu0 0
  %2008 = vmatprep.mubr.bf16.mxu0 0
  %2009 = vmatmul.mubr.bf16.gmra.mxu0 %v1878
  %v2010 = vpop.f32.mrf.mxu0
  %v2011 = vadd.f32 0.0, %v2010
  %v2012 = vpop.f32.mrf.mxu0
  %v2013 = vpop.f32.mrf.mxu0
  %v2014 = vadd.f32 0.0, %v2013
  %v2015 = vpop.f32.mrf.mxu0
  %2016 = vmatprep.mubr.bf16.mxu0 0
  %2017 = vmatmul.mubr.bf16.gmra.mxu0 %v1881
  %v2018 = vpop.f32.mrf.mxu0
  %v2019 = vadd.f32 0.0, %v2018
  %v2020 = vpop.f32.mrf.mxu0
  %v2021 = vpop.f32.mrf.mxu0
  %v2022 = vadd.f32 0.0, %v2021
  %v2023 = vpop.f32.mrf.mxu0
  %2024 = vmatprep.mubr.bf16.mxu0 0
  %2025 = vmatmul.mubr.bf16.gmra.mxu0 %v1884
  %v2026 = vpop.f32.mrf.mxu0
  %v2027 = vadd.f32 0.0, %v2026
  %v2028 = vpop.f32.mrf.mxu0
  %v2029 = vpop.f32.mrf.mxu0
  %v2030 = vadd.f32 0.0, %v2029
  %v2031 = vpop.f32.mrf.mxu0
  %2032 = vmatprep.mubr.bf16.mxu0 0
  %2033 = vmatmul.mubr.bf16.gmra.mxu0 %v1887
  %v2034 = vpop.f32.mrf.mxu0
  %v2035 = vadd.f32 0.0, %v2034
  %v2036 = vpop.f32.mrf.mxu0
  %v2037 = vpop.f32.mrf.mxu0
  %v2038 = vadd.f32 0.0, %v2037
  %v2039 = vpop.f32.mrf.mxu0
  %2040 = vmatprep.mubr.bf16.mxu0 0
  %2041 = vmatmul.mubr.bf16.gmra.mxu0 %v1890
  %v2042 = vpop.f32.mrf.mxu0
  %v2043 = vadd.f32 0.0, %v2042
  %v2044 = vpop.f32.mrf.mxu0
  %v2045 = vpop.f32.mrf.mxu0
  %v2046 = vadd.f32 0.0, %v2045
  %v2047 = vpop.f32.mrf.mxu0
  %2048 = vmatprep.mubr.bf16.mxu0 0
  %2049 = vmatmul.mubr.bf16.gmra.mxu0 %v1893
  %v2050 = vpop.f32.mrf.mxu0
  %v2051 = vadd.f32 0.0, %v2050
  %v2052 = vpop.f32.mrf.mxu0
  %v2053 = vpop.f32.mrf.mxu0
  %v2054 = vadd.f32 0.0, %v2053
  %v2055 = vpop.f32.mrf.mxu0
  %2056 = vmatprep.mubr.bf16.mxu0 0
  %2057 = vmatmul.mubr.bf16.gmra.mxu0 %v1896
  %v2058 = vpop.f32.mrf.mxu0
  %v2059 = vadd.f32 0.0, %v2058
  %v2060 = vpop.f32.mrf.mxu0
  %v2061 = vpop.f32.mrf.mxu0
  %v2062 = vadd.f32 0.0, %v2061
  %v2063 = vpop.f32.mrf.mxu0
  %2064 = vmatprep.mubr.bf16.mxu0 0
  %2065 = vmatmul.mubr.bf16.gmra.mxu0 %v1899
  %v2066 = vpop.f32.mrf.mxu0
  %v2067 = vadd.f32 0.0, %v2066
  %v2068 = vpop.f32.mrf.mxu0
  %v2069 = vpop.f32.mrf.mxu0
  %v2070 = vadd.f32 0.0, %v2069
  %v2071 = vpop.f32.mrf.mxu0
  %2072 = vmatprep.mubr.bf16.mxu0 0
  %2073 = vmatmul.mubr.bf16.gmra.mxu0 %v1902
  %v2074 = vpop.f32.mrf.mxu0
  %v2075 = vadd.f32 0.0, %v2074
  %v2076 = vpop.f32.mrf.mxu0
  %v2077 = vpop.f32.mrf.mxu0
  %v2078 = vadd.f32 0.0, %v2077
  %v2079 = vpop.f32.mrf.mxu0
  %2080 = vmatprep.mubr.bf16.mxu0 0
  %2081 = vmatmul.mubr.bf16.gmra.mxu0 %v1905
  %v2082 = vpop.f32.mrf.mxu0
  %v2083 = vadd.f32 0.0, %v2082
  %v2084 = vpop.f32.mrf.mxu0
  %v2085 = vpop.f32.mrf.mxu0
  %v2086 = vadd.f32 0.0, %v2085
  %v2087 = vpop.f32.mrf.mxu0
  %2088 = vmatprep.mubr.bf16.mxu0 0
  %2089 = vmatmul.mubr.bf16.gmra.mxu0 %v1908
  %v2090 = vpop.f32.mrf.mxu0
  %v2091 = vadd.f32 0.0, %v2090
  %v2092 = vpop.f32.mrf.mxu0
  %v2093 = vpop.f32.mrf.mxu0
  %v2094 = vadd.f32 0.0, %v2093
  %v2095 = vpop.f32.mrf.mxu0
  %2096 = vmatprep.mubr.bf16.mxu0 0
  %2097 = vmatmul.mubr.bf16.gmra.mxu0 %v1911
  %v2098 = vpop.f32.mrf.mxu0
  %v2099 = vadd.f32 0.0, %v2098
  %v2100 = vpop.f32.mrf.mxu0
  %v2101 = vpop.f32.mrf.mxu0
  %v2102 = vadd.f32 0.0, %v2101
  %v2103 = vpop.f32.mrf.mxu0
  %2104 = vmatprep.mubr.bf16.mxu0 0
  %2105 = vmatmul.mubr.bf16.gmra.mxu0 %v1914
  %v2106 = vpop.f32.mrf.mxu0
  %v2107 = vadd.f32 0.0, %v2106
  %v2108 = vpop.f32.mrf.mxu0
  %v2109 = vpop.f32.mrf.mxu0
  %v2110 = vadd.f32 0.0, %v2109
  %v2111 = vpop.f32.mrf.mxu0
  %2112 = vmatprep.mubr.bf16.mxu0 0
  %2113 = vmatmul.mubr.bf16.gmra.mxu0 %v1917
  %v2114 = vpop.f32.mrf.mxu0
  %v2115 = vadd.f32 0.0, %v2114
  %v2116 = vpop.f32.mrf.mxu0
  %v2117 = vpop.f32.mrf.mxu0
  %v2118 = vadd.f32 0.0, %v2117
  %v2119 = vpop.f32.mrf.mxu0
  %2120 = vmatprep.mubr.bf16.mxu0 0
  %2121 = vmatmul.mubr.bf16.gmra.mxu0 %v1920
  %v2122 = vpop.f32.mrf.mxu0
  %v2123 = vadd.f32 0.0, %v2122
  %v2124 = vpop.f32.mrf.mxu0
  %v2125 = vpop.f32.mrf.mxu0
  %v2126 = vadd.f32 0.0, %v2125
  %v2127 = vpop.f32.mrf.mxu0
  %2128 = vmatprep.mubr.bf16.mxu0 0
  %2129 = vmatmul.mubr.bf16.gmra.mxu0 %v1923
  %v2130 = vpop.f32.mrf.mxu0
  %v2131 = vadd.f32 0.0, %v2130
  %v2132 = vpop.f32.mrf.mxu0
  %v2133 = vpop.f32.mrf.mxu0
  %v2134 = vadd.f32 0.0, %v2133
  %v2135 = vpop.f32.mrf.mxu0
  %2136 = vmatprep.mubr.bf16.mxu0 0
  %2137 = vmatmul.mubr.bf16.gmra.mxu0 %v1926
  %v2138 = vpop.f32.mrf.mxu0
  %v2139 = vadd.f32 0.0, %v2138
  %v2140 = vpop.f32.mrf.mxu0
  %v2141 = vpop.f32.mrf.mxu0
  %v2142 = vadd.f32 0.0, %v2141
  %v2143 = vpop.f32.mrf.mxu0
  %2144 = vmatprep.mubr.bf16.mxu0 0
  %2145 = vmatmul.mubr.bf16.gmra.mxu0 %v1929
  %v2146 = vpop.f32.mrf.mxu0
  %v2147 = vadd.f32 0.0, %v2146
  %v2148 = vpop.f32.mrf.mxu0
  %v2149 = vpop.f32.mrf.mxu0
  %v2150 = vadd.f32 0.0, %v2149
  %v2151 = vpop.f32.mrf.mxu0
  %2152 = vmatprep.mubr.bf16.mxu0 0
  %2153 = vmatmul.mubr.bf16.gmra.mxu0 %v1932
  %v2154 = vpop.f32.mrf.mxu0
  %v2155 = vadd.f32 0.0, %v2154
  %v2156 = vpop.f32.mrf.mxu0
  %v2157 = vpop.f32.mrf.mxu0
  %v2158 = vadd.f32 0.0, %v2157
  %v2159 = vpop.f32.mrf.mxu0
  %2160 = vmatprep.mubr.bf16.mxu0 0
  %2161 = vmatmul.mubr.bf16.gmra.mxu0 %v1935
  %v2162 = vpop.f32.mrf.mxu0
  %v2163 = vadd.f32 0.0, %v2162
  %v2164 = vpop.f32.mrf.mxu0
  %v2165 = vpop.f32.mrf.mxu0
  %v2166 = vadd.f32 0.0, %v2165
  %v2167 = vpop.f32.mrf.mxu0
  %2168 = vmatprep.mubr.bf16.mxu0 0
  %2169 = vmatmul.mubr.bf16.gmra.mxu0 %v1938
  %v2170 = vpop.f32.mrf.mxu0
  %v2171 = vadd.f32 0.0, %v2170
  %v2172 = vpop.f32.mrf.mxu0
  %v2173 = vpop.f32.mrf.mxu0
  %v2174 = vadd.f32 0.0, %v2173
  %v2175 = vpop.f32.mrf.mxu0
  %2176 = vmatprep.mubr.bf16.mxu0 0
  %2177 = vmatmul.mubr.bf16.gmra.mxu0 %v1941
  %v2178 = vpop.f32.mrf.mxu0
  %v2179 = vadd.f32 0.0, %v2178
  %v2180 = vpop.f32.mrf.mxu0
  %v2181 = vpop.f32.mrf.mxu0
  %v2182 = vadd.f32 0.0, %v2181
  %v2183 = vpop.f32.mrf.mxu0
  %2184 = vmatprep.mubr.bf16.mxu0 0
  %2185 = vmatmul.mubr.bf16.gmra.mxu0 %v1944
  %v2186 = vpop.f32.mrf.mxu0
  %v2187 = vadd.f32 0.0, %v2186
  %v2188 = vpop.f32.mrf.mxu0
  %v2189 = vpop.f32.mrf.mxu0
  %v2190 = vadd.f32 0.0, %v2189
  %v2191 = vpop.f32.mrf.mxu0
  %2192 = vmatprep.mubr.bf16.mxu0 0
  %2193 = vmatmul.mubr.bf16.gmra.mxu0 %v1947
  %v2194 = vpop.f32.mrf.mxu0
  %v2195 = vadd.f32 0.0, %v2194
  %v2196 = vpop.f32.mrf.mxu0
  %v2197 = vpop.f32.mrf.mxu0
  %v2198 = vadd.f32 0.0, %v2197
  %v2199 = vpop.f32.mrf.mxu0
  %2200 = vmatprep.mubr.bf16.mxu0 0
  %2201 = vmatmul.mubr.bf16.gmra.mxu0 %v1950
  %v2202 = vpop.f32.mrf.mxu0
  %v2203 = vadd.f32 0.0, %v2202
  %v2204 = vpop.f32.mrf.mxu0
  %v2205 = vpop.f32.mrf.mxu0
  %v2206 = vadd.f32 0.0, %v2205
  %v2207 = vpop.f32.mrf.mxu0
  %2208 = vmatprep.mubr.bf16.mxu0 0
  %2209 = vmatmul.mubr.bf16.gmra.mxu0 %v1953
  %v2210 = vpop.f32.mrf.mxu0
  %v2211 = vadd.f32 0.0, %v2210
  %v2212 = vpop.f32.mrf.mxu0
  %v2213 = vpop.f32.mrf.mxu0
  %v2214 = vadd.f32 0.0, %v2213
  %v2215 = vpop.f32.mrf.mxu0
  %2216 = vmatprep.mubr.bf16.mxu0 0
  %2217 = vmatmul.mubr.bf16.gmra.mxu0 %v1956
  %v2218 = vpop.f32.mrf.mxu0
  %v2219 = vadd.f32 0.0, %v2218
  %v2220 = vpop.f32.mrf.mxu0
  %v2221 = vpop.f32.mrf.mxu0
  %v2222 = vadd.f32 0.0, %v2221
  %v2223 = vpop.f32.mrf.mxu0
  %2224 = vmatprep.mubr.bf16.mxu0 0
  %2225 = vmatmul.mubr.bf16.gmra.mxu0 %v1959
  %v2226 = vpop.f32.mrf.mxu0
  %v2227 = vadd.f32 0.0, %v2226
  %v2228 = vpop.f32.mrf.mxu0
  %v2229 = vpop.f32.mrf.mxu0
  %v2230 = vadd.f32 0.0, %v2229
  %v2231 = vpop.f32.mrf.mxu0
  %2232 = vmatprep.mubr.bf16.mxu0 0
  %2233 = vmatmul.mubr.bf16.gmra.mxu0 %v1962
  %v2234 = vpop.f32.mrf.mxu0
  %v2235 = vadd.f32 0.0, %v2234
  %v2236 = vpop.f32.mrf.mxu0
  %v2237 = vpop.f32.mrf.mxu0
  %v2238 = vadd.f32 0.0, %v2237
  %v2239 = vpop.f32.mrf.mxu0
  %2240 = vmatprep.mubr.bf16.mxu0 0
  %2241 = vmatmul.mubr.bf16.gmra.mxu0 %v1965
  %v2242 = vpop.f32.mrf.mxu0
  %v2243 = vadd.f32 0.0, %v2242
  %v2244 = vpop.f32.mrf.mxu0
  %v2245 = vpop.f32.mrf.mxu0
  %v2246 = vadd.f32 0.0, %v2245
  %v2247 = vpop.f32.mrf.mxu0
  %2248 = vmatprep.mubr.bf16.mxu0 0
  %2249 = vmatmul.mubr.bf16.gmra.mxu0 %v1968
  %v2250 = vpop.f32.mrf.mxu0
  %v2251 = vadd.f32 0.0, %v2250
  %v2252 = vpop.f32.mrf.mxu0
  %v2253 = vpop.f32.mrf.mxu0
  %v2254 = vadd.f32 0.0, %v2253
  %v2255 = vpop.f32.mrf.mxu0
  %2256 = vmatprep.mubr.bf16.mxu0 0
  %2257 = vmatmul.mubr.bf16.gmra.mxu0 %v1971
  %v2258 = vpop.f32.mrf.mxu0
  %v2259 = vadd.f32 0.0, %v2258
  %v2260 = vpop.f32.mrf.mxu0
  %v2261 = vpop.f32.mrf.mxu0
  %v2262 = vadd.f32 0.0, %v2261
  %v2263 = vpop.f32.mrf.mxu0
  %2264 = vdwg.mxu0
  %v2265 = vadd.f32 %v1715, %v2011
  %v2266 = vadd.f32 %v1716, %v2014
  %v2267 = vadd.f32 %v1717, %v2019
  %v2268 = vadd.f32 %v1718, %v2022
  %v2269 = vadd.f32 %v1719, %v2027
  %v2270 = vadd.f32 %v1720, %v2030
  %v2271 = vadd.f32 %v1721, %v2035
  %v2272 = vadd.f32 %v1722, %v2038
  %v2273 = vadd.f32 %v1723, %v2043
  %v2274 = vadd.f32 %v1724, %v2046
  %v2275 = vadd.f32 %v1725, %v2051
  %v2276 = vadd.f32 %v1726, %v2054
  %v2277 = vadd.f32 %v1727, %v2059
  %v2278 = vadd.f32 %v1728, %v2062
  %v2279 = vadd.f32 %v1729, %v2067
  %v2280 = vadd.f32 %v1730, %v2070
  %v2281 = vadd.f32 %v1731, %v2075
  %v2282 = vadd.f32 %v1732, %v2078
  %v2283 = vadd.f32 %v1733, %v2083
  %v2284 = vadd.f32 %v1734, %v2086
  %v2285 = vadd.f32 %v1735, %v2091
  %v2286 = vadd.f32 %v1736, %v2094
  %v2287 = vadd.f32 %v1737, %v2099
  %v2288 = vadd.f32 %v1738, %v2102
  %v2289 = vadd.f32 %v1739, %v2107
  %v2290 = vadd.f32 %v1740, %v2110
  %v2291 = vadd.f32 %v1741, %v2115
  %v2292 = vadd.f32 %v1742, %v2118
  %v2293 = vadd.f32 %v1743, %v2123
  %v2294 = vadd.f32 %v1744, %v2126
  %v2295 = vadd.f32 %v1745, %v2131
  %v2296 = vadd.f32 %v1746, %v2134
  %v2297 = vadd.f32 %v1747, %v2139
  %v2298 = vadd.f32 %v1748, %v2142
  %v2299 = vadd.f32 %v1749, %v2147
  %v2300 = vadd.f32 %v1750, %v2150
  %v2301 = vadd.f32 %v1751, %v2155
  %v2302 = vadd.f32 %v1752, %v2158
  %v2303 = vadd.f32 %v1753, %v2163
  %v2304 = vadd.f32 %v1754, %v2166
  %v2305 = vadd.f32 %v1755, %v2171
  %v2306 = vadd.f32 %v1756, %v2174
  %v2307 = vadd.f32 %v1757, %v2179
  %v2308 = vadd.f32 %v1758, %v2182
  %v2309 = vadd.f32 %v1759, %v2187
  %v2310 = vadd.f32 %v1760, %v2190
  %v2311 = vadd.f32 %v1761, %v2195
  %v2312 = vadd.f32 %v1762, %v2198
  %v2313 = vadd.f32 %v1763, %v2203
  %v2314 = vadd.f32 %v1764, %v2206
  %v2315 = vadd.f32 %v1765, %v2211
  %v2316 = vadd.f32 %v1766, %v2214
  %v2317 = vadd.f32 %v1767, %v2219
  %v2318 = vadd.f32 %v1768, %v2222
  %v2319 = vadd.f32 %v1769, %v2227
  %v2320 = vadd.f32 %v1770, %v2230
  %v2321 = vadd.f32 %v1771, %v2235
  %v2322 = vadd.f32 %v1772, %v2238
  %v2323 = vadd.f32 %v1773, %v2243
  %v2324 = vadd.f32 %v1774, %v2246
  %v2325 = vadd.f32 %v1775, %v2251
  %v2326 = vadd.f32 %v1776, %v2254
  %v2327 = vadd.f32 %v1777, %v2259
  %v2328 = vadd.f32 %v1778, %v2262
  %v2329 = vld [vmem:[%s192 + $0x1] sm:$0xff]
  %v2330 = vld [vmem:[%s192 + $0x9] sm:$0xff]
  %v2331 = vld [vmem:[%s192 + $0x19] sm:$0xff]
  %v2332 = vld [vmem:[%s192 + $0x21] sm:$0xff]
  %v2333 = vld [vmem:[%s192 + $0x31] sm:$0xff]
  %v2334 = vld [vmem:[%s192 + $0x39] sm:$0xff]
  %v2335 = vld [vmem:[%s192 + $0x49] sm:$0xff]
  %v2336 = vld [vmem:[%s192 + $0x51] sm:$0xff]
  %v2337 = vld [vmem:[%s192 + $0x61] sm:$0xff]
  %v2338 = vld [vmem:[%s192 + $0x69] sm:$0xff]
  %v2339 = vld [vmem:[%s192 + $0x79] sm:$0xff]
  %v2340 = vld [vmem:[%s192 + $0x81] sm:$0xff]
  %v2341 = vld [vmem:[%s192 + $0x91] sm:$0xff]
  %v2342 = vld [vmem:[%s192 + $0x99] sm:$0xff]
  %v2343 = vld [vmem:[%s192 + $0xa9] sm:$0xff]
  %v2344 = vld [vmem:[%s192 + $0xb1] sm:$0xff]
  %v2345 = vld [vmem:[%s192 + $0xc1] sm:$0xff]
  %v2346 = vld [vmem:[%s192 + $0xc9] sm:$0xff]
  %v2347 = vld [vmem:[%s192 + $0xd9] sm:$0xff]
  %v2348 = vld [vmem:[%s192 + $0xe1] sm:$0xff]
  %v2349 = vld [vmem:[%s192 + $0xf1] sm:$0xff]
  %v2350 = vld [vmem:[%s192 + $0xf9] sm:$0xff]
  %v2351 = vld [vmem:[%s192 + $0x109] sm:$0xff]
  %v2352 = vld [vmem:[%s192 + $0x111] sm:$0xff]
  %v2353 = vld [vmem:[%s192 + $0x121] sm:$0xff]
  %v2354 = vld [vmem:[%s192 + $0x129] sm:$0xff]
  %v2355 = vld [vmem:[%s192 + $0x139] sm:$0xff]
  %v2356 = vld [vmem:[%s192 + $0x141] sm:$0xff]
  %v2357 = vld [vmem:[%s192 + $0x151] sm:$0xff]
  %v2358 = vld [vmem:[%s192 + $0x159] sm:$0xff]
  %v2359 = vld [vmem:[%s192 + $0x169] sm:$0xff]
  %v2360 = vld [vmem:[%s192 + $0x171] sm:$0xff]
  %v2361 = vld [vmem:[%s192 + $0x1b1] sm:$0xff]
  %v2362 = vld [vmem:[%s192 + $0x1b9] sm:$0xff]
  %v2363 = vld [vmem:[%s192 + $0x1c9] sm:$0xff]
  %v2364 = vld [vmem:[%s192 + $0x1d1] sm:$0xff]
  %v2365 = vld [vmem:[%s192 + $0x1e1] sm:$0xff]
  %v2366 = vld [vmem:[%s192 + $0x1e9] sm:$0xff]
  %v2367 = vld [vmem:[%s192 + $0x1f9] sm:$0xff]
  %v2368 = vld [vmem:[%s192 + $0x201] sm:$0xff]
  %v2369 = vld [vmem:[%s192 + $0x211] sm:$0xff]
  %v2370 = vld [vmem:[%s192 + $0x219] sm:$0xff]
  %v2371 = vld [vmem:[%s192 + $0x229] sm:$0xff]
  %v2372 = vld [vmem:[%s192 + $0x231] sm:$0xff]
  %v2373 = vld [vmem:[%s192 + $0x241] sm:$0xff]
  %v2374 = vld [vmem:[%s192 + $0x249] sm:$0xff]
  %v2375 = vld [vmem:[%s192 + $0x259] sm:$0xff]
  %v2376 = vld [vmem:[%s192 + $0x261] sm:$0xff]
  %v2377 = vld [vmem:[%s192 + $0x271] sm:$0xff]
  %v2378 = vld [vmem:[%s192 + $0x279] sm:$0xff]
  %v2379 = vld [vmem:[%s192 + $0x289] sm:$0xff]
  %v2380 = vld [vmem:[%s192 + $0x291] sm:$0xff]
  %v2381 = vld [vmem:[%s192 + $0x2a1] sm:$0xff]
  %v2382 = vld [vmem:[%s192 + $0x2a9] sm:$0xff]
  %v2383 = vld [vmem:[%s192 + $0x2b9] sm:$0xff]
  %v2384 = vld [vmem:[%s192 + $0x2c1] sm:$0xff]
  %v2385 = vld [vmem:[%s192 + $0x2d1] sm:$0xff]
  %v2386 = vld [vmem:[%s192 + $0x2d9] sm:$0xff]
  %v2387 = vld [vmem:[%s192 + $0x2e9] sm:$0xff]
  %v2388 = vld [vmem:[%s192 + $0x2f1] sm:$0xff]
  %v2389 = vld [vmem:[%s192 + $0x301] sm:$0xff]
  %v2390 = vld [vmem:[%s192 + $0x309] sm:$0xff]
  %v2391 = vld [vmem:[%s192 + $0x319] sm:$0xff]
  %v2392 = vld [vmem:[%s192 + $0x321] sm:$0xff]
  %v2393 = vpack.c.bf16 %v2330, %v2329
  %v2394 = vpack.c.bf16 %v2332, %v2331
  %v2395 = vpack.c.bf16 %v2334, %v2333
  %v2396 = vpack.c.bf16 %v2336, %v2335
  %v2397 = vpack.c.bf16 %v2338, %v2337
  %v2398 = vpack.c.bf16 %v2340, %v2339
  %v2399 = vpack.c.bf16 %v2342, %v2341
  %v2400 = vpack.c.bf16 %v2344, %v2343
  %v2401 = vpack.c.bf16 %v2346, %v2345
  %v2402 = vpack.c.bf16 %v2348, %v2347
  %v2403 = vpack.c.bf16 %v2350, %v2349
  %v2404 = vpack.c.bf16 %v2352, %v2351
  %v2405 = vpack.c.bf16 %v2354, %v2353
  %v2406 = vpack.c.bf16 %v2356, %v2355
  %v2407 = vpack.c.bf16 %v2358, %v2357
  %v2408 = vpack.c.bf16 %v2360, %v2359
  %v2409 = vpack.c.bf16 %v2362, %v2361
  %v2410 = vpack.c.bf16 %v2364, %v2363
  %v2411 = vpack.c.bf16 %v2366, %v2365
  %v2412 = vpack.c.bf16 %v2368, %v2367
  %v2413 = vpack.c.bf16 %v2370, %v2369
  %v2414 = vpack.c.bf16 %v2372, %v2371
  %v2415 = vpack.c.bf16 %v2374, %v2373
  %v2416 = vpack.c.bf16 %v2376, %v2375
  %v2417 = vpack.c.bf16 %v2378, %v2377
  %v2418 = vpack.c.bf16 %v2380, %v2379
  %v2419 = vpack.c.bf16 %v2382, %v2381
  %v2420 = vpack.c.bf16 %v2384, %v2383
  %v2421 = vpack.c.bf16 %v2386, %v2385
  %v2422 = vpack.c.bf16 %v2388, %v2387
  %v2423 = vpack.c.bf16 %v2390, %v2389
  %v2424 = vpack.c.bf16 %v2392, %v2391
  %s2425 = scalar_lea.vmem %s1, 8
  %v2426 = vld [vmem:[%s2425] sm:$0x3]
  %v2428 = vsel %vm40, %v2393, 0
  %v2431 = vsel %vm40, %v2394, 0
  %v2434 = vsel %vm40, %v2395, 0
  %v2437 = vsel %vm40, %v2396, 0
  %v2440 = vsel %vm40, %v2397, 0
  %v2443 = vsel %vm40, %v2398, 0
  %v2446 = vsel %vm40, %v2399, 0
  %v2449 = vsel %vm40, %v2400, 0
  %v2452 = vsel %vm40, %v2401, 0
  %v2455 = vsel %vm40, %v2402, 0
  %v2458 = vsel %vm40, %v2403, 0
  %v2461 = vsel %vm40, %v2404, 0
  %v2464 = vsel %vm40, %v2405, 0
  %v2467 = vsel %vm40, %v2406, 0
  %v2470 = vsel %vm40, %v2407, 0
  %v2473 = vsel %vm40, %v2408, 0
  %v2476 = vsel %vm40, %v2409, 0
  %v2479 = vsel %vm40, %v2410, 0
  %v2482 = vsel %vm40, %v2411, 0
  %v2485 = vsel %vm40, %v2412, 0
  %v2488 = vsel %vm40, %v2413, 0
  %v2491 = vsel %vm40, %v2414, 0
  %v2494 = vsel %vm40, %v2415, 0
  %v2497 = vsel %vm40, %v2416, 0
  %v2500 = vsel %vm40, %v2417, 0
  %v2503 = vsel %vm40, %v2418, 0
  %v2506 = vsel %vm40, %v2419, 0
  %v2509 = vsel %vm40, %v2420, 0
  %v2512 = vsel %vm40, %v2421, 0
  %v2515 = vsel %vm40, %v2422, 0
  %v2518 = vsel %vm40, %v2423, 0
  %v2521 = vsel %vm40, %v2424, 0
  %v2524 = vsel %vm548, %v2426, 0
  %2526 = vmatprep.subr.bf16.mxu0 0
  %2527 = vmatpush1.bf16.msra.mxu0 0
  %2528 = vmatprep.subr.bf16.mxu0 0
  %2529 = vmatpush1.bf16.msra.mxu0 0
  %2530 = vmatprep.subr.bf16.mxu0 0
  %2531 = vmatpush1.bf16.msra.mxu0 0
  %2532 = vmatprep.subr.bf16.mxu0 0
  %2533 = vmatpush1.bf16.msra.mxu0 0
  %2534 = vmatprep.subr.bf16.mxu0 0
  %2535 = vmatpush1.bf16.msra.mxu0 0
  %2536 = vmatprep.subr.bf16.mxu0 0
  %2537 = vmatpush1.bf16.msra.mxu0 0
  %2538 = vmatprep.subr.bf16.mxu0 0
  %2539 = vmatpush1.bf16.msra.mxu0 0
  %2540 = vmatprep.subr.bf16.mxu0 0
  %2541 = vmatpush1.bf16.msra.mxu0 %v2524
  %2542 = vmatprep.subr.bf16.mxu0 0
  %2543 = vmatpush2.bf16.msra.mxu0 0
  %2544 = vmatprep.subr.bf16.mxu0 0
  %2545 = vmatpush2.bf16.msra.mxu0 0
  %2546 = vmatprep.subr.bf16.mxu0 0
  %2547 = vmatpush2.bf16.msra.mxu0 0
  %2548 = vmatprep.subr.bf16.mxu0 0
  %2549 = vmatpush2.bf16.msra.mxu0 0
  %2550 = vmatprep.subr.bf16.mxu0 0
  %2551 = vmatpush2.bf16.msra.mxu0 0
  %2552 = vmatprep.subr.bf16.mxu0 0
  %2553 = vmatpush2.bf16.msra.mxu0 0
  %2554 = vmatprep.subr.bf16.mxu0 0
  %2555 = vmatpush2.bf16.msra.mxu0 0
  %2556 = vmatprep.subr.bf16.mxu0 0
  %2557 = vmatpush2.bf16.msra.mxu0 0
  %2558 = vmatprep.mubr.bf16.mxu0 0
  %2559 = vmatmul.mubr.bf16.gmra.mxu0 %v2428
  %v2560 = vpop.f32.mrf.mxu0
  %v2561 = vadd.f32 0.0, %v2560
  %v2562 = vpop.f32.mrf.mxu0
  %v2563 = vpop.f32.mrf.mxu0
  %v2564 = vadd.f32 0.0, %v2563
  %v2565 = vpop.f32.mrf.mxu0
  %2566 = vmatprep.mubr.bf16.mxu0 0
  %2567 = vmatmul.mubr.bf16.gmra.mxu0 %v2431
  %v2568 = vpop.f32.mrf.mxu0
  %v2569 = vadd.f32 0.0, %v2568
  %v2570 = vpop.f32.mrf.mxu0
  %v2571 = vpop.f32.mrf.mxu0
  %v2572 = vadd.f32 0.0, %v2571
  %v2573 = vpop.f32.mrf.mxu0
  %2574 = vmatprep.mubr.bf16.mxu0 0
  %2575 = vmatmul.mubr.bf16.gmra.mxu0 %v2434
  %v2576 = vpop.f32.mrf.mxu0
  %v2577 = vadd.f32 0.0, %v2576
  %v2578 = vpop.f32.mrf.mxu0
  %v2579 = vpop.f32.mrf.mxu0
  %v2580 = vadd.f32 0.0, %v2579
  %v2581 = vpop.f32.mrf.mxu0
  %2582 = vmatprep.mubr.bf16.mxu0 0
  %2583 = vmatmul.mubr.bf16.gmra.mxu0 %v2437
  %v2584 = vpop.f32.mrf.mxu0
  %v2585 = vadd.f32 0.0, %v2584
  %v2586 = vpop.f32.mrf.mxu0
  %v2587 = vpop.f32.mrf.mxu0
  %v2588 = vadd.f32 0.0, %v2587
  %v2589 = vpop.f32.mrf.mxu0
  %2590 = vmatprep.mubr.bf16.mxu0 0
  %2591 = vmatmul.mubr.bf16.gmra.mxu0 %v2440
  %v2592 = vpop.f32.mrf.mxu0
  %v2593 = vadd.f32 0.0, %v2592
  %v2594 = vpop.f32.mrf.mxu0
  %v2595 = vpop.f32.mrf.mxu0
  %v2596 = vadd.f32 0.0, %v2595
  %v2597 = vpop.f32.mrf.mxu0
  %2598 = vmatprep.mubr.bf16.mxu0 0
  %2599 = vmatmul.mubr.bf16.gmra.mxu0 %v2443
  %v2600 = vpop.f32.mrf.mxu0
  %v2601 = vadd.f32 0.0, %v2600
  %v2602 = vpop.f32.mrf.mxu0
  %v2603 = vpop.f32.mrf.mxu0
  %v2604 = vadd.f32 0.0, %v2603
  %v2605 = vpop.f32.mrf.mxu0
  %2606 = vmatprep.mubr.bf16.mxu0 0
  %2607 = vmatmul.mubr.bf16.gmra.mxu0 %v2446
  %v2608 = vpop.f32.mrf.mxu0
  %v2609 = vadd.f32 0.0, %v2608
  %v2610 = vpop.f32.mrf.mxu0
  %v2611 = vpop.f32.mrf.mxu0
  %v2612 = vadd.f32 0.0, %v2611
  %v2613 = vpop.f32.mrf.mxu0
  %2614 = vmatprep.mubr.bf16.mxu0 0
  %2615 = vmatmul.mubr.bf16.gmra.mxu0 %v2449
  %v2616 = vpop.f32.mrf.mxu0
  %v2617 = vadd.f32 0.0, %v2616
  %v2618 = vpop.f32.mrf.mxu0
  %v2619 = vpop.f32.mrf.mxu0
  %v2620 = vadd.f32 0.0, %v2619
  %v2621 = vpop.f32.mrf.mxu0
  %2622 = vmatprep.mubr.bf16.mxu0 0
  %2623 = vmatmul.mubr.bf16.gmra.mxu0 %v2452
  %v2624 = vpop.f32.mrf.mxu0
  %v2625 = vadd.f32 0.0, %v2624
  %v2626 = vpop.f32.mrf.mxu0
  %v2627 = vpop.f32.mrf.mxu0
  %v2628 = vadd.f32 0.0, %v2627
  %v2629 = vpop.f32.mrf.mxu0
  %2630 = vmatprep.mubr.bf16.mxu0 0
  %2631 = vmatmul.mubr.bf16.gmra.mxu0 %v2455
  %v2632 = vpop.f32.mrf.mxu0
  %v2633 = vadd.f32 0.0, %v2632
  %v2634 = vpop.f32.mrf.mxu0
  %v2635 = vpop.f32.mrf.mxu0
  %v2636 = vadd.f32 0.0, %v2635
  %v2637 = vpop.f32.mrf.mxu0
  %2638 = vmatprep.mubr.bf16.mxu0 0
  %2639 = vmatmul.mubr.bf16.gmra.mxu0 %v2458
  %v2640 = vpop.f32.mrf.mxu0
  %v2641 = vadd.f32 0.0, %v2640
  %v2642 = vpop.f32.mrf.mxu0
  %v2643 = vpop.f32.mrf.mxu0
  %v2644 = vadd.f32 0.0, %v2643
  %v2645 = vpop.f32.mrf.mxu0
  %2646 = vmatprep.mubr.bf16.mxu0 0
  %2647 = vmatmul.mubr.bf16.gmra.mxu0 %v2461
  %v2648 = vpop.f32.mrf.mxu0
  %v2649 = vadd.f32 0.0, %v2648
  %v2650 = vpop.f32.mrf.mxu0
  %v2651 = vpop.f32.mrf.mxu0
  %v2652 = vadd.f32 0.0, %v2651
  %v2653 = vpop.f32.mrf.mxu0
  %2654 = vmatprep.mubr.bf16.mxu0 0
  %2655 = vmatmul.mubr.bf16.gmra.mxu0 %v2464
  %v2656 = vpop.f32.mrf.mxu0
  %v2657 = vadd.f32 0.0, %v2656
  %v2658 = vpop.f32.mrf.mxu0
  %v2659 = vpop.f32.mrf.mxu0
  %v2660 = vadd.f32 0.0, %v2659
  %v2661 = vpop.f32.mrf.mxu0
  %2662 = vmatprep.mubr.bf16.mxu0 0
  %2663 = vmatmul.mubr.bf16.gmra.mxu0 %v2467
  %v2664 = vpop.f32.mrf.mxu0
  %v2665 = vadd.f32 0.0, %v2664
  %v2666 = vpop.f32.mrf.mxu0
  %v2667 = vpop.f32.mrf.mxu0
  %v2668 = vadd.f32 0.0, %v2667
  %v2669 = vpop.f32.mrf.mxu0
  %2670 = vmatprep.mubr.bf16.mxu0 0
  %2671 = vmatmul.mubr.bf16.gmra.mxu0 %v2470
  %v2672 = vpop.f32.mrf.mxu0
  %v2673 = vadd.f32 0.0, %v2672
  %v2674 = vpop.f32.mrf.mxu0
  %v2675 = vpop.f32.mrf.mxu0
  %v2676 = vadd.f32 0.0, %v2675
  %v2677 = vpop.f32.mrf.mxu0
  %2678 = vmatprep.mubr.bf16.mxu0 0
  %2679 = vmatmul.mubr.bf16.gmra.mxu0 %v2473
  %v2680 = vpop.f32.mrf.mxu0
  %v2681 = vadd.f32 0.0, %v2680
  %v2682 = vpop.f32.mrf.mxu0
  %v2683 = vpop.f32.mrf.mxu0
  %v2684 = vadd.f32 0.0, %v2683
  %v2685 = vpop.f32.mrf.mxu0
  %2686 = vmatprep.mubr.bf16.mxu0 0
  %2687 = vmatmul.mubr.bf16.gmra.mxu0 %v2476
  %v2688 = vpop.f32.mrf.mxu0
  %v2689 = vadd.f32 0.0, %v2688
  %v2690 = vpop.f32.mrf.mxu0
  %v2691 = vpop.f32.mrf.mxu0
  %v2692 = vadd.f32 0.0, %v2691
  %v2693 = vpop.f32.mrf.mxu0
  %2694 = vmatprep.mubr.bf16.mxu0 0
  %2695 = vmatmul.mubr.bf16.gmra.mxu0 %v2479
  %v2696 = vpop.f32.mrf.mxu0
  %v2697 = vadd.f32 0.0, %v2696
  %v2698 = vpop.f32.mrf.mxu0
  %v2699 = vpop.f32.mrf.mxu0
  %v2700 = vadd.f32 0.0, %v2699
  %v2701 = vpop.f32.mrf.mxu0
  %2702 = vmatprep.mubr.bf16.mxu0 0
  %2703 = vmatmul.mubr.bf16.gmra.mxu0 %v2482
  %v2704 = vpop.f32.mrf.mxu0
  %v2705 = vadd.f32 0.0, %v2704
  %v2706 = vpop.f32.mrf.mxu0
  %v2707 = vpop.f32.mrf.mxu0
  %v2708 = vadd.f32 0.0, %v2707
  %v2709 = vpop.f32.mrf.mxu0
  %2710 = vmatprep.mubr.bf16.mxu0 0
  %2711 = vmatmul.mubr.bf16.gmra.mxu0 %v2485
  %v2712 = vpop.f32.mrf.mxu0
  %v2713 = vadd.f32 0.0, %v2712
  %v2714 = vpop.f32.mrf.mxu0
  %v2715 = vpop.f32.mrf.mxu0
  %v2716 = vadd.f32 0.0, %v2715
  %v2717 = vpop.f32.mrf.mxu0
  %2718 = vmatprep.mubr.bf16.mxu0 0
  %2719 = vmatmul.mubr.bf16.gmra.mxu0 %v2488
  %v2720 = vpop.f32.mrf.mxu0
  %v2721 = vadd.f32 0.0, %v2720
  %v2722 = vpop.f32.mrf.mxu0
  %v2723 = vpop.f32.mrf.mxu0
  %v2724 = vadd.f32 0.0, %v2723
  %v2725 = vpop.f32.mrf.mxu0
  %2726 = vmatprep.mubr.bf16.mxu0 0
  %2727 = vmatmul.mubr.bf16.gmra.mxu0 %v2491
  %v2728 = vpop.f32.mrf.mxu0
  %v2729 = vadd.f32 0.0, %v2728
  %v2730 = vpop.f32.mrf.mxu0
  %v2731 = vpop.f32.mrf.mxu0
  %v2732 = vadd.f32 0.0, %v2731
  %v2733 = vpop.f32.mrf.mxu0
  %2734 = vmatprep.mubr.bf16.mxu0 0
  %2735 = vmatmul.mubr.bf16.gmra.mxu0 %v2494
  %v2736 = vpop.f32.mrf.mxu0
  %v2737 = vadd.f32 0.0, %v2736
  %v2738 = vpop.f32.mrf.mxu0
  %v2739 = vpop.f32.mrf.mxu0
  %v2740 = vadd.f32 0.0, %v2739
  %v2741 = vpop.f32.mrf.mxu0
  %2742 = vmatprep.mubr.bf16.mxu0 0
  %2743 = vmatmul.mubr.bf16.gmra.mxu0 %v2497
  %v2744 = vpop.f32.mrf.mxu0
  %v2745 = vadd.f32 0.0, %v2744
  %v2746 = vpop.f32.mrf.mxu0
  %v2747 = vpop.f32.mrf.mxu0
  %v2748 = vadd.f32 0.0, %v2747
  %v2749 = vpop.f32.mrf.mxu0
  %2750 = vmatprep.mubr.bf16.mxu0 0
  %2751 = vmatmul.mubr.bf16.gmra.mxu0 %v2500
  %v2752 = vpop.f32.mrf.mxu0
  %v2753 = vadd.f32 0.0, %v2752
  %v2754 = vpop.f32.mrf.mxu0
  %v2755 = vpop.f32.mrf.mxu0
  %v2756 = vadd.f32 0.0, %v2755
  %v2757 = vpop.f32.mrf.mxu0
  %2758 = vmatprep.mubr.bf16.mxu0 0
  %2759 = vmatmul.mubr.bf16.gmra.mxu0 %v2503
  %v2760 = vpop.f32.mrf.mxu0
  %v2761 = vadd.f32 0.0, %v2760
  %v2762 = vpop.f32.mrf.mxu0
  %v2763 = vpop.f32.mrf.mxu0
  %v2764 = vadd.f32 0.0, %v2763
  %v2765 = vpop.f32.mrf.mxu0
  %2766 = vmatprep.mubr.bf16.mxu0 0
  %2767 = vmatmul.mubr.bf16.gmra.mxu0 %v2506
  %v2768 = vpop.f32.mrf.mxu0
  %v2769 = vadd.f32 0.0, %v2768
  %v2770 = vpop.f32.mrf.mxu0
  %v2771 = vpop.f32.mrf.mxu0
  %v2772 = vadd.f32 0.0, %v2771
  %v2773 = vpop.f32.mrf.mxu0
  %2774 = vmatprep.mubr.bf16.mxu0 0
  %2775 = vmatmul.mubr.bf16.gmra.mxu0 %v2509
  %v2776 = vpop.f32.mrf.mxu0
  %v2777 = vadd.f32 0.0, %v2776
  %v2778 = vpop.f32.mrf.mxu0
  %v2779 = vpop.f32.mrf.mxu0
  %v2780 = vadd.f32 0.0, %v2779
  %v2781 = vpop.f32.mrf.mxu0
  %2782 = vmatprep.mubr.bf16.mxu0 0
  %2783 = vmatmul.mubr.bf16.gmra.mxu0 %v2512
  %v2784 = vpop.f32.mrf.mxu0
  %v2785 = vadd.f32 0.0, %v2784
  %v2786 = vpop.f32.mrf.mxu0
  %v2787 = vpop.f32.mrf.mxu0
  %v2788 = vadd.f32 0.0, %v2787
  %v2789 = vpop.f32.mrf.mxu0
  %2790 = vmatprep.mubr.bf16.mxu0 0
  %2791 = vmatmul.mubr.bf16.gmra.mxu0 %v2515
  %v2792 = vpop.f32.mrf.mxu0
  %v2793 = vadd.f32 0.0, %v2792
  %v2794 = vpop.f32.mrf.mxu0
  %v2795 = vpop.f32.mrf.mxu0
  %v2796 = vadd.f32 0.0, %v2795
  %v2797 = vpop.f32.mrf.mxu0
  %2798 = vmatprep.mubr.bf16.mxu0 0
  %2799 = vmatmul.mubr.bf16.gmra.mxu0 %v2518
  %v2800 = vpop.f32.mrf.mxu0
  %v2801 = vadd.f32 0.0, %v2800
  %v2802 = vpop.f32.mrf.mxu0
  %v2803 = vpop.f32.mrf.mxu0
  %v2804 = vadd.f32 0.0, %v2803
  %v2805 = vpop.f32.mrf.mxu0
  %2806 = vmatprep.mubr.bf16.mxu0 0
  %2807 = vmatmul.mubr.bf16.gmra.mxu0 %v2521
  %v2808 = vpop.f32.mrf.mxu0
  %v2809 = vadd.f32 0.0, %v2808
  %v2810 = vpop.f32.mrf.mxu0
  %v2811 = vpop.f32.mrf.mxu0
  %v2812 = vadd.f32 0.0, %v2811
  %v2813 = vpop.f32.mrf.mxu0
  %2814 = vdwg.mxu0
  %v2815 = vadd.f32 %v2265, %v2561
  %v2816 = vadd.f32 %v2266, %v2564
  %v2817 = vadd.f32 %v2267, %v2569
  %v2818 = vadd.f32 %v2268, %v2572
  %v2819 = vadd.f32 %v2269, %v2577
  %v2820 = vadd.f32 %v2270, %v2580
  %v2821 = vadd.f32 %v2271, %v2585
  %v2822 = vadd.f32 %v2272, %v2588
  %v2823 = vadd.f32 %v2273, %v2593
  %v2824 = vadd.f32 %v2274, %v2596
  %v2825 = vadd.f32 %v2275, %v2601
  %v2826 = vadd.f32 %v2276, %v2604
  %v2827 = vadd.f32 %v2277, %v2609
  %v2828 = vadd.f32 %v2278, %v2612
  %v2829 = vadd.f32 %v2279, %v2617
  %v2830 = vadd.f32 %v2280, %v2620
  %v2831 = vadd.f32 %v2281, %v2625
  %v2832 = vadd.f32 %v2282, %v2628
  %v2833 = vadd.f32 %v2283, %v2633
  %v2834 = vadd.f32 %v2284, %v2636
  %v2835 = vadd.f32 %v2285, %v2641
  %v2836 = vadd.f32 %v2286, %v2644
  %v2837 = vadd.f32 %v2287, %v2649
  %v2838 = vadd.f32 %v2288, %v2652
  %v2839 = vadd.f32 %v2289, %v2657
  %v2840 = vadd.f32 %v2290, %v2660
  %v2841 = vadd.f32 %v2291, %v2665
  %v2842 = vadd.f32 %v2292, %v2668
  %v2843 = vadd.f32 %v2293, %v2673
  %v2844 = vadd.f32 %v2294, %v2676
  %v2845 = vadd.f32 %v2295, %v2681
  %v2846 = vadd.f32 %v2296, %v2684
  %v2847 = vadd.f32 %v2297, %v2689
  %v2848 = vadd.f32 %v2298, %v2692
  %v2849 = vadd.f32 %v2299, %v2697
  %v2850 = vadd.f32 %v2300, %v2700
  %v2851 = vadd.f32 %v2301, %v2705
  %v2852 = vadd.f32 %v2302, %v2708
  %v2853 = vadd.f32 %v2303, %v2713
  %v2854 = vadd.f32 %v2304, %v2716
  %v2855 = vadd.f32 %v2305, %v2721
  %v2856 = vadd.f32 %v2306, %v2724
  %v2857 = vadd.f32 %v2307, %v2729
  %v2858 = vadd.f32 %v2308, %v2732
  %v2859 = vadd.f32 %v2309, %v2737
  %v2860 = vadd.f32 %v2310, %v2740
  %v2861 = vadd.f32 %v2311, %v2745
  %v2862 = vadd.f32 %v2312, %v2748
  %v2863 = vadd.f32 %v2313, %v2753
  %v2864 = vadd.f32 %v2314, %v2756
  %v2865 = vadd.f32 %v2315, %v2761
  %v2866 = vadd.f32 %v2316, %v2764
  %v2867 = vadd.f32 %v2317, %v2769
  %v2868 = vadd.f32 %v2318, %v2772
  %v2869 = vadd.f32 %v2319, %v2777
  %v2870 = vadd.f32 %v2320, %v2780
  %v2871 = vadd.f32 %v2321, %v2785
  %v2872 = vadd.f32 %v2322, %v2788
  %v2873 = vadd.f32 %v2323, %v2793
  %v2874 = vadd.f32 %v2324, %v2796
  %v2875 = vadd.f32 %v2325, %v2801
  %v2876 = vadd.f32 %v2326, %v2804
  %v2877 = vadd.f32 %v2327, %v2809
  %v2878 = vadd.f32 %v2328, %v2812
  %v2879 = vld [vmem:[%s192 + $0x2] sm:$0xff]
  %v2880 = vld [vmem:[%s192 + $0xa] sm:$0xff]
  %v2881 = vld [vmem:[%s192 + $0x1a] sm:$0xff]
  %v2882 = vld [vmem:[%s192 + $0x22] sm:$0xff]
  %v2883 = vld [vmem:[%s192 + $0x32] sm:$0xff]
  %v2884 = vld [vmem:[%s192 + $0x3a] sm:$0xff]
  %v2885 = vld [vmem:[%s192 + $0x4a] sm:$0xff]
  %v2886 = vld [vmem:[%s192 + $0x52] sm:$0xff]
  %v2887 = vld [vmem:[%s192 + $0x62] sm:$0xff]
  %v2888 = vld [vmem:[%s192 + $0x6a] sm:$0xff]
  %v2889 = vld [vmem:[%s192 + $0x7a] sm:$0xff]
  %v2890 = vld [vmem:[%s192 + $0x82] sm:$0xff]
  %v2891 = vld [vmem:[%s192 + $0x92] sm:$0xff]
  %v2892 = vld [vmem:[%s192 + $0x9a] sm:$0xff]
  %v2893 = vld [vmem:[%s192 + $0xaa] sm:$0xff]
  %v2894 = vld [vmem:[%s192 + $0xb2] sm:$0xff]
  %v2895 = vld [vmem:[%s192 + $0xc2] sm:$0xff]
  %v2896 = vld [vmem:[%s192 + $0xca] sm:$0xff]
  %v2897 = vld [vmem:[%s192 + $0xda] sm:$0xff]
  %v2898 = vld [vmem:[%s192 + $0xe2] sm:$0xff]
  %v2899 = vld [vmem:[%s192 + $0xf2] sm:$0xff]
  %v2900 = vld [vmem:[%s192 + $0xfa] sm:$0xff]
  %v2901 = vld [vmem:[%s192 + $0x10a] sm:$0xff]
  %v2902 = vld [vmem:[%s192 + $0x112] sm:$0xff]
  %v2903 = vld [vmem:[%s192 + $0x122] sm:$0xff]
  %v2904 = vld [vmem:[%s192 + $0x12a] sm:$0xff]
  %v2905 = vld [vmem:[%s192 + $0x13a] sm:$0xff]
  %v2906 = vld [vmem:[%s192 + $0x142] sm:$0xff]
  %v2907 = vld [vmem:[%s192 + $0x152] sm:$0xff]
  %v2908 = vld [vmem:[%s192 + $0x15a] sm:$0xff]
  %v2909 = vld [vmem:[%s192 + $0x16a] sm:$0xff]
  %v2910 = vld [vmem:[%s192 + $0x172] sm:$0xff]
  %v2911 = vld [vmem:[%s192 + $0x1b2] sm:$0xff]
  %v2912 = vld [vmem:[%s192 + $0x1ba] sm:$0xff]
  %v2913 = vld [vmem:[%s192 + $0x1ca] sm:$0xff]
  %v2914 = vld [vmem:[%s192 + $0x1d2] sm:$0xff]
  %v2915 = vld [vmem:[%s192 + $0x1e2] sm:$0xff]
  %v2916 = vld [vmem:[%s192 + $0x1ea] sm:$0xff]
  %v2917 = vld [vmem:[%s192 + $0x1fa] sm:$0xff]
  %v2918 = vld [vmem:[%s192 + $0x202] sm:$0xff]
  %v2919 = vld [vmem:[%s192 + $0x212] sm:$0xff]
  %v2920 = vld [vmem:[%s192 + $0x21a] sm:$0xff]
  %v2921 = vld [vmem:[%s192 + $0x22a] sm:$0xff]
  %v2922 = vld [vmem:[%s192 + $0x232] sm:$0xff]
  %v2923 = vld [vmem:[%s192 + $0x242] sm:$0xff]
  %v2924 = vld [vmem:[%s192 + $0x24a] sm:$0xff]
  %v2925 = vld [vmem:[%s192 + $0x25a] sm:$0xff]
  %v2926 = vld [vmem:[%s192 + $0x262] sm:$0xff]
  %v2927 = vld [vmem:[%s192 + $0x272] sm:$0xff]
  %v2928 = vld [vmem:[%s192 + $0x27a] sm:$0xff]
  %v2929 = vld [vmem:[%s192 + $0x28a] sm:$0xff]
  %v2930 = vld [vmem:[%s192 + $0x292] sm:$0xff]
  %v2931 = vld [vmem:[%s192 + $0x2a2] sm:$0xff]
  %v2932 = vld [vmem:[%s192 + $0x2aa] sm:$0xff]
  %v2933 = vld [vmem:[%s192 + $0x2ba] sm:$0xff]
  %v2934 = vld [vmem:[%s192 + $0x2c2] sm:$0xff]
  %v2935 = vld [vmem:[%s192 + $0x2d2] sm:$0xff]
  %v2936 = vld [vmem:[%s192 + $0x2da] sm:$0xff]
  %v2937 = vld [vmem:[%s192 + $0x2ea] sm:$0xff]
  %v2938 = vld [vmem:[%s192 + $0x2f2] sm:$0xff]
  %v2939 = vld [vmem:[%s192 + $0x302] sm:$0xff]
  %v2940 = vld [vmem:[%s192 + $0x30a] sm:$0xff]
  %v2941 = vld [vmem:[%s192 + $0x31a] sm:$0xff]
  %v2942 = vld [vmem:[%s192 + $0x322] sm:$0xff]
  %v2943 = vpack.c.bf16 %v2880, %v2879
  %v2944 = vpack.c.bf16 %v2882, %v2881
  %v2945 = vpack.c.bf16 %v2884, %v2883
  %v2946 = vpack.c.bf16 %v2886, %v2885
  %v2947 = vpack.c.bf16 %v2888, %v2887
  %v2948 = vpack.c.bf16 %v2890, %v2889
  %v2949 = vpack.c.bf16 %v2892, %v2891
  %v2950 = vpack.c.bf16 %v2894, %v2893
  %v2951 = vpack.c.bf16 %v2896, %v2895
  %v2952 = vpack.c.bf16 %v2898, %v2897
  %v2953 = vpack.c.bf16 %v2900, %v2899
  %v2954 = vpack.c.bf16 %v2902, %v2901
  %v2955 = vpack.c.bf16 %v2904, %v2903
  %v2956 = vpack.c.bf16 %v2906, %v2905
  %v2957 = vpack.c.bf16 %v2908, %v2907
  %v2958 = vpack.c.bf16 %v2910, %v2909
  %v2959 = vpack.c.bf16 %v2912, %v2911
  %v2960 = vpack.c.bf16 %v2914, %v2913
  %v2961 = vpack.c.bf16 %v2916, %v2915
  %v2962 = vpack.c.bf16 %v2918, %v2917
  %v2963 = vpack.c.bf16 %v2920, %v2919
  %v2964 = vpack.c.bf16 %v2922, %v2921
  %v2965 = vpack.c.bf16 %v2924, %v2923
  %v2966 = vpack.c.bf16 %v2926, %v2925
  %v2967 = vpack.c.bf16 %v2928, %v2927
  %v2968 = vpack.c.bf16 %v2930, %v2929
  %v2969 = vpack.c.bf16 %v2932, %v2931
  %v2970 = vpack.c.bf16 %v2934, %v2933
  %v2971 = vpack.c.bf16 %v2936, %v2935
  %v2972 = vpack.c.bf16 %v2938, %v2937
  %v2973 = vpack.c.bf16 %v2940, %v2939
  %v2974 = vpack.c.bf16 %v2942, %v2941
  %s2975 = scalar_lea.vmem %s1, 10
  %v2976 = vld [vmem:[%s2975] sm:$0x3]
  %v2978 = vsel %vm40, %v2943, 0
  %v2981 = vsel %vm40, %v2944, 0
  %v2984 = vsel %vm40, %v2945, 0
  %v2987 = vsel %vm40, %v2946, 0
  %v2990 = vsel %vm40, %v2947, 0
  %v2993 = vsel %vm40, %v2948, 0
  %v2996 = vsel %vm40, %v2949, 0
  %v2999 = vsel %vm40, %v2950, 0
  %v3002 = vsel %vm40, %v2951, 0
  %v3005 = vsel %vm40, %v2952, 0
  %v3008 = vsel %vm40, %v2953, 0
  %v3011 = vsel %vm40, %v2954, 0
  %v3014 = vsel %vm40, %v2955, 0
  %v3017 = vsel %vm40, %v2956, 0
  %v3020 = vsel %vm40, %v2957, 0
  %v3023 = vsel %vm40, %v2958, 0
  %v3026 = vsel %vm40, %v2959, 0
  %v3029 = vsel %vm40, %v2960, 0
  %v3032 = vsel %vm40, %v2961, 0
  %v3035 = vsel %vm40, %v2962, 0
  %v3038 = vsel %vm40, %v2963, 0
  %v3041 = vsel %vm40, %v2964, 0
  %v3044 = vsel %vm40, %v2965, 0
  %v3047 = vsel %vm40, %v2966, 0
  %v3050 = vsel %vm40, %v2967, 0
  %v3053 = vsel %vm40, %v2968, 0
  %v3056 = vsel %vm40, %v2969, 0
  %v3059 = vsel %vm40, %v2970, 0
  %v3062 = vsel %vm40, %v2971, 0
  %v3065 = vsel %vm40, %v2972, 0
  %v3068 = vsel %vm40, %v2973, 0
  %v3071 = vsel %vm40, %v2974, 0
  %v3074 = vsel %vm548, %v2976, 0
  %3076 = vmatprep.subr.bf16.mxu0 0
  %3077 = vmatpush1.bf16.msra.mxu0 0
  %3078 = vmatprep.subr.bf16.mxu0 0
  %3079 = vmatpush1.bf16.msra.mxu0 0
  %3080 = vmatprep.subr.bf16.mxu0 0
  %3081 = vmatpush1.bf16.msra.mxu0 0
  %3082 = vmatprep.subr.bf16.mxu0 0
  %3083 = vmatpush1.bf16.msra.mxu0 0
  %3084 = vmatprep.subr.bf16.mxu0 0
  %3085 = vmatpush1.bf16.msra.mxu0 0
  %3086 = vmatprep.subr.bf16.mxu0 0
  %3087 = vmatpush1.bf16.msra.mxu0 0
  %3088 = vmatprep.subr.bf16.mxu0 0
  %3089 = vmatpush1.bf16.msra.mxu0 0
  %3090 = vmatprep.subr.bf16.mxu0 0
  %3091 = vmatpush1.bf16.msra.mxu0 %v3074
  %3092 = vmatprep.subr.bf16.mxu0 0
  %3093 = vmatpush2.bf16.msra.mxu0 0
  %3094 = vmatprep.subr.bf16.mxu0 0
  %3095 = vmatpush2.bf16.msra.mxu0 0
  %3096 = vmatprep.subr.bf16.mxu0 0
  %3097 = vmatpush2.bf16.msra.mxu0 0
  %3098 = vmatprep.subr.bf16.mxu0 0
  %3099 = vmatpush2.bf16.msra.mxu0 0
  %3100 = vmatprep.subr.bf16.mxu0 0
  %3101 = vmatpush2.bf16.msra.mxu0 0
  %3102 = vmatprep.subr.bf16.mxu0 0
  %3103 = vmatpush2.bf16.msra.mxu0 0
  %3104 = vmatprep.subr.bf16.mxu0 0
  %3105 = vmatpush2.bf16.msra.mxu0 0
  %3106 = vmatprep.subr.bf16.mxu0 0
  %3107 = vmatpush2.bf16.msra.mxu0 0
  %3108 = vmatprep.mubr.bf16.mxu0 0
  %3109 = vmatmul.mubr.bf16.gmra.mxu0 %v2978
  %v3110 = vpop.f32.mrf.mxu0
  %v3111 = vadd.f32 0.0, %v3110
  %v3112 = vpop.f32.mrf.mxu0
  %v3113 = vpop.f32.mrf.mxu0
  %v3114 = vadd.f32 0.0, %v3113
  %v3115 = vpop.f32.mrf.mxu0
  %3116 = vmatprep.mubr.bf16.mxu0 0
  %3117 = vmatmul.mubr.bf16.gmra.mxu0 %v2981
  %v3118 = vpop.f32.mrf.mxu0
  %v3119 = vadd.f32 0.0, %v3118
  %v3120 = vpop.f32.mrf.mxu0
  %v3121 = vpop.f32.mrf.mxu0
  %v3122 = vadd.f32 0.0, %v3121
  %v3123 = vpop.f32.mrf.mxu0
  %3124 = vmatprep.mubr.bf16.mxu0 0
  %3125 = vmatmul.mubr.bf16.gmra.mxu0 %v2984
  %v3126 = vpop.f32.mrf.mxu0
  %v3127 = vadd.f32 0.0, %v3126
  %v3128 = vpop.f32.mrf.mxu0
  %v3129 = vpop.f32.mrf.mxu0
  %v3130 = vadd.f32 0.0, %v3129
  %v3131 = vpop.f32.mrf.mxu0
  %3132 = vmatprep.mubr.bf16.mxu0 0
  %3133 = vmatmul.mubr.bf16.gmra.mxu0 %v2987
  %v3134 = vpop.f32.mrf.mxu0
  %v3135 = vadd.f32 0.0, %v3134
  %v3136 = vpop.f32.mrf.mxu0
  %v3137 = vpop.f32.mrf.mxu0
  %v3138 = vadd.f32 0.0, %v3137
  %v3139 = vpop.f32.mrf.mxu0
  %3140 = vmatprep.mubr.bf16.mxu0 0
  %3141 = vmatmul.mubr.bf16.gmra.mxu0 %v2990
  %v3142 = vpop.f32.mrf.mxu0
  %v3143 = vadd.f32 0.0, %v3142
  %v3144 = vpop.f32.mrf.mxu0
  %v3145 = vpop.f32.mrf.mxu0
  %v3146 = vadd.f32 0.0, %v3145
  %v3147 = vpop.f32.mrf.mxu0
  %3148 = vmatprep.mubr.bf16.mxu0 0
  %3149 = vmatmul.mubr.bf16.gmra.mxu0 %v2993
  %v3150 = vpop.f32.mrf.mxu0
  %v3151 = vadd.f32 0.0, %v3150
  %v3152 = vpop.f32.mrf.mxu0
  %v3153 = vpop.f32.mrf.mxu0
  %v3154 = vadd.f32 0.0, %v3153
  %v3155 = vpop.f32.mrf.mxu0
  %3156 = vmatprep.mubr.bf16.mxu0 0
  %3157 = vmatmul.mubr.bf16.gmra.mxu0 %v2996
  %v3158 = vpop.f32.mrf.mxu0
  %v3159 = vadd.f32 0.0, %v3158
  %v3160 = vpop.f32.mrf.mxu0
  %v3161 = vpop.f32.mrf.mxu0
  %v3162 = vadd.f32 0.0, %v3161
  %v3163 = vpop.f32.mrf.mxu0
  %3164 = vmatprep.mubr.bf16.mxu0 0
  %3165 = vmatmul.mubr.bf16.gmra.mxu0 %v2999
  %v3166 = vpop.f32.mrf.mxu0
  %v3167 = vadd.f32 0.0, %v3166
  %v3168 = vpop.f32.mrf.mxu0
  %v3169 = vpop.f32.mrf.mxu0
  %v3170 = vadd.f32 0.0, %v3169
  %v3171 = vpop.f32.mrf.mxu0
  %3172 = vmatprep.mubr.bf16.mxu0 0
  %3173 = vmatmul.mubr.bf16.gmra.mxu0 %v3002
  %v3174 = vpop.f32.mrf.mxu0
  %v3175 = vadd.f32 0.0, %v3174
  %v3176 = vpop.f32.mrf.mxu0
  %v3177 = vpop.f32.mrf.mxu0
  %v3178 = vadd.f32 0.0, %v3177
  %v3179 = vpop.f32.mrf.mxu0
  %3180 = vmatprep.mubr.bf16.mxu0 0
  %3181 = vmatmul.mubr.bf16.gmra.mxu0 %v3005
  %v3182 = vpop.f32.mrf.mxu0
  %v3183 = vadd.f32 0.0, %v3182
  %v3184 = vpop.f32.mrf.mxu0
  %v3185 = vpop.f32.mrf.mxu0
  %v3186 = vadd.f32 0.0, %v3185
  %v3187 = vpop.f32.mrf.mxu0
  %3188 = vmatprep.mubr.bf16.mxu0 0
  %3189 = vmatmul.mubr.bf16.gmra.mxu0 %v3008
  %v3190 = vpop.f32.mrf.mxu0
  %v3191 = vadd.f32 0.0, %v3190
  %v3192 = vpop.f32.mrf.mxu0
  %v3193 = vpop.f32.mrf.mxu0
  %v3194 = vadd.f32 0.0, %v3193
  %v3195 = vpop.f32.mrf.mxu0
  %3196 = vmatprep.mubr.bf16.mxu0 0
  %3197 = vmatmul.mubr.bf16.gmra.mxu0 %v3011
  %v3198 = vpop.f32.mrf.mxu0
  %v3199 = vadd.f32 0.0, %v3198
  %v3200 = vpop.f32.mrf.mxu0
  %v3201 = vpop.f32.mrf.mxu0
  %v3202 = vadd.f32 0.0, %v3201
  %v3203 = vpop.f32.mrf.mxu0
  %3204 = vmatprep.mubr.bf16.mxu0 0
  %3205 = vmatmul.mubr.bf16.gmra.mxu0 %v3014
  %v3206 = vpop.f32.mrf.mxu0
  %v3207 = vadd.f32 0.0, %v3206
  %v3208 = vpop.f32.mrf.mxu0
  %v3209 = vpop.f32.mrf.mxu0
  %v3210 = vadd.f32 0.0, %v3209
  %v3211 = vpop.f32.mrf.mxu0
  %3212 = vmatprep.mubr.bf16.mxu0 0
  %3213 = vmatmul.mubr.bf16.gmra.mxu0 %v3017
  %v3214 = vpop.f32.mrf.mxu0
  %v3215 = vadd.f32 0.0, %v3214
  %v3216 = vpop.f32.mrf.mxu0
  %v3217 = vpop.f32.mrf.mxu0
  %v3218 = vadd.f32 0.0, %v3217
  %v3219 = vpop.f32.mrf.mxu0
  %3220 = vmatprep.mubr.bf16.mxu0 0
  %3221 = vmatmul.mubr.bf16.gmra.mxu0 %v3020
  %v3222 = vpop.f32.mrf.mxu0
  %v3223 = vadd.f32 0.0, %v3222
  %v3224 = vpop.f32.mrf.mxu0
  %v3225 = vpop.f32.mrf.mxu0
  %v3226 = vadd.f32 0.0, %v3225
  %v3227 = vpop.f32.mrf.mxu0
  %3228 = vmatprep.mubr.bf16.mxu0 0
  %3229 = vmatmul.mubr.bf16.gmra.mxu0 %v3023
  %v3230 = vpop.f32.mrf.mxu0
  %v3231 = vadd.f32 0.0, %v3230
  %v3232 = vpop.f32.mrf.mxu0
  %v3233 = vpop.f32.mrf.mxu0
  %v3234 = vadd.f32 0.0, %v3233
  %v3235 = vpop.f32.mrf.mxu0
  %3236 = vmatprep.mubr.bf16.mxu0 0
  %3237 = vmatmul.mubr.bf16.gmra.mxu0 %v3026
  %v3238 = vpop.f32.mrf.mxu0
  %v3239 = vadd.f32 0.0, %v3238
  %v3240 = vpop.f32.mrf.mxu0
  %v3241 = vpop.f32.mrf.mxu0
  %v3242 = vadd.f32 0.0, %v3241
  %v3243 = vpop.f32.mrf.mxu0
  %3244 = vmatprep.mubr.bf16.mxu0 0
  %3245 = vmatmul.mubr.bf16.gmra.mxu0 %v3029
  %v3246 = vpop.f32.mrf.mxu0
  %v3247 = vadd.f32 0.0, %v3246
  %v3248 = vpop.f32.mrf.mxu0
  %v3249 = vpop.f32.mrf.mxu0
  %v3250 = vadd.f32 0.0, %v3249
  %v3251 = vpop.f32.mrf.mxu0
  %3252 = vmatprep.mubr.bf16.mxu0 0
  %3253 = vmatmul.mubr.bf16.gmra.mxu0 %v3032
  %v3254 = vpop.f32.mrf.mxu0
  %v3255 = vadd.f32 0.0, %v3254
  %v3256 = vpop.f32.mrf.mxu0
  %v3257 = vpop.f32.mrf.mxu0
  %v3258 = vadd.f32 0.0, %v3257
  %v3259 = vpop.f32.mrf.mxu0
  %3260 = vmatprep.mubr.bf16.mxu0 0
  %3261 = vmatmul.mubr.bf16.gmra.mxu0 %v3035
  %v3262 = vpop.f32.mrf.mxu0
  %v3263 = vadd.f32 0.0, %v3262
  %v3264 = vpop.f32.mrf.mxu0
  %v3265 = vpop.f32.mrf.mxu0
  %v3266 = vadd.f32 0.0, %v3265
  %v3267 = vpop.f32.mrf.mxu0
  %3268 = vmatprep.mubr.bf16.mxu0 0
  %3269 = vmatmul.mubr.bf16.gmra.mxu0 %v3038
  %v3270 = vpop.f32.mrf.mxu0
  %v3271 = vadd.f32 0.0, %v3270
  %v3272 = vpop.f32.mrf.mxu0
  %v3273 = vpop.f32.mrf.mxu0
  %v3274 = vadd.f32 0.0, %v3273
  %v3275 = vpop.f32.mrf.mxu0
  %3276 = vmatprep.mubr.bf16.mxu0 0
  %3277 = vmatmul.mubr.bf16.gmra.mxu0 %v3041
  %v3278 = vpop.f32.mrf.mxu0
  %v3279 = vadd.f32 0.0, %v3278
  %v3280 = vpop.f32.mrf.mxu0
  %v3281 = vpop.f32.mrf.mxu0
  %v3282 = vadd.f32 0.0, %v3281
  %v3283 = vpop.f32.mrf.mxu0
  %3284 = vmatprep.mubr.bf16.mxu0 0
  %3285 = vmatmul.mubr.bf16.gmra.mxu0 %v3044
  %v3286 = vpop.f32.mrf.mxu0
  %v3287 = vadd.f32 0.0, %v3286
  %v3288 = vpop.f32.mrf.mxu0
  %v3289 = vpop.f32.mrf.mxu0
  %v3290 = vadd.f32 0.0, %v3289
  %v3291 = vpop.f32.mrf.mxu0
  %3292 = vmatprep.mubr.bf16.mxu0 0
  %3293 = vmatmul.mubr.bf16.gmra.mxu0 %v3047
  %v3294 = vpop.f32.mrf.mxu0
  %v3295 = vadd.f32 0.0, %v3294
  %v3296 = vpop.f32.mrf.mxu0
  %v3297 = vpop.f32.mrf.mxu0
  %v3298 = vadd.f32 0.0, %v3297
  %v3299 = vpop.f32.mrf.mxu0
  %3300 = vmatprep.mubr.bf16.mxu0 0
  %3301 = vmatmul.mubr.bf16.gmra.mxu0 %v3050
  %v3302 = vpop.f32.mrf.mxu0
  %v3303 = vadd.f32 0.0, %v3302
  %v3304 = vpop.f32.mrf.mxu0
  %v3305 = vpop.f32.mrf.mxu0
  %v3306 = vadd.f32 0.0, %v3305
  %v3307 = vpop.f32.mrf.mxu0
  %3308 = vmatprep.mubr.bf16.mxu0 0
  %3309 = vmatmul.mubr.bf16.gmra.mxu0 %v3053
  %v3310 = vpop.f32.mrf.mxu0
  %v3311 = vadd.f32 0.0, %v3310
  %v3312 = vpop.f32.mrf.mxu0
  %v3313 = vpop.f32.mrf.mxu0
  %v3314 = vadd.f32 0.0, %v3313
  %v3315 = vpop.f32.mrf.mxu0
  %3316 = vmatprep.mubr.bf16.mxu0 0
  %3317 = vmatmul.mubr.bf16.gmra.mxu0 %v3056
  %v3318 = vpop.f32.mrf.mxu0
  %v3319 = vadd.f32 0.0, %v3318
  %v3320 = vpop.f32.mrf.mxu0
  %v3321 = vpop.f32.mrf.mxu0
  %v3322 = vadd.f32 0.0, %v3321
  %v3323 = vpop.f32.mrf.mxu0
  %3324 = vmatprep.mubr.bf16.mxu0 0
  %3325 = vmatmul.mubr.bf16.gmra.mxu0 %v3059
  %v3326 = vpop.f32.mrf.mxu0
  %v3327 = vadd.f32 0.0, %v3326
  %v3328 = vpop.f32.mrf.mxu0
  %v3329 = vpop.f32.mrf.mxu0
  %v3330 = vadd.f32 0.0, %v3329
  %v3331 = vpop.f32.mrf.mxu0
  %3332 = vmatprep.mubr.bf16.mxu0 0
  %3333 = vmatmul.mubr.bf16.gmra.mxu0 %v3062
  %v3334 = vpop.f32.mrf.mxu0
  %v3335 = vadd.f32 0.0, %v3334
  %v3336 = vpop.f32.mrf.mxu0
  %v3337 = vpop.f32.mrf.mxu0
  %v3338 = vadd.f32 0.0, %v3337
  %v3339 = vpop.f32.mrf.mxu0
  %3340 = vmatprep.mubr.bf16.mxu0 0
  %3341 = vmatmul.mubr.bf16.gmra.mxu0 %v3065
  %v3342 = vpop.f32.mrf.mxu0
  %v3343 = vadd.f32 0.0, %v3342
  %v3344 = vpop.f32.mrf.mxu0
  %v3345 = vpop.f32.mrf.mxu0
  %v3346 = vadd.f32 0.0, %v3345
  %v3347 = vpop.f32.mrf.mxu0
  %3348 = vmatprep.mubr.bf16.mxu0 0
  %3349 = vmatmul.mubr.bf16.gmra.mxu0 %v3068
  %v3350 = vpop.f32.mrf.mxu0
  %v3351 = vadd.f32 0.0, %v3350
  %v3352 = vpop.f32.mrf.mxu0
  %v3353 = vpop.f32.mrf.mxu0
  %v3354 = vadd.f32 0.0, %v3353
  %v3355 = vpop.f32.mrf.mxu0
  %3356 = vmatprep.mubr.bf16.mxu0 0
  %3357 = vmatmul.mubr.bf16.gmra.mxu0 %v3071
  %v3358 = vpop.f32.mrf.mxu0
  %v3359 = vadd.f32 0.0, %v3358
  %v3360 = vpop.f32.mrf.mxu0
  %v3361 = vpop.f32.mrf.mxu0
  %v3362 = vadd.f32 0.0, %v3361
  %v3363 = vpop.f32.mrf.mxu0
  %3364 = vdwg.mxu0
  %v3365 = vadd.f32 %v2815, %v3111
  %v3366 = vadd.f32 %v2816, %v3114
  %v3367 = vadd.f32 %v2817, %v3119
  %v3368 = vadd.f32 %v2818, %v3122
  %v3369 = vadd.f32 %v2819, %v3127
  %v3370 = vadd.f32 %v2820, %v3130
  %v3371 = vadd.f32 %v2821, %v3135
  %v3372 = vadd.f32 %v2822, %v3138
  %v3373 = vadd.f32 %v2823, %v3143
  %v3374 = vadd.f32 %v2824, %v3146
  %v3375 = vadd.f32 %v2825, %v3151
  %v3376 = vadd.f32 %v2826, %v3154
  %v3377 = vadd.f32 %v2827, %v3159
  %v3378 = vadd.f32 %v2828, %v3162
  %v3379 = vadd.f32 %v2829, %v3167
  %v3380 = vadd.f32 %v2830, %v3170
  %v3381 = vadd.f32 %v2831, %v3175
  %v3382 = vadd.f32 %v2832, %v3178
  %v3383 = vadd.f32 %v2833, %v3183
  %v3384 = vadd.f32 %v2834, %v3186
  %v3385 = vadd.f32 %v2835, %v3191
  %v3386 = vadd.f32 %v2836, %v3194
  %v3387 = vadd.f32 %v2837, %v3199
  %v3388 = vadd.f32 %v2838, %v3202
  %v3389 = vadd.f32 %v2839, %v3207
  %v3390 = vadd.f32 %v2840, %v3210
  %v3391 = vadd.f32 %v2841, %v3215
  %v3392 = vadd.f32 %v2842, %v3218
  %v3393 = vadd.f32 %v2843, %v3223
  %v3394 = vadd.f32 %v2844, %v3226
  %v3395 = vadd.f32 %v2845, %v3231
  %v3396 = vadd.f32 %v2846, %v3234
  %v3397 = vadd.f32 %v2847, %v3239
  %v3398 = vadd.f32 %v2848, %v3242
  %v3399 = vadd.f32 %v2849, %v3247
  %v3400 = vadd.f32 %v2850, %v3250
  %v3401 = vadd.f32 %v2851, %v3255
  %v3402 = vadd.f32 %v2852, %v3258
  %v3403 = vadd.f32 %v2853, %v3263
  %v3404 = vadd.f32 %v2854, %v3266
  %v3405 = vadd.f32 %v2855, %v3271
  %v3406 = vadd.f32 %v2856, %v3274
  %v3407 = vadd.f32 %v2857, %v3279
  %v3408 = vadd.f32 %v2858, %v3282
  %v3409 = vadd.f32 %v2859, %v3287
  %v3410 = vadd.f32 %v2860, %v3290
  %v3411 = vadd.f32 %v2861, %v3295
  %v3412 = vadd.f32 %v2862, %v3298
  %v3413 = vadd.f32 %v2863, %v3303
  %v3414 = vadd.f32 %v2864, %v3306
  %v3415 = vadd.f32 %v2865, %v3311
  %v3416 = vadd.f32 %v2866, %v3314
  %v3417 = vadd.f32 %v2867, %v3319
  %v3418 = vadd.f32 %v2868, %v3322
  %v3419 = vadd.f32 %v2869, %v3327
  %v3420 = vadd.f32 %v2870, %v3330
  %v3421 = vadd.f32 %v2871, %v3335
  %v3422 = vadd.f32 %v2872, %v3338
  %v3423 = vadd.f32 %v2873, %v3343
  %v3424 = vadd.f32 %v2874, %v3346
  %v3425 = vadd.f32 %v2875, %v3351
  %v3426 = vadd.f32 %v2876, %v3354
  %v3427 = vadd.f32 %v2877, %v3359
  %v3428 = vadd.f32 %v2878, %v3362
  %s3429 = scalar_lea.vmem [#allocation2], 48
  %v3430 = vld [vmem:[%s3429] sm:$0xff]
  %v3431 = vld [vmem:[%s3429 + $0x8] sm:$0xff]
  %v3432 = vld [vmem:[%s3429 + $0x18] sm:$0xff]
  %v3433 = vld [vmem:[%s3429 + $0x20] sm:$0xff]
  %v3434 = vld [vmem:[%s3429 + $0x30] sm:$0xff]
  %v3435 = vld [vmem:[%s3429 + $0x38] sm:$0xff]
  %v3436 = vld [vmem:[%s3429 + $0x48] sm:$0xff]
  %v3437 = vld [vmem:[%s3429 + $0x50] sm:$0xff]
  %v3438 = vld [vmem:[%s3429 + $0x60] sm:$0xff]
  %v3439 = vld [vmem:[%s3429 + $0x68] sm:$0xff]
  %v3440 = vld [vmem:[%s3429 + $0x78] sm:$0xff]
  %v3441 = vld [vmem:[%s3429 + $0x80] sm:$0xff]
  %v3442 = vld [vmem:[%s3429 + $0x90] sm:$0xff]
  %v3443 = vld [vmem:[%s3429 + $0x98] sm:$0xff]
  %v3444 = vld [vmem:[%s3429 + $0xa8] sm:$0xff]
  %v3445 = vld [vmem:[%s3429 + $0xb0] sm:$0xff]
  %v3446 = vld [vmem:[%s3429 + $0xc0] sm:$0xff]
  %v3447 = vld [vmem:[%s3429 + $0xc8] sm:$0xff]
  %v3448 = vld [vmem:[%s3429 + $0xd8] sm:$0xff]
  %v3449 = vld [vmem:[%s3429 + $0xe0] sm:$0xff]
  %v3450 = vld [vmem:[%s3429 + $0xf0] sm:$0xff]
  %v3451 = vld [vmem:[%s3429 + $0xf8] sm:$0xff]
  %v3452 = vld [vmem:[%s3429 + $0x108] sm:$0xff]
  %v3453 = vld [vmem:[%s3429 + $0x110] sm:$0xff]
  %v3454 = vld [vmem:[%s3429 + $0x120] sm:$0xff]
  %v3455 = vld [vmem:[%s3429 + $0x128] sm:$0xff]
  %v3456 = vld [vmem:[%s3429 + $0x138] sm:$0xff]
  %v3457 = vld [vmem:[%s3429 + $0x140] sm:$0xff]
  %v3458 = vld [vmem:[%s3429 + $0x150] sm:$0xff]
  %v3459 = vld [vmem:[%s3429 + $0x158] sm:$0xff]
  %v3460 = vld [vmem:[%s3429 + $0x168] sm:$0xff]
  %v3461 = vld [vmem:[%s3429 + $0x170] sm:$0xff]
  %v3462 = vld [vmem:[%s3429 + $0x1b0] sm:$0xff]
  %v3463 = vld [vmem:[%s3429 + $0x1b8] sm:$0xff]
  %v3464 = vld [vmem:[%s3429 + $0x1c8] sm:$0xff]
  %v3465 = vld [vmem:[%s3429 + $0x1d0] sm:$0xff]
  %v3466 = vld [vmem:[%s3429 + $0x1e0] sm:$0xff]
  %v3467 = vld [vmem:[%s3429 + $0x1e8] sm:$0xff]
  %v3468 = vld [vmem:[%s3429 + $0x1f8] sm:$0xff]
  %v3469 = vld [vmem:[%s3429 + $0x200] sm:$0xff]
  %v3470 = vld [vmem:[%s3429 + $0x210] sm:$0xff]
  %v3471 = vld [vmem:[%s3429 + $0x218] sm:$0xff]
  %v3472 = vld [vmem:[%s3429 + $0x228] sm:$0xff]
  %v3473 = vld [vmem:[%s3429 + $0x230] sm:$0xff]
  %v3474 = vld [vmem:[%s3429 + $0x240] sm:$0xff]
  %v3475 = vld [vmem:[%s3429 + $0x248] sm:$0xff]
  %v3476 = vld [vmem:[%s3429 + $0x258] sm:$0xff]
  %v3477 = vld [vmem:[%s3429 + $0x260] sm:$0xff]
  %v3478 = vld [vmem:[%s3429 + $0x270] sm:$0xff]
  %v3479 = vld [vmem:[%s3429 + $0x278] sm:$0xff]
  %v3480 = vld [vmem:[%s3429 + $0x288] sm:$0xff]
  %v3481 = vld [vmem:[%s3429 + $0x290] sm:$0xff]
  %v3482 = vld [vmem:[%s3429 + $0x2a0] sm:$0xff]
  %v3483 = vld [vmem:[%s3429 + $0x2a8] sm:$0xff]
  %v3484 = vld [vmem:[%s3429 + $0x2b8] sm:$0xff]
  %v3485 = vld [vmem:[%s3429 + $0x2c0] sm:$0xff]
  %v3486 = vld [vmem:[%s3429 + $0x2d0] sm:$0xff]
  %v3487 = vld [vmem:[%s3429 + $0x2d8] sm:$0xff]
  %v3488 = vld [vmem:[%s3429 + $0x2e8] sm:$0xff]
  %v3489 = vld [vmem:[%s3429 + $0x2f0] sm:$0xff]
  %v3490 = vld [vmem:[%s3429 + $0x300] sm:$0xff]
  %v3491 = vld [vmem:[%s3429 + $0x308] sm:$0xff]
  %v3492 = vld [vmem:[%s3429 + $0x318] sm:$0xff]
  %v3493 = vld [vmem:[%s3429 + $0x320] sm:$0xff]
  %v3494 = vpack.c.bf16 %v3431, %v3430
  %v3495 = vpack.c.bf16 %v3433, %v3432
  %v3496 = vpack.c.bf16 %v3435, %v3434
  %v3497 = vpack.c.bf16 %v3437, %v3436
  %v3498 = vpack.c.bf16 %v3439, %v3438
  %v3499 = vpack.c.bf16 %v3441, %v3440
  %v3500 = vpack.c.bf16 %v3443, %v3442
  %v3501 = vpack.c.bf16 %v3445, %v3444
  %v3502 = vpack.c.bf16 %v3447, %v3446
  %v3503 = vpack.c.bf16 %v3449, %v3448
  %v3504 = vpack.c.bf16 %v3451, %v3450
  %v3505 = vpack.c.bf16 %v3453, %v3452
  %v3506 = vpack.c.bf16 %v3455, %v3454
  %v3507 = vpack.c.bf16 %v3457, %v3456
  %v3508 = vpack.c.bf16 %v3459, %v3458
  %v3509 = vpack.c.bf16 %v3461, %v3460
  %v3510 = vpack.c.bf16 %v3463, %v3462
  %v3511 = vpack.c.bf16 %v3465, %v3464
  %v3512 = vpack.c.bf16 %v3467, %v3466
  %v3513 = vpack.c.bf16 %v3469, %v3468
  %v3514 = vpack.c.bf16 %v3471, %v3470
  %v3515 = vpack.c.bf16 %v3473, %v3472
  %v3516 = vpack.c.bf16 %v3475, %v3474
  %v3517 = vpack.c.bf16 %v3477, %v3476
  %v3518 = vpack.c.bf16 %v3479, %v3478
  %v3519 = vpack.c.bf16 %v3481, %v3480
  %v3520 = vpack.c.bf16 %v3483, %v3482
  %v3521 = vpack.c.bf16 %v3485, %v3484
  %v3522 = vpack.c.bf16 %v3487, %v3486
  %v3523 = vpack.c.bf16 %v3489, %v3488
  %v3524 = vpack.c.bf16 %v3491, %v3490
  %v3525 = vpack.c.bf16 %v3493, %v3492
  %s3526 = scalar_lea.vmem %s1, 12
  %v3527 = vld [vmem:[%s3526] sm:$0x3]
  %v3529 = vsel %vm40, %v3494, 0
  %v3532 = vsel %vm40, %v3495, 0
  %v3535 = vsel %vm40, %v3496, 0
  %v3538 = vsel %vm40, %v3497, 0
  %v3541 = vsel %vm40, %v3498, 0
  %v3544 = vsel %vm40, %v3499, 0
  %v3547 = vsel %vm40, %v3500, 0
  %v3550 = vsel %vm40, %v3501, 0
  %v3553 = vsel %vm40, %v3502, 0
  %v3556 = vsel %vm40, %v3503, 0
  %v3559 = vsel %vm40, %v3504, 0
  %v3562 = vsel %vm40, %v3505, 0
  %v3565 = vsel %vm40, %v3506, 0
  %v3568 = vsel %vm40, %v3507, 0
  %v3571 = vsel %vm40, %v3508, 0
  %v3574 = vsel %vm40, %v3509, 0
  %v3577 = vsel %vm40, %v3510, 0
  %v3580 = vsel %vm40, %v3511, 0
  %v3583 = vsel %vm40, %v3512, 0
  %v3586 = vsel %vm40, %v3513, 0
  %v3589 = vsel %vm40, %v3514, 0
  %v3592 = vsel %vm40, %v3515, 0
  %v3595 = vsel %vm40, %v3516, 0
  %v3598 = vsel %vm40, %v3517, 0
  %v3601 = vsel %vm40, %v3518, 0
  %v3604 = vsel %vm40, %v3519, 0
  %v3607 = vsel %vm40, %v3520, 0
  %v3610 = vsel %vm40, %v3521, 0
  %v3613 = vsel %vm40, %v3522, 0
  %v3616 = vsel %vm40, %v3523, 0
  %v3619 = vsel %vm40, %v3524, 0
  %v3622 = vsel %vm40, %v3525, 0
  %v3625 = vsel %vm548, %v3527, 0
  %3627 = vmatprep.subr.bf16.mxu0 0
  %3628 = vmatpush1.bf16.msra.mxu0 0
  %3629 = vmatprep.subr.bf16.mxu0 0
  %3630 = vmatpush1.bf16.msra.mxu0 0
  %3631 = vmatprep.subr.bf16.mxu0 0
  %3632 = vmatpush1.bf16.msra.mxu0 0
  %3633 = vmatprep.subr.bf16.mxu0 0
  %3634 = vmatpush1.bf16.msra.mxu0 0
  %3635 = vmatprep.subr.bf16.mxu0 0
  %3636 = vmatpush1.bf16.msra.mxu0 0
  %3637 = vmatprep.subr.bf16.mxu0 0
  %3638 = vmatpush1.bf16.msra.mxu0 0
  %3639 = vmatprep.subr.bf16.mxu0 0
  %3640 = vmatpush1.bf16.msra.mxu0 0
  %3641 = vmatprep.subr.bf16.mxu0 0
  %3642 = vmatpush1.bf16.msra.mxu0 %v3625
  %3643 = vmatprep.subr.bf16.mxu0 0
  %3644 = vmatpush2.bf16.msra.mxu0 0
  %3645 = vmatprep.subr.bf16.mxu0 0
  %3646 = vmatpush2.bf16.msra.mxu0 0
  %3647 = vmatprep.subr.bf16.mxu0 0
  %3648 = vmatpush2.bf16.msra.mxu0 0
  %3649 = vmatprep.subr.bf16.mxu0 0
  %3650 = vmatpush2.bf16.msra.mxu0 0
  %3651 = vmatprep.subr.bf16.mxu0 0
  %3652 = vmatpush2.bf16.msra.mxu0 0
  %3653 = vmatprep.subr.bf16.mxu0 0
  %3654 = vmatpush2.bf16.msra.mxu0 0
  %3655 = vmatprep.subr.bf16.mxu0 0
  %3656 = vmatpush2.bf16.msra.mxu0 0
  %3657 = vmatprep.subr.bf16.mxu0 0
  %3658 = vmatpush2.bf16.msra.mxu0 0
  %3659 = vmatprep.mubr.bf16.mxu0 0
  %3660 = vmatmul.mubr.bf16.gmra.mxu0 %v3529
  %v3661 = vpop.f32.mrf.mxu0
  %v3662 = vadd.f32 0.0, %v3661
  %v3663 = vpop.f32.mrf.mxu0
  %v3664 = vpop.f32.mrf.mxu0
  %v3665 = vadd.f32 0.0, %v3664
  %v3666 = vpop.f32.mrf.mxu0
  %3667 = vmatprep.mubr.bf16.mxu0 0
  %3668 = vmatmul.mubr.bf16.gmra.mxu0 %v3532
  %v3669 = vpop.f32.mrf.mxu0
  %v3670 = vadd.f32 0.0, %v3669
  %v3671 = vpop.f32.mrf.mxu0
  %v3672 = vpop.f32.mrf.mxu0
  %v3673 = vadd.f32 0.0, %v3672
  %v3674 = vpop.f32.mrf.mxu0
  %3675 = vmatprep.mubr.bf16.mxu0 0
  %3676 = vmatmul.mubr.bf16.gmra.mxu0 %v3535
  %v3677 = vpop.f32.mrf.mxu0
  %v3678 = vadd.f32 0.0, %v3677
  %v3679 = vpop.f32.mrf.mxu0
  %v3680 = vpop.f32.mrf.mxu0
  %v3681 = vadd.f32 0.0, %v3680
  %v3682 = vpop.f32.mrf.mxu0
  %3683 = vmatprep.mubr.bf16.mxu0 0
  %3684 = vmatmul.mubr.bf16.gmra.mxu0 %v3538
  %v3685 = vpop.f32.mrf.mxu0
  %v3686 = vadd.f32 0.0, %v3685
  %v3687 = vpop.f32.mrf.mxu0
  %v3688 = vpop.f32.mrf.mxu0
  %v3689 = vadd.f32 0.0, %v3688
  %v3690 = vpop.f32.mrf.mxu0
  %3691 = vmatprep.mubr.bf16.mxu0 0
  %3692 = vmatmul.mubr.bf16.gmra.mxu0 %v3541
  %v3693 = vpop.f32.mrf.mxu0
  %v3694 = vadd.f32 0.0, %v3693
  %v3695 = vpop.f32.mrf.mxu0
  %v3696 = vpop.f32.mrf.mxu0
  %v3697 = vadd.f32 0.0, %v3696
  %v3698 = vpop.f32.mrf.mxu0
  %3699 = vmatprep.mubr.bf16.mxu0 0
  %3700 = vmatmul.mubr.bf16.gmra.mxu0 %v3544
  %v3701 = vpop.f32.mrf.mxu0
  %v3702 = vadd.f32 0.0, %v3701
  %v3703 = vpop.f32.mrf.mxu0
  %v3704 = vpop.f32.mrf.mxu0
  %v3705 = vadd.f32 0.0, %v3704
  %v3706 = vpop.f32.mrf.mxu0
  %3707 = vmatprep.mubr.bf16.mxu0 0
  %3708 = vmatmul.mubr.bf16.gmra.mxu0 %v3547
  %v3709 = vpop.f32.mrf.mxu0
  %v3710 = vadd.f32 0.0, %v3709
  %v3711 = vpop.f32.mrf.mxu0
  %v3712 = vpop.f32.mrf.mxu0
  %v3713 = vadd.f32 0.0, %v3712
  %v3714 = vpop.f32.mrf.mxu0
  %3715 = vmatprep.mubr.bf16.mxu0 0
  %3716 = vmatmul.mubr.bf16.gmra.mxu0 %v3550
  %v3717 = vpop.f32.mrf.mxu0
  %v3718 = vadd.f32 0.0, %v3717
  %v3719 = vpop.f32.mrf.mxu0
  %v3720 = vpop.f32.mrf.mxu0
  %v3721 = vadd.f32 0.0, %v3720
  %v3722 = vpop.f32.mrf.mxu0
  %3723 = vmatprep.mubr.bf16.mxu0 0
  %3724 = vmatmul.mubr.bf16.gmra.mxu0 %v3553
  %v3725 = vpop.f32.mrf.mxu0
  %v3726 = vadd.f32 0.0, %v3725
  %v3727 = vpop.f32.mrf.mxu0
  %v3728 = vpop.f32.mrf.mxu0
  %v3729 = vadd.f32 0.0, %v3728
  %v3730 = vpop.f32.mrf.mxu0
  %3731 = vmatprep.mubr.bf16.mxu0 0
  %3732 = vmatmul.mubr.bf16.gmra.mxu0 %v3556
  %v3733 = vpop.f32.mrf.mxu0
  %v3734 = vadd.f32 0.0, %v3733
  %v3735 = vpop.f32.mrf.mxu0
  %v3736 = vpop.f32.mrf.mxu0
  %v3737 = vadd.f32 0.0, %v3736
  %v3738 = vpop.f32.mrf.mxu0
  %3739 = vmatprep.mubr.bf16.mxu0 0
  %3740 = vmatmul.mubr.bf16.gmra.mxu0 %v3559
  %v3741 = vpop.f32.mrf.mxu0
  %v3742 = vadd.f32 0.0, %v3741
  %v3743 = vpop.f32.mrf.mxu0
  %v3744 = vpop.f32.mrf.mxu0
  %v3745 = vadd.f32 0.0, %v3744
  %v3746 = vpop.f32.mrf.mxu0
  %3747 = vmatprep.mubr.bf16.mxu0 0
  %3748 = vmatmul.mubr.bf16.gmra.mxu0 %v3562
  %v3749 = vpop.f32.mrf.mxu0
  %v3750 = vadd.f32 0.0, %v3749
  %v3751 = vpop.f32.mrf.mxu0
  %v3752 = vpop.f32.mrf.mxu0
  %v3753 = vadd.f32 0.0, %v3752
  %v3754 = vpop.f32.mrf.mxu0
  %3755 = vmatprep.mubr.bf16.mxu0 0
  %3756 = vmatmul.mubr.bf16.gmra.mxu0 %v3565
  %v3757 = vpop.f32.mrf.mxu0
  %v3758 = vadd.f32 0.0, %v3757
  %v3759 = vpop.f32.mrf.mxu0
  %v3760 = vpop.f32.mrf.mxu0
  %v3761 = vadd.f32 0.0, %v3760
  %v3762 = vpop.f32.mrf.mxu0
  %3763 = vmatprep.mubr.bf16.mxu0 0
  %3764 = vmatmul.mubr.bf16.gmra.mxu0 %v3568
  %v3765 = vpop.f32.mrf.mxu0
  %v3766 = vadd.f32 0.0, %v3765
  %v3767 = vpop.f32.mrf.mxu0
  %v3768 = vpop.f32.mrf.mxu0
  %v3769 = vadd.f32 0.0, %v3768
  %v3770 = vpop.f32.mrf.mxu0
  %3771 = vmatprep.mubr.bf16.mxu0 0
  %3772 = vmatmul.mubr.bf16.gmra.mxu0 %v3571
  %v3773 = vpop.f32.mrf.mxu0
  %v3774 = vadd.f32 0.0, %v3773
  %v3775 = vpop.f32.mrf.mxu0
  %v3776 = vpop.f32.mrf.mxu0
  %v3777 = vadd.f32 0.0, %v3776
  %v3778 = vpop.f32.mrf.mxu0
  %3779 = vmatprep.mubr.bf16.mxu0 0
  %3780 = vmatmul.mubr.bf16.gmra.mxu0 %v3574
  %v3781 = vpop.f32.mrf.mxu0
  %v3782 = vadd.f32 0.0, %v3781
  %v3783 = vpop.f32.mrf.mxu0
  %v3784 = vpop.f32.mrf.mxu0
  %v3785 = vadd.f32 0.0, %v3784
  %v3786 = vpop.f32.mrf.mxu0
  %3787 = vmatprep.mubr.bf16.mxu0 0
  %3788 = vmatmul.mubr.bf16.gmra.mxu0 %v3577
  %v3789 = vpop.f32.mrf.mxu0
  %v3790 = vadd.f32 0.0, %v3789
  %v3791 = vpop.f32.mrf.mxu0
  %v3792 = vpop.f32.mrf.mxu0
  %v3793 = vadd.f32 0.0, %v3792
  %v3794 = vpop.f32.mrf.mxu0
  %3795 = vmatprep.mubr.bf16.mxu0 0
  %3796 = vmatmul.mubr.bf16.gmra.mxu0 %v3580
  %v3797 = vpop.f32.mrf.mxu0
  %v3798 = vadd.f32 0.0, %v3797
  %v3799 = vpop.f32.mrf.mxu0
  %v3800 = vpop.f32.mrf.mxu0
  %v3801 = vadd.f32 0.0, %v3800
  %v3802 = vpop.f32.mrf.mxu0
  %3803 = vmatprep.mubr.bf16.mxu0 0
  %3804 = vmatmul.mubr.bf16.gmra.mxu0 %v3583
  %v3805 = vpop.f32.mrf.mxu0
  %v3806 = vadd.f32 0.0, %v3805
  %v3807 = vpop.f32.mrf.mxu0
  %v3808 = vpop.f32.mrf.mxu0
  %v3809 = vadd.f32 0.0, %v3808
  %v3810 = vpop.f32.mrf.mxu0
  %3811 = vmatprep.mubr.bf16.mxu0 0
  %3812 = vmatmul.mubr.bf16.gmra.mxu0 %v3586
  %v3813 = vpop.f32.mrf.mxu0
  %v3814 = vadd.f32 0.0, %v3813
  %v3815 = vpop.f32.mrf.mxu0
  %v3816 = vpop.f32.mrf.mxu0
  %v3817 = vadd.f32 0.0, %v3816
  %v3818 = vpop.f32.mrf.mxu0
  %3819 = vmatprep.mubr.bf16.mxu0 0
  %3820 = vmatmul.mubr.bf16.gmra.mxu0 %v3589
  %v3821 = vpop.f32.mrf.mxu0
  %v3822 = vadd.f32 0.0, %v3821
  %v3823 = vpop.f32.mrf.mxu0
  %v3824 = vpop.f32.mrf.mxu0
  %v3825 = vadd.f32 0.0, %v3824
  %v3826 = vpop.f32.mrf.mxu0
  %3827 = vmatprep.mubr.bf16.mxu0 0
  %3828 = vmatmul.mubr.bf16.gmra.mxu0 %v3592
  %v3829 = vpop.f32.mrf.mxu0
  %v3830 = vadd.f32 0.0, %v3829
  %v3831 = vpop.f32.mrf.mxu0
  %v3832 = vpop.f32.mrf.mxu0
  %v3833 = vadd.f32 0.0, %v3832
  %v3834 = vpop.f32.mrf.mxu0
  %3835 = vmatprep.mubr.bf16.mxu0 0
  %3836 = vmatmul.mubr.bf16.gmra.mxu0 %v3595
  %v3837 = vpop.f32.mrf.mxu0
  %v3838 = vadd.f32 0.0, %v3837
  %v3839 = vpop.f32.mrf.mxu0
  %v3840 = vpop.f32.mrf.mxu0
  %v3841 = vadd.f32 0.0, %v3840
  %v3842 = vpop.f32.mrf.mxu0
  %3843 = vmatprep.mubr.bf16.mxu0 0
  %3844 = vmatmul.mubr.bf16.gmra.mxu0 %v3598
  %v3845 = vpop.f32.mrf.mxu0
  %v3846 = vadd.f32 0.0, %v3845
  %v3847 = vpop.f32.mrf.mxu0
  %v3848 = vpop.f32.mrf.mxu0
  %v3849 = vadd.f32 0.0, %v3848
  %v3850 = vpop.f32.mrf.mxu0
  %3851 = vmatprep.mubr.bf16.mxu0 0
  %3852 = vmatmul.mubr.bf16.gmra.mxu0 %v3601
  %v3853 = vpop.f32.mrf.mxu0
  %v3854 = vadd.f32 0.0, %v3853
  %v3855 = vpop.f32.mrf.mxu0
  %v3856 = vpop.f32.mrf.mxu0
  %v3857 = vadd.f32 0.0, %v3856
  %v3858 = vpop.f32.mrf.mxu0
  %3859 = vmatprep.mubr.bf16.mxu0 0
  %3860 = vmatmul.mubr.bf16.gmra.mxu0 %v3604
  %v3861 = vpop.f32.mrf.mxu0
  %v3862 = vadd.f32 0.0, %v3861
  %v3863 = vpop.f32.mrf.mxu0
  %v3864 = vpop.f32.mrf.mxu0
  %v3865 = vadd.f32 0.0, %v3864
  %v3866 = vpop.f32.mrf.mxu0
  %3867 = vmatprep.mubr.bf16.mxu0 0
  %3868 = vmatmul.mubr.bf16.gmra.mxu0 %v3607
  %v3869 = vpop.f32.mrf.mxu0
  %v3870 = vadd.f32 0.0, %v3869
  %v3871 = vpop.f32.mrf.mxu0
  %v3872 = vpop.f32.mrf.mxu0
  %v3873 = vadd.f32 0.0, %v3872
  %v3874 = vpop.f32.mrf.mxu0
  %3875 = vmatprep.mubr.bf16.mxu0 0
  %3876 = vmatmul.mubr.bf16.gmra.mxu0 %v3610
  %v3877 = vpop.f32.mrf.mxu0
  %v3878 = vadd.f32 0.0, %v3877
  %v3879 = vpop.f32.mrf.mxu0
  %v3880 = vpop.f32.mrf.mxu0
  %v3881 = vadd.f32 0.0, %v3880
  %v3882 = vpop.f32.mrf.mxu0
  %3883 = vmatprep.mubr.bf16.mxu0 0
  %3884 = vmatmul.mubr.bf16.gmra.mxu0 %v3613
  %v3885 = vpop.f32.mrf.mxu0
  %v3886 = vadd.f32 0.0, %v3885
  %v3887 = vpop.f32.mrf.mxu0
  %v3888 = vpop.f32.mrf.mxu0
  %v3889 = vadd.f32 0.0, %v3888
  %v3890 = vpop.f32.mrf.mxu0
  %3891 = vmatprep.mubr.bf16.mxu0 0
  %3892 = vmatmul.mubr.bf16.gmra.mxu0 %v3616
  %v3893 = vpop.f32.mrf.mxu0
  %v3894 = vadd.f32 0.0, %v3893
  %v3895 = vpop.f32.mrf.mxu0
  %v3896 = vpop.f32.mrf.mxu0
  %v3897 = vadd.f32 0.0, %v3896
  %v3898 = vpop.f32.mrf.mxu0
  %3899 = vmatprep.mubr.bf16.mxu0 0
  %3900 = vmatmul.mubr.bf16.gmra.mxu0 %v3619
  %v3901 = vpop.f32.mrf.mxu0
  %v3902 = vadd.f32 0.0, %v3901
  %v3903 = vpop.f32.mrf.mxu0
  %v3904 = vpop.f32.mrf.mxu0
  %v3905 = vadd.f32 0.0, %v3904
  %v3906 = vpop.f32.mrf.mxu0
  %3907 = vmatprep.mubr.bf16.mxu0 0
  %3908 = vmatmul.mubr.bf16.gmra.mxu0 %v3622
  %v3909 = vpop.f32.mrf.mxu0
  %v3910 = vadd.f32 0.0, %v3909
  %v3911 = vpop.f32.mrf.mxu0
  %v3912 = vpop.f32.mrf.mxu0
  %v3913 = vadd.f32 0.0, %v3912
  %v3914 = vpop.f32.mrf.mxu0
  %3915 = vdwg.mxu0
  %v3916 = vadd.f32 %v3365, %v3662
  %v3917 = vadd.f32 %v3366, %v3665
  %v3918 = vadd.f32 %v3367, %v3670
  %v3919 = vadd.f32 %v3368, %v3673
  %v3920 = vadd.f32 %v3369, %v3678
  %v3921 = vadd.f32 %v3370, %v3681
  %v3922 = vadd.f32 %v3371, %v3686
  %v3923 = vadd.f32 %v3372, %v3689
  %v3924 = vadd.f32 %v3373, %v3694
  %v3925 = vadd.f32 %v3374, %v3697
  %v3926 = vadd.f32 %v3375, %v3702
  %v3927 = vadd.f32 %v3376, %v3705
  %v3928 = vadd.f32 %v3377, %v3710
  %v3929 = vadd.f32 %v3378, %v3713
  %v3930 = vadd.f32 %v3379, %v3718
  %v3931 = vadd.f32 %v3380, %v3721
  %v3932 = vadd.f32 %v3381, %v3726
  %v3933 = vadd.f32 %v3382, %v3729
  %v3934 = vadd.f32 %v3383, %v3734
  %v3935 = vadd.f32 %v3384, %v3737
  %v3936 = vadd.f32 %v3385, %v3742
  %v3937 = vadd.f32 %v3386, %v3745
  %v3938 = vadd.f32 %v3387, %v3750
  %v3939 = vadd.f32 %v3388, %v3753
  %v3940 = vadd.f32 %v3389, %v3758
  %v3941 = vadd.f32 %v3390, %v3761
  %v3942 = vadd.f32 %v3391, %v3766
  %v3943 = vadd.f32 %v3392, %v3769
  %v3944 = vadd.f32 %v3393, %v3774
  %v3945 = vadd.f32 %v3394, %v3777
  %v3946 = vadd.f32 %v3395, %v3782
  %v3947 = vadd.f32 %v3396, %v3785
  %v3948 = vadd.f32 %v3397, %v3790
  %v3949 = vadd.f32 %v3398, %v3793
  %v3950 = vadd.f32 %v3399, %v3798
  %v3951 = vadd.f32 %v3400, %v3801
  %v3952 = vadd.f32 %v3401, %v3806
  %v3953 = vadd.f32 %v3402, %v3809
  %v3954 = vadd.f32 %v3403, %v3814
  %v3955 = vadd.f32 %v3404, %v3817
  %v3956 = vadd.f32 %v3405, %v3822
  %v3957 = vadd.f32 %v3406, %v3825
  %v3958 = vadd.f32 %v3407, %v3830
  %v3959 = vadd.f32 %v3408, %v3833
  %v3960 = vadd.f32 %v3409, %v3838
  %v3961 = vadd.f32 %v3410, %v3841
  %v3962 = vadd.f32 %v3411, %v3846
  %v3963 = vadd.f32 %v3412, %v3849
  %v3964 = vadd.f32 %v3413, %v3854
  %v3965 = vadd.f32 %v3414, %v3857
  %v3966 = vadd.f32 %v3415, %v3862
  %v3967 = vadd.f32 %v3416, %v3865
  %v3968 = vadd.f32 %v3417, %v3870
  %v3969 = vadd.f32 %v3418, %v3873
  %v3970 = vadd.f32 %v3419, %v3878
  %v3971 = vadd.f32 %v3420, %v3881
  %v3972 = vadd.f32 %v3421, %v3886
  %v3973 = vadd.f32 %v3422, %v3889
  %v3974 = vadd.f32 %v3423, %v3894
  %v3975 = vadd.f32 %v3424, %v3897
  %v3976 = vadd.f32 %v3425, %v3902
  %v3977 = vadd.f32 %v3426, %v3905
  %v3978 = vadd.f32 %v3427, %v3910
  %v3979 = vadd.f32 %v3428, %v3913
  %v3980 = vld [vmem:[%s3429 + $0x1] sm:$0xff]
  %v3981 = vld [vmem:[%s3429 + $0x9] sm:$0xff]
  %v3982 = vld [vmem:[%s3429 + $0x19] sm:$0xff]
  %v3983 = vld [vmem:[%s3429 + $0x21] sm:$0xff]
  %v3984 = vld [vmem:[%s3429 + $0x31] sm:$0xff]
  %v3985 = vld [vmem:[%s3429 + $0x39] sm:$0xff]
  %v3986 = vld [vmem:[%s3429 + $0x49] sm:$0xff]
  %v3987 = vld [vmem:[%s3429 + $0x51] sm:$0xff]
  %v3988 = vld [vmem:[%s3429 + $0x61] sm:$0xff]
  %v3989 = vld [vmem:[%s3429 + $0x69] sm:$0xff]
  %v3990 = vld [vmem:[%s3429 + $0x79] sm:$0xff]
  %v3991 = vld [vmem:[%s3429 + $0x81] sm:$0xff]
  %v3992 = vld [vmem:[%s3429 + $0x91] sm:$0xff]
  %v3993 = vld [vmem:[%s3429 + $0x99] sm:$0xff]
  %v3994 = vld [vmem:[%s3429 + $0xa9] sm:$0xff]
  %v3995 = vld [vmem:[%s3429 + $0xb1] sm:$0xff]
  %v3996 = vld [vmem:[%s3429 + $0xc1] sm:$0xff]
  %v3997 = vld [vmem:[%s3429 + $0xc9] sm:$0xff]
  %v3998 = vld [vmem:[%s3429 + $0xd9] sm:$0xff]
  %v3999 = vld [vmem:[%s3429 + $0xe1] sm:$0xff]
  %v4000 = vld [vmem:[%s3429 + $0xf1] sm:$0xff]
  %v4001 = vld [vmem:[%s3429 + $0xf9] sm:$0xff]
  %v4002 = vld [vmem:[%s3429 + $0x109] sm:$0xff]
  %v4003 = vld [vmem:[%s3429 + $0x111] sm:$0xff]
  %v4004 = vld [vmem:[%s3429 + $0x121] sm:$0xff]
  %v4005 = vld [vmem:[%s3429 + $0x129] sm:$0xff]
  %v4006 = vld [vmem:[%s3429 + $0x139] sm:$0xff]
  %v4007 = vld [vmem:[%s3429 + $0x141] sm:$0xff]
  %v4008 = vld [vmem:[%s3429 + $0x151] sm:$0xff]
  %v4009 = vld [vmem:[%s3429 + $0x159] sm:$0xff]
  %v4010 = vld [vmem:[%s3429 + $0x169] sm:$0xff]
  %v4011 = vld [vmem:[%s3429 + $0x171] sm:$0xff]
  %v4012 = vld [vmem:[%s3429 + $0x1b1] sm:$0xff]
  %v4013 = vld [vmem:[%s3429 + $0x1b9] sm:$0xff]
  %v4014 = vld [vmem:[%s3429 + $0x1c9] sm:$0xff]
  %v4015 = vld [vmem:[%s3429 + $0x1d1] sm:$0xff]
  %v4016 = vld [vmem:[%s3429 + $0x1e1] sm:$0xff]
  %v4017 = vld [vmem:[%s3429 + $0x1e9] sm:$0xff]
  %v4018 = vld [vmem:[%s3429 + $0x1f9] sm:$0xff]
  %v4019 = vld [vmem:[%s3429 + $0x201] sm:$0xff]
  %v4020 = vld [vmem:[%s3429 + $0x211] sm:$0xff]
  %v4021 = vld [vmem:[%s3429 + $0x219] sm:$0xff]
  %v4022 = vld [vmem:[%s3429 + $0x229] sm:$0xff]
  %v4023 = vld [vmem:[%s3429 + $0x231] sm:$0xff]
  %v4024 = vld [vmem:[%s3429 + $0x241] sm:$0xff]
  %v4025 = vld [vmem:[%s3429 + $0x249] sm:$0xff]
  %v4026 = vld [vmem:[%s3429 + $0x259] sm:$0xff]
  %v4027 = vld [vmem:[%s3429 + $0x261] sm:$0xff]
  %v4028 = vld [vmem:[%s3429 + $0x271] sm:$0xff]
  %v4029 = vld [vmem:[%s3429 + $0x279] sm:$0xff]
  %v4030 = vld [vmem:[%s3429 + $0x289] sm:$0xff]
  %v4031 = vld [vmem:[%s3429 + $0x291] sm:$0xff]
  %v4032 = vld [vmem:[%s3429 + $0x2a1] sm:$0xff]
  %v4033 = vld [vmem:[%s3429 + $0x2a9] sm:$0xff]
  %v4034 = vld [vmem:[%s3429 + $0x2b9] sm:$0xff]
  %v4035 = vld [vmem:[%s3429 + $0x2c1] sm:$0xff]
  %v4036 = vld [vmem:[%s3429 + $0x2d1] sm:$0xff]
  %v4037 = vld [vmem:[%s3429 + $0x2d9] sm:$0xff]
  %v4038 = vld [vmem:[%s3429 + $0x2e9] sm:$0xff]
  %v4039 = vld [vmem:[%s3429 + $0x2f1] sm:$0xff]
  %v4040 = vld [vmem:[%s3429 + $0x301] sm:$0xff]
  %v4041 = vld [vmem:[%s3429 + $0x309] sm:$0xff]
  %v4042 = vld [vmem:[%s3429 + $0x319] sm:$0xff]
  %v4043 = vld [vmem:[%s3429 + $0x321] sm:$0xff]
  %v4044 = vpack.c.bf16 %v3981, %v3980
  %v4045 = vpack.c.bf16 %v3983, %v3982
  %v4046 = vpack.c.bf16 %v3985, %v3984
  %v4047 = vpack.c.bf16 %v3987, %v3986
  %v4048 = vpack.c.bf16 %v3989, %v3988
  %v4049 = vpack.c.bf16 %v3991, %v3990
  %v4050 = vpack.c.bf16 %v3993, %v3992
  %v4051 = vpack.c.bf16 %v3995, %v3994
  %v4052 = vpack.c.bf16 %v3997, %v3996
  %v4053 = vpack.c.bf16 %v3999, %v3998
  %v4054 = vpack.c.bf16 %v4001, %v4000
  %v4055 = vpack.c.bf16 %v4003, %v4002
  %v4056 = vpack.c.bf16 %v4005, %v4004
  %v4057 = vpack.c.bf16 %v4007, %v4006
  %v4058 = vpack.c.bf16 %v4009, %v4008
  %v4059 = vpack.c.bf16 %v4011, %v4010
  %v4060 = vpack.c.bf16 %v4013, %v4012
  %v4061 = vpack.c.bf16 %v4015, %v4014
  %v4062 = vpack.c.bf16 %v4017, %v4016
  %v4063 = vpack.c.bf16 %v4019, %v4018
  %v4064 = vpack.c.bf16 %v4021, %v4020
  %v4065 = vpack.c.bf16 %v4023, %v4022
  %v4066 = vpack.c.bf16 %v4025, %v4024
  %v4067 = vpack.c.bf16 %v4027, %v4026
  %v4068 = vpack.c.bf16 %v4029, %v4028
  %v4069 = vpack.c.bf16 %v4031, %v4030
  %v4070 = vpack.c.bf16 %v4033, %v4032
  %v4071 = vpack.c.bf16 %v4035, %v4034
  %v4072 = vpack.c.bf16 %v4037, %v4036
  %v4073 = vpack.c.bf16 %v4039, %v4038
  %v4074 = vpack.c.bf16 %v4041, %v4040
  %v4075 = vpack.c.bf16 %v4043, %v4042
  %s4076 = scalar_lea.vmem %s1, 14
  %v4077 = vld [vmem:[%s4076] sm:$0x3]
  %v4079 = vsel %vm40, %v4044, 0
  %v4082 = vsel %vm40, %v4045, 0
  %v4085 = vsel %vm40, %v4046, 0
  %v4088 = vsel %vm40, %v4047, 0
  %v4091 = vsel %vm40, %v4048, 0
  %v4094 = vsel %vm40, %v4049, 0
  %v4097 = vsel %vm40, %v4050, 0
  %v4100 = vsel %vm40, %v4051, 0
  %v4103 = vsel %vm40, %v4052, 0
  %v4106 = vsel %vm40, %v4053, 0
  %v4109 = vsel %vm40, %v4054, 0
  %v4112 = vsel %vm40, %v4055, 0
  %v4115 = vsel %vm40, %v4056, 0
  %v4118 = vsel %vm40, %v4057, 0
  %v4121 = vsel %vm40, %v4058, 0
  %v4124 = vsel %vm40, %v4059, 0
  %v4127 = vsel %vm40, %v4060, 0
  %v4130 = vsel %vm40, %v4061, 0
  %v4133 = vsel %vm40, %v4062, 0
  %v4136 = vsel %vm40, %v4063, 0
  %v4139 = vsel %vm40, %v4064, 0
  %v4142 = vsel %vm40, %v4065, 0
  %v4145 = vsel %vm40, %v4066, 0
  %v4148 = vsel %vm40, %v4067, 0
  %v4151 = vsel %vm40, %v4068, 0
  %v4154 = vsel %vm40, %v4069, 0
  %v4157 = vsel %vm40, %v4070, 0
  %v4160 = vsel %vm40, %v4071, 0
  %v4163 = vsel %vm40, %v4072, 0
  %v4166 = vsel %vm40, %v4073, 0
  %v4169 = vsel %vm40, %v4074, 0
  %v4172 = vsel %vm40, %v4075, 0
  %v4175 = vsel %vm548, %v4077, 0
  %4177 = vmatprep.subr.bf16.mxu0 0
  %4178 = vmatpush1.bf16.msra.mxu0 0
  %4179 = vmatprep.subr.bf16.mxu0 0
  %4180 = vmatpush1.bf16.msra.mxu0 0
  %4181 = vmatprep.subr.bf16.mxu0 0
  %4182 = vmatpush1.bf16.msra.mxu0 0
  %4183 = vmatprep.subr.bf16.mxu0 0
  %4184 = vmatpush1.bf16.msra.mxu0 0
  %4185 = vmatprep.subr.bf16.mxu0 0
  %4186 = vmatpush1.bf16.msra.mxu0 0
  %4187 = vmatprep.subr.bf16.mxu0 0
  %4188 = vmatpush1.bf16.msra.mxu0 0
  %4189 = vmatprep.subr.bf16.mxu0 0
  %4190 = vmatpush1.bf16.msra.mxu0 0
  %4191 = vmatprep.subr.bf16.mxu0 0
  %4192 = vmatpush1.bf16.msra.mxu0 %v4175
  %4193 = vmatprep.subr.bf16.mxu0 0
  %4194 = vmatpush2.bf16.msra.mxu0 0
  %4195 = vmatprep.subr.bf16.mxu0 0
  %4196 = vmatpush2.bf16.msra.mxu0 0
  %4197 = vmatprep.subr.bf16.mxu0 0
  %4198 = vmatpush2.bf16.msra.mxu0 0
  %4199 = vmatprep.subr.bf16.mxu0 0
  %4200 = vmatpush2.bf16.msra.mxu0 0
  %4201 = vmatprep.subr.bf16.mxu0 0
  %4202 = vmatpush2.bf16.msra.mxu0 0
  %4203 = vmatprep.subr.bf16.mxu0 0
  %4204 = vmatpush2.bf16.msra.mxu0 0
  %4205 = vmatprep.subr.bf16.mxu0 0
  %4206 = vmatpush2.bf16.msra.mxu0 0
  %4207 = vmatprep.subr.bf16.mxu0 0
  %4208 = vmatpush2.bf16.msra.mxu0 0
  %4209 = vmatprep.mubr.bf16.mxu0 0
  %4210 = vmatmul.mubr.bf16.gmra.mxu0 %v4079
  %v4211 = vpop.f32.mrf.mxu0
  %v4212 = vadd.f32 0.0, %v4211
  %v4213 = vpop.f32.mrf.mxu0
  %v4214 = vpop.f32.mrf.mxu0
  %v4215 = vadd.f32 0.0, %v4214
  %v4216 = vpop.f32.mrf.mxu0
  %4217 = vmatprep.mubr.bf16.mxu0 0
  %4218 = vmatmul.mubr.bf16.gmra.mxu0 %v4082
  %v4219 = vpop.f32.mrf.mxu0
  %v4220 = vadd.f32 0.0, %v4219
  %v4221 = vpop.f32.mrf.mxu0
  %v4222 = vpop.f32.mrf.mxu0
  %v4223 = vadd.f32 0.0, %v4222
  %v4224 = vpop.f32.mrf.mxu0
  %4225 = vmatprep.mubr.bf16.mxu0 0
  %4226 = vmatmul.mubr.bf16.gmra.mxu0 %v4085
  %v4227 = vpop.f32.mrf.mxu0
  %v4228 = vadd.f32 0.0, %v4227
  %v4229 = vpop.f32.mrf.mxu0
  %v4230 = vpop.f32.mrf.mxu0
  %v4231 = vadd.f32 0.0, %v4230
  %v4232 = vpop.f32.mrf.mxu0
  %4233 = vmatprep.mubr.bf16.mxu0 0
  %4234 = vmatmul.mubr.bf16.gmra.mxu0 %v4088
  %v4235 = vpop.f32.mrf.mxu0
  %v4236 = vadd.f32 0.0, %v4235
  %v4237 = vpop.f32.mrf.mxu0
  %v4238 = vpop.f32.mrf.mxu0
  %v4239 = vadd.f32 0.0, %v4238
  %v4240 = vpop.f32.mrf.mxu0
  %4241 = vmatprep.mubr.bf16.mxu0 0
  %4242 = vmatmul.mubr.bf16.gmra.mxu0 %v4091
  %v4243 = vpop.f32.mrf.mxu0
  %v4244 = vadd.f32 0.0, %v4243
  %v4245 = vpop.f32.mrf.mxu0
  %v4246 = vpop.f32.mrf.mxu0
  %v4247 = vadd.f32 0.0, %v4246
  %v4248 = vpop.f32.mrf.mxu0
  %4249 = vmatprep.mubr.bf16.mxu0 0
  %4250 = vmatmul.mubr.bf16.gmra.mxu0 %v4094
  %v4251 = vpop.f32.mrf.mxu0
  %v4252 = vadd.f32 0.0, %v4251
  %v4253 = vpop.f32.mrf.mxu0
  %v4254 = vpop.f32.mrf.mxu0
  %v4255 = vadd.f32 0.0, %v4254
  %v4256 = vpop.f32.mrf.mxu0
  %4257 = vmatprep.mubr.bf16.mxu0 0
  %4258 = vmatmul.mubr.bf16.gmra.mxu0 %v4097
  %v4259 = vpop.f32.mrf.mxu0
  %v4260 = vadd.f32 0.0, %v4259
  %v4261 = vpop.f32.mrf.mxu0
  %v4262 = vpop.f32.mrf.mxu0
  %v4263 = vadd.f32 0.0, %v4262
  %v4264 = vpop.f32.mrf.mxu0
  %4265 = vmatprep.mubr.bf16.mxu0 0
  %4266 = vmatmul.mubr.bf16.gmra.mxu0 %v4100
  %v4267 = vpop.f32.mrf.mxu0
  %v4268 = vadd.f32 0.0, %v4267
  %v4269 = vpop.f32.mrf.mxu0
  %v4270 = vpop.f32.mrf.mxu0
  %v4271 = vadd.f32 0.0, %v4270
  %v4272 = vpop.f32.mrf.mxu0
  %4273 = vmatprep.mubr.bf16.mxu0 0
  %4274 = vmatmul.mubr.bf16.gmra.mxu0 %v4103
  %v4275 = vpop.f32.mrf.mxu0
  %v4276 = vadd.f32 0.0, %v4275
  %v4277 = vpop.f32.mrf.mxu0
  %v4278 = vpop.f32.mrf.mxu0
  %v4279 = vadd.f32 0.0, %v4278
  %v4280 = vpop.f32.mrf.mxu0
  %4281 = vmatprep.mubr.bf16.mxu0 0
  %4282 = vmatmul.mubr.bf16.gmra.mxu0 %v4106
  %v4283 = vpop.f32.mrf.mxu0
  %v4284 = vadd.f32 0.0, %v4283
  %v4285 = vpop.f32.mrf.mxu0
  %v4286 = vpop.f32.mrf.mxu0
  %v4287 = vadd.f32 0.0, %v4286
  %v4288 = vpop.f32.mrf.mxu0
  %4289 = vmatprep.mubr.bf16.mxu0 0
  %4290 = vmatmul.mubr.bf16.gmra.mxu0 %v4109
  %v4291 = vpop.f32.mrf.mxu0
  %v4292 = vadd.f32 0.0, %v4291
  %v4293 = vpop.f32.mrf.mxu0
  %v4294 = vpop.f32.mrf.mxu0
  %v4295 = vadd.f32 0.0, %v4294
  %v4296 = vpop.f32.mrf.mxu0
  %4297 = vmatprep.mubr.bf16.mxu0 0
  %4298 = vmatmul.mubr.bf16.gmra.mxu0 %v4112
  %v4299 = vpop.f32.mrf.mxu0
  %v4300 = vadd.f32 0.0, %v4299
  %v4301 = vpop.f32.mrf.mxu0
  %v4302 = vpop.f32.mrf.mxu0
  %v4303 = vadd.f32 0.0, %v4302
  %v4304 = vpop.f32.mrf.mxu0
  %4305 = vmatprep.mubr.bf16.mxu0 0
  %4306 = vmatmul.mubr.bf16.gmra.mxu0 %v4115
  %v4307 = vpop.f32.mrf.mxu0
  %v4308 = vadd.f32 0.0, %v4307
  %v4309 = vpop.f32.mrf.mxu0
  %v4310 = vpop.f32.mrf.mxu0
  %v4311 = vadd.f32 0.0, %v4310
  %v4312 = vpop.f32.mrf.mxu0
  %4313 = vmatprep.mubr.bf16.mxu0 0
  %4314 = vmatmul.mubr.bf16.gmra.mxu0 %v4118
  %v4315 = vpop.f32.mrf.mxu0
  %v4316 = vadd.f32 0.0, %v4315
  %v4317 = vpop.f32.mrf.mxu0
  %v4318 = vpop.f32.mrf.mxu0
  %v4319 = vadd.f32 0.0, %v4318
  %v4320 = vpop.f32.mrf.mxu0
  %4321 = vmatprep.mubr.bf16.mxu0 0
  %4322 = vmatmul.mubr.bf16.gmra.mxu0 %v4121
  %v4323 = vpop.f32.mrf.mxu0
  %v4324 = vadd.f32 0.0, %v4323
  %v4325 = vpop.f32.mrf.mxu0
  %v4326 = vpop.f32.mrf.mxu0
  %v4327 = vadd.f32 0.0, %v4326
  %v4328 = vpop.f32.mrf.mxu0
  %4329 = vmatprep.mubr.bf16.mxu0 0
  %4330 = vmatmul.mubr.bf16.gmra.mxu0 %v4124
  %v4331 = vpop.f32.mrf.mxu0
  %v4332 = vadd.f32 0.0, %v4331
  %v4333 = vpop.f32.mrf.mxu0
  %v4334 = vpop.f32.mrf.mxu0
  %v4335 = vadd.f32 0.0, %v4334
  %v4336 = vpop.f32.mrf.mxu0
  %4337 = vmatprep.mubr.bf16.mxu0 0
  %4338 = vmatmul.mubr.bf16.gmra.mxu0 %v4127
  %v4339 = vpop.f32.mrf.mxu0
  %v4340 = vadd.f32 0.0, %v4339
  %v4341 = vpop.f32.mrf.mxu0
  %v4342 = vpop.f32.mrf.mxu0
  %v4343 = vadd.f32 0.0, %v4342
  %v4344 = vpop.f32.mrf.mxu0
  %4345 = vmatprep.mubr.bf16.mxu0 0
  %4346 = vmatmul.mubr.bf16.gmra.mxu0 %v4130
  %v4347 = vpop.f32.mrf.mxu0
  %v4348 = vadd.f32 0.0, %v4347
  %v4349 = vpop.f32.mrf.mxu0
  %v4350 = vpop.f32.mrf.mxu0
  %v4351 = vadd.f32 0.0, %v4350
  %v4352 = vpop.f32.mrf.mxu0
  %4353 = vmatprep.mubr.bf16.mxu0 0
  %4354 = vmatmul.mubr.bf16.gmra.mxu0 %v4133
  %v4355 = vpop.f32.mrf.mxu0
  %v4356 = vadd.f32 0.0, %v4355
  %v4357 = vpop.f32.mrf.mxu0
  %v4358 = vpop.f32.mrf.mxu0
  %v4359 = vadd.f32 0.0, %v4358
  %v4360 = vpop.f32.mrf.mxu0
  %4361 = vmatprep.mubr.bf16.mxu0 0
  %4362 = vmatmul.mubr.bf16.gmra.mxu0 %v4136
  %v4363 = vpop.f32.mrf.mxu0
  %v4364 = vadd.f32 0.0, %v4363
  %v4365 = vpop.f32.mrf.mxu0
  %v4366 = vpop.f32.mrf.mxu0
  %v4367 = vadd.f32 0.0, %v4366
  %v4368 = vpop.f32.mrf.mxu0
  %4369 = vmatprep.mubr.bf16.mxu0 0
  %4370 = vmatmul.mubr.bf16.gmra.mxu0 %v4139
  %v4371 = vpop.f32.mrf.mxu0
  %v4372 = vadd.f32 0.0, %v4371
  %v4373 = vpop.f32.mrf.mxu0
  %v4374 = vpop.f32.mrf.mxu0
  %v4375 = vadd.f32 0.0, %v4374
  %v4376 = vpop.f32.mrf.mxu0
  %4377 = vmatprep.mubr.bf16.mxu0 0
  %4378 = vmatmul.mubr.bf16.gmra.mxu0 %v4142
  %v4379 = vpop.f32.mrf.mxu0
  %v4380 = vadd.f32 0.0, %v4379
  %v4381 = vpop.f32.mrf.mxu0
  %v4382 = vpop.f32.mrf.mxu0
  %v4383 = vadd.f32 0.0, %v4382
  %v4384 = vpop.f32.mrf.mxu0
  %4385 = vmatprep.mubr.bf16.mxu0 0
  %4386 = vmatmul.mubr.bf16.gmra.mxu0 %v4145
  %v4387 = vpop.f32.mrf.mxu0
  %v4388 = vadd.f32 0.0, %v4387
  %v4389 = vpop.f32.mrf.mxu0
  %v4390 = vpop.f32.mrf.mxu0
  %v4391 = vadd.f32 0.0, %v4390
  %v4392 = vpop.f32.mrf.mxu0
  %4393 = vmatprep.mubr.bf16.mxu0 0
  %4394 = vmatmul.mubr.bf16.gmra.mxu0 %v4148
  %v4395 = vpop.f32.mrf.mxu0
  %v4396 = vadd.f32 0.0, %v4395
  %v4397 = vpop.f32.mrf.mxu0
  %v4398 = vpop.f32.mrf.mxu0
  %v4399 = vadd.f32 0.0, %v4398
  %v4400 = vpop.f32.mrf.mxu0
  %4401 = vmatprep.mubr.bf16.mxu0 0
  %4402 = vmatmul.mubr.bf16.gmra.mxu0 %v4151
  %v4403 = vpop.f32.mrf.mxu0
  %v4404 = vadd.f32 0.0, %v4403
  %v4405 = vpop.f32.mrf.mxu0
  %v4406 = vpop.f32.mrf.mxu0
  %v4407 = vadd.f32 0.0, %v4406
  %v4408 = vpop.f32.mrf.mxu0
  %4409 = vmatprep.mubr.bf16.mxu0 0
  %4410 = vmatmul.mubr.bf16.gmra.mxu0 %v4154
  %v4411 = vpop.f32.mrf.mxu0
  %v4412 = vadd.f32 0.0, %v4411
  %v4413 = vpop.f32.mrf.mxu0
  %v4414 = vpop.f32.mrf.mxu0
  %v4415 = vadd.f32 0.0, %v4414
  %v4416 = vpop.f32.mrf.mxu0
  %4417 = vmatprep.mubr.bf16.mxu0 0
  %4418 = vmatmul.mubr.bf16.gmra.mxu0 %v4157
  %v4419 = vpop.f32.mrf.mxu0
  %v4420 = vadd.f32 0.0, %v4419
  %v4421 = vpop.f32.mrf.mxu0
  %v4422 = vpop.f32.mrf.mxu0
  %v4423 = vadd.f32 0.0, %v4422
  %v4424 = vpop.f32.mrf.mxu0
  %4425 = vmatprep.mubr.bf16.mxu0 0
  %4426 = vmatmul.mubr.bf16.gmra.mxu0 %v4160
  %v4427 = vpop.f32.mrf.mxu0
  %v4428 = vadd.f32 0.0, %v4427
  %v4429 = vpop.f32.mrf.mxu0
  %v4430 = vpop.f32.mrf.mxu0
  %v4431 = vadd.f32 0.0, %v4430
  %v4432 = vpop.f32.mrf.mxu0
  %4433 = vmatprep.mubr.bf16.mxu0 0
  %4434 = vmatmul.mubr.bf16.gmra.mxu0 %v4163
  %v4435 = vpop.f32.mrf.mxu0
  %v4436 = vadd.f32 0.0, %v4435
  %v4437 = vpop.f32.mrf.mxu0
  %v4438 = vpop.f32.mrf.mxu0
  %v4439 = vadd.f32 0.0, %v4438
  %v4440 = vpop.f32.mrf.mxu0
  %4441 = vmatprep.mubr.bf16.mxu0 0
  %4442 = vmatmul.mubr.bf16.gmra.mxu0 %v4166
  %v4443 = vpop.f32.mrf.mxu0
  %v4444 = vadd.f32 0.0, %v4443
  %v4445 = vpop.f32.mrf.mxu0
  %v4446 = vpop.f32.mrf.mxu0
  %v4447 = vadd.f32 0.0, %v4446
  %v4448 = vpop.f32.mrf.mxu0
  %4449 = vmatprep.mubr.bf16.mxu0 0
  %4450 = vmatmul.mubr.bf16.gmra.mxu0 %v4169
  %v4451 = vpop.f32.mrf.mxu0
  %v4452 = vadd.f32 0.0, %v4451
  %v4453 = vpop.f32.mrf.mxu0
  %v4454 = vpop.f32.mrf.mxu0
  %v4455 = vadd.f32 0.0, %v4454
  %v4456 = vpop.f32.mrf.mxu0
  %4457 = vmatprep.mubr.bf16.mxu0 0
  %4458 = vmatmul.mubr.bf16.gmra.mxu0 %v4172
  %v4459 = vpop.f32.mrf.mxu0
  %v4460 = vadd.f32 0.0, %v4459
  %v4461 = vpop.f32.mrf.mxu0
  %v4462 = vpop.f32.mrf.mxu0
  %v4463 = vadd.f32 0.0, %v4462
  %v4464 = vpop.f32.mrf.mxu0
  %4465 = vdwg.mxu0
  %v4466 = vadd.f32 %v3916, %v4212
  %v4467 = vadd.f32 %v3917, %v4215
  %v4468 = vadd.f32 %v3918, %v4220
  %v4469 = vadd.f32 %v3919, %v4223
  %v4470 = vadd.f32 %v3920, %v4228
  %v4471 = vadd.f32 %v3921, %v4231
  %v4472 = vadd.f32 %v3922, %v4236
  %v4473 = vadd.f32 %v3923, %v4239
  %v4474 = vadd.f32 %v3924, %v4244
  %v4475 = vadd.f32 %v3925, %v4247
  %v4476 = vadd.f32 %v3926, %v4252
  %v4477 = vadd.f32 %v3927, %v4255
  %v4478 = vadd.f32 %v3928, %v4260
  %v4479 = vadd.f32 %v3929, %v4263
  %v4480 = vadd.f32 %v3930, %v4268
  %v4481 = vadd.f32 %v3931, %v4271
  %v4482 = vadd.f32 %v3932, %v4276
  %v4483 = vadd.f32 %v3933, %v4279
  %v4484 = vadd.f32 %v3934, %v4284
  %v4485 = vadd.f32 %v3935, %v4287
  %v4486 = vadd.f32 %v3936, %v4292
  %v4487 = vadd.f32 %v3937, %v4295
  %v4488 = vadd.f32 %v3938, %v4300
  %v4489 = vadd.f32 %v3939, %v4303
  %v4490 = vadd.f32 %v3940, %v4308
  %v4491 = vadd.f32 %v3941, %v4311
  %v4492 = vadd.f32 %v3942, %v4316
  %v4493 = vadd.f32 %v3943, %v4319
  %v4494 = vadd.f32 %v3944, %v4324
  %v4495 = vadd.f32 %v3945, %v4327
  %v4496 = vadd.f32 %v3946, %v4332
  %v4497 = vadd.f32 %v3947, %v4335
  %v4498 = vadd.f32 %v3948, %v4340
  %v4499 = vadd.f32 %v3949, %v4343
  %v4500 = vadd.f32 %v3950, %v4348
  %v4501 = vadd.f32 %v3951, %v4351
  %v4502 = vadd.f32 %v3952, %v4356
  %v4503 = vadd.f32 %v3953, %v4359
  %v4504 = vadd.f32 %v3954, %v4364
  %v4505 = vadd.f32 %v3955, %v4367
  %v4506 = vadd.f32 %v3956, %v4372
  %v4507 = vadd.f32 %v3957, %v4375
  %v4508 = vadd.f32 %v3958, %v4380
  %v4509 = vadd.f32 %v3959, %v4383
  %v4510 = vadd.f32 %v3960, %v4388
  %v4511 = vadd.f32 %v3961, %v4391
  %v4512 = vadd.f32 %v3962, %v4396
  %v4513 = vadd.f32 %v3963, %v4399
  %v4514 = vadd.f32 %v3964, %v4404
  %v4515 = vadd.f32 %v3965, %v4407
  %v4516 = vadd.f32 %v3966, %v4412
  %v4517 = vadd.f32 %v3967, %v4415
  %v4518 = vadd.f32 %v3968, %v4420
  %v4519 = vadd.f32 %v3969, %v4423
  %v4520 = vadd.f32 %v3970, %v4428
  %v4521 = vadd.f32 %v3971, %v4431
  %v4522 = vadd.f32 %v3972, %v4436
  %v4523 = vadd.f32 %v3973, %v4439
  %v4524 = vadd.f32 %v3974, %v4444
  %v4525 = vadd.f32 %v3975, %v4447
  %v4526 = vadd.f32 %v3976, %v4452
  %v4527 = vadd.f32 %v3977, %v4455
  %v4528 = vadd.f32 %v3978, %v4460
  %v4529 = vadd.f32 %v3979, %v4463
  %v4530 = vld [vmem:[%s3429 + $0x2] sm:$0xff]
  %v4531 = vld [vmem:[%s3429 + $0xa] sm:$0xff]
  %v4532 = vld [vmem:[%s3429 + $0x1a] sm:$0xff]
  %v4533 = vld [vmem:[%s3429 + $0x22] sm:$0xff]
  %v4534 = vld [vmem:[%s3429 + $0x32] sm:$0xff]
  %v4535 = vld [vmem:[%s3429 + $0x3a] sm:$0xff]
  %v4536 = vld [vmem:[%s3429 + $0x4a] sm:$0xff]
  %v4537 = vld [vmem:[%s3429 + $0x52] sm:$0xff]
  %v4538 = vld [vmem:[%s3429 + $0x62] sm:$0xff]
  %v4539 = vld [vmem:[%s3429 + $0x6a] sm:$0xff]
  %v4540 = vld [vmem:[%s3429 + $0x7a] sm:$0xff]
  %v4541 = vld [vmem:[%s3429 + $0x82] sm:$0xff]
  %v4542 = vld [vmem:[%s3429 + $0x92] sm:$0xff]
  %v4543 = vld [vmem:[%s3429 + $0x9a] sm:$0xff]
  %v4544 = vld [vmem:[%s3429 + $0xaa] sm:$0xff]
  %v4545 = vld [vmem:[%s3429 + $0xb2] sm:$0xff]
  %v4546 = vld [vmem:[%s3429 + $0xc2] sm:$0xff]
  %v4547 = vld [vmem:[%s3429 + $0xca] sm:$0xff]
  %v4548 = vld [vmem:[%s3429 + $0xda] sm:$0xff]
  %v4549 = vld [vmem:[%s3429 + $0xe2] sm:$0xff]
  %v4550 = vld [vmem:[%s3429 + $0xf2] sm:$0xff]
  %v4551 = vld [vmem:[%s3429 + $0xfa] sm:$0xff]
  %v4552 = vld [vmem:[%s3429 + $0x10a] sm:$0xff]
  %v4553 = vld [vmem:[%s3429 + $0x112] sm:$0xff]
  %v4554 = vld [vmem:[%s3429 + $0x122] sm:$0xff]
  %v4555 = vld [vmem:[%s3429 + $0x12a] sm:$0xff]
  %v4556 = vld [vmem:[%s3429 + $0x13a] sm:$0xff]
  %v4557 = vld [vmem:[%s3429 + $0x142] sm:$0xff]
  %v4558 = vld [vmem:[%s3429 + $0x152] sm:$0xff]
  %v4559 = vld [vmem:[%s3429 + $0x15a] sm:$0xff]
  %v4560 = vld [vmem:[%s3429 + $0x16a] sm:$0xff]
  %v4561 = vld [vmem:[%s3429 + $0x172] sm:$0xff]
  %v4562 = vld [vmem:[%s3429 + $0x1b2] sm:$0xff]
  %v4563 = vld [vmem:[%s3429 + $0x1ba] sm:$0xff]
  %v4564 = vld [vmem:[%s3429 + $0x1ca] sm:$0xff]
  %v4565 = vld [vmem:[%s3429 + $0x1d2] sm:$0xff]
  %v4566 = vld [vmem:[%s3429 + $0x1e2] sm:$0xff]
  %v4567 = vld [vmem:[%s3429 + $0x1ea] sm:$0xff]
  %v4568 = vld [vmem:[%s3429 + $0x1fa] sm:$0xff]
  %v4569 = vld [vmem:[%s3429 + $0x202] sm:$0xff]
  %v4570 = vld [vmem:[%s3429 + $0x212] sm:$0xff]
  %v4571 = vld [vmem:[%s3429 + $0x21a] sm:$0xff]
  %v4572 = vld [vmem:[%s3429 + $0x22a] sm:$0xff]
  %v4573 = vld [vmem:[%s3429 + $0x232] sm:$0xff]
  %v4574 = vld [vmem:[%s3429 + $0x242] sm:$0xff]
  %v4575 = vld [vmem:[%s3429 + $0x24a] sm:$0xff]
  %v4576 = vld [vmem:[%s3429 + $0x25a] sm:$0xff]
  %v4577 = vld [vmem:[%s3429 + $0x262] sm:$0xff]
  %v4578 = vld [vmem:[%s3429 + $0x272] sm:$0xff]
  %v4579 = vld [vmem:[%s3429 + $0x27a] sm:$0xff]
  %v4580 = vld [vmem:[%s3429 + $0x28a] sm:$0xff]
  %v4581 = vld [vmem:[%s3429 + $0x292] sm:$0xff]
  %v4582 = vld [vmem:[%s3429 + $0x2a2] sm:$0xff]
  %v4583 = vld [vmem:[%s3429 + $0x2aa] sm:$0xff]
  %v4584 = vld [vmem:[%s3429 + $0x2ba] sm:$0xff]
  %v4585 = vld [vmem:[%s3429 + $0x2c2] sm:$0xff]
  %v4586 = vld [vmem:[%s3429 + $0x2d2] sm:$0xff]
  %v4587 = vld [vmem:[%s3429 + $0x2da] sm:$0xff]
  %v4588 = vld [vmem:[%s3429 + $0x2ea] sm:$0xff]
  %v4589 = vld [vmem:[%s3429 + $0x2f2] sm:$0xff]
  %v4590 = vld [vmem:[%s3429 + $0x302] sm:$0xff]
  %v4591 = vld [vmem:[%s3429 + $0x30a] sm:$0xff]
  %v4592 = vld [vmem:[%s3429 + $0x31a] sm:$0xff]
  %v4593 = vld [vmem:[%s3429 + $0x322] sm:$0xff]
  %v4594 = vpack.c.bf16 %v4531, %v4530
  %v4595 = vpack.c.bf16 %v4533, %v4532
  %v4596 = vpack.c.bf16 %v4535, %v4534
  %v4597 = vpack.c.bf16 %v4537, %v4536
  %v4598 = vpack.c.bf16 %v4539, %v4538
  %v4599 = vpack.c.bf16 %v4541, %v4540
  %v4600 = vpack.c.bf16 %v4543, %v4542
  %v4601 = vpack.c.bf16 %v4545, %v4544
  %v4602 = vpack.c.bf16 %v4547, %v4546
  %v4603 = vpack.c.bf16 %v4549, %v4548
  %v4604 = vpack.c.bf16 %v4551, %v4550
  %v4605 = vpack.c.bf16 %v4553, %v4552
  %v4606 = vpack.c.bf16 %v4555, %v4554
  %v4607 = vpack.c.bf16 %v4557, %v4556
  %v4608 = vpack.c.bf16 %v4559, %v4558
  %v4609 = vpack.c.bf16 %v4561, %v4560
  %v4610 = vpack.c.bf16 %v4563, %v4562
  %v4611 = vpack.c.bf16 %v4565, %v4564
  %v4612 = vpack.c.bf16 %v4567, %v4566
  %v4613 = vpack.c.bf16 %v4569, %v4568
  %v4614 = vpack.c.bf16 %v4571, %v4570
  %v4615 = vpack.c.bf16 %v4573, %v4572
  %v4616 = vpack.c.bf16 %v4575, %v4574
  %v4617 = vpack.c.bf16 %v4577, %v4576
  %v4618 = vpack.c.bf16 %v4579, %v4578
  %v4619 = vpack.c.bf16 %v4581, %v4580
  %v4620 = vpack.c.bf16 %v4583, %v4582
  %v4621 = vpack.c.bf16 %v4585, %v4584
  %v4622 = vpack.c.bf16 %v4587, %v4586
  %v4623 = vpack.c.bf16 %v4589, %v4588
  %v4624 = vpack.c.bf16 %v4591, %v4590
  %v4625 = vpack.c.bf16 %v4593, %v4592
  %s4626 = scalar_lea.vmem %s1, 16
  %v4627 = vld [vmem:[%s4626] sm:$0x3]
  %v4629 = vsel %vm40, %v4594, 0
  %v4632 = vsel %vm40, %v4595, 0
  %v4635 = vsel %vm40, %v4596, 0
  %v4638 = vsel %vm40, %v4597, 0
  %v4641 = vsel %vm40, %v4598, 0
  %v4644 = vsel %vm40, %v4599, 0
  %v4647 = vsel %vm40, %v4600, 0
  %v4650 = vsel %vm40, %v4601, 0
  %v4653 = vsel %vm40, %v4602, 0
  %v4656 = vsel %vm40, %v4603, 0
  %v4659 = vsel %vm40, %v4604, 0
  %v4662 = vsel %vm40, %v4605, 0
  %v4665 = vsel %vm40, %v4606, 0
  %v4668 = vsel %vm40, %v4607, 0
  %v4671 = vsel %vm40, %v4608, 0
  %v4674 = vsel %vm40, %v4609, 0
  %v4677 = vsel %vm40, %v4610, 0
  %v4680 = vsel %vm40, %v4611, 0
  %v4683 = vsel %vm40, %v4612, 0
  %v4686 = vsel %vm40, %v4613, 0
  %v4689 = vsel %vm40, %v4614, 0
  %v4692 = vsel %vm40, %v4615, 0
  %v4695 = vsel %vm40, %v4616, 0
  %v4698 = vsel %vm40, %v4617, 0
  %v4701 = vsel %vm40, %v4618, 0
  %v4704 = vsel %vm40, %v4619, 0
  %v4707 = vsel %vm40, %v4620, 0
  %v4710 = vsel %vm40, %v4621, 0
  %v4713 = vsel %vm40, %v4622, 0
  %v4716 = vsel %vm40, %v4623, 0
  %v4719 = vsel %vm40, %v4624, 0
  %v4722 = vsel %vm40, %v4625, 0
  %v4725 = vsel %vm548, %v4627, 0
  %4727 = vmatprep.subr.bf16.mxu0 0
  %4728 = vmatpush1.bf16.msra.mxu0 0
  %4729 = vmatprep.subr.bf16.mxu0 0
  %4730 = vmatpush1.bf16.msra.mxu0 0
  %4731 = vmatprep.subr.bf16.mxu0 0
  %4732 = vmatpush1.bf16.msra.mxu0 0
  %4733 = vmatprep.subr.bf16.mxu0 0
  %4734 = vmatpush1.bf16.msra.mxu0 0
  %4735 = vmatprep.subr.bf16.mxu0 0
  %4736 = vmatpush1.bf16.msra.mxu0 0
  %4737 = vmatprep.subr.bf16.mxu0 0
  %4738 = vmatpush1.bf16.msra.mxu0 0
  %4739 = vmatprep.subr.bf16.mxu0 0
  %4740 = vmatpush1.bf16.msra.mxu0 0
  %4741 = vmatprep.subr.bf16.mxu0 0
  %4742 = vmatpush1.bf16.msra.mxu0 %v4725
  %4743 = vmatprep.subr.bf16.mxu0 0
  %4744 = vmatpush2.bf16.msra.mxu0 0
  %4745 = vmatprep.subr.bf16.mxu0 0
  %4746 = vmatpush2.bf16.msra.mxu0 0
  %4747 = vmatprep.subr.bf16.mxu0 0
  %4748 = vmatpush2.bf16.msra.mxu0 0
  %4749 = vmatprep.subr.bf16.mxu0 0
  %4750 = vmatpush2.bf16.msra.mxu0 0
  %4751 = vmatprep.subr.bf16.mxu0 0
  %4752 = vmatpush2.bf16.msra.mxu0 0
  %4753 = vmatprep.subr.bf16.mxu0 0
  %4754 = vmatpush2.bf16.msra.mxu0 0
  %4755 = vmatprep.subr.bf16.mxu0 0
  %4756 = vmatpush2.bf16.msra.mxu0 0
  %4757 = vmatprep.subr.bf16.mxu0 0
  %4758 = vmatpush2.bf16.msra.mxu0 0
  %4759 = vmatprep.mubr.bf16.mxu0 0
  %4760 = vmatmul.mubr.bf16.gmra.mxu0 %v4629
  %v4761 = vpop.f32.mrf.mxu0
  %v4762 = vadd.f32 0.0, %v4761
  %v4763 = vpop.f32.mrf.mxu0
  %v4764 = vpop.f32.mrf.mxu0
  %v4765 = vadd.f32 0.0, %v4764
  %v4766 = vpop.f32.mrf.mxu0
  %4767 = vmatprep.mubr.bf16.mxu0 0
  %4768 = vmatmul.mubr.bf16.gmra.mxu0 %v4632
  %v4769 = vpop.f32.mrf.mxu0
  %v4770 = vadd.f32 0.0, %v4769
  %v4771 = vpop.f32.mrf.mxu0
  %v4772 = vpop.f32.mrf.mxu0
  %v4773 = vadd.f32 0.0, %v4772
  %v4774 = vpop.f32.mrf.mxu0
  %4775 = vmatprep.mubr.bf16.mxu0 0
  %4776 = vmatmul.mubr.bf16.gmra.mxu0 %v4635
  %v4777 = vpop.f32.mrf.mxu0
  %v4778 = vadd.f32 0.0, %v4777
  %v4779 = vpop.f32.mrf.mxu0
  %v4780 = vpop.f32.mrf.mxu0
  %v4781 = vadd.f32 0.0, %v4780
  %v4782 = vpop.f32.mrf.mxu0
  %4783 = vmatprep.mubr.bf16.mxu0 0
  %4784 = vmatmul.mubr.bf16.gmra.mxu0 %v4638
  %v4785 = vpop.f32.mrf.mxu0
  %v4786 = vadd.f32 0.0, %v4785
  %v4787 = vpop.f32.mrf.mxu0
  %v4788 = vpop.f32.mrf.mxu0
  %v4789 = vadd.f32 0.0, %v4788
  %v4790 = vpop.f32.mrf.mxu0
  %4791 = vmatprep.mubr.bf16.mxu0 0
  %4792 = vmatmul.mubr.bf16.gmra.mxu0 %v4641
  %v4793 = vpop.f32.mrf.mxu0
  %v4794 = vadd.f32 0.0, %v4793
  %v4795 = vpop.f32.mrf.mxu0
  %v4796 = vpop.f32.mrf.mxu0
  %v4797 = vadd.f32 0.0, %v4796
  %v4798 = vpop.f32.mrf.mxu0
  %4799 = vmatprep.mubr.bf16.mxu0 0
  %4800 = vmatmul.mubr.bf16.gmra.mxu0 %v4644
  %v4801 = vpop.f32.mrf.mxu0
  %v4802 = vadd.f32 0.0, %v4801
  %v4803 = vpop.f32.mrf.mxu0
  %v4804 = vpop.f32.mrf.mxu0
  %v4805 = vadd.f32 0.0, %v4804
  %v4806 = vpop.f32.mrf.mxu0
  %4807 = vmatprep.mubr.bf16.mxu0 0
  %4808 = vmatmul.mubr.bf16.gmra.mxu0 %v4647
  %v4809 = vpop.f32.mrf.mxu0
  %v4810 = vadd.f32 0.0, %v4809
  %v4811 = vpop.f32.mrf.mxu0
  %v4812 = vpop.f32.mrf.mxu0
  %v4813 = vadd.f32 0.0, %v4812
  %v4814 = vpop.f32.mrf.mxu0
  %4815 = vmatprep.mubr.bf16.mxu0 0
  %4816 = vmatmul.mubr.bf16.gmra.mxu0 %v4650
  %v4817 = vpop.f32.mrf.mxu0
  %v4818 = vadd.f32 0.0, %v4817
  %v4819 = vpop.f32.mrf.mxu0
  %v4820 = vpop.f32.mrf.mxu0
  %v4821 = vadd.f32 0.0, %v4820
  %v4822 = vpop.f32.mrf.mxu0
  %4823 = vmatprep.mubr.bf16.mxu0 0
  %4824 = vmatmul.mubr.bf16.gmra.mxu0 %v4653
  %v4825 = vpop.f32.mrf.mxu0
  %v4826 = vadd.f32 0.0, %v4825
  %v4827 = vpop.f32.mrf.mxu0
  %v4828 = vpop.f32.mrf.mxu0
  %v4829 = vadd.f32 0.0, %v4828
  %v4830 = vpop.f32.mrf.mxu0
  %4831 = vmatprep.mubr.bf16.mxu0 0
  %4832 = vmatmul.mubr.bf16.gmra.mxu0 %v4656
  %v4833 = vpop.f32.mrf.mxu0
  %v4834 = vadd.f32 0.0, %v4833
  %v4835 = vpop.f32.mrf.mxu0
  %v4836 = vpop.f32.mrf.mxu0
  %v4837 = vadd.f32 0.0, %v4836
  %v4838 = vpop.f32.mrf.mxu0
  %4839 = vmatprep.mubr.bf16.mxu0 0
  %4840 = vmatmul.mubr.bf16.gmra.mxu0 %v4659
  %v4841 = vpop.f32.mrf.mxu0
  %v4842 = vadd.f32 0.0, %v4841
  %v4843 = vpop.f32.mrf.mxu0
  %v4844 = vpop.f32.mrf.mxu0
  %v4845 = vadd.f32 0.0, %v4844
  %v4846 = vpop.f32.mrf.mxu0
  %4847 = vmatprep.mubr.bf16.mxu0 0
  %4848 = vmatmul.mubr.bf16.gmra.mxu0 %v4662
  %v4849 = vpop.f32.mrf.mxu0
  %v4850 = vadd.f32 0.0, %v4849
  %v4851 = vpop.f32.mrf.mxu0
  %v4852 = vpop.f32.mrf.mxu0
  %v4853 = vadd.f32 0.0, %v4852
  %v4854 = vpop.f32.mrf.mxu0
  %4855 = vmatprep.mubr.bf16.mxu0 0
  %4856 = vmatmul.mubr.bf16.gmra.mxu0 %v4665
  %v4857 = vpop.f32.mrf.mxu0
  %v4858 = vadd.f32 0.0, %v4857
  %v4859 = vpop.f32.mrf.mxu0
  %v4860 = vpop.f32.mrf.mxu0
  %v4861 = vadd.f32 0.0, %v4860
  %v4862 = vpop.f32.mrf.mxu0
  %4863 = vmatprep.mubr.bf16.mxu0 0
  %4864 = vmatmul.mubr.bf16.gmra.mxu0 %v4668
  %v4865 = vpop.f32.mrf.mxu0
  %v4866 = vadd.f32 0.0, %v4865
  %v4867 = vpop.f32.mrf.mxu0
  %v4868 = vpop.f32.mrf.mxu0
  %v4869 = vadd.f32 0.0, %v4868
  %v4870 = vpop.f32.mrf.mxu0
  %4871 = vmatprep.mubr.bf16.mxu0 0
  %4872 = vmatmul.mubr.bf16.gmra.mxu0 %v4671
  %v4873 = vpop.f32.mrf.mxu0
  %v4874 = vadd.f32 0.0, %v4873
  %v4875 = vpop.f32.mrf.mxu0
  %v4876 = vpop.f32.mrf.mxu0
  %v4877 = vadd.f32 0.0, %v4876
  %v4878 = vpop.f32.mrf.mxu0
  %4879 = vmatprep.mubr.bf16.mxu0 0
  %4880 = vmatmul.mubr.bf16.gmra.mxu0 %v4674
  %v4881 = vpop.f32.mrf.mxu0
  %v4882 = vadd.f32 0.0, %v4881
  %v4883 = vpop.f32.mrf.mxu0
  %v4884 = vpop.f32.mrf.mxu0
  %v4885 = vadd.f32 0.0, %v4884
  %v4886 = vpop.f32.mrf.mxu0
  %4887 = vmatprep.mubr.bf16.mxu0 0
  %4888 = vmatmul.mubr.bf16.gmra.mxu0 %v4677
  %v4889 = vpop.f32.mrf.mxu0
  %v4890 = vadd.f32 0.0, %v4889
  %v4891 = vpop.f32.mrf.mxu0
  %v4892 = vpop.f32.mrf.mxu0
  %v4893 = vadd.f32 0.0, %v4892
  %v4894 = vpop.f32.mrf.mxu0
  %4895 = vmatprep.mubr.bf16.mxu0 0
  %4896 = vmatmul.mubr.bf16.gmra.mxu0 %v4680
  %v4897 = vpop.f32.mrf.mxu0
  %v4898 = vadd.f32 0.0, %v4897
  %v4899 = vpop.f32.mrf.mxu0
  %v4900 = vpop.f32.mrf.mxu0
  %v4901 = vadd.f32 0.0, %v4900
  %v4902 = vpop.f32.mrf.mxu0
  %4903 = vmatprep.mubr.bf16.mxu0 0
  %4904 = vmatmul.mubr.bf16.gmra.mxu0 %v4683
  %v4905 = vpop.f32.mrf.mxu0
  %v4906 = vadd.f32 0.0, %v4905
  %v4907 = vpop.f32.mrf.mxu0
  %v4908 = vpop.f32.mrf.mxu0
  %v4909 = vadd.f32 0.0, %v4908
  %v4910 = vpop.f32.mrf.mxu0
  %4911 = vmatprep.mubr.bf16.mxu0 0
  %4912 = vmatmul.mubr.bf16.gmra.mxu0 %v4686
  %v4913 = vpop.f32.mrf.mxu0
  %v4914 = vadd.f32 0.0, %v4913
  %v4915 = vpop.f32.mrf.mxu0
  %v4916 = vpop.f32.mrf.mxu0
  %v4917 = vadd.f32 0.0, %v4916
  %v4918 = vpop.f32.mrf.mxu0
  %4919 = vmatprep.mubr.bf16.mxu0 0
  %4920 = vmatmul.mubr.bf16.gmra.mxu0 %v4689
  %v4921 = vpop.f32.mrf.mxu0
  %v4922 = vadd.f32 0.0, %v4921
  %v4923 = vpop.f32.mrf.mxu0
  %v4924 = vpop.f32.mrf.mxu0
  %v4925 = vadd.f32 0.0, %v4924
  %v4926 = vpop.f32.mrf.mxu0
  %4927 = vmatprep.mubr.bf16.mxu0 0
  %4928 = vmatmul.mubr.bf16.gmra.mxu0 %v4692
  %v4929 = vpop.f32.mrf.mxu0
  %v4930 = vadd.f32 0.0, %v4929
  %v4931 = vpop.f32.mrf.mxu0
  %v4932 = vpop.f32.mrf.mxu0
  %v4933 = vadd.f32 0.0, %v4932
  %v4934 = vpop.f32.mrf.mxu0
  %4935 = vmatprep.mubr.bf16.mxu0 0
  %4936 = vmatmul.mubr.bf16.gmra.mxu0 %v4695
  %v4937 = vpop.f32.mrf.mxu0
  %v4938 = vadd.f32 0.0, %v4937
  %v4939 = vpop.f32.mrf.mxu0
  %v4940 = vpop.f32.mrf.mxu0
  %v4941 = vadd.f32 0.0, %v4940
  %v4942 = vpop.f32.mrf.mxu0
  %4943 = vmatprep.mubr.bf16.mxu0 0
  %4944 = vmatmul.mubr.bf16.gmra.mxu0 %v4698
  %v4945 = vpop.f32.mrf.mxu0
  %v4946 = vadd.f32 0.0, %v4945
  %v4947 = vpop.f32.mrf.mxu0
  %v4948 = vpop.f32.mrf.mxu0
  %v4949 = vadd.f32 0.0, %v4948
  %v4950 = vpop.f32.mrf.mxu0
  %4951 = vmatprep.mubr.bf16.mxu0 0
  %4952 = vmatmul.mubr.bf16.gmra.mxu0 %v4701
  %v4953 = vpop.f32.mrf.mxu0
  %v4954 = vadd.f32 0.0, %v4953
  %v4955 = vpop.f32.mrf.mxu0
  %v4956 = vpop.f32.mrf.mxu0
  %v4957 = vadd.f32 0.0, %v4956
  %v4958 = vpop.f32.mrf.mxu0
  %4959 = vmatprep.mubr.bf16.mxu0 0
  %4960 = vmatmul.mubr.bf16.gmra.mxu0 %v4704
  %v4961 = vpop.f32.mrf.mxu0
  %v4962 = vadd.f32 0.0, %v4961
  %v4963 = vpop.f32.mrf.mxu0
  %v4964 = vpop.f32.mrf.mxu0
  %v4965 = vadd.f32 0.0, %v4964
  %v4966 = vpop.f32.mrf.mxu0
  %4967 = vmatprep.mubr.bf16.mxu0 0
  %4968 = vmatmul.mubr.bf16.gmra.mxu0 %v4707
  %v4969 = vpop.f32.mrf.mxu0
  %v4970 = vadd.f32 0.0, %v4969
  %v4971 = vpop.f32.mrf.mxu0
  %v4972 = vpop.f32.mrf.mxu0
  %v4973 = vadd.f32 0.0, %v4972
  %v4974 = vpop.f32.mrf.mxu0
  %4975 = vmatprep.mubr.bf16.mxu0 0
  %4976 = vmatmul.mubr.bf16.gmra.mxu0 %v4710
  %v4977 = vpop.f32.mrf.mxu0
  %v4978 = vadd.f32 0.0, %v4977
  %v4979 = vpop.f32.mrf.mxu0
  %v4980 = vpop.f32.mrf.mxu0
  %v4981 = vadd.f32 0.0, %v4980
  %v4982 = vpop.f32.mrf.mxu0
  %4983 = vmatprep.mubr.bf16.mxu0 0
  %4984 = vmatmul.mubr.bf16.gmra.mxu0 %v4713
  %v4985 = vpop.f32.mrf.mxu0
  %v4986 = vadd.f32 0.0, %v4985
  %v4987 = vpop.f32.mrf.mxu0
  %v4988 = vpop.f32.mrf.mxu0
  %v4989 = vadd.f32 0.0, %v4988
  %v4990 = vpop.f32.mrf.mxu0
  %4991 = vmatprep.mubr.bf16.mxu0 0
  %4992 = vmatmul.mubr.bf16.gmra.mxu0 %v4716
  %v4993 = vpop.f32.mrf.mxu0
  %v4994 = vadd.f32 0.0, %v4993
  %v4995 = vpop.f32.mrf.mxu0
  %v4996 = vpop.f32.mrf.mxu0
  %v4997 = vadd.f32 0.0, %v4996
  %v4998 = vpop.f32.mrf.mxu0
  %4999 = vmatprep.mubr.bf16.mxu0 0
  %5000 = vmatmul.mubr.bf16.gmra.mxu0 %v4719
  %v5001 = vpop.f32.mrf.mxu0
  %v5002 = vadd.f32 0.0, %v5001
  %v5003 = vpop.f32.mrf.mxu0
  %v5004 = vpop.f32.mrf.mxu0
  %v5005 = vadd.f32 0.0, %v5004
  %v5006 = vpop.f32.mrf.mxu0
  %5007 = vmatprep.mubr.bf16.mxu0 0
  %5008 = vmatmul.mubr.bf16.gmra.mxu0 %v4722
  %v5009 = vpop.f32.mrf.mxu0
  %v5010 = vadd.f32 0.0, %v5009
  %v5011 = vpop.f32.mrf.mxu0
  %v5012 = vpop.f32.mrf.mxu0
  %v5013 = vadd.f32 0.0, %v5012
  %v5014 = vpop.f32.mrf.mxu0
  %5015 = vdwg.mxu0
  %v5016 = vadd.f32 %v4466, %v4762
  %v5017 = vadd.f32 %v4467, %v4765
  %v5018 = vadd.f32 %v4468, %v4770
  %v5019 = vadd.f32 %v4469, %v4773
  %v5020 = vadd.f32 %v4470, %v4778
  %v5021 = vadd.f32 %v4471, %v4781
  %v5022 = vadd.f32 %v4472, %v4786
  %v5023 = vadd.f32 %v4473, %v4789
  %v5024 = vadd.f32 %v4474, %v4794
  %v5025 = vadd.f32 %v4475, %v4797
  %v5026 = vadd.f32 %v4476, %v4802
  %v5027 = vadd.f32 %v4477, %v4805
  %v5028 = vadd.f32 %v4478, %v4810
  %v5029 = vadd.f32 %v4479, %v4813
  %v5030 = vadd.f32 %v4480, %v4818
  %v5031 = vadd.f32 %v4481, %v4821
  %v5032 = vadd.f32 %v4482, %v4826
  %v5033 = vadd.f32 %v4483, %v4829
  %v5034 = vadd.f32 %v4484, %v4834
  %v5035 = vadd.f32 %v4485, %v4837
  %v5036 = vadd.f32 %v4486, %v4842
  %v5037 = vadd.f32 %v4487, %v4845
  %v5038 = vadd.f32 %v4488, %v4850
  %v5039 = vadd.f32 %v4489, %v4853
  %v5040 = vadd.f32 %v4490, %v4858
  %v5041 = vadd.f32 %v4491, %v4861
  %v5042 = vadd.f32 %v4492, %v4866
  %v5043 = vadd.f32 %v4493, %v4869
  %v5044 = vadd.f32 %v4494, %v4874
  %v5045 = vadd.f32 %v4495, %v4877
  %v5046 = vadd.f32 %v4496, %v4882
  %v5047 = vadd.f32 %v4497, %v4885
  %v5048 = vadd.f32 %v4498, %v4890
  %v5049 = vadd.f32 %v4499, %v4893
  %v5050 = vadd.f32 %v4500, %v4898
  %v5051 = vadd.f32 %v4501, %v4901
  %v5052 = vadd.f32 %v4502, %v4906
  %v5053 = vadd.f32 %v4503, %v4909
  %v5054 = vadd.f32 %v4504, %v4914
  %v5055 = vadd.f32 %v4505, %v4917
  %v5056 = vadd.f32 %v4506, %v4922
  %v5057 = vadd.f32 %v4507, %v4925
  %v5058 = vadd.f32 %v4508, %v4930
  %v5059 = vadd.f32 %v4509, %v4933
  %v5060 = vadd.f32 %v4510, %v4938
  %v5061 = vadd.f32 %v4511, %v4941
  %v5062 = vadd.f32 %v4512, %v4946
  %v5063 = vadd.f32 %v4513, %v4949
  %v5064 = vadd.f32 %v4514, %v4954
  %v5065 = vadd.f32 %v4515, %v4957
  %v5066 = vadd.f32 %v4516, %v4962
  %v5067 = vadd.f32 %v4517, %v4965
  %v5068 = vadd.f32 %v4518, %v4970
  %v5069 = vadd.f32 %v4519, %v4973
  %v5070 = vadd.f32 %v4520, %v4978
  %v5071 = vadd.f32 %v4521, %v4981
  %v5072 = vadd.f32 %v4522, %v4986
  %v5073 = vadd.f32 %v4523, %v4989
  %v5074 = vadd.f32 %v4524, %v4994
  %v5075 = vadd.f32 %v4525, %v4997
  %v5076 = vadd.f32 %v4526, %v5002
  %v5077 = vadd.f32 %v4527, %v5005
  %v5078 = vadd.f32 %v4528, %v5010
  %v5079 = vadd.f32 %v4529, %v5013
  %v5080 = vadd.f32 %v5016, %v5017
  %v5081 = vadd.f32 %v5080, %v5018
  %v5082 = vadd.f32 %v5081, %v5019
  %v5083 = vadd.f32 %v5082, %v5020
  %v5084 = vadd.f32 %v5083, %v5021
  %v5085 = vadd.f32 %v5084, %v5022
  %v5086 = vadd.f32 %v5085, %v5023
  %v5087 = vadd.f32 %v5086, %v5024
  %v5088 = vadd.f32 %v5087, %v5025
  %v5089 = vadd.f32 %v5088, %v5026
  %v5090 = vadd.f32 %v5089, %v5027
  %v5091 = vadd.f32 %v5090, %v5028
  %v5092 = vadd.f32 %v5091, %v5029
  %v5093 = vadd.f32 %v5092, %v5030
  %v5094 = vadd.f32 %v5093, %v5031
  %v5095 = vadd.f32 %v5094, %v5032
  %v5096 = vadd.f32 %v5095, %v5033
  %v5097 = vadd.f32 %v5096, %v5034
  %v5098 = vadd.f32 %v5097, %v5035
  %v5099 = vadd.f32 %v5098, %v5036
  %v5100 = vadd.f32 %v5099, %v5037
  %v5101 = vadd.f32 %v5100, %v5038
  %v5102 = vadd.f32 %v5101, %v5039
  %v5103 = vadd.f32 %v5102, %v5040
  %v5104 = vadd.f32 %v5103, %v5041
  %v5105 = vadd.f32 %v5104, %v5042
  %v5106 = vadd.f32 %v5105, %v5043
  %v5107 = vadd.f32 %v5106, %v5044
  %v5108 = vadd.f32 %v5107, %v5045
  %v5109 = vadd.f32 %v5108, %v5046
  %v5110 = vadd.f32 %v5109, %v5047
  %v5111 = vadd.f32 %v5110, %v5048
  %v5112 = vadd.f32 %v5111, %v5049
  %v5113 = vadd.f32 %v5112, %v5050
  %v5114 = vadd.f32 %v5113, %v5051
  %v5115 = vadd.f32 %v5114, %v5052
  %v5116 = vadd.f32 %v5115, %v5053
  %v5117 = vadd.f32 %v5116, %v5054
  %v5118 = vadd.f32 %v5117, %v5055
  %v5119 = vadd.f32 %v5118, %v5056
  %v5120 = vadd.f32 %v5119, %v5057
  %v5121 = vadd.f32 %v5120, %v5058
  %v5122 = vadd.f32 %v5121, %v5059
  %v5123 = vadd.f32 %v5122, %v5060
  %v5124 = vadd.f32 %v5123, %v5061
  %v5125 = vadd.f32 %v5124, %v5062
  %v5126 = vadd.f32 %v5125, %v5063
  %v5127 = vadd.f32 %v5126, %v5064
  %v5128 = vadd.f32 %v5127, %v5065
  %v5129 = vadd.f32 %v5128, %v5066
  %v5130 = vadd.f32 %v5129, %v5067
  %v5131 = vadd.f32 %v5130, %v5068
  %v5132 = vadd.f32 %v5131, %v5069
  %v5133 = vadd.f32 %v5132, %v5070
  %v5134 = vadd.f32 %v5133, %v5071
  %v5135 = vadd.f32 %v5134, %v5072
  %v5136 = vadd.f32 %v5135, %v5073
  %v5137 = vadd.f32 %v5136, %v5074
  %v5138 = vadd.f32 %v5137, %v5075
  %v5139 = vadd.f32 %v5138, %v5076
  %v5140 = vadd.f32 %v5139, %v5077
  %v5141 = vadd.f32 %v5140, %v5078
  %v5142 = vadd.f32 %v5141, %v5079
  %v5143 = vrot.slane %v5142, 4
  %v5144 = vadd.f32 %v5142, %v5143
  %v5145 = vrot.slane %v5144, 2
  %v5146 = vadd.f32 %v5144, %v5145
  %v5147 = vrot.slane %v5146, 1
  %v5148 = vadd.f32 %v5146, %v5147
  %v5149 = vmul.f32 %v5148, 0.001953125
  %v5150 = vmul.f32 %v5016, %v5016
  %v5151 = vmul.f32 %v5017, %v5017
  %v5152 = vmul.f32 %v5018, %v5018
  %v5153 = vmul.f32 %v5019, %v5019
  %v5154 = vmul.f32 %v5020, %v5020
  %v5155 = vmul.f32 %v5021, %v5021
  %v5156 = vmul.f32 %v5022, %v5022
  %v5157 = vmul.f32 %v5023, %v5023
  %v5158 = vmul.f32 %v5024, %v5024
  %v5159 = vmul.f32 %v5025, %v5025
  %v5160 = vmul.f32 %v5026, %v5026
  %v5161 = vmul.f32 %v5027, %v5027
  %v5162 = vmul.f32 %v5028, %v5028
  %v5163 = vmul.f32 %v5029, %v5029
  %v5164 = vmul.f32 %v5030, %v5030
  %v5165 = vmul.f32 %v5031, %v5031
  %v5166 = vmul.f32 %v5032, %v5032
  %v5167 = vmul.f32 %v5033, %v5033
  %v5168 = vmul.f32 %v5034, %v5034
  %v5169 = vmul.f32 %v5035, %v5035
  %v5170 = vmul.f32 %v5036, %v5036
  %v5171 = vmul.f32 %v5037, %v5037
  %v5172 = vmul.f32 %v5038, %v5038
  %v5173 = vmul.f32 %v5039, %v5039
  %v5174 = vmul.f32 %v5040, %v5040
  %v5175 = vmul.f32 %v5041, %v5041
  %v5176 = vmul.f32 %v5042, %v5042
  %v5177 = vmul.f32 %v5043, %v5043
  %v5178 = vmul.f32 %v5044, %v5044
  %v5179 = vmul.f32 %v5045, %v5045
  %v5180 = vmul.f32 %v5046, %v5046
  %v5181 = vmul.f32 %v5047, %v5047
  %v5182 = vmul.f32 %v5048, %v5048
  %v5183 = vmul.f32 %v5049, %v5049
  %v5184 = vmul.f32 %v5050, %v5050
  %v5185 = vmul.f32 %v5051, %v5051
  %v5186 = vmul.f32 %v5052, %v5052
  %v5187 = vmul.f32 %v5053, %v5053
  %v5188 = vmul.f32 %v5054, %v5054
  %v5189 = vmul.f32 %v5055, %v5055
  %v5190 = vmul.f32 %v5056, %v5056
  %v5191 = vmul.f32 %v5057, %v5057
  %v5192 = vmul.f32 %v5058, %v5058
  %v5193 = vmul.f32 %v5059, %v5059
  %v5194 = vmul.f32 %v5060, %v5060
  %v5195 = vmul.f32 %v5061, %v5061
  %v5196 = vmul.f32 %v5062, %v5062
  %v5197 = vmul.f32 %v5063, %v5063
  %v5198 = vmul.f32 %v5064, %v5064
  %v5199 = vmul.f32 %v5065, %v5065
  %v5200 = vmul.f32 %v5066, %v5066
  %v5201 = vmul.f32 %v5067, %v5067
  %v5202 = vmul.f32 %v5068, %v5068
  %v5203 = vmul.f32 %v5069, %v5069
  %v5204 = vmul.f32 %v5070, %v5070
  %v5205 = vmul.f32 %v5071, %v5071
  %v5206 = vmul.f32 %v5072, %v5072
  %v5207 = vmul.f32 %v5073, %v5073
  %v5208 = vmul.f32 %v5074, %v5074
  %v5209 = vmul.f32 %v5075, %v5075
  %v5210 = vmul.f32 %v5076, %v5076
  %v5211 = vmul.f32 %v5077, %v5077
  %v5212 = vmul.f32 %v5078, %v5078
  %v5213 = vmul.f32 %v5079, %v5079
  %v5214 = vadd.f32 %v5150, %v5151
  %v5215 = vadd.f32 %v5214, %v5152
  %v5216 = vadd.f32 %v5215, %v5153
  %v5217 = vadd.f32 %v5216, %v5154
  %v5218 = vadd.f32 %v5217, %v5155
  %v5219 = vadd.f32 %v5218, %v5156
  %v5220 = vadd.f32 %v5219, %v5157
  %v5221 = vadd.f32 %v5220, %v5158
  %v5222 = vadd.f32 %v5221, %v5159
  %v5223 = vadd.f32 %v5222, %v5160
  %v5224 = vadd.f32 %v5223, %v5161
  %v5225 = vadd.f32 %v5224, %v5162
  %v5226 = vadd.f32 %v5225, %v5163
  %v5227 = vadd.f32 %v5226, %v5164
  %v5228 = vadd.f32 %v5227, %v5165
  %v5229 = vadd.f32 %v5228, %v5166
  %v5230 = vadd.f32 %v5229, %v5167
  %v5231 = vadd.f32 %v5230, %v5168
  %v5232 = vadd.f32 %v5231, %v5169
  %v5233 = vadd.f32 %v5232, %v5170
  %v5234 = vadd.f32 %v5233, %v5171
  %v5235 = vadd.f32 %v5234, %v5172
  %v5236 = vadd.f32 %v5235, %v5173
  %v5237 = vadd.f32 %v5236, %v5174
  %v5238 = vadd.f32 %v5237, %v5175
  %v5239 = vadd.f32 %v5238, %v5176
  %v5240 = vadd.f32 %v5239, %v5177
  %v5241 = vadd.f32 %v5240, %v5178
  %v5242 = vadd.f32 %v5241, %v5179
  %v5243 = vadd.f32 %v5242, %v5180
  %v5244 = vadd.f32 %v5243, %v5181
  %v5245 = vadd.f32 %v5244, %v5182
  %v5246 = vadd.f32 %v5245, %v5183
  %v5247 = vadd.f32 %v5246, %v5184
  %v5248 = vadd.f32 %v5247, %v5185
  %v5249 = vadd.f32 %v5248, %v5186
  %v5250 = vadd.f32 %v5249, %v5187
  %v5251 = vadd.f32 %v5250, %v5188
  %v5252 = vadd.f32 %v5251, %v5189
  %v5253 = vadd.f32 %v5252, %v5190
  %v5254 = vadd.f32 %v5253, %v5191
  %v5255 = vadd.f32 %v5254, %v5192
  %v5256 = vadd.f32 %v5255, %v5193
  %v5257 = vadd.f32 %v5256, %v5194
  %v5258 = vadd.f32 %v5257, %v5195
  %v5259 = vadd.f32 %v5258, %v5196
  %v5260 = vadd.f32 %v5259, %v5197
  %v5261 = vadd.f32 %v5260, %v5198
  %v5262 = vadd.f32 %v5261, %v5199
  %v5263 = vadd.f32 %v5262, %v5200
  %v5264 = vadd.f32 %v5263, %v5201
  %v5265 = vadd.f32 %v5264, %v5202
  %v5266 = vadd.f32 %v5265, %v5203
  %v5267 = vadd.f32 %v5266, %v5204
  %v5268 = vadd.f32 %v5267, %v5205
  %v5269 = vadd.f32 %v5268, %v5206
  %v5270 = vadd.f32 %v5269, %v5207
  %v5271 = vadd.f32 %v5270, %v5208
  %v5272 = vadd.f32 %v5271, %v5209
  %v5273 = vadd.f32 %v5272, %v5210
  %v5274 = vadd.f32 %v5273, %v5211
  %v5275 = vadd.f32 %v5274, %v5212
  %v5276 = vadd.f32 %v5275, %v5213
  %v5277 = vrot.slane %v5276, 4
  %v5278 = vadd.f32 %v5276, %v5277
  %v5279 = vrot.slane %v5278, 2
  %v5280 = vadd.f32 %v5278, %v5279
  %v5281 = vrot.slane %v5280, 1
  %v5282 = vadd.f32 %v5280, %v5281
  %v5283 = vmul.f32 %v5282, 0.001953125
  %v5284 = vmul.f32 %v5149, %v5149
  %v5285 = vsub.f32 %v5283, %v5284
  %v5286 = vmax.f32 %v5285, 0.0
  %v5287 = vsub.f32 %v5016, %v5149
  %v5288 = vsub.f32 %v5017, %v5149
  %v5289 = vsub.f32 %v5018, %v5149
  %v5290 = vsub.f32 %v5019, %v5149
  %v5291 = vsub.f32 %v5020, %v5149
  %v5292 = vsub.f32 %v5021, %v5149
  %v5293 = vsub.f32 %v5022, %v5149
  %v5294 = vsub.f32 %v5023, %v5149
  %v5295 = vsub.f32 %v5024, %v5149
  %v5296 = vsub.f32 %v5025, %v5149
  %v5297 = vsub.f32 %v5026, %v5149
  %v5298 = vsub.f32 %v5027, %v5149
  %v5299 = vsub.f32 %v5028, %v5149
  %v5300 = vsub.f32 %v5029, %v5149
  %v5301 = vsub.f32 %v5030, %v5149
  %v5302 = vsub.f32 %v5031, %v5149
  %v5303 = vsub.f32 %v5032, %v5149
  %v5304 = vsub.f32 %v5033, %v5149
  %v5305 = vsub.f32 %v5034, %v5149
  %v5306 = vsub.f32 %v5035, %v5149
  %v5307 = vsub.f32 %v5036, %v5149
  %v5308 = vsub.f32 %v5037, %v5149
  %v5309 = vsub.f32 %v5038, %v5149
  %v5310 = vsub.f32 %v5039, %v5149
  %v5311 = vsub.f32 %v5040, %v5149
  %v5312 = vsub.f32 %v5041, %v5149
  %v5313 = vsub.f32 %v5042, %v5149
  %v5314 = vsub.f32 %v5043, %v5149
  %v5315 = vsub.f32 %v5044, %v5149
  %v5316 = vsub.f32 %v5045, %v5149
  %v5317 = vsub.f32 %v5046, %v5149
  %v5318 = vsub.f32 %v5047, %v5149
  %v5319 = vsub.f32 %v5048, %v5149
  %v5320 = vsub.f32 %v5049, %v5149
  %v5321 = vsub.f32 %v5050, %v5149
  %v5322 = vsub.f32 %v5051, %v5149
  %v5323 = vsub.f32 %v5052, %v5149
  %v5324 = vsub.f32 %v5053, %v5149
  %v5325 = vsub.f32 %v5054, %v5149
  %v5326 = vsub.f32 %v5055, %v5149
  %v5327 = vsub.f32 %v5056, %v5149
  %v5328 = vsub.f32 %v5057, %v5149
  %v5329 = vsub.f32 %v5058, %v5149
  %v5330 = vsub.f32 %v5059, %v5149
  %v5331 = vsub.f32 %v5060, %v5149
  %v5332 = vsub.f32 %v5061, %v5149
  %v5333 = vsub.f32 %v5062, %v5149
  %v5334 = vsub.f32 %v5063, %v5149
  %v5335 = vsub.f32 %v5064, %v5149
  %v5336 = vsub.f32 %v5065, %v5149
  %v5337 = vsub.f32 %v5066, %v5149
  %v5338 = vsub.f32 %v5067, %v5149
  %v5339 = vsub.f32 %v5068, %v5149
  %v5340 = vsub.f32 %v5069, %v5149
  %v5341 = vsub.f32 %v5070, %v5149
  %v5342 = vsub.f32 %v5071, %v5149
  %v5343 = vsub.f32 %v5072, %v5149
  %v5344 = vsub.f32 %v5073, %v5149
  %v5345 = vsub.f32 %v5074, %v5149
  %v5346 = vsub.f32 %v5075, %v5149
  %v5347 = vsub.f32 %v5076, %v5149
  %v5348 = vsub.f32 %v5077, %v5149
  %v5349 = vsub.f32 %v5078, %v5149
  %v5350 = vsub.f32 %v5079, %v5149
  %v5351 = vadd.f32 %v5286, 1e-05
  %v5352 = vrsqrt.pop %v5351
  %v5353 = vmul.f32 %v5287, %v5352
  %v5354 = vmul.f32 %v5288, %v5352
  %v5355 = vmul.f32 %v5289, %v5352
  %v5356 = vmul.f32 %v5290, %v5352
  %v5357 = vmul.f32 %v5291, %v5352
  %v5358 = vmul.f32 %v5292, %v5352
  %v5359 = vmul.f32 %v5293, %v5352
  %v5360 = vmul.f32 %v5294, %v5352
  %v5361 = vmul.f32 %v5295, %v5352
  %v5362 = vmul.f32 %v5296, %v5352
  %v5363 = vmul.f32 %v5297, %v5352
  %v5364 = vmul.f32 %v5298, %v5352
  %v5365 = vmul.f32 %v5299, %v5352
  %v5366 = vmul.f32 %v5300, %v5352
  %v5367 = vmul.f32 %v5301, %v5352
  %v5368 = vmul.f32 %v5302, %v5352
  %v5369 = vmul.f32 %v5303, %v5352
  %v5370 = vmul.f32 %v5304, %v5352
  %v5371 = vmul.f32 %v5305, %v5352
  %v5372 = vmul.f32 %v5306, %v5352
  %v5373 = vmul.f32 %v5307, %v5352
  %v5374 = vmul.f32 %v5308, %v5352
  %v5375 = vmul.f32 %v5309, %v5352
  %v5376 = vmul.f32 %v5310, %v5352
  %v5377 = vmul.f32 %v5311, %v5352
  %v5378 = vmul.f32 %v5312, %v5352
  %v5379 = vmul.f32 %v5313, %v5352
  %v5380 = vmul.f32 %v5314, %v5352
  %v5381 = vmul.f32 %v5315, %v5352
  %v5382 = vmul.f32 %v5316, %v5352
  %v5383 = vmul.f32 %v5317, %v5352
  %v5384 = vmul.f32 %v5318, %v5352
  %v5385 = vmul.f32 %v5319, %v5352
  %v5386 = vmul.f32 %v5320, %v5352
  %v5387 = vmul.f32 %v5321, %v5352
  %v5388 = vmul.f32 %v5322, %v5352
  %v5389 = vmul.f32 %v5323, %v5352
  %v5390 = vmul.f32 %v5324, %v5352
  %v5391 = vmul.f32 %v5325, %v5352
  %v5392 = vmul.f32 %v5326, %v5352
  %v5393 = vmul.f32 %v5327, %v5352
  %v5394 = vmul.f32 %v5328, %v5352
  %v5395 = vmul.f32 %v5329, %v5352
  %v5396 = vmul.f32 %v5330, %v5352
  %v5397 = vmul.f32 %v5331, %v5352
  %v5398 = vmul.f32 %v5332, %v5352
  %v5399 = vmul.f32 %v5333, %v5352
  %v5400 = vmul.f32 %v5334, %v5352
  %v5401 = vmul.f32 %v5335, %v5352
  %v5402 = vmul.f32 %v5336, %v5352
  %v5403 = vmul.f32 %v5337, %v5352
  %v5404 = vmul.f32 %v5338, %v5352
  %v5405 = vmul.f32 %v5339, %v5352
  %v5406 = vmul.f32 %v5340, %v5352
  %v5407 = vmul.f32 %v5341, %v5352
  %v5408 = vmul.f32 %v5342, %v5352
  %v5409 = vmul.f32 %v5343, %v5352
  %v5410 = vmul.f32 %v5344, %v5352
  %v5411 = vmul.f32 %v5345, %v5352
  %v5412 = vmul.f32 %v5346, %v5352
  %v5413 = vmul.f32 %v5347, %v5352
  %v5414 = vmul.f32 %v5348, %v5352
  %v5415 = vmul.f32 %v5349, %v5352
  %v5416 = vmul.f32 %v5350, %v5352
  %v5417 = vld [vmem:[%s4] sm:$0x1]
  %v5419 = vlaneseq
  %v5420 = vshrl.u32 %v5419, 7
  %v5421 = vsub.s32 0, %v5420
  %v5422 = vrot.slane %v5417, %v5421
  %v5424 = vmul.f32 %v5353, %v5422
  %v5425 = vmul.f32 %v5354, %v5422
  %v5426 = vmul.f32 %v5355, %v5422
  %v5427 = vmul.f32 %v5356, %v5422
  %v5428 = vmul.f32 %v5357, %v5422
  %v5429 = vmul.f32 %v5358, %v5422
  %v5430 = vmul.f32 %v5359, %v5422
  %v5431 = vmul.f32 %v5360, %v5422
  %v5432 = vmul.f32 %v5361, %v5422
  %v5433 = vmul.f32 %v5362, %v5422
  %v5434 = vmul.f32 %v5363, %v5422
  %v5435 = vmul.f32 %v5364, %v5422
  %v5436 = vmul.f32 %v5365, %v5422
  %v5437 = vmul.f32 %v5366, %v5422
  %v5438 = vmul.f32 %v5367, %v5422
  %v5439 = vmul.f32 %v5368, %v5422
  %v5440 = vmul.f32 %v5369, %v5422
  %v5441 = vmul.f32 %v5370, %v5422
  %v5442 = vmul.f32 %v5371, %v5422
  %v5443 = vmul.f32 %v5372, %v5422
  %v5444 = vmul.f32 %v5373, %v5422
  %v5445 = vmul.f32 %v5374, %v5422
  %v5446 = vmul.f32 %v5375, %v5422
  %v5447 = vmul.f32 %v5376, %v5422
  %v5448 = vmul.f32 %v5377, %v5422
  %v5449 = vmul.f32 %v5378, %v5422
  %v5450 = vmul.f32 %v5379, %v5422
  %v5451 = vmul.f32 %v5380, %v5422
  %v5452 = vmul.f32 %v5381, %v5422
  %v5453 = vmul.f32 %v5382, %v5422
  %v5454 = vmul.f32 %v5383, %v5422
  %v5455 = vmul.f32 %v5384, %v5422
  %v5456 = vmul.f32 %v5385, %v5422
  %v5457 = vmul.f32 %v5386, %v5422
  %v5458 = vmul.f32 %v5387, %v5422
  %v5459 = vmul.f32 %v5388, %v5422
  %v5460 = vmul.f32 %v5389, %v5422
  %v5461 = vmul.f32 %v5390, %v5422
  %v5462 = vmul.f32 %v5391, %v5422
  %v5463 = vmul.f32 %v5392, %v5422
  %v5464 = vmul.f32 %v5393, %v5422
  %v5465 = vmul.f32 %v5394, %v5422
  %v5466 = vmul.f32 %v5395, %v5422
  %v5467 = vmul.f32 %v5396, %v5422
  %v5468 = vmul.f32 %v5397, %v5422
  %v5469 = vmul.f32 %v5398, %v5422
  %v5470 = vmul.f32 %v5399, %v5422
  %v5471 = vmul.f32 %v5400, %v5422
  %v5472 = vmul.f32 %v5401, %v5422
  %v5473 = vmul.f32 %v5402, %v5422
  %v5474 = vmul.f32 %v5403, %v5422
  %v5475 = vmul.f32 %v5404, %v5422
  %v5476 = vmul.f32 %v5405, %v5422
  %v5477 = vmul.f32 %v5406, %v5422
  %v5478 = vmul.f32 %v5407, %v5422
  %v5479 = vmul.f32 %v5408, %v5422
  %v5480 = vmul.f32 %v5409, %v5422
  %v5481 = vmul.f32 %v5410, %v5422
  %v5482 = vmul.f32 %v5411, %v5422
  %v5483 = vmul.f32 %v5412, %v5422
  %v5484 = vmul.f32 %v5413, %v5422
  %v5485 = vmul.f32 %v5414, %v5422
  %v5486 = vmul.f32 %v5415, %v5422
  %v5487 = vmul.f32 %v5416, %v5422
  %v5488 = vld [vmem:[%s5] sm:$0x1]
  %v5490 = vlaneseq
  %v5491 = vshrl.u32 %v5490, 7
  %v5492 = vsub.s32 0, %v5491
  %v5493 = vrot.slane %v5488, %v5492
  %v5495 = vadd.f32 %v5424, %v5493
  %v5496 = vadd.f32 %v5425, %v5493
  %v5497 = vadd.f32 %v5426, %v5493
  %v5498 = vadd.f32 %v5427, %v5493
  %v5499 = vadd.f32 %v5428, %v5493
  %v5500 = vadd.f32 %v5429, %v5493
  %v5501 = vadd.f32 %v5430, %v5493
  %v5502 = vadd.f32 %v5431, %v5493
  %v5503 = vadd.f32 %v5432, %v5493
  %v5504 = vadd.f32 %v5433, %v5493
  %v5505 = vadd.f32 %v5434, %v5493
  %v5506 = vadd.f32 %v5435, %v5493
  %v5507 = vadd.f32 %v5436, %v5493
  %v5508 = vadd.f32 %v5437, %v5493
  %v5509 = vadd.f32 %v5438, %v5493
  %v5510 = vadd.f32 %v5439, %v5493
  %v5511 = vadd.f32 %v5440, %v5493
  %v5512 = vadd.f32 %v5441, %v5493
  %v5513 = vadd.f32 %v5442, %v5493
  %v5514 = vadd.f32 %v5443, %v5493
  %v5515 = vadd.f32 %v5444, %v5493
  %v5516 = vadd.f32 %v5445, %v5493
  %v5517 = vadd.f32 %v5446, %v5493
  %v5518 = vadd.f32 %v5447, %v5493
  %v5519 = vadd.f32 %v5448, %v5493
  %v5520 = vadd.f32 %v5449, %v5493
  %v5521 = vadd.f32 %v5450, %v5493
  %v5522 = vadd.f32 %v5451, %v5493
  %v5523 = vadd.f32 %v5452, %v5493
  %v5524 = vadd.f32 %v5453, %v5493
  %v5525 = vadd.f32 %v5454, %v5493
  %v5526 = vadd.f32 %v5455, %v5493
  %v5527 = vadd.f32 %v5456, %v5493
  %v5528 = vadd.f32 %v5457, %v5493
  %v5529 = vadd.f32 %v5458, %v5493
  %v5530 = vadd.f32 %v5459, %v5493
  %v5531 = vadd.f32 %v5460, %v5493
  %v5532 = vadd.f32 %v5461, %v5493
  %v5533 = vadd.f32 %v5462, %v5493
  %v5534 = vadd.f32 %v5463, %v5493
  %v5535 = vadd.f32 %v5464, %v5493
  %v5536 = vadd.f32 %v5465, %v5493
  %v5537 = vadd.f32 %v5466, %v5493
  %v5538 = vadd.f32 %v5467, %v5493
  %v5539 = vadd.f32 %v5468, %v5493
  %v5540 = vadd.f32 %v5469, %v5493
  %v5541 = vadd.f32 %v5470, %v5493
  %v5542 = vadd.f32 %v5471, %v5493
  %v5543 = vadd.f32 %v5472, %v5493
  %v5544 = vadd.f32 %v5473, %v5493
  %v5545 = vadd.f32 %v5474, %v5493
  %v5546 = vadd.f32 %v5475, %v5493
  %v5547 = vadd.f32 %v5476, %v5493
  %v5548 = vadd.f32 %v5477, %v5493
  %v5549 = vadd.f32 %v5478, %v5493
  %v5550 = vadd.f32 %v5479, %v5493
  %v5551 = vadd.f32 %v5480, %v5493
  %v5552 = vadd.f32 %v5481, %v5493
  %v5553 = vadd.f32 %v5482, %v5493
  %v5554 = vadd.f32 %v5483, %v5493
  %v5555 = vadd.f32 %v5484, %v5493
  %v5556 = vadd.f32 %v5485, %v5493
  %v5557 = vadd.f32 %v5486, %v5493
  %v5558 = vadd.f32 %v5487, %v5493
  %5559 = vst.msk [vmem:[%s192 + $0x1] sm:$0xff] %vm40, %v5495
  %5560 = vst.msk [vmem:[%s192 + $0x9] sm:$0xff] %vm40, %v5496
  %5561 = vst.msk [vmem:[%s192 + $0x19] sm:$0xff] %vm40, %v5497
  %5562 = vst.msk [vmem:[%s192 + $0x21] sm:$0xff] %vm40, %v5498
  %5563 = vst.msk [vmem:[%s192 + $0x31] sm:$0xff] %vm40, %v5499
  %5564 = vst.msk [vmem:[%s192 + $0x39] sm:$0xff] %vm40, %v5500
  %5565 = vst.msk [vmem:[%s192 + $0x49] sm:$0xff] %vm40, %v5501
  %5566 = vst.msk [vmem:[%s192 + $0x51] sm:$0xff] %vm40, %v5502
  %5567 = vst.msk [vmem:[%s192 + $0x61] sm:$0xff] %vm40, %v5503
  %5568 = vst.msk [vmem:[%s192 + $0x69] sm:$0xff] %vm40, %v5504
  %5569 = vst.msk [vmem:[%s192 + $0x79] sm:$0xff] %vm40, %v5505
  %5570 = vst.msk [vmem:[%s192 + $0x81] sm:$0xff] %vm40, %v5506
  %5571 = vst.msk [vmem:[%s192 + $0x91] sm:$0xff] %vm40, %v5507
  %5572 = vst.msk [vmem:[%s192 + $0x99] sm:$0xff] %vm40, %v5508
  %5573 = vst.msk [vmem:[%s192 + $0xa9] sm:$0xff] %vm40, %v5509
  %5574 = vst.msk [vmem:[%s192 + $0xb1] sm:$0xff] %vm40, %v5510
  %5575 = vst.msk [vmem:[%s192 + $0xc1] sm:$0xff] %vm40, %v5511
  %5576 = vst.msk [vmem:[%s192 + $0xc9] sm:$0xff] %vm40, %v5512
  %5577 = vst.msk [vmem:[%s192 + $0xd9] sm:$0xff] %vm40, %v5513
  %5578 = vst.msk [vmem:[%s192 + $0xe1] sm:$0xff] %vm40, %v5514
  %5579 = vst.msk [vmem:[%s192 + $0xf1] sm:$0xff] %vm40, %v5515
  %5580 = vst.msk [vmem:[%s192 + $0xf9] sm:$0xff] %vm40, %v5516
  %5581 = vst.msk [vmem:[%s192 + $0x109] sm:$0xff] %vm40, %v5517
  %5582 = vst.msk [vmem:[%s192 + $0x111] sm:$0xff] %vm40, %v5518
  %5583 = vst.msk [vmem:[%s192 + $0x121] sm:$0xff] %vm40, %v5519
  %5584 = vst.msk [vmem:[%s192 + $0x129] sm:$0xff] %vm40, %v5520
  %5585 = vst.msk [vmem:[%s192 + $0x139] sm:$0xff] %vm40, %v5521
  %5586 = vst.msk [vmem:[%s192 + $0x141] sm:$0xff] %vm40, %v5522
  %5587 = vst.msk [vmem:[%s192 + $0x151] sm:$0xff] %vm40, %v5523
  %5588 = vst.msk [vmem:[%s192 + $0x159] sm:$0xff] %vm40, %v5524
  %5589 = vst.msk [vmem:[%s192 + $0x169] sm:$0xff] %vm40, %v5525
  %5590 = vst.msk [vmem:[%s192 + $0x171] sm:$0xff] %vm40, %v5526
  %5591 = vst.msk [vmem:[%s192 + $0x1b1] sm:$0xff] %vm40, %v5527
  %5592 = vst.msk [vmem:[%s192 + $0x1b9] sm:$0xff] %vm40, %v5528
  %5593 = vst.msk [vmem:[%s192 + $0x1c9] sm:$0xff] %vm40, %v5529
  %5594 = vst.msk [vmem:[%s192 + $0x1d1] sm:$0xff] %vm40, %v5530
  %5595 = vst.msk [vmem:[%s192 + $0x1e1] sm:$0xff] %vm40, %v5531
  %5596 = vst.msk [vmem:[%s192 + $0x1e9] sm:$0xff] %vm40, %v5532
  %5597 = vst.msk [vmem:[%s192 + $0x1f9] sm:$0xff] %vm40, %v5533
  %5598 = vst.msk [vmem:[%s192 + $0x201] sm:$0xff] %vm40, %v5534
  %5599 = vst.msk [vmem:[%s192 + $0x211] sm:$0xff] %vm40, %v5535
  %5600 = vst.msk [vmem:[%s192 + $0x219] sm:$0xff] %vm40, %v5536
  %5601 = vst.msk [vmem:[%s192 + $0x229] sm:$0xff] %vm40, %v5537
  %5602 = vst.msk [vmem:[%s192 + $0x231] sm:$0xff] %vm40, %v5538
  %5603 = vst.msk [vmem:[%s192 + $0x241] sm:$0xff] %vm40, %v5539
  %5604 = vst.msk [vmem:[%s192 + $0x249] sm:$0xff] %vm40, %v5540
  %5605 = vst.msk [vmem:[%s192 + $0x259] sm:$0xff] %vm40, %v5541
  %5606 = vst.msk [vmem:[%s192 + $0x261] sm:$0xff] %vm40, %v5542
  %5607 = vst.msk [vmem:[%s192 + $0x271] sm:$0xff] %vm40, %v5543
  %5608 = vst.msk [vmem:[%s192 + $0x279] sm:$0xff] %vm40, %v5544
  %5609 = vst.msk [vmem:[%s192 + $0x289] sm:$0xff] %vm40, %v5545
  %5610 = vst.msk [vmem:[%s192 + $0x291] sm:$0xff] %vm40, %v5546
  %5611 = vst.msk [vmem:[%s192 + $0x2a1] sm:$0xff] %vm40, %v5547
  %5612 = vst.msk [vmem:[%s192 + $0x2a9] sm:$0xff] %vm40, %v5548
  %5613 = vst.msk [vmem:[%s192 + $0x2b9] sm:$0xff] %vm40, %v5549
  %5614 = vst.msk [vmem:[%s192 + $0x2c1] sm:$0xff] %vm40, %v5550
  %5615 = vst.msk [vmem:[%s192 + $0x2d1] sm:$0xff] %vm40, %v5551
  %5616 = vst.msk [vmem:[%s192 + $0x2d9] sm:$0xff] %vm40, %v5552
  %5617 = vst.msk [vmem:[%s192 + $0x2e9] sm:$0xff] %vm40, %v5553
  %5618 = vst.msk [vmem:[%s192 + $0x2f1] sm:$0xff] %vm40, %v5554
  %5619 = vst.msk [vmem:[%s192 + $0x301] sm:$0xff] %vm40, %v5555
  %5620 = vst.msk [vmem:[%s192 + $0x309] sm:$0xff] %vm40, %v5556
  %5621 = vst.msk [vmem:[%s192 + $0x319] sm:$0xff] %vm40, %v5557
  %5622 = vst.msk [vmem:[%s192 + $0x321] sm:$0xff] %vm40, %v5558
  %v5623 = vld [vmem:[#allocation2] sm:$0xff]
  %v5624 = vld [vmem:[#allocation2 + $0x8] sm:$0xff]
  %v5625 = vld [vmem:[#allocation2 + $0x18] sm:$0xff]
  %v5626 = vld [vmem:[#allocation2 + $0x20] sm:$0xff]
  %v5627 = vld [vmem:[#allocation2 + $0x30] sm:$0xff]
  %v5628 = vld [vmem:[#allocation2 + $0x38] sm:$0xff]
  %v5629 = vld [vmem:[#allocation2 + $0x48] sm:$0xff]
  %v5630 = vld [vmem:[#allocation2 + $0x50] sm:$0xff]
  %v5631 = vld [vmem:[#allocation2 + $0x60] sm:$0xff]
  %v5632 = vld [vmem:[#allocation2 + $0x68] sm:$0xff]
  %v5633 = vld [vmem:[#allocation2 + $0x78] sm:$0xff]
  %v5634 = vld [vmem:[#allocation2 + $0x80] sm:$0xff]
  %v5635 = vld [vmem:[#allocation2 + $0x90] sm:$0xff]
  %v5636 = vld [vmem:[#allocation2 + $0x98] sm:$0xff]
  %v5637 = vld [vmem:[#allocation2 + $0xa8] sm:$0xff]
  %v5638 = vld [vmem:[#allocation2 + $0xb0] sm:$0xff]
  %v5639 = vld [vmem:[#allocation2 + $0xc0] sm:$0xff]
  %v5640 = vld [vmem:[#allocation2 + $0xc8] sm:$0xff]
  %v5641 = vld [vmem:[#allocation2 + $0xd8] sm:$0xff]
  %v5642 = vld [vmem:[#allocation2 + $0xe0] sm:$0xff]
  %v5643 = vld [vmem:[#allocation2 + $0xf0] sm:$0xff]
  %v5644 = vld [vmem:[#allocation2 + $0xf8] sm:$0xff]
  %v5645 = vld [vmem:[#allocation2 + $0x108] sm:$0xff]
  %v5646 = vld [vmem:[#allocation2 + $0x110] sm:$0xff]
  %v5647 = vld [vmem:[#allocation2 + $0x120] sm:$0xff]
  %v5648 = vld [vmem:[#allocation2 + $0x128] sm:$0xff]
  %v5649 = vld [vmem:[#allocation2 + $0x138] sm:$0xff]
  %v5650 = vld [vmem:[#allocation2 + $0x140] sm:$0xff]
  %v5651 = vld [vmem:[#allocation2 + $0x150] sm:$0xff]
  %v5652 = vld [vmem:[#allocation2 + $0x158] sm:$0xff]
  %v5653 = vld [vmem:[#allocation2 + $0x168] sm:$0xff]
  %v5654 = vld [vmem:[#allocation2 + $0x170] sm:$0xff]
  %v5655 = vld [vmem:[#allocation2 + $0x1b0] sm:$0xff]
  %v5656 = vld [vmem:[#allocation2 + $0x1b8] sm:$0xff]
  %v5657 = vld [vmem:[#allocation2 + $0x1c8] sm:$0xff]
  %v5658 = vld [vmem:[#allocation2 + $0x1d0] sm:$0xff]
  %v5659 = vld [vmem:[#allocation2 + $0x1e0] sm:$0xff]
  %v5660 = vld [vmem:[#allocation2 + $0x1e8] sm:$0xff]
  %v5661 = vld [vmem:[#allocation2 + $0x1f8] sm:$0xff]
  %v5662 = vld [vmem:[#allocation2 + $0x200] sm:$0xff]
  %v5663 = vld [vmem:[#allocation2 + $0x210] sm:$0xff]
  %v5664 = vld [vmem:[#allocation2 + $0x218] sm:$0xff]
  %v5665 = vld [vmem:[#allocation2 + $0x228] sm:$0xff]
  %v5666 = vld [vmem:[#allocation2 + $0x230] sm:$0xff]
  %v5667 = vld [vmem:[#allocation2 + $0x240] sm:$0xff]
  %v5668 = vld [vmem:[#allocation2 + $0x248] sm:$0xff]
  %v5669 = vld [vmem:[#allocation2 + $0x258] sm:$0xff]
  %v5670 = vld [vmem:[#allocation2 + $0x260] sm:$0xff]
  %v5671 = vld [vmem:[#allocation2 + $0x270] sm:$0xff]
  %v5672 = vld [vmem:[#allocation2 + $0x278] sm:$0xff]
  %v5673 = vld [vmem:[#allocation2 + $0x288] sm:$0xff]
  %v5674 = vld [vmem:[#allocation2 + $0x290] sm:$0xff]
  %v5675 = vld [vmem:[#allocation2 + $0x2a0] sm:$0xff]
  %v5676 = vld [vmem:[#allocation2 + $0x2a8] sm:$0xff]
  %v5677 = vld [vmem:[#allocation2 + $0x2b8] sm:$0xff]
  %v5678 = vld [vmem:[#allocation2 + $0x2c0] sm:$0xff]
  %v5679 = vld [vmem:[#allocation2 + $0x2d0] sm:$0xff]
  %v5680 = vld [vmem:[#allocation2 + $0x2d8] sm:$0xff]
  %v5681 = vld [vmem:[#allocation2 + $0x2e8] sm:$0xff]
  %v5682 = vld [vmem:[#allocation2 + $0x2f0] sm:$0xff]
  %v5683 = vld [vmem:[#allocation2 + $0x300] sm:$0xff]
  %v5684 = vld [vmem:[#allocation2 + $0x308] sm:$0xff]
  %v5685 = vld [vmem:[#allocation2 + $0x318] sm:$0xff]
  %v5686 = vld [vmem:[#allocation2 + $0x320] sm:$0xff]
  %v5687 = vpack.c.bf16 %v5624, %v5623
  %v5688 = vpack.c.bf16 %v5626, %v5625
  %v5689 = vpack.c.bf16 %v5628, %v5627
  %v5690 = vpack.c.bf16 %v5630, %v5629
  %v5691 = vpack.c.bf16 %v5632, %v5631
  %v5692 = vpack.c.bf16 %v5634, %v5633
  %v5693 = vpack.c.bf16 %v5636, %v5635
  %v5694 = vpack.c.bf16 %v5638, %v5637
  %v5695 = vpack.c.bf16 %v5640, %v5639
  %v5696 = vpack.c.bf16 %v5642, %v5641
  %v5697 = vpack.c.bf16 %v5644, %v5643
  %v5698 = vpack.c.bf16 %v5646, %v5645
  %v5699 = vpack.c.bf16 %v5648, %v5647
  %v5700 = vpack.c.bf16 %v5650, %v5649
  %v5701 = vpack.c.bf16 %v5652, %v5651
  %v5702 = vpack.c.bf16 %v5654, %v5653
  %v5703 = vpack.c.bf16 %v5656, %v5655
  %v5704 = vpack.c.bf16 %v5658, %v5657
  %v5705 = vpack.c.bf16 %v5660, %v5659
  %v5706 = vpack.c.bf16 %v5662, %v5661
  %v5707 = vpack.c.bf16 %v5664, %v5663
  %v5708 = vpack.c.bf16 %v5666, %v5665
  %v5709 = vpack.c.bf16 %v5668, %v5667
  %v5710 = vpack.c.bf16 %v5670, %v5669
  %v5711 = vpack.c.bf16 %v5672, %v5671
  %v5712 = vpack.c.bf16 %v5674, %v5673
  %v5713 = vpack.c.bf16 %v5676, %v5675
  %v5714 = vpack.c.bf16 %v5678, %v5677
  %v5715 = vpack.c.bf16 %v5680, %v5679
  %v5716 = vpack.c.bf16 %v5682, %v5681
  %v5717 = vpack.c.bf16 %v5684, %v5683
  %v5718 = vpack.c.bf16 %v5686, %v5685
  %v5719 = vld [vmem:[%s2] sm:$0x3]
  %v5720 = vld [vmem:[#allocation2 + $0x1] sm:$0xff]
  %v5721 = vld [vmem:[#allocation2 + $0x9] sm:$0xff]
  %v5722 = vld [vmem:[#allocation2 + $0x19] sm:$0xff]
  %v5723 = vld [vmem:[#allocation2 + $0x21] sm:$0xff]
  %v5724 = vld [vmem:[#allocation2 + $0x31] sm:$0xff]
  %v5725 = vld [vmem:[#allocation2 + $0x39] sm:$0xff]
  %v5726 = vld [vmem:[#allocation2 + $0x49] sm:$0xff]
  %v5727 = vld [vmem:[#allocation2 + $0x51] sm:$0xff]
  %v5728 = vld [vmem:[#allocation2 + $0x61] sm:$0xff]
  %v5729 = vld [vmem:[#allocation2 + $0x69] sm:$0xff]
  %v5730 = vld [vmem:[#allocation2 + $0x79] sm:$0xff]
  %v5731 = vld [vmem:[#allocation2 + $0x81] sm:$0xff]
  %v5732 = vld [vmem:[#allocation2 + $0x91] sm:$0xff]
  %v5733 = vld [vmem:[#allocation2 + $0x99] sm:$0xff]
  %v5734 = vld [vmem:[#allocation2 + $0xa9] sm:$0xff]
  %v5735 = vld [vmem:[#allocation2 + $0xb1] sm:$0xff]
  %v5736 = vld [vmem:[#allocation2 + $0xc1] sm:$0xff]
  %v5737 = vld [vmem:[#allocation2 + $0xc9] sm:$0xff]
  %v5738 = vld [vmem:[#allocation2 + $0xd9] sm:$0xff]
  %v5739 = vld [vmem:[#allocation2 + $0xe1] sm:$0xff]
  %v5740 = vld [vmem:[#allocation2 + $0xf1] sm:$0xff]
  %v5741 = vld [vmem:[#allocation2 + $0xf9] sm:$0xff]
  %v5742 = vld [vmem:[#allocation2 + $0x109] sm:$0xff]
  %v5743 = vld [vmem:[#allocation2 + $0x111] sm:$0xff]
  %v5744 = vld [vmem:[#allocation2 + $0x121] sm:$0xff]
  %v5745 = vld [vmem:[#allocation2 + $0x129] sm:$0xff]
  %v5746 = vld [vmem:[#allocation2 + $0x139] sm:$0xff]
  %v5747 = vld [vmem:[#allocation2 + $0x141] sm:$0xff]
  %v5748 = vld [vmem:[#allocation2 + $0x151] sm:$0xff]
  %v5749 = vld [vmem:[#allocation2 + $0x159] sm:$0xff]
  %v5750 = vld [vmem:[#allocation2 + $0x169] sm:$0xff]
  %v5751 = vld [vmem:[#allocation2 + $0x171] sm:$0xff]
  %v5752 = vld [vmem:[#allocation2 + $0x1b1] sm:$0xff]
  %v5753 = vld [vmem:[#allocation2 + $0x1b9] sm:$0xff]
  %v5754 = vld [vmem:[#allocation2 + $0x1c9] sm:$0xff]
  %v5755 = vld [vmem:[#allocation2 + $0x1d1] sm:$0xff]
  %v5756 = vld [vmem:[#allocation2 + $0x1e1] sm:$0xff]
  %v5757 = vld [vmem:[#allocation2 + $0x1e9] sm:$0xff]
  %v5758 = vld [vmem:[#allocation2 + $0x1f9] sm:$0xff]
  %v5759 = vld [vmem:[#allocation2 + $0x201] sm:$0xff]
  %v5760 = vld [vmem:[#allocation2 + $0x211] sm:$0xff]
  %v5761 = vld [vmem:[#allocation2 + $0x219] sm:$0xff]
  %v5762 = vld [vmem:[#allocation2 + $0x229] sm:$0xff]
  %v5763 = vld [vmem:[#allocation2 + $0x231] sm:$0xff]
  %v5764 = vld [vmem:[#allocation2 + $0x241] sm:$0xff]
  %v5765 = vld [vmem:[#allocation2 + $0x249] sm:$0xff]
  %v5766 = vld [vmem:[#allocation2 + $0x259] sm:$0xff]
  %v5767 = vld [vmem:[#allocation2 + $0x261] sm:$0xff]
  %v5768 = vld [vmem:[#allocation2 + $0x271] sm:$0xff]
  %v5769 = vld [vmem:[#allocation2 + $0x279] sm:$0xff]
  %v5770 = vld [vmem:[#allocation2 + $0x289] sm:$0xff]
  %v5771 = vld [vmem:[#allocation2 + $0x291] sm:$0xff]
  %v5772 = vld [vmem:[#allocation2 + $0x2a1] sm:$0xff]
  %v5773 = vld [vmem:[#allocation2 + $0x2a9] sm:$0xff]
  %v5774 = vld [vmem:[#allocation2 + $0x2b9] sm:$0xff]
  %v5775 = vld [vmem:[#allocation2 + $0x2c1] sm:$0xff]
  %v5776 = vld [vmem:[#allocation2 + $0x2d1] sm:$0xff]
  %v5777 = vld [vmem:[#allocation2 + $0x2d9] sm:$0xff]
  %v5778 = vld [vmem:[#allocation2 + $0x2e9] sm:$0xff]
  %v5779 = vld [vmem:[#allocation2 + $0x2f1] sm:$0xff]
  %v5780 = vld [vmem:[#allocation2 + $0x301] sm:$0xff]
  %v5781 = vld [vmem:[#allocation2 + $0x309] sm:$0xff]
  %v5782 = vld [vmem:[#allocation2 + $0x319] sm:$0xff]
  %v5783 = vld [vmem:[#allocation2 + $0x321] sm:$0xff]
  %v5784 = vpack.c.bf16 %v5721, %v5720
  %v5785 = vpack.c.bf16 %v5723, %v5722
  %v5786 = vpack.c.bf16 %v5725, %v5724
  %v5787 = vpack.c.bf16 %v5727, %v5726
  %v5788 = vpack.c.bf16 %v5729, %v5728
  %v5789 = vpack.c.bf16 %v5731, %v5730
  %v5790 = vpack.c.bf16 %v5733, %v5732
  %v5791 = vpack.c.bf16 %v5735, %v5734
  %v5792 = vpack.c.bf16 %v5737, %v5736
  %v5793 = vpack.c.bf16 %v5739, %v5738
  %v5794 = vpack.c.bf16 %v5741, %v5740
  %v5795 = vpack.c.bf16 %v5743, %v5742
  %v5796 = vpack.c.bf16 %v5745, %v5744
  %v5797 = vpack.c.bf16 %v5747, %v5746
  %v5798 = vpack.c.bf16 %v5749, %v5748
  %v5799 = vpack.c.bf16 %v5751, %v5750
  %v5800 = vpack.c.bf16 %v5753, %v5752
  %v5801 = vpack.c.bf16 %v5755, %v5754
  %v5802 = vpack.c.bf16 %v5757, %v5756
  %v5803 = vpack.c.bf16 %v5759, %v5758
  %v5804 = vpack.c.bf16 %v5761, %v5760
  %v5805 = vpack.c.bf16 %v5763, %v5762
  %v5806 = vpack.c.bf16 %v5765, %v5764
  %v5807 = vpack.c.bf16 %v5767, %v5766
  %v5808 = vpack.c.bf16 %v5769, %v5768
  %v5809 = vpack.c.bf16 %v5771, %v5770
  %v5810 = vpack.c.bf16 %v5773, %v5772
  %v5811 = vpack.c.bf16 %v5775, %v5774
  %v5812 = vpack.c.bf16 %v5777, %v5776
  %v5813 = vpack.c.bf16 %v5779, %v5778
  %v5814 = vpack.c.bf16 %v5781, %v5780
  %v5815 = vpack.c.bf16 %v5783, %v5782
  %s5816 = scalar_lea.vmem %s2, 2
  %v5817 = vld [vmem:[%s5816] sm:$0x3]
  %v5819 = vsel %vm40, %v5784, 0
  %v5822 = vsel %vm40, %v5785, 0
  %v5825 = vsel %vm40, %v5786, 0
  %v5828 = vsel %vm40, %v5787, 0
  %v5831 = vsel %vm40, %v5788, 0
  %v5834 = vsel %vm40, %v5789, 0
  %v5837 = vsel %vm40, %v5790, 0
  %v5840 = vsel %vm40, %v5791, 0
  %v5843 = vsel %vm40, %v5792, 0
  %v5846 = vsel %vm40, %v5793, 0
  %v5849 = vsel %vm40, %v5794, 0
  %v5852 = vsel %vm40, %v5795, 0
  %v5855 = vsel %vm40, %v5796, 0
  %v5858 = vsel %vm40, %v5797, 0
  %v5861 = vsel %vm40, %v5798, 0
  %v5864 = vsel %vm40, %v5799, 0
  %v5867 = vsel %vm40, %v5800, 0
  %v5870 = vsel %vm40, %v5801, 0
  %v5873 = vsel %vm40, %v5802, 0
  %v5876 = vsel %vm40, %v5803, 0
  %v5879 = vsel %vm40, %v5804, 0
  %v5882 = vsel %vm40, %v5805, 0
  %v5885 = vsel %vm40, %v5806, 0
  %v5888 = vsel %vm40, %v5807, 0
  %v5891 = vsel %vm40, %v5808, 0
  %v5894 = vsel %vm40, %v5809, 0
  %v5897 = vsel %vm40, %v5810, 0
  %v5900 = vsel %vm40, %v5811, 0
  %v5903 = vsel %vm40, %v5812, 0
  %v5906 = vsel %vm40, %v5813, 0
  %v5909 = vsel %vm40, %v5814, 0
  %v5912 = vsel %vm40, %v5815, 0
  %v5915 = vsel %vm548, %v5817, 0
  %5917 = vmatprep.subr.bf16.mxu0 0
  %5918 = vmatpush1.bf16.msra.mxu0 0
  %5919 = vmatprep.subr.bf16.mxu0 0
  %5920 = vmatpush1.bf16.msra.mxu0 0
  %5921 = vmatprep.subr.bf16.mxu0 0
  %5922 = vmatpush1.bf16.msra.mxu0 0
  %5923 = vmatprep.subr.bf16.mxu0 0
  %5924 = vmatpush1.bf16.msra.mxu0 0
  %5925 = vmatprep.subr.bf16.mxu0 0
  %5926 = vmatpush1.bf16.msra.mxu0 0
  %5927 = vmatprep.subr.bf16.mxu0 0
  %5928 = vmatpush1.bf16.msra.mxu0 0
  %5929 = vmatprep.subr.bf16.mxu0 0
  %5930 = vmatpush1.bf16.msra.mxu0 0
  %5931 = vmatprep.subr.bf16.mxu0 0
  %5932 = vmatpush1.bf16.msra.mxu0 %v5915
  %5933 = vmatprep.subr.bf16.mxu0 0
  %5934 = vmatpush2.bf16.msra.mxu0 0
  %5935 = vmatprep.subr.bf16.mxu0 0
  %5936 = vmatpush2.bf16.msra.mxu0 0
  %5937 = vmatprep.subr.bf16.mxu0 0
  %5938 = vmatpush2.bf16.msra.mxu0 0
  %5939 = vmatprep.subr.bf16.mxu0 0
  %5940 = vmatpush2.bf16.msra.mxu0 0
  %5941 = vmatprep.subr.bf16.mxu0 0
  %5942 = vmatpush2.bf16.msra.mxu0 0
  %5943 = vmatprep.subr.bf16.mxu0 0
  %5944 = vmatpush2.bf16.msra.mxu0 0
  %5945 = vmatprep.subr.bf16.mxu0 0
  %5946 = vmatpush2.bf16.msra.mxu0 0
  %5947 = vmatprep.subr.bf16.mxu0 0
  %5948 = vmatpush2.bf16.msra.mxu0 0
  %5949 = vmatprep.mubr.bf16.mxu0 0
  %5950 = vmatmul.mubr.bf16.gmra.mxu0 %v5819
  %v5951 = vpop.f32.mrf.mxu0
  %v5952 = vadd.f32 0.0, %v5951
  %v5953 = vpop.f32.mrf.mxu0
  %v5954 = vpop.f32.mrf.mxu0
  %v5955 = vadd.f32 0.0, %v5954
  %v5956 = vpop.f32.mrf.mxu0
  %5957 = vmatprep.mubr.bf16.mxu0 0
  %5958 = vmatmul.mubr.bf16.gmra.mxu0 %v5822
  %v5959 = vpop.f32.mrf.mxu0
  %v5960 = vadd.f32 0.0, %v5959
  %v5961 = vpop.f32.mrf.mxu0
  %v5962 = vpop.f32.mrf.mxu0
  %v5963 = vadd.f32 0.0, %v5962
  %v5964 = vpop.f32.mrf.mxu0
  %5965 = vmatprep.mubr.bf16.mxu0 0
  %5966 = vmatmul.mubr.bf16.gmra.mxu0 %v5825
  %v5967 = vpop.f32.mrf.mxu0
  %v5968 = vadd.f32 0.0, %v5967
  %v5969 = vpop.f32.mrf.mxu0
  %v5970 = vpop.f32.mrf.mxu0
  %v5971 = vadd.f32 0.0, %v5970
  %v5972 = vpop.f32.mrf.mxu0
  %5973 = vmatprep.mubr.bf16.mxu0 0
  %5974 = vmatmul.mubr.bf16.gmra.mxu0 %v5828
  %v5975 = vpop.f32.mrf.mxu0
  %v5976 = vadd.f32 0.0, %v5975
  %v5977 = vpop.f32.mrf.mxu0
  %v5978 = vpop.f32.mrf.mxu0
  %v5979 = vadd.f32 0.0, %v5978
  %v5980 = vpop.f32.mrf.mxu0
  %5981 = vmatprep.mubr.bf16.mxu0 0
  %5982 = vmatmul.mubr.bf16.gmra.mxu0 %v5831
  %v5983 = vpop.f32.mrf.mxu0
  %v5984 = vadd.f32 0.0, %v5983
  %v5985 = vpop.f32.mrf.mxu0
  %v5986 = vpop.f32.mrf.mxu0
  %v5987 = vadd.f32 0.0, %v5986
  %v5988 = vpop.f32.mrf.mxu0
  %5989 = vmatprep.mubr.bf16.mxu0 0
  %5990 = vmatmul.mubr.bf16.gmra.mxu0 %v5834
  %v5991 = vpop.f32.mrf.mxu0
  %v5992 = vadd.f32 0.0, %v5991
  %v5993 = vpop.f32.mrf.mxu0
  %v5994 = vpop.f32.mrf.mxu0
  %v5995 = vadd.f32 0.0, %v5994
  %v5996 = vpop.f32.mrf.mxu0
  %5997 = vmatprep.mubr.bf16.mxu0 0
  %5998 = vmatmul.mubr.bf16.gmra.mxu0 %v5837
  %v5999 = vpop.f32.mrf.mxu0
  %v6000 = vadd.f32 0.0, %v5999
  %v6001 = vpop.f32.mrf.mxu0
  %v6002 = vpop.f32.mrf.mxu0
  %v6003 = vadd.f32 0.0, %v6002
  %v6004 = vpop.f32.mrf.mxu0
  %6005 = vmatprep.mubr.bf16.mxu0 0
  %6006 = vmatmul.mubr.bf16.gmra.mxu0 %v5840
  %v6007 = vpop.f32.mrf.mxu0
  %v6008 = vadd.f32 0.0, %v6007
  %v6009 = vpop.f32.mrf.mxu0
  %v6010 = vpop.f32.mrf.mxu0
  %v6011 = vadd.f32 0.0, %v6010
  %v6012 = vpop.f32.mrf.mxu0
  %6013 = vmatprep.mubr.bf16.mxu0 0
  %6014 = vmatmul.mubr.bf16.gmra.mxu0 %v5843
  %v6015 = vpop.f32.mrf.mxu0
  %v6016 = vadd.f32 0.0, %v6015
  %v6017 = vpop.f32.mrf.mxu0
  %v6018 = vpop.f32.mrf.mxu0
  %v6019 = vadd.f32 0.0, %v6018
  %v6020 = vpop.f32.mrf.mxu0
  %6021 = vmatprep.mubr.bf16.mxu0 0
  %6022 = vmatmul.mubr.bf16.gmra.mxu0 %v5846
  %v6023 = vpop.f32.mrf.mxu0
  %v6024 = vadd.f32 0.0, %v6023
  %v6025 = vpop.f32.mrf.mxu0
  %v6026 = vpop.f32.mrf.mxu0
  %v6027 = vadd.f32 0.0, %v6026
  %v6028 = vpop.f32.mrf.mxu0
  %6029 = vmatprep.mubr.bf16.mxu0 0
  %6030 = vmatmul.mubr.bf16.gmra.mxu0 %v5849
  %v6031 = vpop.f32.mrf.mxu0
  %v6032 = vadd.f32 0.0, %v6031
  %v6033 = vpop.f32.mrf.mxu0
  %v6034 = vpop.f32.mrf.mxu0
  %v6035 = vadd.f32 0.0, %v6034
  %v6036 = vpop.f32.mrf.mxu0
  %6037 = vmatprep.mubr.bf16.mxu0 0
  %6038 = vmatmul.mubr.bf16.gmra.mxu0 %v5852
  %v6039 = vpop.f32.mrf.mxu0
  %v6040 = vadd.f32 0.0, %v6039
  %v6041 = vpop.f32.mrf.mxu0
  %v6042 = vpop.f32.mrf.mxu0
  %v6043 = vadd.f32 0.0, %v6042
  %v6044 = vpop.f32.mrf.mxu0
  %6045 = vmatprep.mubr.bf16.mxu0 0
  %6046 = vmatmul.mubr.bf16.gmra.mxu0 %v5855
  %v6047 = vpop.f32.mrf.mxu0
  %v6048 = vadd.f32 0.0, %v6047
  %v6049 = vpop.f32.mrf.mxu0
  %v6050 = vpop.f32.mrf.mxu0
  %v6051 = vadd.f32 0.0, %v6050
  %v6052 = vpop.f32.mrf.mxu0
  %6053 = vmatprep.mubr.bf16.mxu0 0
  %6054 = vmatmul.mubr.bf16.gmra.mxu0 %v5858
  %v6055 = vpop.f32.mrf.mxu0
  %v6056 = vadd.f32 0.0, %v6055
  %v6057 = vpop.f32.mrf.mxu0
  %v6058 = vpop.f32.mrf.mxu0
  %v6059 = vadd.f32 0.0, %v6058
  %v6060 = vpop.f32.mrf.mxu0
  %6061 = vmatprep.mubr.bf16.mxu0 0
  %6062 = vmatmul.mubr.bf16.gmra.mxu0 %v5861
  %v6063 = vpop.f32.mrf.mxu0
  %v6064 = vadd.f32 0.0, %v6063
  %v6065 = vpop.f32.mrf.mxu0
  %v6066 = vpop.f32.mrf.mxu0
  %v6067 = vadd.f32 0.0, %v6066
  %v6068 = vpop.f32.mrf.mxu0
  %6069 = vmatprep.mubr.bf16.mxu0 0
  %6070 = vmatmul.mubr.bf16.gmra.mxu0 %v5864
  %v6071 = vpop.f32.mrf.mxu0
  %v6072 = vadd.f32 0.0, %v6071
  %v6073 = vpop.f32.mrf.mxu0
  %v6074 = vpop.f32.mrf.mxu0
  %v6075 = vadd.f32 0.0, %v6074
  %v6076 = vpop.f32.mrf.mxu0
  %6077 = vmatprep.mubr.bf16.mxu0 0
  %6078 = vmatmul.mubr.bf16.gmra.mxu0 %v5867
  %v6079 = vpop.f32.mrf.mxu0
  %v6080 = vadd.f32 0.0, %v6079
  %v6081 = vpop.f32.mrf.mxu0
  %v6082 = vpop.f32.mrf.mxu0
  %v6083 = vadd.f32 0.0, %v6082
  %v6084 = vpop.f32.mrf.mxu0
  %6085 = vmatprep.mubr.bf16.mxu0 0
  %6086 = vmatmul.mubr.bf16.gmra.mxu0 %v5870
  %v6087 = vpop.f32.mrf.mxu0
  %v6088 = vadd.f32 0.0, %v6087
  %v6089 = vpop.f32.mrf.mxu0
  %v6090 = vpop.f32.mrf.mxu0
  %v6091 = vadd.f32 0.0, %v6090
  %v6092 = vpop.f32.mrf.mxu0
  %6093 = vmatprep.mubr.bf16.mxu0 0
  %6094 = vmatmul.mubr.bf16.gmra.mxu0 %v5873
  %v6095 = vpop.f32.mrf.mxu0
  %v6096 = vadd.f32 0.0, %v6095
  %v6097 = vpop.f32.mrf.mxu0
  %v6098 = vpop.f32.mrf.mxu0
  %v6099 = vadd.f32 0.0, %v6098
  %v6100 = vpop.f32.mrf.mxu0
  %6101 = vmatprep.mubr.bf16.mxu0 0
  %6102 = vmatmul.mubr.bf16.gmra.mxu0 %v5876
  %v6103 = vpop.f32.mrf.mxu0
  %v6104 = vadd.f32 0.0, %v6103
  %v6105 = vpop.f32.mrf.mxu0
  %v6106 = vpop.f32.mrf.mxu0
  %v6107 = vadd.f32 0.0, %v6106
  %v6108 = vpop.f32.mrf.mxu0
  %6109 = vmatprep.mubr.bf16.mxu0 0
  %6110 = vmatmul.mubr.bf16.gmra.mxu0 %v5879
  %v6111 = vpop.f32.mrf.mxu0
  %v6112 = vadd.f32 0.0, %v6111
  %v6113 = vpop.f32.mrf.mxu0
  %v6114 = vpop.f32.mrf.mxu0
  %v6115 = vadd.f32 0.0, %v6114
  %v6116 = vpop.f32.mrf.mxu0
  %6117 = vmatprep.mubr.bf16.mxu0 0
  %6118 = vmatmul.mubr.bf16.gmra.mxu0 %v5882
  %v6119 = vpop.f32.mrf.mxu0
  %v6120 = vadd.f32 0.0, %v6119
  %v6121 = vpop.f32.mrf.mxu0
  %v6122 = vpop.f32.mrf.mxu0
  %v6123 = vadd.f32 0.0, %v6122
  %v6124 = vpop.f32.mrf.mxu0
  %6125 = vmatprep.mubr.bf16.mxu0 0
  %6126 = vmatmul.mubr.bf16.gmra.mxu0 %v5885
  %v6127 = vpop.f32.mrf.mxu0
  %v6128 = vadd.f32 0.0, %v6127
  %v6129 = vpop.f32.mrf.mxu0
  %v6130 = vpop.f32.mrf.mxu0
  %v6131 = vadd.f32 0.0, %v6130
  %v6132 = vpop.f32.mrf.mxu0
  %6133 = vmatprep.mubr.bf16.mxu0 0
  %6134 = vmatmul.mubr.bf16.gmra.mxu0 %v5888
  %v6135 = vpop.f32.mrf.mxu0
  %v6136 = vadd.f32 0.0, %v6135
  %v6137 = vpop.f32.mrf.mxu0
  %v6138 = vpop.f32.mrf.mxu0
  %v6139 = vadd.f32 0.0, %v6138
  %v6140 = vpop.f32.mrf.mxu0
  %6141 = vmatprep.mubr.bf16.mxu0 0
  %6142 = vmatmul.mubr.bf16.gmra.mxu0 %v5891
  %v6143 = vpop.f32.mrf.mxu0
  %v6144 = vadd.f32 0.0, %v6143
  %v6145 = vpop.f32.mrf.mxu0
  %v6146 = vpop.f32.mrf.mxu0
  %v6147 = vadd.f32 0.0, %v6146
  %v6148 = vpop.f32.mrf.mxu0
  %6149 = vmatprep.mubr.bf16.mxu0 0
  %6150 = vmatmul.mubr.bf16.gmra.mxu0 %v5894
  %v6151 = vpop.f32.mrf.mxu0
  %v6152 = vadd.f32 0.0, %v6151
  %v6153 = vpop.f32.mrf.mxu0
  %v6154 = vpop.f32.mrf.mxu0
  %v6155 = vadd.f32 0.0, %v6154
  %v6156 = vpop.f32.mrf.mxu0
  %6157 = vmatprep.mubr.bf16.mxu0 0
  %6158 = vmatmul.mubr.bf16.gmra.mxu0 %v5897
  %v6159 = vpop.f32.mrf.mxu0
  %v6160 = vadd.f32 0.0, %v6159
  %v6161 = vpop.f32.mrf.mxu0
  %v6162 = vpop.f32.mrf.mxu0
  %v6163 = vadd.f32 0.0, %v6162
  %v6164 = vpop.f32.mrf.mxu0
  %6165 = vmatprep.mubr.bf16.mxu0 0
  %6166 = vmatmul.mubr.bf16.gmra.mxu0 %v5900
  %v6167 = vpop.f32.mrf.mxu0
  %v6168 = vadd.f32 0.0, %v6167
  %v6169 = vpop.f32.mrf.mxu0
  %v6170 = vpop.f32.mrf.mxu0
  %v6171 = vadd.f32 0.0, %v6170
  %v6172 = vpop.f32.mrf.mxu0
  %6173 = vmatprep.mubr.bf16.mxu0 0
  %6174 = vmatmul.mubr.bf16.gmra.mxu0 %v5903
  %v6175 = vpop.f32.mrf.mxu0
  %v6176 = vadd.f32 0.0, %v6175
  %v6177 = vpop.f32.mrf.mxu0
  %v6178 = vpop.f32.mrf.mxu0
  %v6179 = vadd.f32 0.0, %v6178
  %v6180 = vpop.f32.mrf.mxu0
  %6181 = vmatprep.mubr.bf16.mxu0 0
  %6182 = vmatmul.mubr.bf16.gmra.mxu0 %v5906
  %v6183 = vpop.f32.mrf.mxu0
  %v6184 = vadd.f32 0.0, %v6183
  %v6185 = vpop.f32.mrf.mxu0
  %v6186 = vpop.f32.mrf.mxu0
  %v6187 = vadd.f32 0.0, %v6186
  %v6188 = vpop.f32.mrf.mxu0
  %6189 = vmatprep.mubr.bf16.mxu0 0
  %6190 = vmatmul.mubr.bf16.gmra.mxu0 %v5909
  %v6191 = vpop.f32.mrf.mxu0
  %v6192 = vadd.f32 0.0, %v6191
  %v6193 = vpop.f32.mrf.mxu0
  %v6194 = vpop.f32.mrf.mxu0
  %v6195 = vadd.f32 0.0, %v6194
  %v6196 = vpop.f32.mrf.mxu0
  %6197 = vmatprep.mubr.bf16.mxu0 0
  %6198 = vmatmul.mubr.bf16.gmra.mxu0 %v5912
  %v6199 = vpop.f32.mrf.mxu0
  %v6200 = vadd.f32 0.0, %v6199
  %v6201 = vpop.f32.mrf.mxu0
  %v6202 = vpop.f32.mrf.mxu0
  %v6203 = vadd.f32 0.0, %v6202
  %v6204 = vpop.f32.mrf.mxu0
  %6205 = vdwg.mxu0
  %v6207 = vsel %vm40, %v5687, 0
  %v6210 = vsel %vm40, %v5688, 0
  %v6213 = vsel %vm40, %v5689, 0
  %v6216 = vsel %vm40, %v5690, 0
  %v6219 = vsel %vm40, %v5691, 0
  %v6222 = vsel %vm40, %v5692, 0
  %v6225 = vsel %vm40, %v5693, 0
  %v6228 = vsel %vm40, %v5694, 0
  %v6231 = vsel %vm40, %v5695, 0
  %v6234 = vsel %vm40, %v5696, 0
  %v6237 = vsel %vm40, %v5697, 0
  %v6240 = vsel %vm40, %v5698, 0
  %v6243 = vsel %vm40, %v5699, 0
  %v6246 = vsel %vm40, %v5700, 0
  %v6249 = vsel %vm40, %v5701, 0
  %v6252 = vsel %vm40, %v5702, 0
  %v6255 = vsel %vm40, %v5703, 0
  %v6258 = vsel %vm40, %v5704, 0
  %v6261 = vsel %vm40, %v5705, 0
  %v6264 = vsel %vm40, %v5706, 0
  %v6267 = vsel %vm40, %v5707, 0
  %v6270 = vsel %vm40, %v5708, 0
  %v6273 = vsel %vm40, %v5709, 0
  %v6276 = vsel %vm40, %v5710, 0
  %v6279 = vsel %vm40, %v5711, 0
  %v6282 = vsel %vm40, %v5712, 0
  %v6285 = vsel %vm40, %v5713, 0
  %v6288 = vsel %vm40, %v5714, 0
  %v6291 = vsel %vm40, %v5715, 0
  %v6294 = vsel %vm40, %v5716, 0
  %v6297 = vsel %vm40, %v5717, 0
  %v6300 = vsel %vm40, %v5718, 0
  %v6303 = vsel %vm548, %v5719, 0
  %6305 = vmatprep.subr.bf16.mxu0 0
  %6306 = vmatpush1.bf16.msra.mxu0 0
  %6307 = vmatprep.subr.bf16.mxu0 0
  %6308 = vmatpush1.bf16.msra.mxu0 0
  %6309 = vmatprep.subr.bf16.mxu0 0
  %6310 = vmatpush1.bf16.msra.mxu0 0
  %6311 = vmatprep.subr.bf16.mxu0 0
  %6312 = vmatpush1.bf16.msra.mxu0 0
  %6313 = vmatprep.subr.bf16.mxu0 0
  %6314 = vmatpush1.bf16.msra.mxu0 0
  %6315 = vmatprep.subr.bf16.mxu0 0
  %6316 = vmatpush1.bf16.msra.mxu0 0
  %6317 = vmatprep.subr.bf16.mxu0 0
  %6318 = vmatpush1.bf16.msra.mxu0 0
  %6319 = vmatprep.subr.bf16.mxu0 0
  %6320 = vmatpush1.bf16.msra.mxu0 %v6303
  %6321 = vmatprep.subr.bf16.mxu0 0
  %6322 = vmatpush2.bf16.msra.mxu0 0
  %6323 = vmatprep.subr.bf16.mxu0 0
  %6324 = vmatpush2.bf16.msra.mxu0 0
  %6325 = vmatprep.subr.bf16.mxu0 0
  %6326 = vmatpush2.bf16.msra.mxu0 0
  %6327 = vmatprep.subr.bf16.mxu0 0
  %6328 = vmatpush2.bf16.msra.mxu0 0
  %6329 = vmatprep.subr.bf16.mxu0 0
  %6330 = vmatpush2.bf16.msra.mxu0 0
  %6331 = vmatprep.subr.bf16.mxu0 0
  %6332 = vmatpush2.bf16.msra.mxu0 0
  %6333 = vmatprep.subr.bf16.mxu0 0
  %6334 = vmatpush2.bf16.msra.mxu0 0
  %6335 = vmatprep.subr.bf16.mxu0 0
  %6336 = vmatpush2.bf16.msra.mxu0 0
  %6337 = vmatprep.mubr.bf16.mxu0 0
  %6338 = vmatmul.mubr.bf16.gmra.mxu0 %v6207
  %v6339 = vpop.f32.mrf.mxu0
  %v6340 = vadd.f32 %v5952, %v6339
  %v6341 = vpop.f32.mrf.mxu0
  %v6342 = vpop.f32.mrf.mxu0
  %v6343 = vadd.f32 %v5955, %v6342
  %v6344 = vpop.f32.mrf.mxu0
  %6345 = vmatprep.mubr.bf16.mxu0 0
  %6346 = vmatmul.mubr.bf16.gmra.mxu0 %v6210
  %v6347 = vpop.f32.mrf.mxu0
  %v6348 = vadd.f32 %v5960, %v6347
  %v6349 = vpop.f32.mrf.mxu0
  %v6350 = vpop.f32.mrf.mxu0
  %v6351 = vadd.f32 %v5963, %v6350
  %v6352 = vpop.f32.mrf.mxu0
  %6353 = vmatprep.mubr.bf16.mxu0 0
  %6354 = vmatmul.mubr.bf16.gmra.mxu0 %v6213
  %v6355 = vpop.f32.mrf.mxu0
  %v6356 = vadd.f32 %v5968, %v6355
  %v6357 = vpop.f32.mrf.mxu0
  %v6358 = vpop.f32.mrf.mxu0
  %v6359 = vadd.f32 %v5971, %v6358
  %v6360 = vpop.f32.mrf.mxu0
  %6361 = vmatprep.mubr.bf16.mxu0 0
  %6362 = vmatmul.mubr.bf16.gmra.mxu0 %v6216
  %v6363 = vpop.f32.mrf.mxu0
  %v6364 = vadd.f32 %v5976, %v6363
  %v6365 = vpop.f32.mrf.mxu0
  %v6366 = vpop.f32.mrf.mxu0
  %v6367 = vadd.f32 %v5979, %v6366
  %v6368 = vpop.f32.mrf.mxu0
  %6369 = vmatprep.mubr.bf16.mxu0 0
  %6370 = vmatmul.mubr.bf16.gmra.mxu0 %v6219
  %v6371 = vpop.f32.mrf.mxu0
  %v6372 = vadd.f32 %v5984, %v6371
  %v6373 = vpop.f32.mrf.mxu0
  %v6374 = vpop.f32.mrf.mxu0
  %v6375 = vadd.f32 %v5987, %v6374
  %v6376 = vpop.f32.mrf.mxu0
  %6377 = vmatprep.mubr.bf16.mxu0 0
  %6378 = vmatmul.mubr.bf16.gmra.mxu0 %v6222
  %v6379 = vpop.f32.mrf.mxu0
  %v6380 = vadd.f32 %v5992, %v6379
  %v6381 = vpop.f32.mrf.mxu0
  %v6382 = vpop.f32.mrf.mxu0
  %v6383 = vadd.f32 %v5995, %v6382
  %v6384 = vpop.f32.mrf.mxu0
  %6385 = vmatprep.mubr.bf16.mxu0 0
  %6386 = vmatmul.mubr.bf16.gmra.mxu0 %v6225
  %v6387 = vpop.f32.mrf.mxu0
  %v6388 = vadd.f32 %v6000, %v6387
  %v6389 = vpop.f32.mrf.mxu0
  %v6390 = vpop.f32.mrf.mxu0
  %v6391 = vadd.f32 %v6003, %v6390
  %v6392 = vpop.f32.mrf.mxu0
  %6393 = vmatprep.mubr.bf16.mxu0 0
  %6394 = vmatmul.mubr.bf16.gmra.mxu0 %v6228
  %v6395 = vpop.f32.mrf.mxu0
  %v6396 = vadd.f32 %v6008, %v6395
  %v6397 = vpop.f32.mrf.mxu0
  %v6398 = vpop.f32.mrf.mxu0
  %v6399 = vadd.f32 %v6011, %v6398
  %v6400 = vpop.f32.mrf.mxu0
  %6401 = vmatprep.mubr.bf16.mxu0 0
  %6402 = vmatmul.mubr.bf16.gmra.mxu0 %v6231
  %v6403 = vpop.f32.mrf.mxu0
  %v6404 = vadd.f32 %v6016, %v6403
  %v6405 = vpop.f32.mrf.mxu0
  %v6406 = vpop.f32.mrf.mxu0
  %v6407 = vadd.f32 %v6019, %v6406
  %v6408 = vpop.f32.mrf.mxu0
  %6409 = vmatprep.mubr.bf16.mxu0 0
  %6410 = vmatmul.mubr.bf16.gmra.mxu0 %v6234
  %v6411 = vpop.f32.mrf.mxu0
  %v6412 = vadd.f32 %v6024, %v6411
  %v6413 = vpop.f32.mrf.mxu0
  %v6414 = vpop.f32.mrf.mxu0
  %v6415 = vadd.f32 %v6027, %v6414
  %v6416 = vpop.f32.mrf.mxu0
  %6417 = vmatprep.mubr.bf16.mxu0 0
  %6418 = vmatmul.mubr.bf16.gmra.mxu0 %v6237
  %v6419 = vpop.f32.mrf.mxu0
  %v6420 = vadd.f32 %v6032, %v6419
  %v6421 = vpop.f32.mrf.mxu0
  %v6422 = vpop.f32.mrf.mxu0
  %v6423 = vadd.f32 %v6035, %v6422
  %v6424 = vpop.f32.mrf.mxu0
  %6425 = vmatprep.mubr.bf16.mxu0 0
  %6426 = vmatmul.mubr.bf16.gmra.mxu0 %v6240
  %v6427 = vpop.f32.mrf.mxu0
  %v6428 = vadd.f32 %v6040, %v6427
  %v6429 = vpop.f32.mrf.mxu0
  %v6430 = vpop.f32.mrf.mxu0
  %v6431 = vadd.f32 %v6043, %v6430
  %v6432 = vpop.f32.mrf.mxu0
  %6433 = vmatprep.mubr.bf16.mxu0 0
  %6434 = vmatmul.mubr.bf16.gmra.mxu0 %v6243
  %v6435 = vpop.f32.mrf.mxu0
  %v6436 = vadd.f32 %v6048, %v6435
  %v6437 = vpop.f32.mrf.mxu0
  %v6438 = vpop.f32.mrf.mxu0
  %v6439 = vadd.f32 %v6051, %v6438
  %v6440 = vpop.f32.mrf.mxu0
  %6441 = vmatprep.mubr.bf16.mxu0 0
  %6442 = vmatmul.mubr.bf16.gmra.mxu0 %v6246
  %v6443 = vpop.f32.mrf.mxu0
  %v6444 = vadd.f32 %v6056, %v6443
  %v6445 = vpop.f32.mrf.mxu0
  %v6446 = vpop.f32.mrf.mxu0
  %v6447 = vadd.f32 %v6059, %v6446
  %v6448 = vpop.f32.mrf.mxu0
  %6449 = vmatprep.mubr.bf16.mxu0 0
  %6450 = vmatmul.mubr.bf16.gmra.mxu0 %v6249
  %v6451 = vpop.f32.mrf.mxu0
  %v6452 = vadd.f32 %v6064, %v6451
  %v6453 = vpop.f32.mrf.mxu0
  %v6454 = vpop.f32.mrf.mxu0
  %v6455 = vadd.f32 %v6067, %v6454
  %v6456 = vpop.f32.mrf.mxu0
  %6457 = vmatprep.mubr.bf16.mxu0 0
  %6458 = vmatmul.mubr.bf16.gmra.mxu0 %v6252
  %v6459 = vpop.f32.mrf.mxu0
  %v6460 = vadd.f32 %v6072, %v6459
  %v6461 = vpop.f32.mrf.mxu0
  %v6462 = vpop.f32.mrf.mxu0
  %v6463 = vadd.f32 %v6075, %v6462
  %v6464 = vpop.f32.mrf.mxu0
  %6465 = vmatprep.mubr.bf16.mxu0 0
  %6466 = vmatmul.mubr.bf16.gmra.mxu0 %v6255
  %v6467 = vpop.f32.mrf.mxu0
  %v6468 = vadd.f32 %v6080, %v6467
  %v6469 = vpop.f32.mrf.mxu0
  %v6470 = vpop.f32.mrf.mxu0
  %v6471 = vadd.f32 %v6083, %v6470
  %v6472 = vpop.f32.mrf.mxu0
  %6473 = vmatprep.mubr.bf16.mxu0 0
  %6474 = vmatmul.mubr.bf16.gmra.mxu0 %v6258
  %v6475 = vpop.f32.mrf.mxu0
  %v6476 = vadd.f32 %v6088, %v6475
  %v6477 = vpop.f32.mrf.mxu0
  %v6478 = vpop.f32.mrf.mxu0
  %v6479 = vadd.f32 %v6091, %v6478
  %v6480 = vpop.f32.mrf.mxu0
  %6481 = vmatprep.mubr.bf16.mxu0 0
  %6482 = vmatmul.mubr.bf16.gmra.mxu0 %v6261
  %v6483 = vpop.f32.mrf.mxu0
  %v6484 = vadd.f32 %v6096, %v6483
  %v6485 = vpop.f32.mrf.mxu0
  %v6486 = vpop.f32.mrf.mxu0
  %v6487 = vadd.f32 %v6099, %v6486
  %v6488 = vpop.f32.mrf.mxu0
  %6489 = vmatprep.mubr.bf16.mxu0 0
  %6490 = vmatmul.mubr.bf16.gmra.mxu0 %v6264
  %v6491 = vpop.f32.mrf.mxu0
  %v6492 = vadd.f32 %v6104, %v6491
  %v6493 = vpop.f32.mrf.mxu0
  %v6494 = vpop.f32.mrf.mxu0
  %v6495 = vadd.f32 %v6107, %v6494
  %v6496 = vpop.f32.mrf.mxu0
  %6497 = vmatprep.mubr.bf16.mxu0 0
  %6498 = vmatmul.mubr.bf16.gmra.mxu0 %v6267
  %v6499 = vpop.f32.mrf.mxu0
  %v6500 = vadd.f32 %v6112, %v6499
  %v6501 = vpop.f32.mrf.mxu0
  %v6502 = vpop.f32.mrf.mxu0
  %v6503 = vadd.f32 %v6115, %v6502
  %v6504 = vpop.f32.mrf.mxu0
  %6505 = vmatprep.mubr.bf16.mxu0 0
  %6506 = vmatmul.mubr.bf16.gmra.mxu0 %v6270
  %v6507 = vpop.f32.mrf.mxu0
  %v6508 = vadd.f32 %v6120, %v6507
  %v6509 = vpop.f32.mrf.mxu0
  %v6510 = vpop.f32.mrf.mxu0
  %v6511 = vadd.f32 %v6123, %v6510
  %v6512 = vpop.f32.mrf.mxu0
  %6513 = vmatprep.mubr.bf16.mxu0 0
  %6514 = vmatmul.mubr.bf16.gmra.mxu0 %v6273
  %v6515 = vpop.f32.mrf.mxu0
  %v6516 = vadd.f32 %v6128, %v6515
  %v6517 = vpop.f32.mrf.mxu0
  %v6518 = vpop.f32.mrf.mxu0
  %v6519 = vadd.f32 %v6131, %v6518
  %v6520 = vpop.f32.mrf.mxu0
  %6521 = vmatprep.mubr.bf16.mxu0 0
  %6522 = vmatmul.mubr.bf16.gmra.mxu0 %v6276
  %v6523 = vpop.f32.mrf.mxu0
  %v6524 = vadd.f32 %v6136, %v6523
  %v6525 = vpop.f32.mrf.mxu0
  %v6526 = vpop.f32.mrf.mxu0
  %v6527 = vadd.f32 %v6139, %v6526
  %v6528 = vpop.f32.mrf.mxu0
  %6529 = vmatprep.mubr.bf16.mxu0 0
  %6530 = vmatmul.mubr.bf16.gmra.mxu0 %v6279
  %v6531 = vpop.f32.mrf.mxu0
  %v6532 = vadd.f32 %v6144, %v6531
  %v6533 = vpop.f32.mrf.mxu0
  %v6534 = vpop.f32.mrf.mxu0
  %v6535 = vadd.f32 %v6147, %v6534
  %v6536 = vpop.f32.mrf.mxu0
  %6537 = vmatprep.mubr.bf16.mxu0 0
  %6538 = vmatmul.mubr.bf16.gmra.mxu0 %v6282
  %v6539 = vpop.f32.mrf.mxu0
  %v6540 = vadd.f32 %v6152, %v6539
  %v6541 = vpop.f32.mrf.mxu0
  %v6542 = vpop.f32.mrf.mxu0
  %v6543 = vadd.f32 %v6155, %v6542
  %v6544 = vpop.f32.mrf.mxu0
  %6545 = vmatprep.mubr.bf16.mxu0 0
  %6546 = vmatmul.mubr.bf16.gmra.mxu0 %v6285
  %v6547 = vpop.f32.mrf.mxu0
  %v6548 = vadd.f32 %v6160, %v6547
  %v6549 = vpop.f32.mrf.mxu0
  %v6550 = vpop.f32.mrf.mxu0
  %v6551 = vadd.f32 %v6163, %v6550
  %v6552 = vpop.f32.mrf.mxu0
  %6553 = vmatprep.mubr.bf16.mxu0 0
  %6554 = vmatmul.mubr.bf16.gmra.mxu0 %v6288
  %v6555 = vpop.f32.mrf.mxu0
  %v6556 = vadd.f32 %v6168, %v6555
  %v6557 = vpop.f32.mrf.mxu0
  %v6558 = vpop.f32.mrf.mxu0
  %v6559 = vadd.f32 %v6171, %v6558
  %v6560 = vpop.f32.mrf.mxu0
  %6561 = vmatprep.mubr.bf16.mxu0 0
  %6562 = vmatmul.mubr.bf16.gmra.mxu0 %v6291
  %v6563 = vpop.f32.mrf.mxu0
  %v6564 = vadd.f32 %v6176, %v6563
  %v6565 = vpop.f32.mrf.mxu0
  %v6566 = vpop.f32.mrf.mxu0
  %v6567 = vadd.f32 %v6179, %v6566
  %v6568 = vpop.f32.mrf.mxu0
  %6569 = vmatprep.mubr.bf16.mxu0 0
  %6570 = vmatmul.mubr.bf16.gmra.mxu0 %v6294
  %v6571 = vpop.f32.mrf.mxu0
  %v6572 = vadd.f32 %v6184, %v6571
  %v6573 = vpop.f32.mrf.mxu0
  %v6574 = vpop.f32.mrf.mxu0
  %v6575 = vadd.f32 %v6187, %v6574
  %v6576 = vpop.f32.mrf.mxu0
  %6577 = vmatprep.mubr.bf16.mxu0 0
  %6578 = vmatmul.mubr.bf16.gmra.mxu0 %v6297
  %v6579 = vpop.f32.mrf.mxu0
  %v6580 = vadd.f32 %v6192, %v6579
  %v6581 = vpop.f32.mrf.mxu0
  %v6582 = vpop.f32.mrf.mxu0
  %v6583 = vadd.f32 %v6195, %v6582
  %v6584 = vpop.f32.mrf.mxu0
  %6585 = vmatprep.mubr.bf16.mxu0 0
  %6586 = vmatmul.mubr.bf16.gmra.mxu0 %v6300
  %v6587 = vpop.f32.mrf.mxu0
  %v6588 = vadd.f32 %v6200, %v6587
  %v6589 = vpop.f32.mrf.mxu0
  %v6590 = vpop.f32.mrf.mxu0
  %v6591 = vadd.f32 %v6203, %v6590
  %v6592 = vpop.f32.mrf.mxu0
  %6593 = vdwg.mxu0
  %v6594 = vld [vmem:[#allocation2 + $0x2] sm:$0xff]
  %v6595 = vld [vmem:[#allocation2 + $0xa] sm:$0xff]
  %v6596 = vld [vmem:[#allocation2 + $0x1a] sm:$0xff]
  %v6597 = vld [vmem:[#allocation2 + $0x22] sm:$0xff]
  %v6598 = vld [vmem:[#allocation2 + $0x32] sm:$0xff]
  %v6599 = vld [vmem:[#allocation2 + $0x3a] sm:$0xff]
  %v6600 = vld [vmem:[#allocation2 + $0x4a] sm:$0xff]
  %v6601 = vld [vmem:[#allocation2 + $0x52] sm:$0xff]
  %v6602 = vld [vmem:[#allocation2 + $0x62] sm:$0xff]
  %v6603 = vld [vmem:[#allocation2 + $0x6a] sm:$0xff]
  %v6604 = vld [vmem:[#allocation2 + $0x7a] sm:$0xff]
  %v6605 = vld [vmem:[#allocation2 + $0x82] sm:$0xff]
  %v6606 = vld [vmem:[#allocation2 + $0x92] sm:$0xff]
  %v6607 = vld [vmem:[#allocation2 + $0x9a] sm:$0xff]
  %v6608 = vld [vmem:[#allocation2 + $0xaa] sm:$0xff]
  %v6609 = vld [vmem:[#allocation2 + $0xb2] sm:$0xff]
  %v6610 = vld [vmem:[#allocation2 + $0xc2] sm:$0xff]
  %v6611 = vld [vmem:[#allocation2 + $0xca] sm:$0xff]
  %v6612 = vld [vmem:[#allocation2 + $0xda] sm:$0xff]
  %v6613 = vld [vmem:[#allocation2 + $0xe2] sm:$0xff]
  %v6614 = vld [vmem:[#allocation2 + $0xf2] sm:$0xff]
  %v6615 = vld [vmem:[#allocation2 + $0xfa] sm:$0xff]
  %v6616 = vld [vmem:[#allocation2 + $0x10a] sm:$0xff]
  %v6617 = vld [vmem:[#allocation2 + $0x112] sm:$0xff]
  %v6618 = vld [vmem:[#allocation2 + $0x122] sm:$0xff]
  %v6619 = vld [vmem:[#allocation2 + $0x12a] sm:$0xff]
  %v6620 = vld [vmem:[#allocation2 + $0x13a] sm:$0xff]
  %v6621 = vld [vmem:[#allocation2 + $0x142] sm:$0xff]
  %v6622 = vld [vmem:[#allocation2 + $0x152] sm:$0xff]
  %v6623 = vld [vmem:[#allocation2 + $0x15a] sm:$0xff]
  %v6624 = vld [vmem:[#allocation2 + $0x16a] sm:$0xff]
  %v6625 = vld [vmem:[#allocation2 + $0x172] sm:$0xff]
  %v6626 = vld [vmem:[#allocation2 + $0x1b2] sm:$0xff]
  %v6627 = vld [vmem:[#allocation2 + $0x1ba] sm:$0xff]
  %v6628 = vld [vmem:[#allocation2 + $0x1ca] sm:$0xff]
  %v6629 = vld [vmem:[#allocation2 + $0x1d2] sm:$0xff]
  %v6630 = vld [vmem:[#allocation2 + $0x1e2] sm:$0xff]
  %v6631 = vld [vmem:[#allocation2 + $0x1ea] sm:$0xff]
  %v6632 = vld [vmem:[#allocation2 + $0x1fa] sm:$0xff]
  %v6633 = vld [vmem:[#allocation2 + $0x202] sm:$0xff]
  %v6634 = vld [vmem:[#allocation2 + $0x212] sm:$0xff]
  %v6635 = vld [vmem:[#allocation2 + $0x21a] sm:$0xff]
  %v6636 = vld [vmem:[#allocation2 + $0x22a] sm:$0xff]
  %v6637 = vld [vmem:[#allocation2 + $0x232] sm:$0xff]
  %v6638 = vld [vmem:[#allocation2 + $0x242] sm:$0xff]
  %v6639 = vld [vmem:[#allocation2 + $0x24a] sm:$0xff]
  %v6640 = vld [vmem:[#allocation2 + $0x25a] sm:$0xff]
  %v6641 = vld [vmem:[#allocation2 + $0x262] sm:$0xff]
  %v6642 = vld [vmem:[#allocation2 + $0x272] sm:$0xff]
  %v6643 = vld [vmem:[#allocation2 + $0x27a] sm:$0xff]
  %v6644 = vld [vmem:[#allocation2 + $0x28a] sm:$0xff]
  %v6645 = vld [vmem:[#allocation2 + $0x292] sm:$0xff]
  %v6646 = vld [vmem:[#allocation2 + $0x2a2] sm:$0xff]
  %v6647 = vld [vmem:[#allocation2 + $0x2aa] sm:$0xff]
  %v6648 = vld [vmem:[#allocation2 + $0x2ba] sm:$0xff]
  %v6649 = vld [vmem:[#allocation2 + $0x2c2] sm:$0xff]
  %v6650 = vld [vmem:[#allocation2 + $0x2d2] sm:$0xff]
  %v6651 = vld [vmem:[#allocation2 + $0x2da] sm:$0xff]
  %v6652 = vld [vmem:[#allocation2 + $0x2ea] sm:$0xff]
  %v6653 = vld [vmem:[#allocation2 + $0x2f2] sm:$0xff]
  %v6654 = vld [vmem:[#allocation2 + $0x302] sm:$0xff]
  %v6655 = vld [vmem:[#allocation2 + $0x30a] sm:$0xff]
  %v6656 = vld [vmem:[#allocation2 + $0x31a] sm:$0xff]
  %v6657 = vld [vmem:[#allocation2 + $0x322] sm:$0xff]
  %v6658 = vpack.c.bf16 %v6595, %v6594
  %v6659 = vpack.c.bf16 %v6597, %v6596
  %v6660 = vpack.c.bf16 %v6599, %v6598
  %v6661 = vpack.c.bf16 %v6601, %v6600
  %v6662 = vpack.c.bf16 %v6603, %v6602
  %v6663 = vpack.c.bf16 %v6605, %v6604
  %v6664 = vpack.c.bf16 %v6607, %v6606
  %v6665 = vpack.c.bf16 %v6609, %v6608
  %v6666 = vpack.c.bf16 %v6611, %v6610
  %v6667 = vpack.c.bf16 %v6613, %v6612
  %v6668 = vpack.c.bf16 %v6615, %v6614
  %v6669 = vpack.c.bf16 %v6617, %v6616
  %v6670 = vpack.c.bf16 %v6619, %v6618
  %v6671 = vpack.c.bf16 %v6621, %v6620
  %v6672 = vpack.c.bf16 %v6623, %v6622
  %v6673 = vpack.c.bf16 %v6625, %v6624
  %v6674 = vpack.c.bf16 %v6627, %v6626
  %v6675 = vpack.c.bf16 %v6629, %v6628
  %v6676 = vpack.c.bf16 %v6631, %v6630
  %v6677 = vpack.c.bf16 %v6633, %v6632
  %v6678 = vpack.c.bf16 %v6635, %v6634
  %v6679 = vpack.c.bf16 %v6637, %v6636
  %v6680 = vpack.c.bf16 %v6639, %v6638
  %v6681 = vpack.c.bf16 %v6641, %v6640
  %v6682 = vpack.c.bf16 %v6643, %v6642
  %v6683 = vpack.c.bf16 %v6645, %v6644
  %v6684 = vpack.c.bf16 %v6647, %v6646
  %v6685 = vpack.c.bf16 %v6649, %v6648
  %v6686 = vpack.c.bf16 %v6651, %v6650
  %v6687 = vpack.c.bf16 %v6653, %v6652
  %v6688 = vpack.c.bf16 %v6655, %v6654
  %v6689 = vpack.c.bf16 %v6657, %v6656
  %s6690 = scalar_lea.vmem %s2, 4
  %v6691 = vld [vmem:[%s6690] sm:$0x3]
  %v6693 = vsel %vm40, %v6658, 0
  %v6696 = vsel %vm40, %v6659, 0
  %v6699 = vsel %vm40, %v6660, 0
  %v6702 = vsel %vm40, %v6661, 0
  %v6705 = vsel %vm40, %v6662, 0
  %v6708 = vsel %vm40, %v6663, 0
  %v6711 = vsel %vm40, %v6664, 0
  %v6714 = vsel %vm40, %v6665, 0
  %v6717 = vsel %vm40, %v6666, 0
  %v6720 = vsel %vm40, %v6667, 0
  %v6723 = vsel %vm40, %v6668, 0
  %v6726 = vsel %vm40, %v6669, 0
  %v6729 = vsel %vm40, %v6670, 0
  %v6732 = vsel %vm40, %v6671, 0
  %v6735 = vsel %vm40, %v6672, 0
  %v6738 = vsel %vm40, %v6673, 0
  %v6741 = vsel %vm40, %v6674, 0
  %v6744 = vsel %vm40, %v6675, 0
  %v6747 = vsel %vm40, %v6676, 0
  %v6750 = vsel %vm40, %v6677, 0
  %v6753 = vsel %vm40, %v6678, 0
  %v6756 = vsel %vm40, %v6679, 0
  %v6759 = vsel %vm40, %v6680, 0
  %v6762 = vsel %vm40, %v6681, 0
  %v6765 = vsel %vm40, %v6682, 0
  %v6768 = vsel %vm40, %v6683, 0
  %v6771 = vsel %vm40, %v6684, 0
  %v6774 = vsel %vm40, %v6685, 0
  %v6777 = vsel %vm40, %v6686, 0
  %v6780 = vsel %vm40, %v6687, 0
  %v6783 = vsel %vm40, %v6688, 0
  %v6786 = vsel %vm40, %v6689, 0
  %v6789 = vsel %vm548, %v6691, 0
  %6791 = vmatprep.subr.bf16.mxu0 0
  %6792 = vmatpush1.bf16.msra.mxu0 0
  %6793 = vmatprep.subr.bf16.mxu0 0
  %6794 = vmatpush1.bf16.msra.mxu0 0
  %6795 = vmatprep.subr.bf16.mxu0 0
  %6796 = vmatpush1.bf16.msra.mxu0 0
  %6797 = vmatprep.subr.bf16.mxu0 0
  %6798 = vmatpush1.bf16.msra.mxu0 0
  %6799 = vmatprep.subr.bf16.mxu0 0
  %6800 = vmatpush1.bf16.msra.mxu0 0
  %6801 = vmatprep.subr.bf16.mxu0 0
  %6802 = vmatpush1.bf16.msra.mxu0 0
  %6803 = vmatprep.subr.bf16.mxu0 0
  %6804 = vmatpush1.bf16.msra.mxu0 0
  %6805 = vmatprep.subr.bf16.mxu0 0
  %6806 = vmatpush1.bf16.msra.mxu0 %v6789
  %6807 = vmatprep.subr.bf16.mxu0 0
  %6808 = vmatpush2.bf16.msra.mxu0 0
  %6809 = vmatprep.subr.bf16.mxu0 0
  %6810 = vmatpush2.bf16.msra.mxu0 0
  %6811 = vmatprep.subr.bf16.mxu0 0
  %6812 = vmatpush2.bf16.msra.mxu0 0
  %6813 = vmatprep.subr.bf16.mxu0 0
  %6814 = vmatpush2.bf16.msra.mxu0 0
  %6815 = vmatprep.subr.bf16.mxu0 0
  %6816 = vmatpush2.bf16.msra.mxu0 0
  %6817 = vmatprep.subr.bf16.mxu0 0
  %6818 = vmatpush2.bf16.msra.mxu0 0
  %6819 = vmatprep.subr.bf16.mxu0 0
  %6820 = vmatpush2.bf16.msra.mxu0 0
  %6821 = vmatprep.subr.bf16.mxu0 0
  %6822 = vmatpush2.bf16.msra.mxu0 0
  %6823 = vmatprep.mubr.bf16.mxu0 0
  %6824 = vmatmul.mubr.bf16.gmra.mxu0 %v6693
  %v6825 = vpop.f32.mrf.mxu0
  %v6826 = vadd.f32 0.0, %v6825
  %v6827 = vpop.f32.mrf.mxu0
  %v6828 = vpop.f32.mrf.mxu0
  %v6829 = vadd.f32 0.0, %v6828
  %v6830 = vpop.f32.mrf.mxu0
  %6831 = vmatprep.mubr.bf16.mxu0 0
  %6832 = vmatmul.mubr.bf16.gmra.mxu0 %v6696
  %v6833 = vpop.f32.mrf.mxu0
  %v6834 = vadd.f32 0.0, %v6833
  %v6835 = vpop.f32.mrf.mxu0
  %v6836 = vpop.f32.mrf.mxu0
  %v6837 = vadd.f32 0.0, %v6836
  %v6838 = vpop.f32.mrf.mxu0
  %6839 = vmatprep.mubr.bf16.mxu0 0
  %6840 = vmatmul.mubr.bf16.gmra.mxu0 %v6699
  %v6841 = vpop.f32.mrf.mxu0
  %v6842 = vadd.f32 0.0, %v6841
  %v6843 = vpop.f32.mrf.mxu0
  %v6844 = vpop.f32.mrf.mxu0
  %v6845 = vadd.f32 0.0, %v6844
  %v6846 = vpop.f32.mrf.mxu0
  %6847 = vmatprep.mubr.bf16.mxu0 0
  %6848 = vmatmul.mubr.bf16.gmra.mxu0 %v6702
  %v6849 = vpop.f32.mrf.mxu0
  %v6850 = vadd.f32 0.0, %v6849
  %v6851 = vpop.f32.mrf.mxu0
  %v6852 = vpop.f32.mrf.mxu0
  %v6853 = vadd.f32 0.0, %v6852
  %v6854 = vpop.f32.mrf.mxu0
  %6855 = vmatprep.mubr.bf16.mxu0 0
  %6856 = vmatmul.mubr.bf16.gmra.mxu0 %v6705
  %v6857 = vpop.f32.mrf.mxu0
  %v6858 = vadd.f32 0.0, %v6857
  %v6859 = vpop.f32.mrf.mxu0
  %v6860 = vpop.f32.mrf.mxu0
  %v6861 = vadd.f32 0.0, %v6860
  %v6862 = vpop.f32.mrf.mxu0
  %6863 = vmatprep.mubr.bf16.mxu0 0
  %6864 = vmatmul.mubr.bf16.gmra.mxu0 %v6708
  %v6865 = vpop.f32.mrf.mxu0
  %v6866 = vadd.f32 0.0, %v6865
  %v6867 = vpop.f32.mrf.mxu0
  %v6868 = vpop.f32.mrf.mxu0
  %v6869 = vadd.f32 0.0, %v6868
  %v6870 = vpop.f32.mrf.mxu0
  %6871 = vmatprep.mubr.bf16.mxu0 0
  %6872 = vmatmul.mubr.bf16.gmra.mxu0 %v6711
  %v6873 = vpop.f32.mrf.mxu0
  %v6874 = vadd.f32 0.0, %v6873
  %v6875 = vpop.f32.mrf.mxu0
  %v6876 = vpop.f32.mrf.mxu0
  %v6877 = vadd.f32 0.0, %v6876
  %v6878 = vpop.f32.mrf.mxu0
  %6879 = vmatprep.mubr.bf16.mxu0 0
  %6880 = vmatmul.mubr.bf16.gmra.mxu0 %v6714
  %v6881 = vpop.f32.mrf.mxu0
  %v6882 = vadd.f32 0.0, %v6881
  %v6883 = vpop.f32.mrf.mxu0
  %v6884 = vpop.f32.mrf.mxu0
  %v6885 = vadd.f32 0.0, %v6884
  %v6886 = vpop.f32.mrf.mxu0
  %6887 = vmatprep.mubr.bf16.mxu0 0
  %6888 = vmatmul.mubr.bf16.gmra.mxu0 %v6717
  %v6889 = vpop.f32.mrf.mxu0
  %v6890 = vadd.f32 0.0, %v6889
  %v6891 = vpop.f32.mrf.mxu0
  %v6892 = vpop.f32.mrf.mxu0
  %v6893 = vadd.f32 0.0, %v6892
  %v6894 = vpop.f32.mrf.mxu0
  %6895 = vmatprep.mubr.bf16.mxu0 0
  %6896 = vmatmul.mubr.bf16.gmra.mxu0 %v6720
  %v6897 = vpop.f32.mrf.mxu0
  %v6898 = vadd.f32 0.0, %v6897
  %v6899 = vpop.f32.mrf.mxu0
  %v6900 = vpop.f32.mrf.mxu0
  %v6901 = vadd.f32 0.0, %v6900
  %v6902 = vpop.f32.mrf.mxu0
  %6903 = vmatprep.mubr.bf16.mxu0 0
  %6904 = vmatmul.mubr.bf16.gmra.mxu0 %v6723
  %v6905 = vpop.f32.mrf.mxu0
  %v6906 = vadd.f32 0.0, %v6905
  %v6907 = vpop.f32.mrf.mxu0
  %v6908 = vpop.f32.mrf.mxu0
  %v6909 = vadd.f32 0.0, %v6908
  %v6910 = vpop.f32.mrf.mxu0
  %6911 = vmatprep.mubr.bf16.mxu0 0
  %6912 = vmatmul.mubr.bf16.gmra.mxu0 %v6726
  %v6913 = vpop.f32.mrf.mxu0
  %v6914 = vadd.f32 0.0, %v6913
  %v6915 = vpop.f32.mrf.mxu0
  %v6916 = vpop.f32.mrf.mxu0
  %v6917 = vadd.f32 0.0, %v6916
  %v6918 = vpop.f32.mrf.mxu0
  %6919 = vmatprep.mubr.bf16.mxu0 0
  %6920 = vmatmul.mubr.bf16.gmra.mxu0 %v6729
  %v6921 = vpop.f32.mrf.mxu0
  %v6922 = vadd.f32 0.0, %v6921
  %v6923 = vpop.f32.mrf.mxu0
  %v6924 = vpop.f32.mrf.mxu0
  %v6925 = vadd.f32 0.0, %v6924
  %v6926 = vpop.f32.mrf.mxu0
  %6927 = vmatprep.mubr.bf16.mxu0 0
  %6928 = vmatmul.mubr.bf16.gmra.mxu0 %v6732
  %v6929 = vpop.f32.mrf.mxu0
  %v6930 = vadd.f32 0.0, %v6929
  %v6931 = vpop.f32.mrf.mxu0
  %v6932 = vpop.f32.mrf.mxu0
  %v6933 = vadd.f32 0.0, %v6932
  %v6934 = vpop.f32.mrf.mxu0
  %6935 = vmatprep.mubr.bf16.mxu0 0
  %6936 = vmatmul.mubr.bf16.gmra.mxu0 %v6735
  %v6937 = vpop.f32.mrf.mxu0
  %v6938 = vadd.f32 0.0, %v6937
  %v6939 = vpop.f32.mrf.mxu0
  %v6940 = vpop.f32.mrf.mxu0
  %v6941 = vadd.f32 0.0, %v6940
  %v6942 = vpop.f32.mrf.mxu0
  %6943 = vmatprep.mubr.bf16.mxu0 0
  %6944 = vmatmul.mubr.bf16.gmra.mxu0 %v6738
  %v6945 = vpop.f32.mrf.mxu0
  %v6946 = vadd.f32 0.0, %v6945
  %v6947 = vpop.f32.mrf.mxu0
  %v6948 = vpop.f32.mrf.mxu0
  %v6949 = vadd.f32 0.0, %v6948
  %v6950 = vpop.f32.mrf.mxu0
  %6951 = vmatprep.mubr.bf16.mxu0 0
  %6952 = vmatmul.mubr.bf16.gmra.mxu0 %v6741
  %v6953 = vpop.f32.mrf.mxu0
  %v6954 = vadd.f32 0.0, %v6953
  %v6955 = vpop.f32.mrf.mxu0
  %v6956 = vpop.f32.mrf.mxu0
  %v6957 = vadd.f32 0.0, %v6956
  %v6958 = vpop.f32.mrf.mxu0
  %6959 = vmatprep.mubr.bf16.mxu0 0
  %6960 = vmatmul.mubr.bf16.gmra.mxu0 %v6744
  %v6961 = vpop.f32.mrf.mxu0
  %v6962 = vadd.f32 0.0, %v6961
  %v6963 = vpop.f32.mrf.mxu0
  %v6964 = vpop.f32.mrf.mxu0
  %v6965 = vadd.f32 0.0, %v6964
  %v6966 = vpop.f32.mrf.mxu0
  %6967 = vmatprep.mubr.bf16.mxu0 0
  %6968 = vmatmul.mubr.bf16.gmra.mxu0 %v6747
  %v6969 = vpop.f32.mrf.mxu0
  %v6970 = vadd.f32 0.0, %v6969
  %v6971 = vpop.f32.mrf.mxu0
  %v6972 = vpop.f32.mrf.mxu0
  %v6973 = vadd.f32 0.0, %v6972
  %v6974 = vpop.f32.mrf.mxu0
  %6975 = vmatprep.mubr.bf16.mxu0 0
  %6976 = vmatmul.mubr.bf16.gmra.mxu0 %v6750
  %v6977 = vpop.f32.mrf.mxu0
  %v6978 = vadd.f32 0.0, %v6977
  %v6979 = vpop.f32.mrf.mxu0
  %v6980 = vpop.f32.mrf.mxu0
  %v6981 = vadd.f32 0.0, %v6980
  %v6982 = vpop.f32.mrf.mxu0
  %6983 = vmatprep.mubr.bf16.mxu0 0
  %6984 = vmatmul.mubr.bf16.gmra.mxu0 %v6753
  %v6985 = vpop.f32.mrf.mxu0
  %v6986 = vadd.f32 0.0, %v6985
  %v6987 = vpop.f32.mrf.mxu0
  %v6988 = vpop.f32.mrf.mxu0
  %v6989 = vadd.f32 0.0, %v6988
  %v6990 = vpop.f32.mrf.mxu0
  %6991 = vmatprep.mubr.bf16.mxu0 0
  %6992 = vmatmul.mubr.bf16.gmra.mxu0 %v6756
  %v6993 = vpop.f32.mrf.mxu0
  %v6994 = vadd.f32 0.0, %v6993
  %v6995 = vpop.f32.mrf.mxu0
  %v6996 = vpop.f32.mrf.mxu0
  %v6997 = vadd.f32 0.0, %v6996
  %v6998 = vpop.f32.mrf.mxu0
  %6999 = vmatprep.mubr.bf16.mxu0 0
  %7000 = vmatmul.mubr.bf16.gmra.mxu0 %v6759
  %v7001 = vpop.f32.mrf.mxu0
  %v7002 = vadd.f32 0.0, %v7001
  %v7003 = vpop.f32.mrf.mxu0
  %v7004 = vpop.f32.mrf.mxu0
  %v7005 = vadd.f32 0.0, %v7004
  %v7006 = vpop.f32.mrf.mxu0
  %7007 = vmatprep.mubr.bf16.mxu0 0
  %7008 = vmatmul.mubr.bf16.gmra.mxu0 %v6762
  %v7009 = vpop.f32.mrf.mxu0
  %v7010 = vadd.f32 0.0, %v7009
  %v7011 = vpop.f32.mrf.mxu0
  %v7012 = vpop.f32.mrf.mxu0
  %v7013 = vadd.f32 0.0, %v7012
  %v7014 = vpop.f32.mrf.mxu0
  %7015 = vmatprep.mubr.bf16.mxu0 0
  %7016 = vmatmul.mubr.bf16.gmra.mxu0 %v6765
  %v7017 = vpop.f32.mrf.mxu0
  %v7018 = vadd.f32 0.0, %v7017
  %v7019 = vpop.f32.mrf.mxu0
  %v7020 = vpop.f32.mrf.mxu0
  %v7021 = vadd.f32 0.0, %v7020
  %v7022 = vpop.f32.mrf.mxu0
  %7023 = vmatprep.mubr.bf16.mxu0 0
  %7024 = vmatmul.mubr.bf16.gmra.mxu0 %v6768
  %v7025 = vpop.f32.mrf.mxu0
  %v7026 = vadd.f32 0.0, %v7025
  %v7027 = vpop.f32.mrf.mxu0
  %v7028 = vpop.f32.mrf.mxu0
  %v7029 = vadd.f32 0.0, %v7028
  %v7030 = vpop.f32.mrf.mxu0
  %7031 = vmatprep.mubr.bf16.mxu0 0
  %7032 = vmatmul.mubr.bf16.gmra.mxu0 %v6771
  %v7033 = vpop.f32.mrf.mxu0
  %v7034 = vadd.f32 0.0, %v7033
  %v7035 = vpop.f32.mrf.mxu0
  %v7036 = vpop.f32.mrf.mxu0
  %v7037 = vadd.f32 0.0, %v7036
  %v7038 = vpop.f32.mrf.mxu0
  %7039 = vmatprep.mubr.bf16.mxu0 0
  %7040 = vmatmul.mubr.bf16.gmra.mxu0 %v6774
  %v7041 = vpop.f32.mrf.mxu0
  %v7042 = vadd.f32 0.0, %v7041
  %v7043 = vpop.f32.mrf.mxu0
  %v7044 = vpop.f32.mrf.mxu0
  %v7045 = vadd.f32 0.0, %v7044
  %v7046 = vpop.f32.mrf.mxu0
  %7047 = vmatprep.mubr.bf16.mxu0 0
  %7048 = vmatmul.mubr.bf16.gmra.mxu0 %v6777
  %v7049 = vpop.f32.mrf.mxu0
  %v7050 = vadd.f32 0.0, %v7049
  %v7051 = vpop.f32.mrf.mxu0
  %v7052 = vpop.f32.mrf.mxu0
  %v7053 = vadd.f32 0.0, %v7052
  %v7054 = vpop.f32.mrf.mxu0
  %7055 = vmatprep.mubr.bf16.mxu0 0
  %7056 = vmatmul.mubr.bf16.gmra.mxu0 %v6780
  %v7057 = vpop.f32.mrf.mxu0
  %v7058 = vadd.f32 0.0, %v7057
  %v7059 = vpop.f32.mrf.mxu0
  %v7060 = vpop.f32.mrf.mxu0
  %v7061 = vadd.f32 0.0, %v7060
  %v7062 = vpop.f32.mrf.mxu0
  %7063 = vmatprep.mubr.bf16.mxu0 0
  %7064 = vmatmul.mubr.bf16.gmra.mxu0 %v6783
  %v7065 = vpop.f32.mrf.mxu0
  %v7066 = vadd.f32 0.0, %v7065
  %v7067 = vpop.f32.mrf.mxu0
  %v7068 = vpop.f32.mrf.mxu0
  %v7069 = vadd.f32 0.0, %v7068
  %v7070 = vpop.f32.mrf.mxu0
  %7071 = vmatprep.mubr.bf16.mxu0 0
  %7072 = vmatmul.mubr.bf16.gmra.mxu0 %v6786
  %v7073 = vpop.f32.mrf.mxu0
  %v7074 = vadd.f32 0.0, %v7073
  %v7075 = vpop.f32.mrf.mxu0
  %v7076 = vpop.f32.mrf.mxu0
  %v7077 = vadd.f32 0.0, %v7076
  %v7078 = vpop.f32.mrf.mxu0
  %7079 = vdwg.mxu0
  %v7080 = vadd.f32 %v6340, %v6826
  %v7081 = vadd.f32 %v6343, %v6829
  %v7082 = vadd.f32 %v6348, %v6834
  %v7083 = vadd.f32 %v6351, %v6837
  %v7084 = vadd.f32 %v6356, %v6842
  %v7085 = vadd.f32 %v6359, %v6845
  %v7086 = vadd.f32 %v6364, %v6850
  %v7087 = vadd.f32 %v6367, %v6853
  %v7088 = vadd.f32 %v6372, %v6858
  %v7089 = vadd.f32 %v6375, %v6861
  %v7090 = vadd.f32 %v6380, %v6866
  %v7091 = vadd.f32 %v6383, %v6869
  %v7092 = vadd.f32 %v6388, %v6874
  %v7093 = vadd.f32 %v6391, %v6877
  %v7094 = vadd.f32 %v6396, %v6882
  %v7095 = vadd.f32 %v6399, %v6885
  %v7096 = vadd.f32 %v6404, %v6890
  %v7097 = vadd.f32 %v6407, %v6893
  %v7098 = vadd.f32 %v6412, %v6898
  %v7099 = vadd.f32 %v6415, %v6901
  %v7100 = vadd.f32 %v6420, %v6906
  %v7101 = vadd.f32 %v6423, %v6909
  %v7102 = vadd.f32 %v6428, %v6914
  %v7103 = vadd.f32 %v6431, %v6917
  %v7104 = vadd.f32 %v6436, %v6922
  %v7105 = vadd.f32 %v6439, %v6925
  %v7106 = vadd.f32 %v6444, %v6930
  %v7107 = vadd.f32 %v6447, %v6933
  %v7108 = vadd.f32 %v6452, %v6938
  %v7109 = vadd.f32 %v6455, %v6941
  %v7110 = vadd.f32 %v6460, %v6946
  %v7111 = vadd.f32 %v6463, %v6949
  %v7112 = vadd.f32 %v6468, %v6954
  %v7113 = vadd.f32 %v6471, %v6957
  %v7114 = vadd.f32 %v6476, %v6962
  %v7115 = vadd.f32 %v6479, %v6965
  %v7116 = vadd.f32 %v6484, %v6970
  %v7117 = vadd.f32 %v6487, %v6973
  %v7118 = vadd.f32 %v6492, %v6978
  %v7119 = vadd.f32 %v6495, %v6981
  %v7120 = vadd.f32 %v6500, %v6986
  %v7121 = vadd.f32 %v6503, %v6989
  %v7122 = vadd.f32 %v6508, %v6994
  %v7123 = vadd.f32 %v6511, %v6997
  %v7124 = vadd.f32 %v6516, %v7002
  %v7125 = vadd.f32 %v6519, %v7005
  %v7126 = vadd.f32 %v6524, %v7010
  %v7127 = vadd.f32 %v6527, %v7013
  %v7128 = vadd.f32 %v6532, %v7018
  %v7129 = vadd.f32 %v6535, %v7021
  %v7130 = vadd.f32 %v6540, %v7026
  %v7131 = vadd.f32 %v6543, %v7029
  %v7132 = vadd.f32 %v6548, %v7034
  %v7133 = vadd.f32 %v6551, %v7037
  %v7134 = vadd.f32 %v6556, %v7042
  %v7135 = vadd.f32 %v6559, %v7045
  %v7136 = vadd.f32 %v6564, %v7050
  %v7137 = vadd.f32 %v6567, %v7053
  %v7138 = vadd.f32 %v6572, %v7058
  %v7139 = vadd.f32 %v6575, %v7061
  %v7140 = vadd.f32 %v6580, %v7066
  %v7141 = vadd.f32 %v6583, %v7069
  %v7142 = vadd.f32 %v6588, %v7074
  %v7143 = vadd.f32 %v6591, %v7077
  %v7144 = vld [vmem:[%s192] sm:$0xff]
  %v7145 = vld [vmem:[%s192 + $0x8] sm:$0xff]
  %v7146 = vld [vmem:[%s192 + $0x18] sm:$0xff]
  %v7147 = vld [vmem:[%s192 + $0x20] sm:$0xff]
  %v7148 = vld [vmem:[%s192 + $0x30] sm:$0xff]
  %v7149 = vld [vmem:[%s192 + $0x38] sm:$0xff]
  %v7150 = vld [vmem:[%s192 + $0x48] sm:$0xff]
  %v7151 = vld [vmem:[%s192 + $0x50] sm:$0xff]
  %v7152 = vld [vmem:[%s192 + $0x60] sm:$0xff]
  %v7153 = vld [vmem:[%s192 + $0x68] sm:$0xff]
  %v7154 = vld [vmem:[%s192 + $0x78] sm:$0xff]
  %v7155 = vld [vmem:[%s192 + $0x80] sm:$0xff]
  %v7156 = vld [vmem:[%s192 + $0x90] sm:$0xff]
  %v7157 = vld [vmem:[%s192 + $0x98] sm:$0xff]
  %v7158 = vld [vmem:[%s192 + $0xa8] sm:$0xff]
  %v7159 = vld [vmem:[%s192 + $0xb0] sm:$0xff]
  %v7160 = vld [vmem:[%s192 + $0xc0] sm:$0xff]
  %v7161 = vld [vmem:[%s192 + $0xc8] sm:$0xff]
  %v7162 = vld [vmem:[%s192 + $0xd8] sm:$0xff]
  %v7163 = vld [vmem:[%s192 + $0xe0] sm:$0xff]
  %v7164 = vld [vmem:[%s192 + $0xf0] sm:$0xff]
  %v7165 = vld [vmem:[%s192 + $0xf8] sm:$0xff]
  %v7166 = vld [vmem:[%s192 + $0x108] sm:$0xff]
  %v7167 = vld [vmem:[%s192 + $0x110] sm:$0xff]
  %v7168 = vld [vmem:[%s192 + $0x120] sm:$0xff]
  %v7169 = vld [vmem:[%s192 + $0x128] sm:$0xff]
  %v7170 = vld [vmem:[%s192 + $0x138] sm:$0xff]
  %v7171 = vld [vmem:[%s192 + $0x140] sm:$0xff]
  %v7172 = vld [vmem:[%s192 + $0x150] sm:$0xff]
  %v7173 = vld [vmem:[%s192 + $0x158] sm:$0xff]
  %v7174 = vld [vmem:[%s192 + $0x168] sm:$0xff]
  %v7175 = vld [vmem:[%s192 + $0x170] sm:$0xff]
  %v7176 = vld [vmem:[%s192 + $0x1b0] sm:$0xff]
  %v7177 = vld [vmem:[%s192 + $0x1b8] sm:$0xff]
  %v7178 = vld [vmem:[%s192 + $0x1c8] sm:$0xff]
  %v7179 = vld [vmem:[%s192 + $0x1d0] sm:$0xff]
  %v7180 = vld [vmem:[%s192 + $0x1e0] sm:$0xff]
  %v7181 = vld [vmem:[%s192 + $0x1e8] sm:$0xff]
  %v7182 = vld [vmem:[%s192 + $0x1f8] sm:$0xff]
  %v7183 = vld [vmem:[%s192 + $0x200] sm:$0xff]
  %v7184 = vld [vmem:[%s192 + $0x210] sm:$0xff]
  %v7185 = vld [vmem:[%s192 + $0x218] sm:$0xff]
  %v7186 = vld [vmem:[%s192 + $0x228] sm:$0xff]
  %v7187 = vld [vmem:[%s192 + $0x230] sm:$0xff]
  %v7188 = vld [vmem:[%s192 + $0x240] sm:$0xff]
  %v7189 = vld [vmem:[%s192 + $0x248] sm:$0xff]
  %v7190 = vld [vmem:[%s192 + $0x258] sm:$0xff]
  %v7191 = vld [vmem:[%s192 + $0x260] sm:$0xff]
  %v7192 = vld [vmem:[%s192 + $0x270] sm:$0xff]
  %v7193 = vld [vmem:[%s192 + $0x278] sm:$0xff]
  %v7194 = vld [vmem:[%s192 + $0x288] sm:$0xff]
  %v7195 = vld [vmem:[%s192 + $0x290] sm:$0xff]
  %v7196 = vld [vmem:[%s192 + $0x2a0] sm:$0xff]
  %v7197 = vld [vmem:[%s192 + $0x2a8] sm:$0xff]
  %v7198 = vld [vmem:[%s192 + $0x2b8] sm:$0xff]
  %v7199 = vld [vmem:[%s192 + $0x2c0] sm:$0xff]
  %v7200 = vld [vmem:[%s192 + $0x2d0] sm:$0xff]
  %v7201 = vld [vmem:[%s192 + $0x2d8] sm:$0xff]
  %v7202 = vld [vmem:[%s192 + $0x2e8] sm:$0xff]
  %v7203 = vld [vmem:[%s192 + $0x2f0] sm:$0xff]
  %v7204 = vld [vmem:[%s192 + $0x300] sm:$0xff]
  %v7205 = vld [vmem:[%s192 + $0x308] sm:$0xff]
  %v7206 = vld [vmem:[%s192 + $0x318] sm:$0xff]
  %v7207 = vld [vmem:[%s192 + $0x320] sm:$0xff]
  %v7208 = vpack.c.bf16 %v7145, %v7144
  %v7209 = vpack.c.bf16 %v7147, %v7146
  %v7210 = vpack.c.bf16 %v7149, %v7148
  %v7211 = vpack.c.bf16 %v7151, %v7150
  %v7212 = vpack.c.bf16 %v7153, %v7152
  %v7213 = vpack.c.bf16 %v7155, %v7154
  %v7214 = vpack.c.bf16 %v7157, %v7156
  %v7215 = vpack.c.bf16 %v7159, %v7158
  %v7216 = vpack.c.bf16 %v7161, %v7160
  %v7217 = vpack.c.bf16 %v7163, %v7162
  %v7218 = vpack.c.bf16 %v7165, %v7164
  %v7219 = vpack.c.bf16 %v7167, %v7166
  %v7220 = vpack.c.bf16 %v7169, %v7168
  %v7221 = vpack.c.bf16 %v7171, %v7170
  %v7222 = vpack.c.bf16 %v7173, %v7172
  %v7223 = vpack.c.bf16 %v7175, %v7174
  %v7224 = vpack.c.bf16 %v7177, %v7176
  %v7225 = vpack.c.bf16 %v7179, %v7178
  %v7226 = vpack.c.bf16 %v7181, %v7180
  %v7227 = vpack.c.bf16 %v7183, %v7182
  %v7228 = vpack.c.bf16 %v7185, %v7184
  %v7229 = vpack.c.bf16 %v7187, %v7186
  %v7230 = vpack.c.bf16 %v7189, %v7188
  %v7231 = vpack.c.bf16 %v7191, %v7190
  %v7232 = vpack.c.bf16 %v7193, %v7192
  %v7233 = vpack.c.bf16 %v7195, %v7194
  %v7234 = vpack.c.bf16 %v7197, %v7196
  %v7235 = vpack.c.bf16 %v7199, %v7198
  %v7236 = vpack.c.bf16 %v7201, %v7200
  %v7237 = vpack.c.bf16 %v7203, %v7202
  %v7238 = vpack.c.bf16 %v7205, %v7204
  %v7239 = vpack.c.bf16 %v7207, %v7206
  %s7240 = scalar_lea.vmem %s2, 6
  %v7241 = vld [vmem:[%s7240] sm:$0x3]
  %v7243 = vsel %vm40, %v7208, 0
  %v7246 = vsel %vm40, %v7209, 0
  %v7249 = vsel %vm40, %v7210, 0
  %v7252 = vsel %vm40, %v7211, 0
  %v7255 = vsel %vm40, %v7212, 0
  %v7258 = vsel %vm40, %v7213, 0
  %v7261 = vsel %vm40, %v7214, 0
  %v7264 = vsel %vm40, %v7215, 0
  %v7267 = vsel %vm40, %v7216, 0
  %v7270 = vsel %vm40, %v7217, 0
  %v7273 = vsel %vm40, %v7218, 0
  %v7276 = vsel %vm40, %v7219, 0
  %v7279 = vsel %vm40, %v7220, 0
  %v7282 = vsel %vm40, %v7221, 0
  %v7285 = vsel %vm40, %v7222, 0
  %v7288 = vsel %vm40, %v7223, 0
  %v7291 = vsel %vm40, %v7224, 0
  %v7294 = vsel %vm40, %v7225, 0
  %v7297 = vsel %vm40, %v7226, 0
  %v7300 = vsel %vm40, %v7227, 0
  %v7303 = vsel %vm40, %v7228, 0
  %v7306 = vsel %vm40, %v7229, 0
  %v7309 = vsel %vm40, %v7230, 0
  %v7312 = vsel %vm40, %v7231, 0
  %v7315 = vsel %vm40, %v7232, 0
  %v7318 = vsel %vm40, %v7233, 0
  %v7321 = vsel %vm40, %v7234, 0
  %v7324 = vsel %vm40, %v7235, 0
  %v7327 = vsel %vm40, %v7236, 0
  %v7330 = vsel %vm40, %v7237, 0
  %v7333 = vsel %vm40, %v7238, 0
  %v7336 = vsel %vm40, %v7239, 0
  %v7339 = vsel %vm548, %v7241, 0
  %7341 = vmatprep.subr.bf16.mxu0 0
  %7342 = vmatpush1.bf16.msra.mxu0 0
  %7343 = vmatprep.subr.bf16.mxu0 0
  %7344 = vmatpush1.bf16.msra.mxu0 0
  %7345 = vmatprep.subr.bf16.mxu0 0
  %7346 = vmatpush1.bf16.msra.mxu0 0
  %7347 = vmatprep.subr.bf16.mxu0 0
  %7348 = vmatpush1.bf16.msra.mxu0 0
  %7349 = vmatprep.subr.bf16.mxu0 0
  %7350 = vmatpush1.bf16.msra.mxu0 0
  %7351 = vmatprep.subr.bf16.mxu0 0
  %7352 = vmatpush1.bf16.msra.mxu0 0
  %7353 = vmatprep.subr.bf16.mxu0 0
  %7354 = vmatpush1.bf16.msra.mxu0 0
  %7355 = vmatprep.subr.bf16.mxu0 0
  %7356 = vmatpush1.bf16.msra.mxu0 %v7339
  %7357 = vmatprep.subr.bf16.mxu0 0
  %7358 = vmatpush2.bf16.msra.mxu0 0
  %7359 = vmatprep.subr.bf16.mxu0 0
  %7360 = vmatpush2.bf16.msra.mxu0 0
  %7361 = vmatprep.subr.bf16.mxu0 0
  %7362 = vmatpush2.bf16.msra.mxu0 0
  %7363 = vmatprep.subr.bf16.mxu0 0
  %7364 = vmatpush2.bf16.msra.mxu0 0
  %7365 = vmatprep.subr.bf16.mxu0 0
  %7366 = vmatpush2.bf16.msra.mxu0 0
  %7367 = vmatprep.subr.bf16.mxu0 0
  %7368 = vmatpush2.bf16.msra.mxu0 0
  %7369 = vmatprep.subr.bf16.mxu0 0
  %7370 = vmatpush2.bf16.msra.mxu0 0
  %7371 = vmatprep.subr.bf16.mxu0 0
  %7372 = vmatpush2.bf16.msra.mxu0 0
  %7373 = vmatprep.mubr.bf16.mxu0 0
  %7374 = vmatmul.mubr.bf16.gmra.mxu0 %v7243
  %v7375 = vpop.f32.mrf.mxu0
  %v7376 = vadd.f32 0.0, %v7375
  %v7377 = vpop.f32.mrf.mxu0
  %v7378 = vpop.f32.mrf.mxu0
  %v7379 = vadd.f32 0.0, %v7378
  %v7380 = vpop.f32.mrf.mxu0
  %7381 = vmatprep.mubr.bf16.mxu0 0
  %7382 = vmatmul.mubr.bf16.gmra.mxu0 %v7246
  %v7383 = vpop.f32.mrf.mxu0
  %v7384 = vadd.f32 0.0, %v7383
  %v7385 = vpop.f32.mrf.mxu0
  %v7386 = vpop.f32.mrf.mxu0
  %v7387 = vadd.f32 0.0, %v7386
  %v7388 = vpop.f32.mrf.mxu0
  %7389 = vmatprep.mubr.bf16.mxu0 0
  %7390 = vmatmul.mubr.bf16.gmra.mxu0 %v7249
  %v7391 = vpop.f32.mrf.mxu0
  %v7392 = vadd.f32 0.0, %v7391
  %v7393 = vpop.f32.mrf.mxu0
  %v7394 = vpop.f32.mrf.mxu0
  %v7395 = vadd.f32 0.0, %v7394
  %v7396 = vpop.f32.mrf.mxu0
  %7397 = vmatprep.mubr.bf16.mxu0 0
  %7398 = vmatmul.mubr.bf16.gmra.mxu0 %v7252
  %v7399 = vpop.f32.mrf.mxu0
  %v7400 = vadd.f32 0.0, %v7399
  %v7401 = vpop.f32.mrf.mxu0
  %v7402 = vpop.f32.mrf.mxu0
  %v7403 = vadd.f32 0.0, %v7402
  %v7404 = vpop.f32.mrf.mxu0
  %7405 = vmatprep.mubr.bf16.mxu0 0
  %7406 = vmatmul.mubr.bf16.gmra.mxu0 %v7255
  %v7407 = vpop.f32.mrf.mxu0
  %v7408 = vadd.f32 0.0, %v7407
  %v7409 = vpop.f32.mrf.mxu0
  %v7410 = vpop.f32.mrf.mxu0
  %v7411 = vadd.f32 0.0, %v7410
  %v7412 = vpop.f32.mrf.mxu0
  %7413 = vmatprep.mubr.bf16.mxu0 0
  %7414 = vmatmul.mubr.bf16.gmra.mxu0 %v7258
  %v7415 = vpop.f32.mrf.mxu0
  %v7416 = vadd.f32 0.0, %v7415
  %v7417 = vpop.f32.mrf.mxu0
  %v7418 = vpop.f32.mrf.mxu0
  %v7419 = vadd.f32 0.0, %v7418
  %v7420 = vpop.f32.mrf.mxu0
  %7421 = vmatprep.mubr.bf16.mxu0 0
  %7422 = vmatmul.mubr.bf16.gmra.mxu0 %v7261
  %v7423 = vpop.f32.mrf.mxu0
  %v7424 = vadd.f32 0.0, %v7423
  %v7425 = vpop.f32.mrf.mxu0
  %v7426 = vpop.f32.mrf.mxu0
  %v7427 = vadd.f32 0.0, %v7426
  %v7428 = vpop.f32.mrf.mxu0
  %7429 = vmatprep.mubr.bf16.mxu0 0
  %7430 = vmatmul.mubr.bf16.gmra.mxu0 %v7264
  %v7431 = vpop.f32.mrf.mxu0
  %v7432 = vadd.f32 0.0, %v7431
  %v7433 = vpop.f32.mrf.mxu0
  %v7434 = vpop.f32.mrf.mxu0
  %v7435 = vadd.f32 0.0, %v7434
  %v7436 = vpop.f32.mrf.mxu0
  %7437 = vmatprep.mubr.bf16.mxu0 0
  %7438 = vmatmul.mubr.bf16.gmra.mxu0 %v7267
  %v7439 = vpop.f32.mrf.mxu0
  %v7440 = vadd.f32 0.0, %v7439
  %v7441 = vpop.f32.mrf.mxu0
  %v7442 = vpop.f32.mrf.mxu0
  %v7443 = vadd.f32 0.0, %v7442
  %v7444 = vpop.f32.mrf.mxu0
  %7445 = vmatprep.mubr.bf16.mxu0 0
  %7446 = vmatmul.mubr.bf16.gmra.mxu0 %v7270
  %v7447 = vpop.f32.mrf.mxu0
  %v7448 = vadd.f32 0.0, %v7447
  %v7449 = vpop.f32.mrf.mxu0
  %v7450 = vpop.f32.mrf.mxu0
  %v7451 = vadd.f32 0.0, %v7450
  %v7452 = vpop.f32.mrf.mxu0
  %7453 = vmatprep.mubr.bf16.mxu0 0
  %7454 = vmatmul.mubr.bf16.gmra.mxu0 %v7273
  %v7455 = vpop.f32.mrf.mxu0
  %v7456 = vadd.f32 0.0, %v7455
  %v7457 = vpop.f32.mrf.mxu0
  %v7458 = vpop.f32.mrf.mxu0
  %v7459 = vadd.f32 0.0, %v7458
  %v7460 = vpop.f32.mrf.mxu0
  %7461 = vmatprep.mubr.bf16.mxu0 0
  %7462 = vmatmul.mubr.bf16.gmra.mxu0 %v7276
  %v7463 = vpop.f32.mrf.mxu0
  %v7464 = vadd.f32 0.0, %v7463
  %v7465 = vpop.f32.mrf.mxu0
  %v7466 = vpop.f32.mrf.mxu0
  %v7467 = vadd.f32 0.0, %v7466
  %v7468 = vpop.f32.mrf.mxu0
  %7469 = vmatprep.mubr.bf16.mxu0 0
  %7470 = vmatmul.mubr.bf16.gmra.mxu0 %v7279
  %v7471 = vpop.f32.mrf.mxu0
  %v7472 = vadd.f32 0.0, %v7471
  %v7473 = vpop.f32.mrf.mxu0
  %v7474 = vpop.f32.mrf.mxu0
  %v7475 = vadd.f32 0.0, %v7474
  %v7476 = vpop.f32.mrf.mxu0
  %7477 = vmatprep.mubr.bf16.mxu0 0
  %7478 = vmatmul.mubr.bf16.gmra.mxu0 %v7282
  %v7479 = vpop.f32.mrf.mxu0
  %v7480 = vadd.f32 0.0, %v7479
  %v7481 = vpop.f32.mrf.mxu0
  %v7482 = vpop.f32.mrf.mxu0
  %v7483 = vadd.f32 0.0, %v7482
  %v7484 = vpop.f32.mrf.mxu0
  %7485 = vmatprep.mubr.bf16.mxu0 0
  %7486 = vmatmul.mubr.bf16.gmra.mxu0 %v7285
  %v7487 = vpop.f32.mrf.mxu0
  %v7488 = vadd.f32 0.0, %v7487
  %v7489 = vpop.f32.mrf.mxu0
  %v7490 = vpop.f32.mrf.mxu0
  %v7491 = vadd.f32 0.0, %v7490
  %v7492 = vpop.f32.mrf.mxu0
  %7493 = vmatprep.mubr.bf16.mxu0 0
  %7494 = vmatmul.mubr.bf16.gmra.mxu0 %v7288
  %v7495 = vpop.f32.mrf.mxu0
  %v7496 = vadd.f32 0.0, %v7495
  %v7497 = vpop.f32.mrf.mxu0
  %v7498 = vpop.f32.mrf.mxu0
  %v7499 = vadd.f32 0.0, %v7498
  %v7500 = vpop.f32.mrf.mxu0
  %7501 = vmatprep.mubr.bf16.mxu0 0
  %7502 = vmatmul.mubr.bf16.gmra.mxu0 %v7291
  %v7503 = vpop.f32.mrf.mxu0
  %v7504 = vadd.f32 0.0, %v7503
  %v7505 = vpop.f32.mrf.mxu0
  %v7506 = vpop.f32.mrf.mxu0
  %v7507 = vadd.f32 0.0, %v7506
  %v7508 = vpop.f32.mrf.mxu0
  %7509 = vmatprep.mubr.bf16.mxu0 0
  %7510 = vmatmul.mubr.bf16.gmra.mxu0 %v7294
  %v7511 = vpop.f32.mrf.mxu0
  %v7512 = vadd.f32 0.0, %v7511
  %v7513 = vpop.f32.mrf.mxu0
  %v7514 = vpop.f32.mrf.mxu0
  %v7515 = vadd.f32 0.0, %v7514
  %v7516 = vpop.f32.mrf.mxu0
  %7517 = vmatprep.mubr.bf16.mxu0 0
  %7518 = vmatmul.mubr.bf16.gmra.mxu0 %v7297
  %v7519 = vpop.f32.mrf.mxu0
  %v7520 = vadd.f32 0.0, %v7519
  %v7521 = vpop.f32.mrf.mxu0
  %v7522 = vpop.f32.mrf.mxu0
  %v7523 = vadd.f32 0.0, %v7522
  %v7524 = vpop.f32.mrf.mxu0
  %7525 = vmatprep.mubr.bf16.mxu0 0
  %7526 = vmatmul.mubr.bf16.gmra.mxu0 %v7300
  %v7527 = vpop.f32.mrf.mxu0
  %v7528 = vadd.f32 0.0, %v7527
  %v7529 = vpop.f32.mrf.mxu0
  %v7530 = vpop.f32.mrf.mxu0
  %v7531 = vadd.f32 0.0, %v7530
  %v7532 = vpop.f32.mrf.mxu0
  %7533 = vmatprep.mubr.bf16.mxu0 0
  %7534 = vmatmul.mubr.bf16.gmra.mxu0 %v7303
  %v7535 = vpop.f32.mrf.mxu0
  %v7536 = vadd.f32 0.0, %v7535
  %v7537 = vpop.f32.mrf.mxu0
  %v7538 = vpop.f32.mrf.mxu0
  %v7539 = vadd.f32 0.0, %v7538
  %v7540 = vpop.f32.mrf.mxu0
  %7541 = vmatprep.mubr.bf16.mxu0 0
  %7542 = vmatmul.mubr.bf16.gmra.mxu0 %v7306
  %v7543 = vpop.f32.mrf.mxu0
  %v7544 = vadd.f32 0.0, %v7543
  %v7545 = vpop.f32.mrf.mxu0
  %v7546 = vpop.f32.mrf.mxu0
  %v7547 = vadd.f32 0.0, %v7546
  %v7548 = vpop.f32.mrf.mxu0
  %7549 = vmatprep.mubr.bf16.mxu0 0
  %7550 = vmatmul.mubr.bf16.gmra.mxu0 %v7309
  %v7551 = vpop.f32.mrf.mxu0
  %v7552 = vadd.f32 0.0, %v7551
  %v7553 = vpop.f32.mrf.mxu0
  %v7554 = vpop.f32.mrf.mxu0
  %v7555 = vadd.f32 0.0, %v7554
  %v7556 = vpop.f32.mrf.mxu0
  %7557 = vmatprep.mubr.bf16.mxu0 0
  %7558 = vmatmul.mubr.bf16.gmra.mxu0 %v7312
  %v7559 = vpop.f32.mrf.mxu0
  %v7560 = vadd.f32 0.0, %v7559
  %v7561 = vpop.f32.mrf.mxu0
  %v7562 = vpop.f32.mrf.mxu0
  %v7563 = vadd.f32 0.0, %v7562
  %v7564 = vpop.f32.mrf.mxu0
  %7565 = vmatprep.mubr.bf16.mxu0 0
  %7566 = vmatmul.mubr.bf16.gmra.mxu0 %v7315
  %v7567 = vpop.f32.mrf.mxu0
  %v7568 = vadd.f32 0.0, %v7567
  %v7569 = vpop.f32.mrf.mxu0
  %v7570 = vpop.f32.mrf.mxu0
  %v7571 = vadd.f32 0.0, %v7570
  %v7572 = vpop.f32.mrf.mxu0
  %7573 = vmatprep.mubr.bf16.mxu0 0
  %7574 = vmatmul.mubr.bf16.gmra.mxu0 %v7318
  %v7575 = vpop.f32.mrf.mxu0
  %v7576 = vadd.f32 0.0, %v7575
  %v7577 = vpop.f32.mrf.mxu0
  %v7578 = vpop.f32.mrf.mxu0
  %v7579 = vadd.f32 0.0, %v7578
  %v7580 = vpop.f32.mrf.mxu0
  %7581 = vmatprep.mubr.bf16.mxu0 0
  %7582 = vmatmul.mubr.bf16.gmra.mxu0 %v7321
  %v7583 = vpop.f32.mrf.mxu0
  %v7584 = vadd.f32 0.0, %v7583
  %v7585 = vpop.f32.mrf.mxu0
  %v7586 = vpop.f32.mrf.mxu0
  %v7587 = vadd.f32 0.0, %v7586
  %v7588 = vpop.f32.mrf.mxu0
  %7589 = vmatprep.mubr.bf16.mxu0 0
  %7590 = vmatmul.mubr.bf16.gmra.mxu0 %v7324
  %v7591 = vpop.f32.mrf.mxu0
  %v7592 = vadd.f32 0.0, %v7591
  %v7593 = vpop.f32.mrf.mxu0
  %v7594 = vpop.f32.mrf.mxu0
  %v7595 = vadd.f32 0.0, %v7594
  %v7596 = vpop.f32.mrf.mxu0
  %7597 = vmatprep.mubr.bf16.mxu0 0
  %7598 = vmatmul.mubr.bf16.gmra.mxu0 %v7327
  %v7599 = vpop.f32.mrf.mxu0
  %v7600 = vadd.f32 0.0, %v7599
  %v7601 = vpop.f32.mrf.mxu0
  %v7602 = vpop.f32.mrf.mxu0
  %v7603 = vadd.f32 0.0, %v7602
  %v7604 = vpop.f32.mrf.mxu0
  %7605 = vmatprep.mubr.bf16.mxu0 0
  %7606 = vmatmul.mubr.bf16.gmra.mxu0 %v7330
  %v7607 = vpop.f32.mrf.mxu0
  %v7608 = vadd.f32 0.0, %v7607
  %v7609 = vpop.f32.mrf.mxu0
  %v7610 = vpop.f32.mrf.mxu0
  %v7611 = vadd.f32 0.0, %v7610
  %v7612 = vpop.f32.mrf.mxu0
  %7613 = vmatprep.mubr.bf16.mxu0 0
  %7614 = vmatmul.mubr.bf16.gmra.mxu0 %v7333
  %v7615 = vpop.f32.mrf.mxu0
  %v7616 = vadd.f32 0.0, %v7615
  %v7617 = vpop.f32.mrf.mxu0
  %v7618 = vpop.f32.mrf.mxu0
  %v7619 = vadd.f32 0.0, %v7618
  %v7620 = vpop.f32.mrf.mxu0
  %7621 = vmatprep.mubr.bf16.mxu0 0
  %7622 = vmatmul.mubr.bf16.gmra.mxu0 %v7336
  %v7623 = vpop.f32.mrf.mxu0
  %v7624 = vadd.f32 0.0, %v7623
  %v7625 = vpop.f32.mrf.mxu0
  %v7626 = vpop.f32.mrf.mxu0
  %v7627 = vadd.f32 0.0, %v7626
  %v7628 = vpop.f32.mrf.mxu0
  %7629 = vdwg.mxu0
  %v7630 = vadd.f32 %v7080, %v7376
  %v7631 = vadd.f32 %v7081, %v7379
  %v7632 = vadd.f32 %v7082, %v7384
  %v7633 = vadd.f32 %v7083, %v7387
  %v7634 = vadd.f32 %v7084, %v7392
  %v7635 = vadd.f32 %v7085, %v7395
  %v7636 = vadd.f32 %v7086, %v7400
  %v7637 = vadd.f32 %v7087, %v7403
  %v7638 = vadd.f32 %v7088, %v7408
  %v7639 = vadd.f32 %v7089, %v7411
  %v7640 = vadd.f32 %v7090, %v7416
  %v7641 = vadd.f32 %v7091, %v7419
  %v7642 = vadd.f32 %v7092, %v7424
  %v7643 = vadd.f32 %v7093, %v7427
  %v7644 = vadd.f32 %v7094, %v7432
  %v7645 = vadd.f32 %v7095, %v7435
  %v7646 = vadd.f32 %v7096, %v7440
  %v7647 = vadd.f32 %v7097, %v7443
  %v7648 = vadd.f32 %v7098, %v7448
  %v7649 = vadd.f32 %v7099, %v7451
  %v7650 = vadd.f32 %v7100, %v7456
  %v7651 = vadd.f32 %v7101, %v7459
  %v7652 = vadd.f32 %v7102, %v7464
  %v7653 = vadd.f32 %v7103, %v7467
  %v7654 = vadd.f32 %v7104, %v7472
  %v7655 = vadd.f32 %v7105, %v7475
  %v7656 = vadd.f32 %v7106, %v7480
  %v7657 = vadd.f32 %v7107, %v7483
  %v7658 = vadd.f32 %v7108, %v7488
  %v7659 = vadd.f32 %v7109, %v7491
  %v7660 = vadd.f32 %v7110, %v7496
  %v7661 = vadd.f32 %v7111, %v7499
  %v7662 = vadd.f32 %v7112, %v7504
  %v7663 = vadd.f32 %v7113, %v7507
  %v7664 = vadd.f32 %v7114, %v7512
  %v7665 = vadd.f32 %v7115, %v7515
  %v7666 = vadd.f32 %v7116, %v7520
  %v7667 = vadd.f32 %v7117, %v7523
  %v7668 = vadd.f32 %v7118, %v7528
  %v7669 = vadd.f32 %v7119, %v7531
  %v7670 = vadd.f32 %v7120, %v7536
  %v7671 = vadd.f32 %v7121, %v7539
  %v7672 = vadd.f32 %v7122, %v7544
  %v7673 = vadd.f32 %v7123, %v7547
  %v7674 = vadd.f32 %v7124, %v7552
  %v7675 = vadd.f32 %v7125, %v7555
  %v7676 = vadd.f32 %v7126, %v7560
  %v7677 = vadd.f32 %v7127, %v7563
  %v7678 = vadd.f32 %v7128, %v7568
  %v7679 = vadd.f32 %v7129, %v7571
  %v7680 = vadd.f32 %v7130, %v7576
  %v7681 = vadd.f32 %v7131, %v7579
  %v7682 = vadd.f32 %v7132, %v7584
  %v7683 = vadd.f32 %v7133, %v7587
  %v7684 = vadd.f32 %v7134, %v7592
  %v7685 = vadd.f32 %v7135, %v7595
  %v7686 = vadd.f32 %v7136, %v7600
  %v7687 = vadd.f32 %v7137, %v7603
  %v7688 = vadd.f32 %v7138, %v7608
  %v7689 = vadd.f32 %v7139, %v7611
  %v7690 = vadd.f32 %v7140, %v7616
  %v7691 = vadd.f32 %v7141, %v7619
  %v7692 = vadd.f32 %v7142, %v7624
  %v7693 = vadd.f32 %v7143, %v7627
  %v7694 = vld [vmem:[%s192 + $0x1] sm:$0xff]
  %v7695 = vld [vmem:[%s192 + $0x9] sm:$0xff]
  %v7696 = vld [vmem:[%s192 + $0x19] sm:$0xff]
  %v7697 = vld [vmem:[%s192 + $0x21] sm:$0xff]
  %v7698 = vld [vmem:[%s192 + $0x31] sm:$0xff]
  %v7699 = vld [vmem:[%s192 + $0x39] sm:$0xff]
  %v7700 = vld [vmem:[%s192 + $0x49] sm:$0xff]
  %v7701 = vld [vmem:[%s192 + $0x51] sm:$0xff]
  %v7702 = vld [vmem:[%s192 + $0x61] sm:$0xff]
  %v7703 = vld [vmem:[%s192 + $0x69] sm:$0xff]
  %v7704 = vld [vmem:[%s192 + $0x79] sm:$0xff]
  %v7705 = vld [vmem:[%s192 + $0x81] sm:$0xff]
  %v7706 = vld [vmem:[%s192 + $0x91] sm:$0xff]
  %v7707 = vld [vmem:[%s192 + $0x99] sm:$0xff]
  %v7708 = vld [vmem:[%s192 + $0xa9] sm:$0xff]
  %v7709 = vld [vmem:[%s192 + $0xb1] sm:$0xff]
  %v7710 = vld [vmem:[%s192 + $0xc1] sm:$0xff]
  %v7711 = vld [vmem:[%s192 + $0xc9] sm:$0xff]
  %v7712 = vld [vmem:[%s192 + $0xd9] sm:$0xff]
  %v7713 = vld [vmem:[%s192 + $0xe1] sm:$0xff]
  %v7714 = vld [vmem:[%s192 + $0xf1] sm:$0xff]
  %v7715 = vld [vmem:[%s192 + $0xf9] sm:$0xff]
  %v7716 = vld [vmem:[%s192 + $0x109] sm:$0xff]
  %v7717 = vld [vmem:[%s192 + $0x111] sm:$0xff]
  %v7718 = vld [vmem:[%s192 + $0x121] sm:$0xff]
  %v7719 = vld [vmem:[%s192 + $0x129] sm:$0xff]
  %v7720 = vld [vmem:[%s192 + $0x139] sm:$0xff]
  %v7721 = vld [vmem:[%s192 + $0x141] sm:$0xff]
  %v7722 = vld [vmem:[%s192 + $0x151] sm:$0xff]
  %v7723 = vld [vmem:[%s192 + $0x159] sm:$0xff]
  %v7724 = vld [vmem:[%s192 + $0x169] sm:$0xff]
  %v7725 = vld [vmem:[%s192 + $0x171] sm:$0xff]
  %v7726 = vld [vmem:[%s192 + $0x1b1] sm:$0xff]
  %v7727 = vld [vmem:[%s192 + $0x1b9] sm:$0xff]
  %v7728 = vld [vmem:[%s192 + $0x1c9] sm:$0xff]
  %v7729 = vld [vmem:[%s192 + $0x1d1] sm:$0xff]
  %v7730 = vld [vmem:[%s192 + $0x1e1] sm:$0xff]
  %v7731 = vld [vmem:[%s192 + $0x1e9] sm:$0xff]
  %v7732 = vld [vmem:[%s192 + $0x1f9] sm:$0xff]
  %v7733 = vld [vmem:[%s192 + $0x201] sm:$0xff]
  %v7734 = vld [vmem:[%s192 + $0x211] sm:$0xff]
  %v7735 = vld [vmem:[%s192 + $0x219] sm:$0xff]
  %v7736 = vld [vmem:[%s192 + $0x229] sm:$0xff]
  %v7737 = vld [vmem:[%s192 + $0x231] sm:$0xff]
  %v7738 = vld [vmem:[%s192 + $0x241] sm:$0xff]
  %v7739 = vld [vmem:[%s192 + $0x249] sm:$0xff]
  %v7740 = vld [vmem:[%s192 + $0x259] sm:$0xff]
  %v7741 = vld [vmem:[%s192 + $0x261] sm:$0xff]
  %v7742 = vld [vmem:[%s192 + $0x271] sm:$0xff]
  %v7743 = vld [vmem:[%s192 + $0x279] sm:$0xff]
  %v7744 = vld [vmem:[%s192 + $0x289] sm:$0xff]
  %v7745 = vld [vmem:[%s192 + $0x291] sm:$0xff]
  %v7746 = vld [vmem:[%s192 + $0x2a1] sm:$0xff]
  %v7747 = vld [vmem:[%s192 + $0x2a9] sm:$0xff]
  %v7748 = vld [vmem:[%s192 + $0x2b9] sm:$0xff]
  %v7749 = vld [vmem:[%s192 + $0x2c1] sm:$0xff]
  %v7750 = vld [vmem:[%s192 + $0x2d1] sm:$0xff]
  %v7751 = vld [vmem:[%s192 + $0x2d9] sm:$0xff]
  %v7752 = vld [vmem:[%s192 + $0x2e9] sm:$0xff]
  %v7753 = vld [vmem:[%s192 + $0x2f1] sm:$0xff]
  %v7754 = vld [vmem:[%s192 + $0x301] sm:$0xff]
  %v7755 = vld [vmem:[%s192 + $0x309] sm:$0xff]
  %v7756 = vld [vmem:[%s192 + $0x319] sm:$0xff]
  %v7757 = vld [vmem:[%s192 + $0x321] sm:$0xff]
  %v7758 = vpack.c.bf16 %v7695, %v7694
  %v7759 = vpack.c.bf16 %v7697, %v7696
  %v7760 = vpack.c.bf16 %v7699, %v7698
  %v7761 = vpack.c.bf16 %v7701, %v7700
  %v7762 = vpack.c.bf16 %v7703, %v7702
  %v7763 = vpack.c.bf16 %v7705, %v7704
  %v7764 = vpack.c.bf16 %v7707, %v7706
  %v7765 = vpack.c.bf16 %v7709, %v7708
  %v7766 = vpack.c.bf16 %v7711, %v7710
  %v7767 = vpack.c.bf16 %v7713, %v7712
  %v7768 = vpack.c.bf16 %v7715, %v7714
  %v7769 = vpack.c.bf16 %v7717, %v7716
  %v7770 = vpack.c.bf16 %v7719, %v7718
  %v7771 = vpack.c.bf16 %v7721, %v7720
  %v7772 = vpack.c.bf16 %v7723, %v7722
  %v7773 = vpack.c.bf16 %v7725, %v7724
  %v7774 = vpack.c.bf16 %v7727, %v7726
  %v7775 = vpack.c.bf16 %v7729, %v7728
  %v7776 = vpack.c.bf16 %v7731, %v7730
  %v7777 = vpack.c.bf16 %v7733, %v7732
  %v7778 = vpack.c.bf16 %v7735, %v7734
  %v7779 = vpack.c.bf16 %v7737, %v7736
  %v7780 = vpack.c.bf16 %v7739, %v7738
  %v7781 = vpack.c.bf16 %v7741, %v7740
  %v7782 = vpack.c.bf16 %v7743, %v7742
  %v7783 = vpack.c.bf16 %v7745, %v7744
  %v7784 = vpack.c.bf16 %v7747, %v7746
  %v7785 = vpack.c.bf16 %v7749, %v7748
  %v7786 = vpack.c.bf16 %v7751, %v7750
  %v7787 = vpack.c.bf16 %v7753, %v7752
  %v7788 = vpack.c.bf16 %v7755, %v7754
  %v7789 = vpack.c.bf16 %v7757, %v7756
  %s7790 = scalar_lea.vmem %s2, 8
  %v7791 = vld [vmem:[%s7790] sm:$0x3]
  %v7793 = vsel %vm40, %v7758, 0
  %v7796 = vsel %vm40, %v7759, 0
  %v7799 = vsel %vm40, %v7760, 0
  %v7802 = vsel %vm40, %v7761, 0
  %v7805 = vsel %vm40, %v7762, 0
  %v7808 = vsel %vm40, %v7763, 0
  %v7811 = vsel %vm40, %v7764, 0
  %v7814 = vsel %vm40, %v7765, 0
  %v7817 = vsel %vm40, %v7766, 0
  %v7820 = vsel %vm40, %v7767, 0
  %v7823 = vsel %vm40, %v7768, 0
  %v7826 = vsel %vm40, %v7769, 0
  %v7829 = vsel %vm40, %v7770, 0
  %v7832 = vsel %vm40, %v7771, 0
  %v7835 = vsel %vm40, %v7772, 0
  %v7838 = vsel %vm40, %v7773, 0
  %v7841 = vsel %vm40, %v7774, 0
  %v7844 = vsel %vm40, %v7775, 0
  %v7847 = vsel %vm40, %v7776, 0
  %v7850 = vsel %vm40, %v7777, 0
  %v7853 = vsel %vm40, %v7778, 0
  %v7856 = vsel %vm40, %v7779, 0
  %v7859 = vsel %vm40, %v7780, 0
  %v7862 = vsel %vm40, %v7781, 0
  %v7865 = vsel %vm40, %v7782, 0
  %v7868 = vsel %vm40, %v7783, 0
  %v7871 = vsel %vm40, %v7784, 0
  %v7874 = vsel %vm40, %v7785, 0
  %v7877 = vsel %vm40, %v7786, 0
  %v7880 = vsel %vm40, %v7787, 0
  %v7883 = vsel %vm40, %v7788, 0
  %v7886 = vsel %vm40, %v7789, 0
  %v7889 = vsel %vm548, %v7791, 0
  %7891 = vmatprep.subr.bf16.mxu0 0
  %7892 = vmatpush1.bf16.msra.mxu0 0
  %7893 = vmatprep.subr.bf16.mxu0 0
  %7894 = vmatpush1.bf16.msra.mxu0 0
  %7895 = vmatprep.subr.bf16.mxu0 0
  %7896 = vmatpush1.bf16.msra.mxu0 0
  %7897 = vmatprep.subr.bf16.mxu0 0
  %7898 = vmatpush1.bf16.msra.mxu0 0
  %7899 = vmatprep.subr.bf16.mxu0 0
  %7900 = vmatpush1.bf16.msra.mxu0 0
  %7901 = vmatprep.subr.bf16.mxu0 0
  %7902 = vmatpush1.bf16.msra.mxu0 0
  %7903 = vmatprep.subr.bf16.mxu0 0
  %7904 = vmatpush1.bf16.msra.mxu0 0
  %7905 = vmatprep.subr.bf16.mxu0 0
  %7906 = vmatpush1.bf16.msra.mxu0 %v7889
  %7907 = vmatprep.subr.bf16.mxu0 0
  %7908 = vmatpush2.bf16.msra.mxu0 0
  %7909 = vmatprep.subr.bf16.mxu0 0
  %7910 = vmatpush2.bf16.msra.mxu0 0
  %7911 = vmatprep.subr.bf16.mxu0 0
  %7912 = vmatpush2.bf16.msra.mxu0 0
  %7913 = vmatprep.subr.bf16.mxu0 0
  %7914 = vmatpush2.bf16.msra.mxu0 0
  %7915 = vmatprep.subr.bf16.mxu0 0
  %7916 = vmatpush2.bf16.msra.mxu0 0
  %7917 = vmatprep.subr.bf16.mxu0 0
  %7918 = vmatpush2.bf16.msra.mxu0 0
  %7919 = vmatprep.subr.bf16.mxu0 0
  %7920 = vmatpush2.bf16.msra.mxu0 0
  %7921 = vmatprep.subr.bf16.mxu0 0
  %7922 = vmatpush2.bf16.msra.mxu0 0
  %7923 = vmatprep.mubr.bf16.mxu0 0
  %7924 = vmatmul.mubr.bf16.gmra.mxu0 %v7793
  %v7925 = vpop.f32.mrf.mxu0
  %v7926 = vadd.f32 0.0, %v7925
  %v7927 = vpop.f32.mrf.mxu0
  %v7928 = vpop.f32.mrf.mxu0
  %v7929 = vadd.f32 0.0, %v7928
  %v7930 = vpop.f32.mrf.mxu0
  %7931 = vmatprep.mubr.bf16.mxu0 0
  %7932 = vmatmul.mubr.bf16.gmra.mxu0 %v7796
  %v7933 = vpop.f32.mrf.mxu0
  %v7934 = vadd.f32 0.0, %v7933
  %v7935 = vpop.f32.mrf.mxu0
  %v7936 = vpop.f32.mrf.mxu0
  %v7937 = vadd.f32 0.0, %v7936
  %v7938 = vpop.f32.mrf.mxu0
  %7939 = vmatprep.mubr.bf16.mxu0 0
  %7940 = vmatmul.mubr.bf16.gmra.mxu0 %v7799
  %v7941 = vpop.f32.mrf.mxu0
  %v7942 = vadd.f32 0.0, %v7941
  %v7943 = vpop.f32.mrf.mxu0
  %v7944 = vpop.f32.mrf.mxu0
  %v7945 = vadd.f32 0.0, %v7944
  %v7946 = vpop.f32.mrf.mxu0
  %7947 = vmatprep.mubr.bf16.mxu0 0
  %7948 = vmatmul.mubr.bf16.gmra.mxu0 %v7802
  %v7949 = vpop.f32.mrf.mxu0
  %v7950 = vadd.f32 0.0, %v7949
  %v7951 = vpop.f32.mrf.mxu0
  %v7952 = vpop.f32.mrf.mxu0
  %v7953 = vadd.f32 0.0, %v7952
  %v7954 = vpop.f32.mrf.mxu0
  %7955 = vmatprep.mubr.bf16.mxu0 0
  %7956 = vmatmul.mubr.bf16.gmra.mxu0 %v7805
  %v7957 = vpop.f32.mrf.mxu0
  %v7958 = vadd.f32 0.0, %v7957
  %v7959 = vpop.f32.mrf.mxu0
  %v7960 = vpop.f32.mrf.mxu0
  %v7961 = vadd.f32 0.0, %v7960
  %v7962 = vpop.f32.mrf.mxu0
  %7963 = vmatprep.mubr.bf16.mxu0 0
  %7964 = vmatmul.mubr.bf16.gmra.mxu0 %v7808
  %v7965 = vpop.f32.mrf.mxu0
  %v7966 = vadd.f32 0.0, %v7965
  %v7967 = vpop.f32.mrf.mxu0
  %v7968 = vpop.f32.mrf.mxu0
  %v7969 = vadd.f32 0.0, %v7968
  %v7970 = vpop.f32.mrf.mxu0
  %7971 = vmatprep.mubr.bf16.mxu0 0
  %7972 = vmatmul.mubr.bf16.gmra.mxu0 %v7811
  %v7973 = vpop.f32.mrf.mxu0
  %v7974 = vadd.f32 0.0, %v7973
  %v7975 = vpop.f32.mrf.mxu0
  %v7976 = vpop.f32.mrf.mxu0
  %v7977 = vadd.f32 0.0, %v7976
  %v7978 = vpop.f32.mrf.mxu0
  %7979 = vmatprep.mubr.bf16.mxu0 0
  %7980 = vmatmul.mubr.bf16.gmra.mxu0 %v7814
  %v7981 = vpop.f32.mrf.mxu0
  %v7982 = vadd.f32 0.0, %v7981
  %v7983 = vpop.f32.mrf.mxu0
  %v7984 = vpop.f32.mrf.mxu0
  %v7985 = vadd.f32 0.0, %v7984
  %v7986 = vpop.f32.mrf.mxu0
  %7987 = vmatprep.mubr.bf16.mxu0 0
  %7988 = vmatmul.mubr.bf16.gmra.mxu0 %v7817
  %v7989 = vpop.f32.mrf.mxu0
  %v7990 = vadd.f32 0.0, %v7989
  %v7991 = vpop.f32.mrf.mxu0
  %v7992 = vpop.f32.mrf.mxu0
  %v7993 = vadd.f32 0.0, %v7992
  %v7994 = vpop.f32.mrf.mxu0
  %7995 = vmatprep.mubr.bf16.mxu0 0
  %7996 = vmatmul.mubr.bf16.gmra.mxu0 %v7820
  %v7997 = vpop.f32.mrf.mxu0
  %v7998 = vadd.f32 0.0, %v7997
  %v7999 = vpop.f32.mrf.mxu0
  %v8000 = vpop.f32.mrf.mxu0
  %v8001 = vadd.f32 0.0, %v8000
  %v8002 = vpop.f32.mrf.mxu0
  %8003 = vmatprep.mubr.bf16.mxu0 0
  %8004 = vmatmul.mubr.bf16.gmra.mxu0 %v7823
  %v8005 = vpop.f32.mrf.mxu0
  %v8006 = vadd.f32 0.0, %v8005
  %v8007 = vpop.f32.mrf.mxu0
  %v8008 = vpop.f32.mrf.mxu0
  %v8009 = vadd.f32 0.0, %v8008
  %v8010 = vpop.f32.mrf.mxu0
  %8011 = vmatprep.mubr.bf16.mxu0 0
  %8012 = vmatmul.mubr.bf16.gmra.mxu0 %v7826
  %v8013 = vpop.f32.mrf.mxu0
  %v8014 = vadd.f32 0.0, %v8013
  %v8015 = vpop.f32.mrf.mxu0
  %v8016 = vpop.f32.mrf.mxu0
  %v8017 = vadd.f32 0.0, %v8016
  %v8018 = vpop.f32.mrf.mxu0
  %8019 = vmatprep.mubr.bf16.mxu0 0
  %8020 = vmatmul.mubr.bf16.gmra.mxu0 %v7829
  %v8021 = vpop.f32.mrf.mxu0
  %v8022 = vadd.f32 0.0, %v8021
  %v8023 = vpop.f32.mrf.mxu0
  %v8024 = vpop.f32.mrf.mxu0
  %v8025 = vadd.f32 0.0, %v8024
  %v8026 = vpop.f32.mrf.mxu0
  %8027 = vmatprep.mubr.bf16.mxu0 0
  %8028 = vmatmul.mubr.bf16.gmra.mxu0 %v7832
  %v8029 = vpop.f32.mrf.mxu0
  %v8030 = vadd.f32 0.0, %v8029
  %v8031 = vpop.f32.mrf.mxu0
  %v8032 = vpop.f32.mrf.mxu0
  %v8033 = vadd.f32 0.0, %v8032
  %v8034 = vpop.f32.mrf.mxu0
  %8035 = vmatprep.mubr.bf16.mxu0 0
  %8036 = vmatmul.mubr.bf16.gmra.mxu0 %v7835
  %v8037 = vpop.f32.mrf.mxu0
  %v8038 = vadd.f32 0.0, %v8037
  %v8039 = vpop.f32.mrf.mxu0
  %v8040 = vpop.f32.mrf.mxu0
  %v8041 = vadd.f32 0.0, %v8040
  %v8042 = vpop.f32.mrf.mxu0
  %8043 = vmatprep.mubr.bf16.mxu0 0
  %8044 = vmatmul.mubr.bf16.gmra.mxu0 %v7838
  %v8045 = vpop.f32.mrf.mxu0
  %v8046 = vadd.f32 0.0, %v8045
  %v8047 = vpop.f32.mrf.mxu0
  %v8048 = vpop.f32.mrf.mxu0
  %v8049 = vadd.f32 0.0, %v8048
  %v8050 = vpop.f32.mrf.mxu0
  %8051 = vmatprep.mubr.bf16.mxu0 0
  %8052 = vmatmul.mubr.bf16.gmra.mxu0 %v7841
  %v8053 = vpop.f32.mrf.mxu0
  %v8054 = vadd.f32 0.0, %v8053
  %v8055 = vpop.f32.mrf.mxu0
  %v8056 = vpop.f32.mrf.mxu0
  %v8057 = vadd.f32 0.0, %v8056
  %v8058 = vpop.f32.mrf.mxu0
  %8059 = vmatprep.mubr.bf16.mxu0 0
  %8060 = vmatmul.mubr.bf16.gmra.mxu0 %v7844
  %v8061 = vpop.f32.mrf.mxu0
  %v8062 = vadd.f32 0.0, %v8061
  %v8063 = vpop.f32.mrf.mxu0
  %v8064 = vpop.f32.mrf.mxu0
  %v8065 = vadd.f32 0.0, %v8064
  %v8066 = vpop.f32.mrf.mxu0
  %8067 = vmatprep.mubr.bf16.mxu0 0
  %8068 = vmatmul.mubr.bf16.gmra.mxu0 %v7847
  %v8069 = vpop.f32.mrf.mxu0
  %v8070 = vadd.f32 0.0, %v8069
  %v8071 = vpop.f32.mrf.mxu0
  %v8072 = vpop.f32.mrf.mxu0
  %v8073 = vadd.f32 0.0, %v8072
  %v8074 = vpop.f32.mrf.mxu0
  %8075 = vmatprep.mubr.bf16.mxu0 0
  %8076 = vmatmul.mubr.bf16.gmra.mxu0 %v7850
  %v8077 = vpop.f32.mrf.mxu0
  %v8078 = vadd.f32 0.0, %v8077
  %v8079 = vpop.f32.mrf.mxu0
  %v8080 = vpop.f32.mrf.mxu0
  %v8081 = vadd.f32 0.0, %v8080
  %v8082 = vpop.f32.mrf.mxu0
  %8083 = vmatprep.mubr.bf16.mxu0 0
  %8084 = vmatmul.mubr.bf16.gmra.mxu0 %v7853
  %v8085 = vpop.f32.mrf.mxu0
  %v8086 = vadd.f32 0.0, %v8085
  %v8087 = vpop.f32.mrf.mxu0
  %v8088 = vpop.f32.mrf.mxu0
  %v8089 = vadd.f32 0.0, %v8088
  %v8090 = vpop.f32.mrf.mxu0
  %8091 = vmatprep.mubr.bf16.mxu0 0
  %8092 = vmatmul.mubr.bf16.gmra.mxu0 %v7856
  %v8093 = vpop.f32.mrf.mxu0
  %v8094 = vadd.f32 0.0, %v8093
  %v8095 = vpop.f32.mrf.mxu0
  %v8096 = vpop.f32.mrf.mxu0
  %v8097 = vadd.f32 0.0, %v8096
  %v8098 = vpop.f32.mrf.mxu0
  %8099 = vmatprep.mubr.bf16.mxu0 0
  %8100 = vmatmul.mubr.bf16.gmra.mxu0 %v7859
  %v8101 = vpop.f32.mrf.mxu0
  %v8102 = vadd.f32 0.0, %v8101
  %v8103 = vpop.f32.mrf.mxu0
  %v8104 = vpop.f32.mrf.mxu0
  %v8105 = vadd.f32 0.0, %v8104
  %v8106 = vpop.f32.mrf.mxu0
  %8107 = vmatprep.mubr.bf16.mxu0 0
  %8108 = vmatmul.mubr.bf16.gmra.mxu0 %v7862
  %v8109 = vpop.f32.mrf.mxu0
  %v8110 = vadd.f32 0.0, %v8109
  %v8111 = vpop.f32.mrf.mxu0
  %v8112 = vpop.f32.mrf.mxu0
  %v8113 = vadd.f32 0.0, %v8112
  %v8114 = vpop.f32.mrf.mxu0
  %8115 = vmatprep.mubr.bf16.mxu0 0
  %8116 = vmatmul.mubr.bf16.gmra.mxu0 %v7865
  %v8117 = vpop.f32.mrf.mxu0
  %v8118 = vadd.f32 0.0, %v8117
  %v8119 = vpop.f32.mrf.mxu0
  %v8120 = vpop.f32.mrf.mxu0
  %v8121 = vadd.f32 0.0, %v8120
  %v8122 = vpop.f32.mrf.mxu0
  %8123 = vmatprep.mubr.bf16.mxu0 0
  %8124 = vmatmul.mubr.bf16.gmra.mxu0 %v7868
  %v8125 = vpop.f32.mrf.mxu0
  %v8126 = vadd.f32 0.0, %v8125
  %v8127 = vpop.f32.mrf.mxu0
  %v8128 = vpop.f32.mrf.mxu0
  %v8129 = vadd.f32 0.0, %v8128
  %v8130 = vpop.f32.mrf.mxu0
  %8131 = vmatprep.mubr.bf16.mxu0 0
  %8132 = vmatmul.mubr.bf16.gmra.mxu0 %v7871
  %v8133 = vpop.f32.mrf.mxu0
  %v8134 = vadd.f32 0.0, %v8133
  %v8135 = vpop.f32.mrf.mxu0
  %v8136 = vpop.f32.mrf.mxu0
  %v8137 = vadd.f32 0.0, %v8136
  %v8138 = vpop.f32.mrf.mxu0
  %8139 = vmatprep.mubr.bf16.mxu0 0
  %8140 = vmatmul.mubr.bf16.gmra.mxu0 %v7874
  %v8141 = vpop.f32.mrf.mxu0
  %v8142 = vadd.f32 0.0, %v8141
  %v8143 = vpop.f32.mrf.mxu0
  %v8144 = vpop.f32.mrf.mxu0
  %v8145 = vadd.f32 0.0, %v8144
  %v8146 = vpop.f32.mrf.mxu0
  %8147 = vmatprep.mubr.bf16.mxu0 0
  %8148 = vmatmul.mubr.bf16.gmra.mxu0 %v7877
  %v8149 = vpop.f32.mrf.mxu0
  %v8150 = vadd.f32 0.0, %v8149
  %v8151 = vpop.f32.mrf.mxu0
  %v8152 = vpop.f32.mrf.mxu0
  %v8153 = vadd.f32 0.0, %v8152
  %v8154 = vpop.f32.mrf.mxu0
  %8155 = vmatprep.mubr.bf16.mxu0 0
  %8156 = vmatmul.mubr.bf16.gmra.mxu0 %v7880
  %v8157 = vpop.f32.mrf.mxu0
  %v8158 = vadd.f32 0.0, %v8157
  %v8159 = vpop.f32.mrf.mxu0
  %v8160 = vpop.f32.mrf.mxu0
  %v8161 = vadd.f32 0.0, %v8160
  %v8162 = vpop.f32.mrf.mxu0
  %8163 = vmatprep.mubr.bf16.mxu0 0
  %8164 = vmatmul.mubr.bf16.gmra.mxu0 %v7883
  %v8165 = vpop.f32.mrf.mxu0
  %v8166 = vadd.f32 0.0, %v8165
  %v8167 = vpop.f32.mrf.mxu0
  %v8168 = vpop.f32.mrf.mxu0
  %v8169 = vadd.f32 0.0, %v8168
  %v8170 = vpop.f32.mrf.mxu0
  %8171 = vmatprep.mubr.bf16.mxu0 0
  %8172 = vmatmul.mubr.bf16.gmra.mxu0 %v7886
  %v8173 = vpop.f32.mrf.mxu0
  %v8174 = vadd.f32 0.0, %v8173
  %v8175 = vpop.f32.mrf.mxu0
  %v8176 = vpop.f32.mrf.mxu0
  %v8177 = vadd.f32 0.0, %v8176
  %v8178 = vpop.f32.mrf.mxu0
  %8179 = vdwg.mxu0
  %v8180 = vadd.f32 %v7630, %v7926
  %v8181 = vadd.f32 %v7631, %v7929
  %v8182 = vadd.f32 %v7632, %v7934
  %v8183 = vadd.f32 %v7633, %v7937
  %v8184 = vadd.f32 %v7634, %v7942
  %v8185 = vadd.f32 %v7635, %v7945
  %v8186 = vadd.f32 %v7636, %v7950
  %v8187 = vadd.f32 %v7637, %v7953
  %v8188 = vadd.f32 %v7638, %v7958
  %v8189 = vadd.f32 %v7639, %v7961
  %v8190 = vadd.f32 %v7640, %v7966
  %v8191 = vadd.f32 %v7641, %v7969
  %v8192 = vadd.f32 %v7642, %v7974
  %v8193 = vadd.f32 %v7643, %v7977
  %v8194 = vadd.f32 %v7644, %v7982
  %v8195 = vadd.f32 %v7645, %v7985
  %v8196 = vadd.f32 %v7646, %v7990
  %v8197 = vadd.f32 %v7647, %v7993
  %v8198 = vadd.f32 %v7648, %v7998
  %v8199 = vadd.f32 %v7649, %v8001
  %v8200 = vadd.f32 %v7650, %v8006
  %v8201 = vadd.f32 %v7651, %v8009
  %v8202 = vadd.f32 %v7652, %v8014
  %v8203 = vadd.f32 %v7653, %v8017
  %v8204 = vadd.f32 %v7654, %v8022
  %v8205 = vadd.f32 %v7655, %v8025
  %v8206 = vadd.f32 %v7656, %v8030
  %v8207 = vadd.f32 %v7657, %v8033
  %v8208 = vadd.f32 %v7658, %v8038
  %v8209 = vadd.f32 %v7659, %v8041
  %v8210 = vadd.f32 %v7660, %v8046
  %v8211 = vadd.f32 %v7661, %v8049
  %v8212 = vadd.f32 %v7662, %v8054
  %v8213 = vadd.f32 %v7663, %v8057
  %v8214 = vadd.f32 %v7664, %v8062
  %v8215 = vadd.f32 %v7665, %v8065
  %v8216 = vadd.f32 %v7666, %v8070
  %v8217 = vadd.f32 %v7667, %v8073
  %v8218 = vadd.f32 %v7668, %v8078
  %v8219 = vadd.f32 %v7669, %v8081
  %v8220 = vadd.f32 %v7670, %v8086
  %v8221 = vadd.f32 %v7671, %v8089
  %v8222 = vadd.f32 %v7672, %v8094
  %v8223 = vadd.f32 %v7673, %v8097
  %v8224 = vadd.f32 %v7674, %v8102
  %v8225 = vadd.f32 %v7675, %v8105
  %v8226 = vadd.f32 %v7676, %v8110
  %v8227 = vadd.f32 %v7677, %v8113
  %v8228 = vadd.f32 %v7678, %v8118
  %v8229 = vadd.f32 %v7679, %v8121
  %v8230 = vadd.f32 %v7680, %v8126
  %v8231 = vadd.f32 %v7681, %v8129
  %v8232 = vadd.f32 %v7682, %v8134
  %v8233 = vadd.f32 %v7683, %v8137
  %v8234 = vadd.f32 %v7684, %v8142
  %v8235 = vadd.f32 %v7685, %v8145
  %v8236 = vadd.f32 %v7686, %v8150
  %v8237 = vadd.f32 %v7687, %v8153
  %v8238 = vadd.f32 %v7688, %v8158
  %v8239 = vadd.f32 %v7689, %v8161
  %v8240 = vadd.f32 %v7690, %v8166
  %v8241 = vadd.f32 %v7691, %v8169
  %v8242 = vadd.f32 %v7692, %v8174
  %v8243 = vadd.f32 %v7693, %v8177
  %v8244 = vld [vmem:[%s192 + $0x2] sm:$0xff]
  %v8245 = vld [vmem:[%s192 + $0xa] sm:$0xff]
  %v8246 = vld [vmem:[%s192 + $0x1a] sm:$0xff]
  %v8247 = vld [vmem:[%s192 + $0x22] sm:$0xff]
  %v8248 = vld [vmem:[%s192 + $0x32] sm:$0xff]
  %v8249 = vld [vmem:[%s192 + $0x3a] sm:$0xff]
  %v8250 = vld [vmem:[%s192 + $0x4a] sm:$0xff]
  %v8251 = vld [vmem:[%s192 + $0x52] sm:$0xff]
  %v8252 = vld [vmem:[%s192 + $0x62] sm:$0xff]
  %v8253 = vld [vmem:[%s192 + $0x6a] sm:$0xff]
  %v8254 = vld [vmem:[%s192 + $0x7a] sm:$0xff]
  %v8255 = vld [vmem:[%s192 + $0x82] sm:$0xff]
  %v8256 = vld [vmem:[%s192 + $0x92] sm:$0xff]
  %v8257 = vld [vmem:[%s192 + $0x9a] sm:$0xff]
  %v8258 = vld [vmem:[%s192 + $0xaa] sm:$0xff]
  %v8259 = vld [vmem:[%s192 + $0xb2] sm:$0xff]
  %v8260 = vld [vmem:[%s192 + $0xc2] sm:$0xff]
  %v8261 = vld [vmem:[%s192 + $0xca] sm:$0xff]
  %v8262 = vld [vmem:[%s192 + $0xda] sm:$0xff]
  %v8263 = vld [vmem:[%s192 + $0xe2] sm:$0xff]
  %v8264 = vld [vmem:[%s192 + $0xf2] sm:$0xff]
  %v8265 = vld [vmem:[%s192 + $0xfa] sm:$0xff]
  %v8266 = vld [vmem:[%s192 + $0x10a] sm:$0xff]
  %v8267 = vld [vmem:[%s192 + $0x112] sm:$0xff]
  %v8268 = vld [vmem:[%s192 + $0x122] sm:$0xff]
  %v8269 = vld [vmem:[%s192 + $0x12a] sm:$0xff]
  %v8270 = vld [vmem:[%s192 + $0x13a] sm:$0xff]
  %v8271 = vld [vmem:[%s192 + $0x142] sm:$0xff]
  %v8272 = vld [vmem:[%s192 + $0x152] sm:$0xff]
  %v8273 = vld [vmem:[%s192 + $0x15a] sm:$0xff]
  %v8274 = vld [vmem:[%s192 + $0x16a] sm:$0xff]
  %v8275 = vld [vmem:[%s192 + $0x172] sm:$0xff]
  %v8276 = vld [vmem:[%s192 + $0x1b2] sm:$0xff]
  %v8277 = vld [vmem:[%s192 + $0x1ba] sm:$0xff]
  %v8278 = vld [vmem:[%s192 + $0x1ca] sm:$0xff]
  %v8279 = vld [vmem:[%s192 + $0x1d2] sm:$0xff]
  %v8280 = vld [vmem:[%s192 + $0x1e2] sm:$0xff]
  %v8281 = vld [vmem:[%s192 + $0x1ea] sm:$0xff]
  %v8282 = vld [vmem:[%s192 + $0x1fa] sm:$0xff]
  %v8283 = vld [vmem:[%s192 + $0x202] sm:$0xff]
  %v8284 = vld [vmem:[%s192 + $0x212] sm:$0xff]
  %v8285 = vld [vmem:[%s192 + $0x21a] sm:$0xff]
  %v8286 = vld [vmem:[%s192 + $0x22a] sm:$0xff]
  %v8287 = vld [vmem:[%s192 + $0x232] sm:$0xff]
  %v8288 = vld [vmem:[%s192 + $0x242] sm:$0xff]
  %v8289 = vld [vmem:[%s192 + $0x24a] sm:$0xff]
  %v8290 = vld [vmem:[%s192 + $0x25a] sm:$0xff]
  %v8291 = vld [vmem:[%s192 + $0x262] sm:$0xff]
  %v8292 = vld [vmem:[%s192 + $0x272] sm:$0xff]
  %v8293 = vld [vmem:[%s192 + $0x27a] sm:$0xff]
  %v8294 = vld [vmem:[%s192 + $0x28a] sm:$0xff]
  %v8295 = vld [vmem:[%s192 + $0x292] sm:$0xff]
  %v8296 = vld [vmem:[%s192 + $0x2a2] sm:$0xff]
  %v8297 = vld [vmem:[%s192 + $0x2aa] sm:$0xff]
  %v8298 = vld [vmem:[%s192 + $0x2ba] sm:$0xff]
  %v8299 = vld [vmem:[%s192 + $0x2c2] sm:$0xff]
  %v8300 = vld [vmem:[%s192 + $0x2d2] sm:$0xff]
  %v8301 = vld [vmem:[%s192 + $0x2da] sm:$0xff]
  %v8302 = vld [vmem:[%s192 + $0x2ea] sm:$0xff]
  %v8303 = vld [vmem:[%s192 + $0x2f2] sm:$0xff]
  %v8304 = vld [vmem:[%s192 + $0x302] sm:$0xff]
  %v8305 = vld [vmem:[%s192 + $0x30a] sm:$0xff]
  %v8306 = vld [vmem:[%s192 + $0x31a] sm:$0xff]
  %v8307 = vld [vmem:[%s192 + $0x322] sm:$0xff]
  %v8308 = vpack.c.bf16 %v8245, %v8244
  %v8309 = vpack.c.bf16 %v8247, %v8246
  %v8310 = vpack.c.bf16 %v8249, %v8248
  %v8311 = vpack.c.bf16 %v8251, %v8250
  %v8312 = vpack.c.bf16 %v8253, %v8252
  %v8313 = vpack.c.bf16 %v8255, %v8254
  %v8314 = vpack.c.bf16 %v8257, %v8256
  %v8315 = vpack.c.bf16 %v8259, %v8258
  %v8316 = vpack.c.bf16 %v8261, %v8260
  %v8317 = vpack.c.bf16 %v8263, %v8262
  %v8318 = vpack.c.bf16 %v8265, %v8264
  %v8319 = vpack.c.bf16 %v8267, %v8266
  %v8320 = vpack.c.bf16 %v8269, %v8268
  %v8321 = vpack.c.bf16 %v8271, %v8270
  %v8322 = vpack.c.bf16 %v8273, %v8272
  %v8323 = vpack.c.bf16 %v8275, %v8274
  %v8324 = vpack.c.bf16 %v8277, %v8276
  %v8325 = vpack.c.bf16 %v8279, %v8278
  %v8326 = vpack.c.bf16 %v8281, %v8280
  %v8327 = vpack.c.bf16 %v8283, %v8282
  %v8328 = vpack.c.bf16 %v8285, %v8284
  %v8329 = vpack.c.bf16 %v8287, %v8286
  %v8330 = vpack.c.bf16 %v8289, %v8288
  %v8331 = vpack.c.bf16 %v8291, %v8290
  %v8332 = vpack.c.bf16 %v8293, %v8292
  %v8333 = vpack.c.bf16 %v8295, %v8294
  %v8334 = vpack.c.bf16 %v8297, %v8296
  %v8335 = vpack.c.bf16 %v8299, %v8298
  %v8336 = vpack.c.bf16 %v8301, %v8300
  %v8337 = vpack.c.bf16 %v8303, %v8302
  %v8338 = vpack.c.bf16 %v8305, %v8304
  %v8339 = vpack.c.bf16 %v8307, %v8306
  %s8340 = scalar_lea.vmem %s2, 10
  %v8341 = vld [vmem:[%s8340] sm:$0x3]
  %v8343 = vsel %vm40, %v8308, 0
  %v8346 = vsel %vm40, %v8309, 0
  %v8349 = vsel %vm40, %v8310, 0
  %v8352 = vsel %vm40, %v8311, 0
  %v8355 = vsel %vm40, %v8312, 0
  %v8358 = vsel %vm40, %v8313, 0
  %v8361 = vsel %vm40, %v8314, 0
  %v8364 = vsel %vm40, %v8315, 0
  %v8367 = vsel %vm40, %v8316, 0
  %v8370 = vsel %vm40, %v8317, 0
  %v8373 = vsel %vm40, %v8318, 0
  %v8376 = vsel %vm40, %v8319, 0
  %v8379 = vsel %vm40, %v8320, 0
  %v8382 = vsel %vm40, %v8321, 0
  %v8385 = vsel %vm40, %v8322, 0
  %v8388 = vsel %vm40, %v8323, 0
  %v8391 = vsel %vm40, %v8324, 0
  %v8394 = vsel %vm40, %v8325, 0
  %v8397 = vsel %vm40, %v8326, 0
  %v8400 = vsel %vm40, %v8327, 0
  %v8403 = vsel %vm40, %v8328, 0
  %v8406 = vsel %vm40, %v8329, 0
  %v8409 = vsel %vm40, %v8330, 0
  %v8412 = vsel %vm40, %v8331, 0
  %v8415 = vsel %vm40, %v8332, 0
  %v8418 = vsel %vm40, %v8333, 0
  %v8421 = vsel %vm40, %v8334, 0
  %v8424 = vsel %vm40, %v8335, 0
  %v8427 = vsel %vm40, %v8336, 0
  %v8430 = vsel %vm40, %v8337, 0
  %v8433 = vsel %vm40, %v8338, 0
  %v8436 = vsel %vm40, %v8339, 0
  %v8439 = vsel %vm548, %v8341, 0
  %8441 = vmatprep.subr.bf16.mxu0 0
  %8442 = vmatpush1.bf16.msra.mxu0 0
  %8443 = vmatprep.subr.bf16.mxu0 0
  %8444 = vmatpush1.bf16.msra.mxu0 0
  %8445 = vmatprep.subr.bf16.mxu0 0
  %8446 = vmatpush1.bf16.msra.mxu0 0
  %8447 = vmatprep.subr.bf16.mxu0 0
  %8448 = vmatpush1.bf16.msra.mxu0 0
  %8449 = vmatprep.subr.bf16.mxu0 0
  %8450 = vmatpush1.bf16.msra.mxu0 0
  %8451 = vmatprep.subr.bf16.mxu0 0
  %8452 = vmatpush1.bf16.msra.mxu0 0
  %8453 = vmatprep.subr.bf16.mxu0 0
  %8454 = vmatpush1.bf16.msra.mxu0 0
  %8455 = vmatprep.subr.bf16.mxu0 0
  %8456 = vmatpush1.bf16.msra.mxu0 %v8439
  %8457 = vmatprep.subr.bf16.mxu0 0
  %8458 = vmatpush2.bf16.msra.mxu0 0
  %8459 = vmatprep.subr.bf16.mxu0 0
  %8460 = vmatpush2.bf16.msra.mxu0 0
  %8461 = vmatprep.subr.bf16.mxu0 0
  %8462 = vmatpush2.bf16.msra.mxu0 0
  %8463 = vmatprep.subr.bf16.mxu0 0
  %8464 = vmatpush2.bf16.msra.mxu0 0
  %8465 = vmatprep.subr.bf16.mxu0 0
  %8466 = vmatpush2.bf16.msra.mxu0 0
  %8467 = vmatprep.subr.bf16.mxu0 0
  %8468 = vmatpush2.bf16.msra.mxu0 0
  %8469 = vmatprep.subr.bf16.mxu0 0
  %8470 = vmatpush2.bf16.msra.mxu0 0
  %8471 = vmatprep.subr.bf16.mxu0 0
  %8472 = vmatpush2.bf16.msra.mxu0 0
  %8473 = vmatprep.mubr.bf16.mxu0 0
  %8474 = vmatmul.mubr.bf16.gmra.mxu0 %v8343
  %v8475 = vpop.f32.mrf.mxu0
  %v8476 = vadd.f32 0.0, %v8475
  %v8477 = vpop.f32.mrf.mxu0
  %v8478 = vpop.f32.mrf.mxu0
  %v8479 = vadd.f32 0.0, %v8478
  %v8480 = vpop.f32.mrf.mxu0
  %8481 = vmatprep.mubr.bf16.mxu0 0
  %8482 = vmatmul.mubr.bf16.gmra.mxu0 %v8346
  %v8483 = vpop.f32.mrf.mxu0
  %v8484 = vadd.f32 0.0, %v8483
  %v8485 = vpop.f32.mrf.mxu0
  %v8486 = vpop.f32.mrf.mxu0
  %v8487 = vadd.f32 0.0, %v8486
  %v8488 = vpop.f32.mrf.mxu0
  %8489 = vmatprep.mubr.bf16.mxu0 0
  %8490 = vmatmul.mubr.bf16.gmra.mxu0 %v8349
  %v8491 = vpop.f32.mrf.mxu0
  %v8492 = vadd.f32 0.0, %v8491
  %v8493 = vpop.f32.mrf.mxu0
  %v8494 = vpop.f32.mrf.mxu0
  %v8495 = vadd.f32 0.0, %v8494
  %v8496 = vpop.f32.mrf.mxu0
  %8497 = vmatprep.mubr.bf16.mxu0 0
  %8498 = vmatmul.mubr.bf16.gmra.mxu0 %v8352
  %v8499 = vpop.f32.mrf.mxu0
  %v8500 = vadd.f32 0.0, %v8499
  %v8501 = vpop.f32.mrf.mxu0
  %v8502 = vpop.f32.mrf.mxu0
  %v8503 = vadd.f32 0.0, %v8502
  %v8504 = vpop.f32.mrf.mxu0
  %8505 = vmatprep.mubr.bf16.mxu0 0
  %8506 = vmatmul.mubr.bf16.gmra.mxu0 %v8355
  %v8507 = vpop.f32.mrf.mxu0
  %v8508 = vadd.f32 0.0, %v8507
  %v8509 = vpop.f32.mrf.mxu0
  %v8510 = vpop.f32.mrf.mxu0
  %v8511 = vadd.f32 0.0, %v8510
  %v8512 = vpop.f32.mrf.mxu0
  %8513 = vmatprep.mubr.bf16.mxu0 0
  %8514 = vmatmul.mubr.bf16.gmra.mxu0 %v8358
  %v8515 = vpop.f32.mrf.mxu0
  %v8516 = vadd.f32 0.0, %v8515
  %v8517 = vpop.f32.mrf.mxu0
  %v8518 = vpop.f32.mrf.mxu0
  %v8519 = vadd.f32 0.0, %v8518
  %v8520 = vpop.f32.mrf.mxu0
  %8521 = vmatprep.mubr.bf16.mxu0 0
  %8522 = vmatmul.mubr.bf16.gmra.mxu0 %v8361
  %v8523 = vpop.f32.mrf.mxu0
  %v8524 = vadd.f32 0.0, %v8523
  %v8525 = vpop.f32.mrf.mxu0
  %v8526 = vpop.f32.mrf.mxu0
  %v8527 = vadd.f32 0.0, %v8526
  %v8528 = vpop.f32.mrf.mxu0
  %8529 = vmatprep.mubr.bf16.mxu0 0
  %8530 = vmatmul.mubr.bf16.gmra.mxu0 %v8364
  %v8531 = vpop.f32.mrf.mxu0
  %v8532 = vadd.f32 0.0, %v8531
  %v8533 = vpop.f32.mrf.mxu0
  %v8534 = vpop.f32.mrf.mxu0
  %v8535 = vadd.f32 0.0, %v8534
  %v8536 = vpop.f32.mrf.mxu0
  %8537 = vmatprep.mubr.bf16.mxu0 0
  %8538 = vmatmul.mubr.bf16.gmra.mxu0 %v8367
  %v8539 = vpop.f32.mrf.mxu0
  %v8540 = vadd.f32 0.0, %v8539
  %v8541 = vpop.f32.mrf.mxu0
  %v8542 = vpop.f32.mrf.mxu0
  %v8543 = vadd.f32 0.0, %v8542
  %v8544 = vpop.f32.mrf.mxu0
  %8545 = vmatprep.mubr.bf16.mxu0 0
  %8546 = vmatmul.mubr.bf16.gmra.mxu0 %v8370
  %v8547 = vpop.f32.mrf.mxu0
  %v8548 = vadd.f32 0.0, %v8547
  %v8549 = vpop.f32.mrf.mxu0
  %v8550 = vpop.f32.mrf.mxu0
  %v8551 = vadd.f32 0.0, %v8550
  %v8552 = vpop.f32.mrf.mxu0
  %8553 = vmatprep.mubr.bf16.mxu0 0
  %8554 = vmatmul.mubr.bf16.gmra.mxu0 %v8373
  %v8555 = vpop.f32.mrf.mxu0
  %v8556 = vadd.f32 0.0, %v8555
  %v8557 = vpop.f32.mrf.mxu0
  %v8558 = vpop.f32.mrf.mxu0
  %v8559 = vadd.f32 0.0, %v8558
  %v8560 = vpop.f32.mrf.mxu0
  %8561 = vmatprep.mubr.bf16.mxu0 0
  %8562 = vmatmul.mubr.bf16.gmra.mxu0 %v8376
  %v8563 = vpop.f32.mrf.mxu0
  %v8564 = vadd.f32 0.0, %v8563
  %v8565 = vpop.f32.mrf.mxu0
  %v8566 = vpop.f32.mrf.mxu0
  %v8567 = vadd.f32 0.0, %v8566
  %v8568 = vpop.f32.mrf.mxu0
  %8569 = vmatprep.mubr.bf16.mxu0 0
  %8570 = vmatmul.mubr.bf16.gmra.mxu0 %v8379
  %v8571 = vpop.f32.mrf.mxu0
  %v8572 = vadd.f32 0.0, %v8571
  %v8573 = vpop.f32.mrf.mxu0
  %v8574 = vpop.f32.mrf.mxu0
  %v8575 = vadd.f32 0.0, %v8574
  %v8576 = vpop.f32.mrf.mxu0
  %8577 = vmatprep.mubr.bf16.mxu0 0
  %8578 = vmatmul.mubr.bf16.gmra.mxu0 %v8382
  %v8579 = vpop.f32.mrf.mxu0
  %v8580 = vadd.f32 0.0, %v8579
  %v8581 = vpop.f32.mrf.mxu0
  %v8582 = vpop.f32.mrf.mxu0
  %v8583 = vadd.f32 0.0, %v8582
  %v8584 = vpop.f32.mrf.mxu0
  %8585 = vmatprep.mubr.bf16.mxu0 0
  %8586 = vmatmul.mubr.bf16.gmra.mxu0 %v8385
  %v8587 = vpop.f32.mrf.mxu0
  %v8588 = vadd.f32 0.0, %v8587
  %v8589 = vpop.f32.mrf.mxu0
  %v8590 = vpop.f32.mrf.mxu0
  %v8591 = vadd.f32 0.0, %v8590
  %v8592 = vpop.f32.mrf.mxu0
  %8593 = vmatprep.mubr.bf16.mxu0 0
  %8594 = vmatmul.mubr.bf16.gmra.mxu0 %v8388
  %v8595 = vpop.f32.mrf.mxu0
  %v8596 = vadd.f32 0.0, %v8595
  %v8597 = vpop.f32.mrf.mxu0
  %v8598 = vpop.f32.mrf.mxu0
  %v8599 = vadd.f32 0.0, %v8598
  %v8600 = vpop.f32.mrf.mxu0
  %8601 = vmatprep.mubr.bf16.mxu0 0
  %8602 = vmatmul.mubr.bf16.gmra.mxu0 %v8391
  %v8603 = vpop.f32.mrf.mxu0
  %v8604 = vadd.f32 0.0, %v8603
  %v8605 = vpop.f32.mrf.mxu0
  %v8606 = vpop.f32.mrf.mxu0
  %v8607 = vadd.f32 0.0, %v8606
  %v8608 = vpop.f32.mrf.mxu0
  %8609 = vmatprep.mubr.bf16.mxu0 0
  %8610 = vmatmul.mubr.bf16.gmra.mxu0 %v8394
  %v8611 = vpop.f32.mrf.mxu0
  %v8612 = vadd.f32 0.0, %v8611
  %v8613 = vpop.f32.mrf.mxu0
  %v8614 = vpop.f32.mrf.mxu0
  %v8615 = vadd.f32 0.0, %v8614
  %v8616 = vpop.f32.mrf.mxu0
  %8617 = vmatprep.mubr.bf16.mxu0 0
  %8618 = vmatmul.mubr.bf16.gmra.mxu0 %v8397
  %v8619 = vpop.f32.mrf.mxu0
  %v8620 = vadd.f32 0.0, %v8619
  %v8621 = vpop.f32.mrf.mxu0
  %v8622 = vpop.f32.mrf.mxu0
  %v8623 = vadd.f32 0.0, %v8622
  %v8624 = vpop.f32.mrf.mxu0
  %8625 = vmatprep.mubr.bf16.mxu0 0
  %8626 = vmatmul.mubr.bf16.gmra.mxu0 %v8400
  %v8627 = vpop.f32.mrf.mxu0
  %v8628 = vadd.f32 0.0, %v8627
  %v8629 = vpop.f32.mrf.mxu0
  %v8630 = vpop.f32.mrf.mxu0
  %v8631 = vadd.f32 0.0, %v8630
  %v8632 = vpop.f32.mrf.mxu0
  %8633 = vmatprep.mubr.bf16.mxu0 0
  %8634 = vmatmul.mubr.bf16.gmra.mxu0 %v8403
  %v8635 = vpop.f32.mrf.mxu0
  %v8636 = vadd.f32 0.0, %v8635
  %v8637 = vpop.f32.mrf.mxu0
  %v8638 = vpop.f32.mrf.mxu0
  %v8639 = vadd.f32 0.0, %v8638
  %v8640 = vpop.f32.mrf.mxu0
  %8641 = vmatprep.mubr.bf16.mxu0 0
  %8642 = vmatmul.mubr.bf16.gmra.mxu0 %v8406
  %v8643 = vpop.f32.mrf.mxu0
  %v8644 = vadd.f32 0.0, %v8643
  %v8645 = vpop.f32.mrf.mxu0
  %v8646 = vpop.f32.mrf.mxu0
  %v8647 = vadd.f32 0.0, %v8646
  %v8648 = vpop.f32.mrf.mxu0
  %8649 = vmatprep.mubr.bf16.mxu0 0
  %8650 = vmatmul.mubr.bf16.gmra.mxu0 %v8409
  %v8651 = vpop.f32.mrf.mxu0
  %v8652 = vadd.f32 0.0, %v8651
  %v8653 = vpop.f32.mrf.mxu0
  %v8654 = vpop.f32.mrf.mxu0
  %v8655 = vadd.f32 0.0, %v8654
  %v8656 = vpop.f32.mrf.mxu0
  %8657 = vmatprep.mubr.bf16.mxu0 0
  %8658 = vmatmul.mubr.bf16.gmra.mxu0 %v8412
  %v8659 = vpop.f32.mrf.mxu0
  %v8660 = vadd.f32 0.0, %v8659
  %v8661 = vpop.f32.mrf.mxu0
  %v8662 = vpop.f32.mrf.mxu0
  %v8663 = vadd.f32 0.0, %v8662
  %v8664 = vpop.f32.mrf.mxu0
  %8665 = vmatprep.mubr.bf16.mxu0 0
  %8666 = vmatmul.mubr.bf16.gmra.mxu0 %v8415
  %v8667 = vpop.f32.mrf.mxu0
  %v8668 = vadd.f32 0.0, %v8667
  %v8669 = vpop.f32.mrf.mxu0
  %v8670 = vpop.f32.mrf.mxu0
  %v8671 = vadd.f32 0.0, %v8670
  %v8672 = vpop.f32.mrf.mxu0
  %8673 = vmatprep.mubr.bf16.mxu0 0
  %8674 = vmatmul.mubr.bf16.gmra.mxu0 %v8418
  %v8675 = vpop.f32.mrf.mxu0
  %v8676 = vadd.f32 0.0, %v8675
  %v8677 = vpop.f32.mrf.mxu0
  %v8678 = vpop.f32.mrf.mxu0
  %v8679 = vadd.f32 0.0, %v8678
  %v8680 = vpop.f32.mrf.mxu0
  %8681 = vmatprep.mubr.bf16.mxu0 0
  %8682 = vmatmul.mubr.bf16.gmra.mxu0 %v8421
  %v8683 = vpop.f32.mrf.mxu0
  %v8684 = vadd.f32 0.0, %v8683
  %v8685 = vpop.f32.mrf.mxu0
  %v8686 = vpop.f32.mrf.mxu0
  %v8687 = vadd.f32 0.0, %v8686
  %v8688 = vpop.f32.mrf.mxu0
  %8689 = vmatprep.mubr.bf16.mxu0 0
  %8690 = vmatmul.mubr.bf16.gmra.mxu0 %v8424
  %v8691 = vpop.f32.mrf.mxu0
  %v8692 = vadd.f32 0.0, %v8691
  %v8693 = vpop.f32.mrf.mxu0
  %v8694 = vpop.f32.mrf.mxu0
  %v8695 = vadd.f32 0.0, %v8694
  %v8696 = vpop.f32.mrf.mxu0
  %8697 = vmatprep.mubr.bf16.mxu0 0
  %8698 = vmatmul.mubr.bf16.gmra.mxu0 %v8427
  %v8699 = vpop.f32.mrf.mxu0
  %v8700 = vadd.f32 0.0, %v8699
  %v8701 = vpop.f32.mrf.mxu0
  %v8702 = vpop.f32.mrf.mxu0
  %v8703 = vadd.f32 0.0, %v8702
  %v8704 = vpop.f32.mrf.mxu0
  %8705 = vmatprep.mubr.bf16.mxu0 0
  %8706 = vmatmul.mubr.bf16.gmra.mxu0 %v8430
  %v8707 = vpop.f32.mrf.mxu0
  %v8708 = vadd.f32 0.0, %v8707
  %v8709 = vpop.f32.mrf.mxu0
  %v8710 = vpop.f32.mrf.mxu0
  %v8711 = vadd.f32 0.0, %v8710
  %v8712 = vpop.f32.mrf.mxu0
  %8713 = vmatprep.mubr.bf16.mxu0 0
  %8714 = vmatmul.mubr.bf16.gmra.mxu0 %v8433
  %v8715 = vpop.f32.mrf.mxu0
  %v8716 = vadd.f32 0.0, %v8715
  %v8717 = vpop.f32.mrf.mxu0
  %v8718 = vpop.f32.mrf.mxu0
  %v8719 = vadd.f32 0.0, %v8718
  %v8720 = vpop.f32.mrf.mxu0
  %8721 = vmatprep.mubr.bf16.mxu0 0
  %8722 = vmatmul.mubr.bf16.gmra.mxu0 %v8436
  %v8723 = vpop.f32.mrf.mxu0
  %v8724 = vadd.f32 0.0, %v8723
  %v8725 = vpop.f32.mrf.mxu0
  %v8726 = vpop.f32.mrf.mxu0
  %v8727 = vadd.f32 0.0, %v8726
  %v8728 = vpop.f32.mrf.mxu0
  %8729 = vdwg.mxu0
  %v8730 = vadd.f32 %v8180, %v8476
  %v8731 = vadd.f32 %v8181, %v8479
  %v8732 = vadd.f32 %v8182, %v8484
  %v8733 = vadd.f32 %v8183, %v8487
  %v8734 = vadd.f32 %v8184, %v8492
  %v8735 = vadd.f32 %v8185, %v8495
  %v8736 = vadd.f32 %v8186, %v8500
  %v8737 = vadd.f32 %v8187, %v8503
  %v8738 = vadd.f32 %v8188, %v8508
  %v8739 = vadd.f32 %v8189, %v8511
  %v8740 = vadd.f32 %v8190, %v8516
  %v8741 = vadd.f32 %v8191, %v8519
  %v8742 = vadd.f32 %v8192, %v8524
  %v8743 = vadd.f32 %v8193, %v8527
  %v8744 = vadd.f32 %v8194, %v8532
  %v8745 = vadd.f32 %v8195, %v8535
  %v8746 = vadd.f32 %v8196, %v8540
  %v8747 = vadd.f32 %v8197, %v8543
  %v8748 = vadd.f32 %v8198, %v8548
  %v8749 = vadd.f32 %v8199, %v8551
  %v8750 = vadd.f32 %v8200, %v8556
  %v8751 = vadd.f32 %v8201, %v8559
  %v8752 = vadd.f32 %v8202, %v8564
  %v8753 = vadd.f32 %v8203, %v8567
  %v8754 = vadd.f32 %v8204, %v8572
  %v8755 = vadd.f32 %v8205, %v8575
  %v8756 = vadd.f32 %v8206, %v8580
  %v8757 = vadd.f32 %v8207, %v8583
  %v8758 = vadd.f32 %v8208, %v8588
  %v8759 = vadd.f32 %v8209, %v8591
  %v8760 = vadd.f32 %v8210, %v8596
  %v8761 = vadd.f32 %v8211, %v8599
  %v8762 = vadd.f32 %v8212, %v8604
  %v8763 = vadd.f32 %v8213, %v8607
  %v8764 = vadd.f32 %v8214, %v8612
  %v8765 = vadd.f32 %v8215, %v8615
  %v8766 = vadd.f32 %v8216, %v8620
  %v8767 = vadd.f32 %v8217, %v8623
  %v8768 = vadd.f32 %v8218, %v8628
  %v8769 = vadd.f32 %v8219, %v8631
  %v8770 = vadd.f32 %v8220, %v8636
  %v8771 = vadd.f32 %v8221, %v8639
  %v8772 = vadd.f32 %v8222, %v8644
  %v8773 = vadd.f32 %v8223, %v8647
  %v8774 = vadd.f32 %v8224, %v8652
  %v8775 = vadd.f32 %v8225, %v8655
  %v8776 = vadd.f32 %v8226, %v8660
  %v8777 = vadd.f32 %v8227, %v8663
  %v8778 = vadd.f32 %v8228, %v8668
  %v8779 = vadd.f32 %v8229, %v8671
  %v8780 = vadd.f32 %v8230, %v8676
  %v8781 = vadd.f32 %v8231, %v8679
  %v8782 = vadd.f32 %v8232, %v8684
  %v8783 = vadd.f32 %v8233, %v8687
  %v8784 = vadd.f32 %v8234, %v8692
  %v8785 = vadd.f32 %v8235, %v8695
  %v8786 = vadd.f32 %v8236, %v8700
  %v8787 = vadd.f32 %v8237, %v8703
  %v8788 = vadd.f32 %v8238, %v8708
  %v8789 = vadd.f32 %v8239, %v8711
  %v8790 = vadd.f32 %v8240, %v8716
  %v8791 = vadd.f32 %v8241, %v8719
  %v8792 = vadd.f32 %v8242, %v8724
  %v8793 = vadd.f32 %v8243, %v8727
  %v8794 = vld [vmem:[%s3429] sm:$0xff]
  %v8795 = vld [vmem:[%s3429 + $0x8] sm:$0xff]
  %v8796 = vld [vmem:[%s3429 + $0x18] sm:$0xff]
  %v8797 = vld [vmem:[%s3429 + $0x20] sm:$0xff]
  %v8798 = vld [vmem:[%s3429 + $0x30] sm:$0xff]
  %v8799 = vld [vmem:[%s3429 + $0x38] sm:$0xff]
  %v8800 = vld [vmem:[%s3429 + $0x48] sm:$0xff]
  %v8801 = vld [vmem:[%s3429 + $0x50] sm:$0xff]
  %v8802 = vld [vmem:[%s3429 + $0x60] sm:$0xff]
  %v8803 = vld [vmem:[%s3429 + $0x68] sm:$0xff]
  %v8804 = vld [vmem:[%s3429 + $0x78] sm:$0xff]
  %v8805 = vld [vmem:[%s3429 + $0x80] sm:$0xff]
  %v8806 = vld [vmem:[%s3429 + $0x90] sm:$0xff]
  %v8807 = vld [vmem:[%s3429 + $0x98] sm:$0xff]
  %v8808 = vld [vmem:[%s3429 + $0xa8] sm:$0xff]
  %v8809 = vld [vmem:[%s3429 + $0xb0] sm:$0xff]
  %v8810 = vld [vmem:[%s3429 + $0xc0] sm:$0xff]
  %v8811 = vld [vmem:[%s3429 + $0xc8] sm:$0xff]
  %v8812 = vld [vmem:[%s3429 + $0xd8] sm:$0xff]
  %v8813 = vld [vmem:[%s3429 + $0xe0] sm:$0xff]
  %v8814 = vld [vmem:[%s3429 + $0xf0] sm:$0xff]
  %v8815 = vld [vmem:[%s3429 + $0xf8] sm:$0xff]
  %v8816 = vld [vmem:[%s3429 + $0x108] sm:$0xff]
  %v8817 = vld [vmem:[%s3429 + $0x110] sm:$0xff]
  %v8818 = vld [vmem:[%s3429 + $0x120] sm:$0xff]
  %v8819 = vld [vmem:[%s3429 + $0x128] sm:$0xff]
  %v8820 = vld [vmem:[%s3429 + $0x138] sm:$0xff]
  %v8821 = vld [vmem:[%s3429 + $0x140] sm:$0xff]
  %v8822 = vld [vmem:[%s3429 + $0x150] sm:$0xff]
  %v8823 = vld [vmem:[%s3429 + $0x158] sm:$0xff]
  %v8824 = vld [vmem:[%s3429 + $0x168] sm:$0xff]
  %v8825 = vld [vmem:[%s3429 + $0x170] sm:$0xff]
  %v8826 = vld [vmem:[%s3429 + $0x1b0] sm:$0xff]
  %v8827 = vld [vmem:[%s3429 + $0x1b8] sm:$0xff]
  %v8828 = vld [vmem:[%s3429 + $0x1c8] sm:$0xff]
  %v8829 = vld [vmem:[%s3429 + $0x1d0] sm:$0xff]
  %v8830 = vld [vmem:[%s3429 + $0x1e0] sm:$0xff]
  %v8831 = vld [vmem:[%s3429 + $0x1e8] sm:$0xff]
  %v8832 = vld [vmem:[%s3429 + $0x1f8] sm:$0xff]
  %v8833 = vld [vmem:[%s3429 + $0x200] sm:$0xff]
  %v8834 = vld [vmem:[%s3429 + $0x210] sm:$0xff]
  %v8835 = vld [vmem:[%s3429 + $0x218] sm:$0xff]
  %v8836 = vld [vmem:[%s3429 + $0x228] sm:$0xff]
  %v8837 = vld [vmem:[%s3429 + $0x230] sm:$0xff]
  %v8838 = vld [vmem:[%s3429 + $0x240] sm:$0xff]
  %v8839 = vld [vmem:[%s3429 + $0x248] sm:$0xff]
  %v8840 = vld [vmem:[%s3429 + $0x258] sm:$0xff]
  %v8841 = vld [vmem:[%s3429 + $0x260] sm:$0xff]
  %v8842 = vld [vmem:[%s3429 + $0x270] sm:$0xff]
  %v8843 = vld [vmem:[%s3429 + $0x278] sm:$0xff]
  %v8844 = vld [vmem:[%s3429 + $0x288] sm:$0xff]
  %v8845 = vld [vmem:[%s3429 + $0x290] sm:$0xff]
  %v8846 = vld [vmem:[%s3429 + $0x2a0] sm:$0xff]
  %v8847 = vld [vmem:[%s3429 + $0x2a8] sm:$0xff]
  %v8848 = vld [vmem:[%s3429 + $0x2b8] sm:$0xff]
  %v8849 = vld [vmem:[%s3429 + $0x2c0] sm:$0xff]
  %v8850 = vld [vmem:[%s3429 + $0x2d0] sm:$0xff]
  %v8851 = vld [vmem:[%s3429 + $0x2d8] sm:$0xff]
  %v8852 = vld [vmem:[%s3429 + $0x2e8] sm:$0xff]
  %v8853 = vld [vmem:[%s3429 + $0x2f0] sm:$0xff]
  %v8854 = vld [vmem:[%s3429 + $0x300] sm:$0xff]
  %v8855 = vld [vmem:[%s3429 + $0x308] sm:$0xff]
  %v8856 = vld [vmem:[%s3429 + $0x318] sm:$0xff]
  %v8857 = vld [vmem:[%s3429 + $0x320] sm:$0xff]
  %v8858 = vpack.c.bf16 %v8795, %v8794
  %v8859 = vpack.c.bf16 %v8797, %v8796
  %v8860 = vpack.c.bf16 %v8799, %v8798
  %v8861 = vpack.c.bf16 %v8801, %v8800
  %v8862 = vpack.c.bf16 %v8803, %v8802
  %v8863 = vpack.c.bf16 %v8805, %v8804
  %v8864 = vpack.c.bf16 %v8807, %v8806
  %v8865 = vpack.c.bf16 %v8809, %v8808
  %v8866 = vpack.c.bf16 %v8811, %v8810
  %v8867 = vpack.c.bf16 %v8813, %v8812
  %v8868 = vpack.c.bf16 %v8815, %v8814
  %v8869 = vpack.c.bf16 %v8817, %v8816
  %v8870 = vpack.c.bf16 %v8819, %v8818
  %v8871 = vpack.c.bf16 %v8821, %v8820
  %v8872 = vpack.c.bf16 %v8823, %v8822
  %v8873 = vpack.c.bf16 %v8825, %v8824
  %v8874 = vpack.c.bf16 %v8827, %v8826
  %v8875 = vpack.c.bf16 %v8829, %v8828
  %v8876 = vpack.c.bf16 %v8831, %v8830
  %v8877 = vpack.c.bf16 %v8833, %v8832
  %v8878 = vpack.c.bf16 %v8835, %v8834
  %v8879 = vpack.c.bf16 %v8837, %v8836
  %v8880 = vpack.c.bf16 %v8839, %v8838
  %v8881 = vpack.c.bf16 %v8841, %v8840
  %v8882 = vpack.c.bf16 %v8843, %v8842
  %v8883 = vpack.c.bf16 %v8845, %v8844
  %v8884 = vpack.c.bf16 %v8847, %v8846
  %v8885 = vpack.c.bf16 %v8849, %v8848
  %v8886 = vpack.c.bf16 %v8851, %v8850
  %v8887 = vpack.c.bf16 %v8853, %v8852
  %v8888 = vpack.c.bf16 %v8855, %v8854
  %v8889 = vpack.c.bf16 %v8857, %v8856
  %s8890 = scalar_lea.vmem %s2, 12
  %v8891 = vld [vmem:[%s8890] sm:$0x3]
  %v8893 = vsel %vm40, %v8858, 0
  %v8896 = vsel %vm40, %v8859, 0
  %v8899 = vsel %vm40, %v8860, 0
  %v8902 = vsel %vm40, %v8861, 0
  %v8905 = vsel %vm40, %v8862, 0
  %v8908 = vsel %vm40, %v8863, 0
  %v8911 = vsel %vm40, %v8864, 0
  %v8914 = vsel %vm40, %v8865, 0
  %v8917 = vsel %vm40, %v8866, 0
  %v8920 = vsel %vm40, %v8867, 0
  %v8923 = vsel %vm40, %v8868, 0
  %v8926 = vsel %vm40, %v8869, 0
  %v8929 = vsel %vm40, %v8870, 0
  %v8932 = vsel %vm40, %v8871, 0
  %v8935 = vsel %vm40, %v8872, 0
  %v8938 = vsel %vm40, %v8873, 0
  %v8941 = vsel %vm40, %v8874, 0
  %v8944 = vsel %vm40, %v8875, 0
  %v8947 = vsel %vm40, %v8876, 0
  %v8950 = vsel %vm40, %v8877, 0
  %v8953 = vsel %vm40, %v8878, 0
  %v8956 = vsel %vm40, %v8879, 0
  %v8959 = vsel %vm40, %v8880, 0
  %v8962 = vsel %vm40, %v8881, 0
  %v8965 = vsel %vm40, %v8882, 0
  %v8968 = vsel %vm40, %v8883, 0
  %v8971 = vsel %vm40, %v8884, 0
  %v8974 = vsel %vm40, %v8885, 0
  %v8977 = vsel %vm40, %v8886, 0
  %v8980 = vsel %vm40, %v8887, 0
  %v8983 = vsel %vm40, %v8888, 0
  %v8986 = vsel %vm40, %v8889, 0
  %v8989 = vsel %vm548, %v8891, 0
  %8991 = vmatprep.subr.bf16.mxu0 0
  %8992 = vmatpush1.bf16.msra.mxu0 0
  %8993 = vmatprep.subr.bf16.mxu0 0
  %8994 = vmatpush1.bf16.msra.mxu0 0
  %8995 = vmatprep.subr.bf16.mxu0 0
  %8996 = vmatpush1.bf16.msra.mxu0 0
  %8997 = vmatprep.subr.bf16.mxu0 0
  %8998 = vmatpush1.bf16.msra.mxu0 0
  %8999 = vmatprep.subr.bf16.mxu0 0
  %9000 = vmatpush1.bf16.msra.mxu0 0
  %9001 = vmatprep.subr.bf16.mxu0 0
  %9002 = vmatpush1.bf16.msra.mxu0 0
  %9003 = vmatprep.subr.bf16.mxu0 0
  %9004 = vmatpush1.bf16.msra.mxu0 0
  %9005 = vmatprep.subr.bf16.mxu0 0
  %9006 = vmatpush1.bf16.msra.mxu0 %v8989
  %9007 = vmatprep.subr.bf16.mxu0 0
  %9008 = vmatpush2.bf16.msra.mxu0 0
  %9009 = vmatprep.subr.bf16.mxu0 0
  %9010 = vmatpush2.bf16.msra.mxu0 0
  %9011 = vmatprep.subr.bf16.mxu0 0
  %9012 = vmatpush2.bf16.msra.mxu0 0
  %9013 = vmatprep.subr.bf16.mxu0 0
  %9014 = vmatpush2.bf16.msra.mxu0 0
  %9015 = vmatprep.subr.bf16.mxu0 0
  %9016 = vmatpush2.bf16.msra.mxu0 0
  %9017 = vmatprep.subr.bf16.mxu0 0
  %9018 = vmatpush2.bf16.msra.mxu0 0
  %9019 = vmatprep.subr.bf16.mxu0 0
  %9020 = vmatpush2.bf16.msra.mxu0 0
  %9021 = vmatprep.subr.bf16.mxu0 0
  %9022 = vmatpush2.bf16.msra.mxu0 0
  %9023 = vmatprep.mubr.bf16.mxu0 0
  %9024 = vmatmul.mubr.bf16.gmra.mxu0 %v8893
  %v9025 = vpop.f32.mrf.mxu0
  %v9026 = vadd.f32 0.0, %v9025
  %v9027 = vpop.f32.mrf.mxu0
  %v9028 = vpop.f32.mrf.mxu0
  %v9029 = vadd.f32 0.0, %v9028
  %v9030 = vpop.f32.mrf.mxu0
  %9031 = vmatprep.mubr.bf16.mxu0 0
  %9032 = vmatmul.mubr.bf16.gmra.mxu0 %v8896
  %v9033 = vpop.f32.mrf.mxu0
  %v9034 = vadd.f32 0.0, %v9033
  %v9035 = vpop.f32.mrf.mxu0
  %v9036 = vpop.f32.mrf.mxu0
  %v9037 = vadd.f32 0.0, %v9036
  %v9038 = vpop.f32.mrf.mxu0
  %9039 = vmatprep.mubr.bf16.mxu0 0
  %9040 = vmatmul.mubr.bf16.gmra.mxu0 %v8899
  %v9041 = vpop.f32.mrf.mxu0
  %v9042 = vadd.f32 0.0, %v9041
  %v9043 = vpop.f32.mrf.mxu0
  %v9044 = vpop.f32.mrf.mxu0
  %v9045 = vadd.f32 0.0, %v9044
  %v9046 = vpop.f32.mrf.mxu0
  %9047 = vmatprep.mubr.bf16.mxu0 0
  %9048 = vmatmul.mubr.bf16.gmra.mxu0 %v8902
  %v9049 = vpop.f32.mrf.mxu0
  %v9050 = vadd.f32 0.0, %v9049
  %v9051 = vpop.f32.mrf.mxu0
  %v9052 = vpop.f32.mrf.mxu0
  %v9053 = vadd.f32 0.0, %v9052
  %v9054 = vpop.f32.mrf.mxu0
  %9055 = vmatprep.mubr.bf16.mxu0 0
  %9056 = vmatmul.mubr.bf16.gmra.mxu0 %v8905
  %v9057 = vpop.f32.mrf.mxu0
  %v9058 = vadd.f32 0.0, %v9057
  %v9059 = vpop.f32.mrf.mxu0
  %v9060 = vpop.f32.mrf.mxu0
  %v9061 = vadd.f32 0.0, %v9060
  %v9062 = vpop.f32.mrf.mxu0
  %9063 = vmatprep.mubr.bf16.mxu0 0
  %9064 = vmatmul.mubr.bf16.gmra.mxu0 %v8908
  %v9065 = vpop.f32.mrf.mxu0
  %v9066 = vadd.f32 0.0, %v9065
  %v9067 = vpop.f32.mrf.mxu0
  %v9068 = vpop.f32.mrf.mxu0
  %v9069 = vadd.f32 0.0, %v9068
  %v9070 = vpop.f32.mrf.mxu0
  %9071 = vmatprep.mubr.bf16.mxu0 0
  %9072 = vmatmul.mubr.bf16.gmra.mxu0 %v8911
  %v9073 = vpop.f32.mrf.mxu0
  %v9074 = vadd.f32 0.0, %v9073
  %v9075 = vpop.f32.mrf.mxu0
  %v9076 = vpop.f32.mrf.mxu0
  %v9077 = vadd.f32 0.0, %v9076
  %v9078 = vpop.f32.mrf.mxu0
  %9079 = vmatprep.mubr.bf16.mxu0 0
  %9080 = vmatmul.mubr.bf16.gmra.mxu0 %v8914
  %v9081 = vpop.f32.mrf.mxu0
  %v9082 = vadd.f32 0.0, %v9081
  %v9083 = vpop.f32.mrf.mxu0
  %v9084 = vpop.f32.mrf.mxu0
  %v9085 = vadd.f32 0.0, %v9084
  %v9086 = vpop.f32.mrf.mxu0
  %9087 = vmatprep.mubr.bf16.mxu0 0
  %9088 = vmatmul.mubr.bf16.gmra.mxu0 %v8917
  %v9089 = vpop.f32.mrf.mxu0
  %v9090 = vadd.f32 0.0, %v9089
  %v9091 = vpop.f32.mrf.mxu0
  %v9092 = vpop.f32.mrf.mxu0
  %v9093 = vadd.f32 0.0, %v9092
  %v9094 = vpop.f32.mrf.mxu0
  %9095 = vmatprep.mubr.bf16.mxu0 0
  %9096 = vmatmul.mubr.bf16.gmra.mxu0 %v8920
  %v9097 = vpop.f32.mrf.mxu0
  %v9098 = vadd.f32 0.0, %v9097
  %v9099 = vpop.f32.mrf.mxu0
  %v9100 = vpop.f32.mrf.mxu0
  %v9101 = vadd.f32 0.0, %v9100
  %v9102 = vpop.f32.mrf.mxu0
  %9103 = vmatprep.mubr.bf16.mxu0 0
  %9104 = vmatmul.mubr.bf16.gmra.mxu0 %v8923
  %v9105 = vpop.f32.mrf.mxu0
  %v9106 = vadd.f32 0.0, %v9105
  %v9107 = vpop.f32.mrf.mxu0
  %v9108 = vpop.f32.mrf.mxu0
  %v9109 = vadd.f32 0.0, %v9108
  %v9110 = vpop.f32.mrf.mxu0
  %9111 = vmatprep.mubr.bf16.mxu0 0
  %9112 = vmatmul.mubr.bf16.gmra.mxu0 %v8926
  %v9113 = vpop.f32.mrf.mxu0
  %v9114 = vadd.f32 0.0, %v9113
  %v9115 = vpop.f32.mrf.mxu0
  %v9116 = vpop.f32.mrf.mxu0
  %v9117 = vadd.f32 0.0, %v9116
  %v9118 = vpop.f32.mrf.mxu0
  %9119 = vmatprep.mubr.bf16.mxu0 0
  %9120 = vmatmul.mubr.bf16.gmra.mxu0 %v8929
  %v9121 = vpop.f32.mrf.mxu0
  %v9122 = vadd.f32 0.0, %v9121
  %v9123 = vpop.f32.mrf.mxu0
  %v9124 = vpop.f32.mrf.mxu0
  %v9125 = vadd.f32 0.0, %v9124
  %v9126 = vpop.f32.mrf.mxu0
  %9127 = vmatprep.mubr.bf16.mxu0 0
  %9128 = vmatmul.mubr.bf16.gmra.mxu0 %v8932
  %v9129 = vpop.f32.mrf.mxu0
  %v9130 = vadd.f32 0.0, %v9129
  %v9131 = vpop.f32.mrf.mxu0
  %v9132 = vpop.f32.mrf.mxu0
  %v9133 = vadd.f32 0.0, %v9132
  %v9134 = vpop.f32.mrf.mxu0
  %9135 = vmatprep.mubr.bf16.mxu0 0
  %9136 = vmatmul.mubr.bf16.gmra.mxu0 %v8935
  %v9137 = vpop.f32.mrf.mxu0
  %v9138 = vadd.f32 0.0, %v9137
  %v9139 = vpop.f32.mrf.mxu0
  %v9140 = vpop.f32.mrf.mxu0
  %v9141 = vadd.f32 0.0, %v9140
  %v9142 = vpop.f32.mrf.mxu0
  %9143 = vmatprep.mubr.bf16.mxu0 0
  %9144 = vmatmul.mubr.bf16.gmra.mxu0 %v8938
  %v9145 = vpop.f32.mrf.mxu0
  %v9146 = vadd.f32 0.0, %v9145
  %v9147 = vpop.f32.mrf.mxu0
  %v9148 = vpop.f32.mrf.mxu0
  %v9149 = vadd.f32 0.0, %v9148
  %v9150 = vpop.f32.mrf.mxu0
  %9151 = vmatprep.mubr.bf16.mxu0 0
  %9152 = vmatmul.mubr.bf16.gmra.mxu0 %v8941
  %v9153 = vpop.f32.mrf.mxu0
  %v9154 = vadd.f32 0.0, %v9153
  %v9155 = vpop.f32.mrf.mxu0
  %v9156 = vpop.f32.mrf.mxu0
  %v9157 = vadd.f32 0.0, %v9156
  %v9158 = vpop.f32.mrf.mxu0
  %9159 = vmatprep.mubr.bf16.mxu0 0
  %9160 = vmatmul.mubr.bf16.gmra.mxu0 %v8944
  %v9161 = vpop.f32.mrf.mxu0
  %v9162 = vadd.f32 0.0, %v9161
  %v9163 = vpop.f32.mrf.mxu0
  %v9164 = vpop.f32.mrf.mxu0
  %v9165 = vadd.f32 0.0, %v9164
  %v9166 = vpop.f32.mrf.mxu0
  %9167 = vmatprep.mubr.bf16.mxu0 0
  %9168 = vmatmul.mubr.bf16.gmra.mxu0 %v8947
  %v9169 = vpop.f32.mrf.mxu0
  %v9170 = vadd.f32 0.0, %v9169
  %v9171 = vpop.f32.mrf.mxu0
  %v9172 = vpop.f32.mrf.mxu0
  %v9173 = vadd.f32 0.0, %v9172
  %v9174 = vpop.f32.mrf.mxu0
  %9175 = vmatprep.mubr.bf16.mxu0 0
  %9176 = vmatmul.mubr.bf16.gmra.mxu0 %v8950
  %v9177 = vpop.f32.mrf.mxu0
  %v9178 = vadd.f32 0.0, %v9177
  %v9179 = vpop.f32.mrf.mxu0
  %v9180 = vpop.f32.mrf.mxu0
  %v9181 = vadd.f32 0.0, %v9180
  %v9182 = vpop.f32.mrf.mxu0
  %9183 = vmatprep.mubr.bf16.mxu0 0
  %9184 = vmatmul.mubr.bf16.gmra.mxu0 %v8953
  %v9185 = vpop.f32.mrf.mxu0
  %v9186 = vadd.f32 0.0, %v9185
  %v9187 = vpop.f32.mrf.mxu0
  %v9188 = vpop.f32.mrf.mxu0
  %v9189 = vadd.f32 0.0, %v9188
  %v9190 = vpop.f32.mrf.mxu0
  %9191 = vmatprep.mubr.bf16.mxu0 0
  %9192 = vmatmul.mubr.bf16.gmra.mxu0 %v8956
  %v9193 = vpop.f32.mrf.mxu0
  %v9194 = vadd.f32 0.0, %v9193
  %v9195 = vpop.f32.mrf.mxu0
  %v9196 = vpop.f32.mrf.mxu0
  %v9197 = vadd.f32 0.0, %v9196
  %v9198 = vpop.f32.mrf.mxu0
  %9199 = vmatprep.mubr.bf16.mxu0 0
  %9200 = vmatmul.mubr.bf16.gmra.mxu0 %v8959
  %v9201 = vpop.f32.mrf.mxu0
  %v9202 = vadd.f32 0.0, %v9201
  %v9203 = vpop.f32.mrf.mxu0
  %v9204 = vpop.f32.mrf.mxu0
  %v9205 = vadd.f32 0.0, %v9204
  %v9206 = vpop.f32.mrf.mxu0
  %9207 = vmatprep.mubr.bf16.mxu0 0
  %9208 = vmatmul.mubr.bf16.gmra.mxu0 %v8962
  %v9209 = vpop.f32.mrf.mxu0
  %v9210 = vadd.f32 0.0, %v9209
  %v9211 = vpop.f32.mrf.mxu0
  %v9212 = vpop.f32.mrf.mxu0
  %v9213 = vadd.f32 0.0, %v9212
  %v9214 = vpop.f32.mrf.mxu0
  %9215 = vmatprep.mubr.bf16.mxu0 0
  %9216 = vmatmul.mubr.bf16.gmra.mxu0 %v8965
  %v9217 = vpop.f32.mrf.mxu0
  %v9218 = vadd.f32 0.0, %v9217
  %v9219 = vpop.f32.mrf.mxu0
  %v9220 = vpop.f32.mrf.mxu0
  %v9221 = vadd.f32 0.0, %v9220
  %v9222 = vpop.f32.mrf.mxu0
  %9223 = vmatprep.mubr.bf16.mxu0 0
  %9224 = vmatmul.mubr.bf16.gmra.mxu0 %v8968
  %v9225 = vpop.f32.mrf.mxu0
  %v9226 = vadd.f32 0.0, %v9225
  %v9227 = vpop.f32.mrf.mxu0
  %v9228 = vpop.f32.mrf.mxu0
  %v9229 = vadd.f32 0.0, %v9228
  %v9230 = vpop.f32.mrf.mxu0
  %9231 = vmatprep.mubr.bf16.mxu0 0
  %9232 = vmatmul.mubr.bf16.gmra.mxu0 %v8971
  %v9233 = vpop.f32.mrf.mxu0
  %v9234 = vadd.f32 0.0, %v9233
  %v9235 = vpop.f32.mrf.mxu0
  %v9236 = vpop.f32.mrf.mxu0
  %v9237 = vadd.f32 0.0, %v9236
  %v9238 = vpop.f32.mrf.mxu0
  %9239 = vmatprep.mubr.bf16.mxu0 0
  %9240 = vmatmul.mubr.bf16.gmra.mxu0 %v8974
  %v9241 = vpop.f32.mrf.mxu0
  %v9242 = vadd.f32 0.0, %v9241
  %v9243 = vpop.f32.mrf.mxu0
  %v9244 = vpop.f32.mrf.mxu0
  %v9245 = vadd.f32 0.0, %v9244
  %v9246 = vpop.f32.mrf.mxu0
  %9247 = vmatprep.mubr.bf16.mxu0 0
  %9248 = vmatmul.mubr.bf16.gmra.mxu0 %v8977
  %v9249 = vpop.f32.mrf.mxu0
  %v9250 = vadd.f32 0.0, %v9249
  %v9251 = vpop.f32.mrf.mxu0
  %v9252 = vpop.f32.mrf.mxu0
  %v9253 = vadd.f32 0.0, %v9252
  %v9254 = vpop.f32.mrf.mxu0
  %9255 = vmatprep.mubr.bf16.mxu0 0
  %9256 = vmatmul.mubr.bf16.gmra.mxu0 %v8980
  %v9257 = vpop.f32.mrf.mxu0
  %v9258 = vadd.f32 0.0, %v9257
  %v9259 = vpop.f32.mrf.mxu0
  %v9260 = vpop.f32.mrf.mxu0
  %v9261 = vadd.f32 0.0, %v9260
  %v9262 = vpop.f32.mrf.mxu0
  %9263 = vmatprep.mubr.bf16.mxu0 0
  %9264 = vmatmul.mubr.bf16.gmra.mxu0 %v8983
  %v9265 = vpop.f32.mrf.mxu0
  %v9266 = vadd.f32 0.0, %v9265
  %v9267 = vpop.f32.mrf.mxu0
  %v9268 = vpop.f32.mrf.mxu0
  %v9269 = vadd.f32 0.0, %v9268
  %v9270 = vpop.f32.mrf.mxu0
  %9271 = vmatprep.mubr.bf16.mxu0 0
  %9272 = vmatmul.mubr.bf16.gmra.mxu0 %v8986
  %v9273 = vpop.f32.mrf.mxu0
  %v9274 = vadd.f32 0.0, %v9273
  %v9275 = vpop.f32.mrf.mxu0
  %v9276 = vpop.f32.mrf.mxu0
  %v9277 = vadd.f32 0.0, %v9276
  %v9278 = vpop.f32.mrf.mxu0
  %9279 = vdwg.mxu0
  %v9280 = vadd.f32 %v8730, %v9026
  %v9281 = vadd.f32 %v8731, %v9029
  %v9282 = vadd.f32 %v8732, %v9034
  %v9283 = vadd.f32 %v8733, %v9037
  %v9284 = vadd.f32 %v8734, %v9042
  %v9285 = vadd.f32 %v8735, %v9045
  %v9286 = vadd.f32 %v8736, %v9050
  %v9287 = vadd.f32 %v8737, %v9053
  %v9288 = vadd.f32 %v8738, %v9058
  %v9289 = vadd.f32 %v8739, %v9061
  %v9290 = vadd.f32 %v8740, %v9066
  %v9291 = vadd.f32 %v8741, %v9069
  %v9292 = vadd.f32 %v8742, %v9074
  %v9293 = vadd.f32 %v8743, %v9077
  %v9294 = vadd.f32 %v8744, %v9082
  %v9295 = vadd.f32 %v8745, %v9085
  %v9296 = vadd.f32 %v8746, %v9090
  %v9297 = vadd.f32 %v8747, %v9093
  %v9298 = vadd.f32 %v8748, %v9098
  %v9299 = vadd.f32 %v8749, %v9101
  %v9300 = vadd.f32 %v8750, %v9106
  %v9301 = vadd.f32 %v8751, %v9109
  %v9302 = vadd.f32 %v8752, %v9114
  %v9303 = vadd.f32 %v8753, %v9117
  %v9304 = vadd.f32 %v8754, %v9122
  %v9305 = vadd.f32 %v8755, %v9125
  %v9306 = vadd.f32 %v8756, %v9130
  %v9307 = vadd.f32 %v8757, %v9133
  %v9308 = vadd.f32 %v8758, %v9138
  %v9309 = vadd.f32 %v8759, %v9141
  %v9310 = vadd.f32 %v8760, %v9146
  %v9311 = vadd.f32 %v8761, %v9149
  %v9312 = vadd.f32 %v8762, %v9154
  %v9313 = vadd.f32 %v8763, %v9157
  %v9314 = vadd.f32 %v8764, %v9162
  %v9315 = vadd.f32 %v8765, %v9165
  %v9316 = vadd.f32 %v8766, %v9170
  %v9317 = vadd.f32 %v8767, %v9173
  %v9318 = vadd.f32 %v8768, %v9178
  %v9319 = vadd.f32 %v8769, %v9181
  %v9320 = vadd.f32 %v8770, %v9186
  %v9321 = vadd.f32 %v8771, %v9189
  %v9322 = vadd.f32 %v8772, %v9194
  %v9323 = vadd.f32 %v8773, %v9197
  %v9324 = vadd.f32 %v8774, %v9202
  %v9325 = vadd.f32 %v8775, %v9205
  %v9326 = vadd.f32 %v8776, %v9210
  %v9327 = vadd.f32 %v8777, %v9213
  %v9328 = vadd.f32 %v8778, %v9218
  %v9329 = vadd.f32 %v8779, %v9221
  %v9330 = vadd.f32 %v8780, %v9226
  %v9331 = vadd.f32 %v8781, %v9229
  %v9332 = vadd.f32 %v8782, %v9234
  %v9333 = vadd.f32 %v8783, %v9237
  %v9334 = vadd.f32 %v8784, %v9242
  %v9335 = vadd.f32 %v8785, %v9245
  %v9336 = vadd.f32 %v8786, %v9250
  %v9337 = vadd.f32 %v8787, %v9253
  %v9338 = vadd.f32 %v8788, %v9258
  %v9339 = vadd.f32 %v8789, %v9261
  %v9340 = vadd.f32 %v8790, %v9266
  %v9341 = vadd.f32 %v8791, %v9269
  %v9342 = vadd.f32 %v8792, %v9274
  %v9343 = vadd.f32 %v8793, %v9277
  %v9344 = vld [vmem:[%s3429 + $0x1] sm:$0xff]
  %v9345 = vld [vmem:[%s3429 + $0x9] sm:$0xff]
  %v9346 = vld [vmem:[%s3429 + $0x19] sm:$0xff]
  %v9347 = vld [vmem:[%s3429 + $0x21] sm:$0xff]
  %v9348 = vld [vmem:[%s3429 + $0x31] sm:$0xff]
  %v9349 = vld [vmem:[%s3429 + $0x39] sm:$0xff]
  %v9350 = vld [vmem:[%s3429 + $0x49] sm:$0xff]
  %v9351 = vld [vmem:[%s3429 + $0x51] sm:$0xff]
  %v9352 = vld [vmem:[%s3429 + $0x61] sm:$0xff]
  %v9353 = vld [vmem:[%s3429 + $0x69] sm:$0xff]
  %v9354 = vld [vmem:[%s3429 + $0x79] sm:$0xff]
  %v9355 = vld [vmem:[%s3429 + $0x81] sm:$0xff]
  %v9356 = vld [vmem:[%s3429 + $0x91] sm:$0xff]
  %v9357 = vld [vmem:[%s3429 + $0x99] sm:$0xff]
  %v9358 = vld [vmem:[%s3429 + $0xa9] sm:$0xff]
  %v9359 = vld [vmem:[%s3429 + $0xb1] sm:$0xff]
  %v9360 = vld [vmem:[%s3429 + $0xc1] sm:$0xff]
  %v9361 = vld [vmem:[%s3429 + $0xc9] sm:$0xff]
  %v9362 = vld [vmem:[%s3429 + $0xd9] sm:$0xff]
  %v9363 = vld [vmem:[%s3429 + $0xe1] sm:$0xff]
  %v9364 = vld [vmem:[%s3429 + $0xf1] sm:$0xff]
  %v9365 = vld [vmem:[%s3429 + $0xf9] sm:$0xff]
  %v9366 = vld [vmem:[%s3429 + $0x109] sm:$0xff]
  %v9367 = vld [vmem:[%s3429 + $0x111] sm:$0xff]
  %v9368 = vld [vmem:[%s3429 + $0x121] sm:$0xff]
  %v9369 = vld [vmem:[%s3429 + $0x129] sm:$0xff]
  %v9370 = vld [vmem:[%s3429 + $0x139] sm:$0xff]
  %v9371 = vld [vmem:[%s3429 + $0x141] sm:$0xff]
  %v9372 = vld [vmem:[%s3429 + $0x151] sm:$0xff]
  %v9373 = vld [vmem:[%s3429 + $0x159] sm:$0xff]
  %v9374 = vld [vmem:[%s3429 + $0x169] sm:$0xff]
  %v9375 = vld [vmem:[%s3429 + $0x171] sm:$0xff]
  %v9376 = vld [vmem:[%s3429 + $0x1b1] sm:$0xff]
  %v9377 = vld [vmem:[%s3429 + $0x1b9] sm:$0xff]
  %v9378 = vld [vmem:[%s3429 + $0x1c9] sm:$0xff]
  %v9379 = vld [vmem:[%s3429 + $0x1d1] sm:$0xff]
  %v9380 = vld [vmem:[%s3429 + $0x1e1] sm:$0xff]
  %v9381 = vld [vmem:[%s3429 + $0x1e9] sm:$0xff]
  %v9382 = vld [vmem:[%s3429 + $0x1f9] sm:$0xff]
  %v9383 = vld [vmem:[%s3429 + $0x201] sm:$0xff]
  %v9384 = vld [vmem:[%s3429 + $0x211] sm:$0xff]
  %v9385 = vld [vmem:[%s3429 + $0x219] sm:$0xff]
  %v9386 = vld [vmem:[%s3429 + $0x229] sm:$0xff]
  %v9387 = vld [vmem:[%s3429 + $0x231] sm:$0xff]
  %v9388 = vld [vmem:[%s3429 + $0x241] sm:$0xff]
  %v9389 = vld [vmem:[%s3429 + $0x249] sm:$0xff]
  %v9390 = vld [vmem:[%s3429 + $0x259] sm:$0xff]
  %v9391 = vld [vmem:[%s3429 + $0x261] sm:$0xff]
  %v9392 = vld [vmem:[%s3429 + $0x271] sm:$0xff]
  %v9393 = vld [vmem:[%s3429 + $0x279] sm:$0xff]
  %v9394 = vld [vmem:[%s3429 + $0x289] sm:$0xff]
  %v9395 = vld [vmem:[%s3429 + $0x291] sm:$0xff]
  %v9396 = vld [vmem:[%s3429 + $0x2a1] sm:$0xff]
  %v9397 = vld [vmem:[%s3429 + $0x2a9] sm:$0xff]
  %v9398 = vld [vmem:[%s3429 + $0x2b9] sm:$0xff]
  %v9399 = vld [vmem:[%s3429 + $0x2c1] sm:$0xff]
  %v9400 = vld [vmem:[%s3429 + $0x2d1] sm:$0xff]
  %v9401 = vld [vmem:[%s3429 + $0x2d9] sm:$0xff]
  %v9402 = vld [vmem:[%s3429 + $0x2e9] sm:$0xff]
  %v9403 = vld [vmem:[%s3429 + $0x2f1] sm:$0xff]
  %v9404 = vld [vmem:[%s3429 + $0x301] sm:$0xff]
  %v9405 = vld [vmem:[%s3429 + $0x309] sm:$0xff]
  %v9406 = vld [vmem:[%s3429 + $0x319] sm:$0xff]
  %v9407 = vld [vmem:[%s3429 + $0x321] sm:$0xff]
  %v9408 = vpack.c.bf16 %v9345, %v9344
  %v9409 = vpack.c.bf16 %v9347, %v9346
  %v9410 = vpack.c.bf16 %v9349, %v9348
  %v9411 = vpack.c.bf16 %v9351, %v9350
  %v9412 = vpack.c.bf16 %v9353, %v9352
  %v9413 = vpack.c.bf16 %v9355, %v9354
  %v9414 = vpack.c.bf16 %v9357, %v9356
  %v9415 = vpack.c.bf16 %v9359, %v9358
  %v9416 = vpack.c.bf16 %v9361, %v9360
  %v9417 = vpack.c.bf16 %v9363, %v9362
  %v9418 = vpack.c.bf16 %v9365, %v9364
  %v9419 = vpack.c.bf16 %v9367, %v9366
  %v9420 = vpack.c.bf16 %v9369, %v9368
  %v9421 = vpack.c.bf16 %v9371, %v9370
  %v9422 = vpack.c.bf16 %v9373, %v9372
  %v9423 = vpack.c.bf16 %v9375, %v9374
  %v9424 = vpack.c.bf16 %v9377, %v9376
  %v9425 = vpack.c.bf16 %v9379, %v9378
  %v9426 = vpack.c.bf16 %v9381, %v9380
  %v9427 = vpack.c.bf16 %v9383, %v9382
  %v9428 = vpack.c.bf16 %v9385, %v9384
  %v9429 = vpack.c.bf16 %v9387, %v9386
  %v9430 = vpack.c.bf16 %v9389, %v9388
  %v9431 = vpack.c.bf16 %v9391, %v9390
  %v9432 = vpack.c.bf16 %v9393, %v9392
  %v9433 = vpack.c.bf16 %v9395, %v9394
  %v9434 = vpack.c.bf16 %v9397, %v9396
  %v9435 = vpack.c.bf16 %v9399, %v9398
  %v9436 = vpack.c.bf16 %v9401, %v9400
  %v9437 = vpack.c.bf16 %v9403, %v9402
  %v9438 = vpack.c.bf16 %v9405, %v9404
  %v9439 = vpack.c.bf16 %v9407, %v9406
  %s9440 = scalar_lea.vmem %s2, 14
  %v9441 = vld [vmem:[%s9440] sm:$0x3]
  %v9443 = vsel %vm40, %v9408, 0
  %v9446 = vsel %vm40, %v9409, 0
  %v9449 = vsel %vm40, %v9410, 0
  %v9452 = vsel %vm40, %v9411, 0
  %v9455 = vsel %vm40, %v9412, 0
  %v9458 = vsel %vm40, %v9413, 0
  %v9461 = vsel %vm40, %v9414, 0
  %v9464 = vsel %vm40, %v9415, 0
  %v9467 = vsel %vm40, %v9416, 0
  %v9470 = vsel %vm40, %v9417, 0
  %v9473 = vsel %vm40, %v9418, 0
  %v9476 = vsel %vm40, %v9419, 0
  %v9479 = vsel %vm40, %v9420, 0
  %v9482 = vsel %vm40, %v9421, 0
  %v9485 = vsel %vm40, %v9422, 0
  %v9488 = vsel %vm40, %v9423, 0
  %v9491 = vsel %vm40, %v9424, 0
  %v9494 = vsel %vm40, %v9425, 0
  %v9497 = vsel %vm40, %v9426, 0
  %v9500 = vsel %vm40, %v9427, 0
  %v9503 = vsel %vm40, %v9428, 0
  %v9506 = vsel %vm40, %v9429, 0
  %v9509 = vsel %vm40, %v9430, 0
  %v9512 = vsel %vm40, %v9431, 0
  %v9515 = vsel %vm40, %v9432, 0
  %v9518 = vsel %vm40, %v9433, 0
  %v9521 = vsel %vm40, %v9434, 0
  %v9524 = vsel %vm40, %v9435, 0
  %v9527 = vsel %vm40, %v9436, 0
  %v9530 = vsel %vm40, %v9437, 0
  %v9533 = vsel %vm40, %v9438, 0
  %v9536 = vsel %vm40, %v9439, 0
  %v9539 = vsel %vm548, %v9441, 0
  %9541 = vmatprep.subr.bf16.mxu0 0
  %9542 = vmatpush1.bf16.msra.mxu0 0
  %9543 = vmatprep.subr.bf16.mxu0 0
  %9544 = vmatpush1.bf16.msra.mxu0 0
  %9545 = vmatprep.subr.bf16.mxu0 0
  %9546 = vmatpush1.bf16.msra.mxu0 0
  %9547 = vmatprep.subr.bf16.mxu0 0
  %9548 = vmatpush1.bf16.msra.mxu0 0
  %9549 = vmatprep.subr.bf16.mxu0 0
  %9550 = vmatpush1.bf16.msra.mxu0 0
  %9551 = vmatprep.subr.bf16.mxu0 0
  %9552 = vmatpush1.bf16.msra.mxu0 0
  %9553 = vmatprep.subr.bf16.mxu0 0
  %9554 = vmatpush1.bf16.msra.mxu0 0
  %9555 = vmatprep.subr.bf16.mxu0 0
  %9556 = vmatpush1.bf16.msra.mxu0 %v9539
  %9557 = vmatprep.subr.bf16.mxu0 0
  %9558 = vmatpush2.bf16.msra.mxu0 0
  %9559 = vmatprep.subr.bf16.mxu0 0
  %9560 = vmatpush2.bf16.msra.mxu0 0
  %9561 = vmatprep.subr.bf16.mxu0 0
  %9562 = vmatpush2.bf16.msra.mxu0 0
  %9563 = vmatprep.subr.bf16.mxu0 0
  %9564 = vmatpush2.bf16.msra.mxu0 0
  %9565 = vmatprep.subr.bf16.mxu0 0
  %9566 = vmatpush2.bf16.msra.mxu0 0
  %9567 = vmatprep.subr.bf16.mxu0 0
  %9568 = vmatpush2.bf16.msra.mxu0 0
  %9569 = vmatprep.subr.bf16.mxu0 0
  %9570 = vmatpush2.bf16.msra.mxu0 0
  %9571 = vmatprep.subr.bf16.mxu0 0
  %9572 = vmatpush2.bf16.msra.mxu0 0
  %9573 = vmatprep.mubr.bf16.mxu0 0
  %9574 = vmatmul.mubr.bf16.gmra.mxu0 %v9443
  %v9575 = vpop.f32.mrf.mxu0
  %v9576 = vadd.f32 0.0, %v9575
  %v9577 = vpop.f32.mrf.mxu0
  %v9578 = vpop.f32.mrf.mxu0
  %v9579 = vadd.f32 0.0, %v9578
  %v9580 = vpop.f32.mrf.mxu0
  %9581 = vmatprep.mubr.bf16.mxu0 0
  %9582 = vmatmul.mubr.bf16.gmra.mxu0 %v9446
  %v9583 = vpop.f32.mrf.mxu0
  %v9584 = vadd.f32 0.0, %v9583
  %v9585 = vpop.f32.mrf.mxu0
  %v9586 = vpop.f32.mrf.mxu0
  %v9587 = vadd.f32 0.0, %v9586
  %v9588 = vpop.f32.mrf.mxu0
  %9589 = vmatprep.mubr.bf16.mxu0 0
  %9590 = vmatmul.mubr.bf16.gmra.mxu0 %v9449
  %v9591 = vpop.f32.mrf.mxu0
  %v9592 = vadd.f32 0.0, %v9591
  %v9593 = vpop.f32.mrf.mxu0
  %v9594 = vpop.f32.mrf.mxu0
  %v9595 = vadd.f32 0.0, %v9594
  %v9596 = vpop.f32.mrf.mxu0
  %9597 = vmatprep.mubr.bf16.mxu0 0
  %9598 = vmatmul.mubr.bf16.gmra.mxu0 %v9452
  %v9599 = vpop.f32.mrf.mxu0
  %v9600 = vadd.f32 0.0, %v9599
  %v9601 = vpop.f32.mrf.mxu0
  %v9602 = vpop.f32.mrf.mxu0
  %v9603 = vadd.f32 0.0, %v9602
  %v9604 = vpop.f32.mrf.mxu0
  %9605 = vmatprep.mubr.bf16.mxu0 0
  %9606 = vmatmul.mubr.bf16.gmra.mxu0 %v9455
  %v9607 = vpop.f32.mrf.mxu0
  %v9608 = vadd.f32 0.0, %v9607
  %v9609 = vpop.f32.mrf.mxu0
  %v9610 = vpop.f32.mrf.mxu0
  %v9611 = vadd.f32 0.0, %v9610
  %v9612 = vpop.f32.mrf.mxu0
  %9613 = vmatprep.mubr.bf16.mxu0 0
  %9614 = vmatmul.mubr.bf16.gmra.mxu0 %v9458
  %v9615 = vpop.f32.mrf.mxu0
  %v9616 = vadd.f32 0.0, %v9615
  %v9617 = vpop.f32.mrf.mxu0
  %v9618 = vpop.f32.mrf.mxu0
  %v9619 = vadd.f32 0.0, %v9618
  %v9620 = vpop.f32.mrf.mxu0
  %9621 = vmatprep.mubr.bf16.mxu0 0
  %9622 = vmatmul.mubr.bf16.gmra.mxu0 %v9461
  %v9623 = vpop.f32.mrf.mxu0
  %v9624 = vadd.f32 0.0, %v9623
  %v9625 = vpop.f32.mrf.mxu0
  %v9626 = vpop.f32.mrf.mxu0
  %v9627 = vadd.f32 0.0, %v9626
  %v9628 = vpop.f32.mrf.mxu0
  %9629 = vmatprep.mubr.bf16.mxu0 0
  %9630 = vmatmul.mubr.bf16.gmra.mxu0 %v9464
  %v9631 = vpop.f32.mrf.mxu0
  %v9632 = vadd.f32 0.0, %v9631
  %v9633 = vpop.f32.mrf.mxu0
  %v9634 = vpop.f32.mrf.mxu0
  %v9635 = vadd.f32 0.0, %v9634
  %v9636 = vpop.f32.mrf.mxu0
  %9637 = vmatprep.mubr.bf16.mxu0 0
  %9638 = vmatmul.mubr.bf16.gmra.mxu0 %v9467
  %v9639 = vpop.f32.mrf.mxu0
  %v9640 = vadd.f32 0.0, %v9639
  %v9641 = vpop.f32.mrf.mxu0
  %v9642 = vpop.f32.mrf.mxu0
  %v9643 = vadd.f32 0.0, %v9642
  %v9644 = vpop.f32.mrf.mxu0
  %9645 = vmatprep.mubr.bf16.mxu0 0
  %9646 = vmatmul.mubr.bf16.gmra.mxu0 %v9470
  %v9647 = vpop.f32.mrf.mxu0
  %v9648 = vadd.f32 0.0, %v9647
  %v9649 = vpop.f32.mrf.mxu0
  %v9650 = vpop.f32.mrf.mxu0
  %v9651 = vadd.f32 0.0, %v9650
  %v9652 = vpop.f32.mrf.mxu0
  %9653 = vmatprep.mubr.bf16.mxu0 0
  %9654 = vmatmul.mubr.bf16.gmra.mxu0 %v9473
  %v9655 = vpop.f32.mrf.mxu0
  %v9656 = vadd.f32 0.0, %v9655
  %v9657 = vpop.f32.mrf.mxu0
  %v9658 = vpop.f32.mrf.mxu0
  %v9659 = vadd.f32 0.0, %v9658
  %v9660 = vpop.f32.mrf.mxu0
  %9661 = vmatprep.mubr.bf16.mxu0 0
  %9662 = vmatmul.mubr.bf16.gmra.mxu0 %v9476
  %v9663 = vpop.f32.mrf.mxu0
  %v9664 = vadd.f32 0.0, %v9663
  %v9665 = vpop.f32.mrf.mxu0
  %v9666 = vpop.f32.mrf.mxu0
  %v9667 = vadd.f32 0.0, %v9666
  %v9668 = vpop.f32.mrf.mxu0
  %9669 = vmatprep.mubr.bf16.mxu0 0
  %9670 = vmatmul.mubr.bf16.gmra.mxu0 %v9479
  %v9671 = vpop.f32.mrf.mxu0
  %v9672 = vadd.f32 0.0, %v9671
  %v9673 = vpop.f32.mrf.mxu0
  %v9674 = vpop.f32.mrf.mxu0
  %v9675 = vadd.f32 0.0, %v9674
  %v9676 = vpop.f32.mrf.mxu0
  %9677 = vmatprep.mubr.bf16.mxu0 0
  %9678 = vmatmul.mubr.bf16.gmra.mxu0 %v9482
  %v9679 = vpop.f32.mrf.mxu0
  %v9680 = vadd.f32 0.0, %v9679
  %v9681 = vpop.f32.mrf.mxu0
  %v9682 = vpop.f32.mrf.mxu0
  %v9683 = vadd.f32 0.0, %v9682
  %v9684 = vpop.f32.mrf.mxu0
  %9685 = vmatprep.mubr.bf16.mxu0 0
  %9686 = vmatmul.mubr.bf16.gmra.mxu0 %v9485
  %v9687 = vpop.f32.mrf.mxu0
  %v9688 = vadd.f32 0.0, %v9687
  %v9689 = vpop.f32.mrf.mxu0
  %v9690 = vpop.f32.mrf.mxu0
  %v9691 = vadd.f32 0.0, %v9690
  %v9692 = vpop.f32.mrf.mxu0
  %9693 = vmatprep.mubr.bf16.mxu0 0
  %9694 = vmatmul.mubr.bf16.gmra.mxu0 %v9488
  %v9695 = vpop.f32.mrf.mxu0
  %v9696 = vadd.f32 0.0, %v9695
  %v9697 = vpop.f32.mrf.mxu0
  %v9698 = vpop.f32.mrf.mxu0
  %v9699 = vadd.f32 0.0, %v9698
  %v9700 = vpop.f32.mrf.mxu0
  %9701 = vmatprep.mubr.bf16.mxu0 0
  %9702 = vmatmul.mubr.bf16.gmra.mxu0 %v9491
  %v9703 = vpop.f32.mrf.mxu0
  %v9704 = vadd.f32 0.0, %v9703
  %v9705 = vpop.f32.mrf.mxu0
  %v9706 = vpop.f32.mrf.mxu0
  %v9707 = vadd.f32 0.0, %v9706
  %v9708 = vpop.f32.mrf.mxu0
  %9709 = vmatprep.mubr.bf16.mxu0 0
  %9710 = vmatmul.mubr.bf16.gmra.mxu0 %v9494
  %v9711 = vpop.f32.mrf.mxu0
  %v9712 = vadd.f32 0.0, %v9711
  %v9713 = vpop.f32.mrf.mxu0
  %v9714 = vpop.f32.mrf.mxu0
  %v9715 = vadd.f32 0.0, %v9714
  %v9716 = vpop.f32.mrf.mxu0
  %9717 = vmatprep.mubr.bf16.mxu0 0
  %9718 = vmatmul.mubr.bf16.gmra.mxu0 %v9497
  %v9719 = vpop.f32.mrf.mxu0
  %v9720 = vadd.f32 0.0, %v9719
  %v9721 = vpop.f32.mrf.mxu0
  %v9722 = vpop.f32.mrf.mxu0
  %v9723 = vadd.f32 0.0, %v9722
  %v9724 = vpop.f32.mrf.mxu0
  %9725 = vmatprep.mubr.bf16.mxu0 0
  %9726 = vmatmul.mubr.bf16.gmra.mxu0 %v9500
  %v9727 = vpop.f32.mrf.mxu0
  %v9728 = vadd.f32 0.0, %v9727
  %v9729 = vpop.f32.mrf.mxu0
  %v9730 = vpop.f32.mrf.mxu0
  %v9731 = vadd.f32 0.0, %v9730
  %v9732 = vpop.f32.mrf.mxu0
  %9733 = vmatprep.mubr.bf16.mxu0 0
  %9734 = vmatmul.mubr.bf16.gmra.mxu0 %v9503
  %v9735 = vpop.f32.mrf.mxu0
  %v9736 = vadd.f32 0.0, %v9735
  %v9737 = vpop.f32.mrf.mxu0
  %v9738 = vpop.f32.mrf.mxu0
  %v9739 = vadd.f32 0.0, %v9738
  %v9740 = vpop.f32.mrf.mxu0
  %9741 = vmatprep.mubr.bf16.mxu0 0
  %9742 = vmatmul.mubr.bf16.gmra.mxu0 %v9506
  %v9743 = vpop.f32.mrf.mxu0
  %v9744 = vadd.f32 0.0, %v9743
  %v9745 = vpop.f32.mrf.mxu0
  %v9746 = vpop.f32.mrf.mxu0
  %v9747 = vadd.f32 0.0, %v9746
  %v9748 = vpop.f32.mrf.mxu0
  %9749 = vmatprep.mubr.bf16.mxu0 0
  %9750 = vmatmul.mubr.bf16.gmra.mxu0 %v9509
  %v9751 = vpop.f32.mrf.mxu0
  %v9752 = vadd.f32 0.0, %v9751
  %v9753 = vpop.f32.mrf.mxu0
  %v9754 = vpop.f32.mrf.mxu0
  %v9755 = vadd.f32 0.0, %v9754
  %v9756 = vpop.f32.mrf.mxu0
  %9757 = vmatprep.mubr.bf16.mxu0 0
  %9758 = vmatmul.mubr.bf16.gmra.mxu0 %v9512
  %v9759 = vpop.f32.mrf.mxu0
  %v9760 = vadd.f32 0.0, %v9759
  %v9761 = vpop.f32.mrf.mxu0
  %v9762 = vpop.f32.mrf.mxu0
  %v9763 = vadd.f32 0.0, %v9762
  %v9764 = vpop.f32.mrf.mxu0
  %9765 = vmatprep.mubr.bf16.mxu0 0
  %9766 = vmatmul.mubr.bf16.gmra.mxu0 %v9515
  %v9767 = vpop.f32.mrf.mxu0
  %v9768 = vadd.f32 0.0, %v9767
  %v9769 = vpop.f32.mrf.mxu0
  %v9770 = vpop.f32.mrf.mxu0
  %v9771 = vadd.f32 0.0, %v9770
  %v9772 = vpop.f32.mrf.mxu0
  %9773 = vmatprep.mubr.bf16.mxu0 0
  %9774 = vmatmul.mubr.bf16.gmra.mxu0 %v9518
  %v9775 = vpop.f32.mrf.mxu0
  %v9776 = vadd.f32 0.0, %v9775
  %v9777 = vpop.f32.mrf.mxu0
  %v9778 = vpop.f32.mrf.mxu0
  %v9779 = vadd.f32 0.0, %v9778
  %v9780 = vpop.f32.mrf.mxu0
  %9781 = vmatprep.mubr.bf16.mxu0 0
  %9782 = vmatmul.mubr.bf16.gmra.mxu0 %v9521
  %v9783 = vpop.f32.mrf.mxu0
  %v9784 = vadd.f32 0.0, %v9783
  %v9785 = vpop.f32.mrf.mxu0
  %v9786 = vpop.f32.mrf.mxu0
  %v9787 = vadd.f32 0.0, %v9786
  %v9788 = vpop.f32.mrf.mxu0
  %9789 = vmatprep.mubr.bf16.mxu0 0
  %9790 = vmatmul.mubr.bf16.gmra.mxu0 %v9524
  %v9791 = vpop.f32.mrf.mxu0
  %v9792 = vadd.f32 0.0, %v9791
  %v9793 = vpop.f32.mrf.mxu0
  %v9794 = vpop.f32.mrf.mxu0
  %v9795 = vadd.f32 0.0, %v9794
  %v9796 = vpop.f32.mrf.mxu0
  %9797 = vmatprep.mubr.bf16.mxu0 0
  %9798 = vmatmul.mubr.bf16.gmra.mxu0 %v9527
  %v9799 = vpop.f32.mrf.mxu0
  %v9800 = vadd.f32 0.0, %v9799
  %v9801 = vpop.f32.mrf.mxu0
  %v9802 = vpop.f32.mrf.mxu0
  %v9803 = vadd.f32 0.0, %v9802
  %v9804 = vpop.f32.mrf.mxu0
  %9805 = vmatprep.mubr.bf16.mxu0 0
  %9806 = vmatmul.mubr.bf16.gmra.mxu0 %v9530
  %v9807 = vpop.f32.mrf.mxu0
  %v9808 = vadd.f32 0.0, %v9807
  %v9809 = vpop.f32.mrf.mxu0
  %v9810 = vpop.f32.mrf.mxu0
  %v9811 = vadd.f32 0.0, %v9810
  %v9812 = vpop.f32.mrf.mxu0
  %9813 = vmatprep.mubr.bf16.mxu0 0
  %9814 = vmatmul.mubr.bf16.gmra.mxu0 %v9533
  %v9815 = vpop.f32.mrf.mxu0
  %v9816 = vadd.f32 0.0, %v9815
  %v9817 = vpop.f32.mrf.mxu0
  %v9818 = vpop.f32.mrf.mxu0
  %v9819 = vadd.f32 0.0, %v9818
  %v9820 = vpop.f32.mrf.mxu0
  %9821 = vmatprep.mubr.bf16.mxu0 0
  %9822 = vmatmul.mubr.bf16.gmra.mxu0 %v9536
  %v9823 = vpop.f32.mrf.mxu0
  %v9824 = vadd.f32 0.0, %v9823
  %v9825 = vpop.f32.mrf.mxu0
  %v9826 = vpop.f32.mrf.mxu0
  %v9827 = vadd.f32 0.0, %v9826
  %v9828 = vpop.f32.mrf.mxu0
  %9829 = vdwg.mxu0
  %v9830 = vadd.f32 %v9280, %v9576
  %v9831 = vadd.f32 %v9281, %v9579
  %v9832 = vadd.f32 %v9282, %v9584
  %v9833 = vadd.f32 %v9283, %v9587
  %v9834 = vadd.f32 %v9284, %v9592
  %v9835 = vadd.f32 %v9285, %v9595
  %v9836 = vadd.f32 %v9286, %v9600
  %v9837 = vadd.f32 %v9287, %v9603
  %v9838 = vadd.f32 %v9288, %v9608
  %v9839 = vadd.f32 %v9289, %v9611
  %v9840 = vadd.f32 %v9290, %v9616
  %v9841 = vadd.f32 %v9291, %v9619
  %v9842 = vadd.f32 %v9292, %v9624
  %v9843 = vadd.f32 %v9293, %v9627
  %v9844 = vadd.f32 %v9294, %v9632
  %v9845 = vadd.f32 %v9295, %v9635
  %v9846 = vadd.f32 %v9296, %v9640
  %v9847 = vadd.f32 %v9297, %v9643
  %v9848 = vadd.f32 %v9298, %v9648
  %v9849 = vadd.f32 %v9299, %v9651
  %v9850 = vadd.f32 %v9300, %v9656
  %v9851 = vadd.f32 %v9301, %v9659
  %v9852 = vadd.f32 %v9302, %v9664
  %v9853 = vadd.f32 %v9303, %v9667
  %v9854 = vadd.f32 %v9304, %v9672
  %v9855 = vadd.f32 %v9305, %v9675
  %v9856 = vadd.f32 %v9306, %v9680
  %v9857 = vadd.f32 %v9307, %v9683
  %v9858 = vadd.f32 %v9308, %v9688
  %v9859 = vadd.f32 %v9309, %v9691
  %v9860 = vadd.f32 %v9310, %v9696
  %v9861 = vadd.f32 %v9311, %v9699
  %v9862 = vadd.f32 %v9312, %v9704
  %v9863 = vadd.f32 %v9313, %v9707
  %v9864 = vadd.f32 %v9314, %v9712
  %v9865 = vadd.f32 %v9315, %v9715
  %v9866 = vadd.f32 %v9316, %v9720
  %v9867 = vadd.f32 %v9317, %v9723
  %v9868 = vadd.f32 %v9318, %v9728
  %v9869 = vadd.f32 %v9319, %v9731
  %v9870 = vadd.f32 %v9320, %v9736
  %v9871 = vadd.f32 %v9321, %v9739
  %v9872 = vadd.f32 %v9322, %v9744
  %v9873 = vadd.f32 %v9323, %v9747
  %v9874 = vadd.f32 %v9324, %v9752
  %v9875 = vadd.f32 %v9325, %v9755
  %v9876 = vadd.f32 %v9326, %v9760
  %v9877 = vadd.f32 %v9327, %v9763
  %v9878 = vadd.f32 %v9328, %v9768
  %v9879 = vadd.f32 %v9329, %v9771
  %v9880 = vadd.f32 %v9330, %v9776
  %v9881 = vadd.f32 %v9331, %v9779
  %v9882 = vadd.f32 %v9332, %v9784
  %v9883 = vadd.f32 %v9333, %v9787
  %v9884 = vadd.f32 %v9334, %v9792
  %v9885 = vadd.f32 %v9335, %v9795
  %v9886 = vadd.f32 %v9336, %v9800
  %v9887 = vadd.f32 %v9337, %v9803
  %v9888 = vadd.f32 %v9338, %v9808
  %v9889 = vadd.f32 %v9339, %v9811
  %v9890 = vadd.f32 %v9340, %v9816
  %v9891 = vadd.f32 %v9341, %v9819
  %v9892 = vadd.f32 %v9342, %v9824
  %v9893 = vadd.f32 %v9343, %v9827
  %v9894 = vld [vmem:[%s3429 + $0x2] sm:$0xff]
  %v9895 = vld [vmem:[%s3429 + $0xa] sm:$0xff]
  %v9896 = vld [vmem:[%s3429 + $0x1a] sm:$0xff]
  %v9897 = vld [vmem:[%s3429 + $0x22] sm:$0xff]
  %v9898 = vld [vmem:[%s3429 + $0x32] sm:$0xff]
  %v9899 = vld [vmem:[%s3429 + $0x3a] sm:$0xff]
  %v9900 = vld [vmem:[%s3429 + $0x4a] sm:$0xff]
  %v9901 = vld [vmem:[%s3429 + $0x52] sm:$0xff]
  %v9902 = vld [vmem:[%s3429 + $0x62] sm:$0xff]
  %v9903 = vld [vmem:[%s3429 + $0x6a] sm:$0xff]
  %v9904 = vld [vmem:[%s3429 + $0x7a] sm:$0xff]
  %v9905 = vld [vmem:[%s3429 + $0x82] sm:$0xff]
  %v9906 = vld [vmem:[%s3429 + $0x92] sm:$0xff]
  %v9907 = vld [vmem:[%s3429 + $0x9a] sm:$0xff]
  %v9908 = vld [vmem:[%s3429 + $0xaa] sm:$0xff]
  %v9909 = vld [vmem:[%s3429 + $0xb2] sm:$0xff]
  %v9910 = vld [vmem:[%s3429 + $0xc2] sm:$0xff]
  %v9911 = vld [vmem:[%s3429 + $0xca] sm:$0xff]
  %v9912 = vld [vmem:[%s3429 + $0xda] sm:$0xff]
  %v9913 = vld [vmem:[%s3429 + $0xe2] sm:$0xff]
  %v9914 = vld [vmem:[%s3429 + $0xf2] sm:$0xff]
  %v9915 = vld [vmem:[%s3429 + $0xfa] sm:$0xff]
  %v9916 = vld [vmem:[%s3429 + $0x10a] sm:$0xff]
  %v9917 = vld [vmem:[%s3429 + $0x112] sm:$0xff]
  %v9918 = vld [vmem:[%s3429 + $0x122] sm:$0xff]
  %v9919 = vld [vmem:[%s3429 + $0x12a] sm:$0xff]
  %v9920 = vld [vmem:[%s3429 + $0x13a] sm:$0xff]
  %v9921 = vld [vmem:[%s3429 + $0x142] sm:$0xff]
  %v9922 = vld [vmem:[%s3429 + $0x152] sm:$0xff]
  %v9923 = vld [vmem:[%s3429 + $0x15a] sm:$0xff]
  %v9924 = vld [vmem:[%s3429 + $0x16a] sm:$0xff]
  %v9925 = vld [vmem:[%s3429 + $0x172] sm:$0xff]
  %v9926 = vld [vmem:[%s3429 + $0x1b2] sm:$0xff]
  %v9927 = vld [vmem:[%s3429 + $0x1ba] sm:$0xff]
  %v9928 = vld [vmem:[%s3429 + $0x1ca] sm:$0xff]
  %v9929 = vld [vmem:[%s3429 + $0x1d2] sm:$0xff]
  %v9930 = vld [vmem:[%s3429 + $0x1e2] sm:$0xff]
  %v9931 = vld [vmem:[%s3429 + $0x1ea] sm:$0xff]
  %v9932 = vld [vmem:[%s3429 + $0x1fa] sm:$0xff]
  %v9933 = vld [vmem:[%s3429 + $0x202] sm:$0xff]
  %v9934 = vld [vmem:[%s3429 + $0x212] sm:$0xff]
  %v9935 = vld [vmem:[%s3429 + $0x21a] sm:$0xff]
  %v9936 = vld [vmem:[%s3429 + $0x22a] sm:$0xff]
  %v9937 = vld [vmem:[%s3429 + $0x232] sm:$0xff]
  %v9938 = vld [vmem:[%s3429 + $0x242] sm:$0xff]
  %v9939 = vld [vmem:[%s3429 + $0x24a] sm:$0xff]
  %v9940 = vld [vmem:[%s3429 + $0x25a] sm:$0xff]
  %v9941 = vld [vmem:[%s3429 + $0x262] sm:$0xff]
  %v9942 = vld [vmem:[%s3429 + $0x272] sm:$0xff]
  %v9943 = vld [vmem:[%s3429 + $0x27a] sm:$0xff]
  %v9944 = vld [vmem:[%s3429 + $0x28a] sm:$0xff]
  %v9945 = vld [vmem:[%s3429 + $0x292] sm:$0xff]
  %v9946 = vld [vmem:[%s3429 + $0x2a2] sm:$0xff]
  %v9947 = vld [vmem:[%s3429 + $0x2aa] sm:$0xff]
  %v9948 = vld [vmem:[%s3429 + $0x2ba] sm:$0xff]
  %v9949 = vld [vmem:[%s3429 + $0x2c2] sm:$0xff]
  %v9950 = vld [vmem:[%s3429 + $0x2d2] sm:$0xff]
  %v9951 = vld [vmem:[%s3429 + $0x2da] sm:$0xff]
  %v9952 = vld [vmem:[%s3429 + $0x2ea] sm:$0xff]
  %v9953 = vld [vmem:[%s3429 + $0x2f2] sm:$0xff]
  %v9954 = vld [vmem:[%s3429 + $0x302] sm:$0xff]
  %v9955 = vld [vmem:[%s3429 + $0x30a] sm:$0xff]
  %v9956 = vld [vmem:[%s3429 + $0x31a] sm:$0xff]
  %v9957 = vld [vmem:[%s3429 + $0x322] sm:$0xff]
  %v9958 = vpack.c.bf16 %v9895, %v9894
  %v9959 = vpack.c.bf16 %v9897, %v9896
  %v9960 = vpack.c.bf16 %v9899, %v9898
  %v9961 = vpack.c.bf16 %v9901, %v9900
  %v9962 = vpack.c.bf16 %v9903, %v9902
  %v9963 = vpack.c.bf16 %v9905, %v9904
  %v9964 = vpack.c.bf16 %v9907, %v9906
  %v9965 = vpack.c.bf16 %v9909, %v9908
  %v9966 = vpack.c.bf16 %v9911, %v9910
  %v9967 = vpack.c.bf16 %v9913, %v9912
  %v9968 = vpack.c.bf16 %v9915, %v9914
  %v9969 = vpack.c.bf16 %v9917, %v9916
  %v9970 = vpack.c.bf16 %v9919, %v9918
  %v9971 = vpack.c.bf16 %v9921, %v9920
  %v9972 = vpack.c.bf16 %v9923, %v9922
  %v9973 = vpack.c.bf16 %v9925, %v9924
  %v9974 = vpack.c.bf16 %v9927, %v9926
  %v9975 = vpack.c.bf16 %v9929, %v9928
  %v9976 = vpack.c.bf16 %v9931, %v9930
  %v9977 = vpack.c.bf16 %v9933, %v9932
  %v9978 = vpack.c.bf16 %v9935, %v9934
  %v9979 = vpack.c.bf16 %v9937, %v9936
  %v9980 = vpack.c.bf16 %v9939, %v9938
  %v9981 = vpack.c.bf16 %v9941, %v9940
  %v9982 = vpack.c.bf16 %v9943, %v9942
  %v9983 = vpack.c.bf16 %v9945, %v9944
  %v9984 = vpack.c.bf16 %v9947, %v9946
  %v9985 = vpack.c.bf16 %v9949, %v9948
  %v9986 = vpack.c.bf16 %v9951, %v9950
  %v9987 = vpack.c.bf16 %v9953, %v9952
  %v9988 = vpack.c.bf16 %v9955, %v9954
  %v9989 = vpack.c.bf16 %v9957, %v9956
  %s9990 = scalar_lea.vmem %s2, 16
  %v9991 = vld [vmem:[%s9990] sm:$0x3]
  %v9993 = vsel %vm40, %v9958, 0
  %v9996 = vsel %vm40, %v9959, 0
  %v9999 = vsel %vm40, %v9960, 0
  %v10002 = vsel %vm40, %v9961, 0
  %v10005 = vsel %vm40, %v9962, 0
  %v10008 = vsel %vm40, %v9963, 0
  %v10011 = vsel %vm40, %v9964, 0
  %v10014 = vsel %vm40, %v9965, 0
  %v10017 = vsel %vm40, %v9966, 0
  %v10020 = vsel %vm40, %v9967, 0
  %v10023 = vsel %vm40, %v9968, 0
  %v10026 = vsel %vm40, %v9969, 0
  %v10029 = vsel %vm40, %v9970, 0
  %v10032 = vsel %vm40, %v9971, 0
  %v10035 = vsel %vm40, %v9972, 0
  %v10038 = vsel %vm40, %v9973, 0
  %v10041 = vsel %vm40, %v9974, 0
  %v10044 = vsel %vm40, %v9975, 0
  %v10047 = vsel %vm40, %v9976, 0
  %v10050 = vsel %vm40, %v9977, 0
  %v10053 = vsel %vm40, %v9978, 0
  %v10056 = vsel %vm40, %v9979, 0
  %v10059 = vsel %vm40, %v9980, 0
  %v10062 = vsel %vm40, %v9981, 0
  %v10065 = vsel %vm40, %v9982, 0
  %v10068 = vsel %vm40, %v9983, 0
  %v10071 = vsel %vm40, %v9984, 0
  %v10074 = vsel %vm40, %v9985, 0
  %v10077 = vsel %vm40, %v9986, 0
  %v10080 = vsel %vm40, %v9987, 0
  %v10083 = vsel %vm40, %v9988, 0
  %v10086 = vsel %vm40, %v9989, 0
  %v10089 = vsel %vm548, %v9991, 0
  %10091 = vmatprep.subr.bf16.mxu0 0
  %10092 = vmatpush1.bf16.msra.mxu0 0
  %10093 = vmatprep.subr.bf16.mxu0 0
  %10094 = vmatpush1.bf16.msra.mxu0 0
  %10095 = vmatprep.subr.bf16.mxu0 0
  %10096 = vmatpush1.bf16.msra.mxu0 0
  %10097 = vmatprep.subr.bf16.mxu0 0
  %10098 = vmatpush1.bf16.msra.mxu0 0
  %10099 = vmatprep.subr.bf16.mxu0 0
  %10100 = vmatpush1.bf16.msra.mxu0 0
  %10101 = vmatprep.subr.bf16.mxu0 0
  %10102 = vmatpush1.bf16.msra.mxu0 0
  %10103 = vmatprep.subr.bf16.mxu0 0
  %10104 = vmatpush1.bf16.msra.mxu0 0
  %10105 = vmatprep.subr.bf16.mxu0 0
  %10106 = vmatpush1.bf16.msra.mxu0 %v10089
  %10107 = vmatprep.subr.bf16.mxu0 0
  %10108 = vmatpush2.bf16.msra.mxu0 0
  %10109 = vmatprep.subr.bf16.mxu0 0
  %10110 = vmatpush2.bf16.msra.mxu0 0
  %10111 = vmatprep.subr.bf16.mxu0 0
  %10112 = vmatpush2.bf16.msra.mxu0 0
  %10113 = vmatprep.subr.bf16.mxu0 0
  %10114 = vmatpush2.bf16.msra.mxu0 0
  %10115 = vmatprep.subr.bf16.mxu0 0
  %10116 = vmatpush2.bf16.msra.mxu0 0
  %10117 = vmatprep.subr.bf16.mxu0 0
  %10118 = vmatpush2.bf16.msra.mxu0 0
  %10119 = vmatprep.subr.bf16.mxu0 0
  %10120 = vmatpush2.bf16.msra.mxu0 0
  %10121 = vmatprep.subr.bf16.mxu0 0
  %10122 = vmatpush2.bf16.msra.mxu0 0
  %10123 = vmatprep.mubr.bf16.mxu0 0
  %10124 = vmatmul.mubr.bf16.gmra.mxu0 %v9993
  %v10125 = vpop.f32.mrf.mxu0
  %v10126 = vadd.f32 0.0, %v10125
  %v10127 = vpop.f32.mrf.mxu0
  %v10128 = vpop.f32.mrf.mxu0
  %v10129 = vadd.f32 0.0, %v10128
  %v10130 = vpop.f32.mrf.mxu0
  %10131 = vmatprep.mubr.bf16.mxu0 0
  %10132 = vmatmul.mubr.bf16.gmra.mxu0 %v9996
  %v10133 = vpop.f32.mrf.mxu0
  %v10134 = vadd.f32 0.0, %v10133
  %v10135 = vpop.f32.mrf.mxu0
  %v10136 = vpop.f32.mrf.mxu0
  %v10137 = vadd.f32 0.0, %v10136
  %v10138 = vpop.f32.mrf.mxu0
  %10139 = vmatprep.mubr.bf16.mxu0 0
  %10140 = vmatmul.mubr.bf16.gmra.mxu0 %v9999
  %v10141 = vpop.f32.mrf.mxu0
  %v10142 = vadd.f32 0.0, %v10141
  %v10143 = vpop.f32.mrf.mxu0
  %v10144 = vpop.f32.mrf.mxu0
  %v10145 = vadd.f32 0.0, %v10144
  %v10146 = vpop.f32.mrf.mxu0
  %10147 = vmatprep.mubr.bf16.mxu0 0
  %10148 = vmatmul.mubr.bf16.gmra.mxu0 %v10002
  %v10149 = vpop.f32.mrf.mxu0
  %v10150 = vadd.f32 0.0, %v10149
  %v10151 = vpop.f32.mrf.mxu0
  %v10152 = vpop.f32.mrf.mxu0
  %v10153 = vadd.f32 0.0, %v10152
  %v10154 = vpop.f32.mrf.mxu0
  %10155 = vmatprep.mubr.bf16.mxu0 0
  %10156 = vmatmul.mubr.bf16.gmra.mxu0 %v10005
  %v10157 = vpop.f32.mrf.mxu0
  %v10158 = vadd.f32 0.0, %v10157
  %v10159 = vpop.f32.mrf.mxu0
  %v10160 = vpop.f32.mrf.mxu0
  %v10161 = vadd.f32 0.0, %v10160
  %v10162 = vpop.f32.mrf.mxu0
  %10163 = vmatprep.mubr.bf16.mxu0 0
  %10164 = vmatmul.mubr.bf16.gmra.mxu0 %v10008
  %v10165 = vpop.f32.mrf.mxu0
  %v10166 = vadd.f32 0.0, %v10165
  %v10167 = vpop.f32.mrf.mxu0
  %v10168 = vpop.f32.mrf.mxu0
  %v10169 = vadd.f32 0.0, %v10168
  %v10170 = vpop.f32.mrf.mxu0
  %10171 = vmatprep.mubr.bf16.mxu0 0
  %10172 = vmatmul.mubr.bf16.gmra.mxu0 %v10011
  %v10173 = vpop.f32.mrf.mxu0
  %v10174 = vadd.f32 0.0, %v10173
  %v10175 = vpop.f32.mrf.mxu0
  %v10176 = vpop.f32.mrf.mxu0
  %v10177 = vadd.f32 0.0, %v10176
  %v10178 = vpop.f32.mrf.mxu0
  %10179 = vmatprep.mubr.bf16.mxu0 0
  %10180 = vmatmul.mubr.bf16.gmra.mxu0 %v10014
  %v10181 = vpop.f32.mrf.mxu0
  %v10182 = vadd.f32 0.0, %v10181
  %v10183 = vpop.f32.mrf.mxu0
  %v10184 = vpop.f32.mrf.mxu0
  %v10185 = vadd.f32 0.0, %v10184
  %v10186 = vpop.f32.mrf.mxu0
  %10187 = vmatprep.mubr.bf16.mxu0 0
  %10188 = vmatmul.mubr.bf16.gmra.mxu0 %v10017
  %v10189 = vpop.f32.mrf.mxu0
  %v10190 = vadd.f32 0.0, %v10189
  %v10191 = vpop.f32.mrf.mxu0
  %v10192 = vpop.f32.mrf.mxu0
  %v10193 = vadd.f32 0.0, %v10192
  %v10194 = vpop.f32.mrf.mxu0
  %10195 = vmatprep.mubr.bf16.mxu0 0
  %10196 = vmatmul.mubr.bf16.gmra.mxu0 %v10020
  %v10197 = vpop.f32.mrf.mxu0
  %v10198 = vadd.f32 0.0, %v10197
  %v10199 = vpop.f32.mrf.mxu0
  %v10200 = vpop.f32.mrf.mxu0
  %v10201 = vadd.f32 0.0, %v10200
  %v10202 = vpop.f32.mrf.mxu0
  %10203 = vmatprep.mubr.bf16.mxu0 0
  %10204 = vmatmul.mubr.bf16.gmra.mxu0 %v10023
  %v10205 = vpop.f32.mrf.mxu0
  %v10206 = vadd.f32 0.0, %v10205
  %v10207 = vpop.f32.mrf.mxu0
  %v10208 = vpop.f32.mrf.mxu0
  %v10209 = vadd.f32 0.0, %v10208
  %v10210 = vpop.f32.mrf.mxu0
  %10211 = vmatprep.mubr.bf16.mxu0 0
  %10212 = vmatmul.mubr.bf16.gmra.mxu0 %v10026
  %v10213 = vpop.f32.mrf.mxu0
  %v10214 = vadd.f32 0.0, %v10213
  %v10215 = vpop.f32.mrf.mxu0
  %v10216 = vpop.f32.mrf.mxu0
  %v10217 = vadd.f32 0.0, %v10216
  %v10218 = vpop.f32.mrf.mxu0
  %10219 = vmatprep.mubr.bf16.mxu0 0
  %10220 = vmatmul.mubr.bf16.gmra.mxu0 %v10029
  %v10221 = vpop.f32.mrf.mxu0
  %v10222 = vadd.f32 0.0, %v10221
  %v10223 = vpop.f32.mrf.mxu0
  %v10224 = vpop.f32.mrf.mxu0
  %v10225 = vadd.f32 0.0, %v10224
  %v10226 = vpop.f32.mrf.mxu0
  %10227 = vmatprep.mubr.bf16.mxu0 0
  %10228 = vmatmul.mubr.bf16.gmra.mxu0 %v10032
  %v10229 = vpop.f32.mrf.mxu0
  %v10230 = vadd.f32 0.0, %v10229
  %v10231 = vpop.f32.mrf.mxu0
  %v10232 = vpop.f32.mrf.mxu0
  %v10233 = vadd.f32 0.0, %v10232
  %v10234 = vpop.f32.mrf.mxu0
  %10235 = vmatprep.mubr.bf16.mxu0 0
  %10236 = vmatmul.mubr.bf16.gmra.mxu0 %v10035
  %v10237 = vpop.f32.mrf.mxu0
  %v10238 = vadd.f32 0.0, %v10237
  %v10239 = vpop.f32.mrf.mxu0
  %v10240 = vpop.f32.mrf.mxu0
  %v10241 = vadd.f32 0.0, %v10240
  %v10242 = vpop.f32.mrf.mxu0
  %10243 = vmatprep.mubr.bf16.mxu0 0
  %10244 = vmatmul.mubr.bf16.gmra.mxu0 %v10038
  %v10245 = vpop.f32.mrf.mxu0
  %v10246 = vadd.f32 0.0, %v10245
  %v10247 = vpop.f32.mrf.mxu0
  %v10248 = vpop.f32.mrf.mxu0
  %v10249 = vadd.f32 0.0, %v10248
  %v10250 = vpop.f32.mrf.mxu0
  %10251 = vmatprep.mubr.bf16.mxu0 0
  %10252 = vmatmul.mubr.bf16.gmra.mxu0 %v10041
  %v10253 = vpop.f32.mrf.mxu0
  %v10254 = vadd.f32 0.0, %v10253
  %v10255 = vpop.f32.mrf.mxu0
  %v10256 = vpop.f32.mrf.mxu0
  %v10257 = vadd.f32 0.0, %v10256
  %v10258 = vpop.f32.mrf.mxu0
  %10259 = vmatprep.mubr.bf16.mxu0 0
  %10260 = vmatmul.mubr.bf16.gmra.mxu0 %v10044
  %v10261 = vpop.f32.mrf.mxu0
  %v10262 = vadd.f32 0.0, %v10261
  %v10263 = vpop.f32.mrf.mxu0
  %v10264 = vpop.f32.mrf.mxu0
  %v10265 = vadd.f32 0.0, %v10264
  %v10266 = vpop.f32.mrf.mxu0
  %10267 = vmatprep.mubr.bf16.mxu0 0
  %10268 = vmatmul.mubr.bf16.gmra.mxu0 %v10047
  %v10269 = vpop.f32.mrf.mxu0
  %v10270 = vadd.f32 0.0, %v10269
  %v10271 = vpop.f32.mrf.mxu0
  %v10272 = vpop.f32.mrf.mxu0
  %v10273 = vadd.f32 0.0, %v10272
  %v10274 = vpop.f32.mrf.mxu0
  %10275 = vmatprep.mubr.bf16.mxu0 0
  %10276 = vmatmul.mubr.bf16.gmra.mxu0 %v10050
  %v10277 = vpop.f32.mrf.mxu0
  %v10278 = vadd.f32 0.0, %v10277
  %v10279 = vpop.f32.mrf.mxu0
  %v10280 = vpop.f32.mrf.mxu0
  %v10281 = vadd.f32 0.0, %v10280
  %v10282 = vpop.f32.mrf.mxu0
  %10283 = vmatprep.mubr.bf16.mxu0 0
  %10284 = vmatmul.mubr.bf16.gmra.mxu0 %v10053
  %v10285 = vpop.f32.mrf.mxu0
  %v10286 = vadd.f32 0.0, %v10285
  %v10287 = vpop.f32.mrf.mxu0
  %v10288 = vpop.f32.mrf.mxu0
  %v10289 = vadd.f32 0.0, %v10288
  %v10290 = vpop.f32.mrf.mxu0
  %10291 = vmatprep.mubr.bf16.mxu0 0
  %10292 = vmatmul.mubr.bf16.gmra.mxu0 %v10056
  %v10293 = vpop.f32.mrf.mxu0
  %v10294 = vadd.f32 0.0, %v10293
  %v10295 = vpop.f32.mrf.mxu0
  %v10296 = vpop.f32.mrf.mxu0
  %v10297 = vadd.f32 0.0, %v10296
  %v10298 = vpop.f32.mrf.mxu0
  %10299 = vmatprep.mubr.bf16.mxu0 0
  %10300 = vmatmul.mubr.bf16.gmra.mxu0 %v10059
  %v10301 = vpop.f32.mrf.mxu0
  %v10302 = vadd.f32 0.0, %v10301
  %v10303 = vpop.f32.mrf.mxu0
  %v10304 = vpop.f32.mrf.mxu0
  %v10305 = vadd.f32 0.0, %v10304
  %v10306 = vpop.f32.mrf.mxu0
  %10307 = vmatprep.mubr.bf16.mxu0 0
  %10308 = vmatmul.mubr.bf16.gmra.mxu0 %v10062
  %v10309 = vpop.f32.mrf.mxu0
  %v10310 = vadd.f32 0.0, %v10309
  %v10311 = vpop.f32.mrf.mxu0
  %v10312 = vpop.f32.mrf.mxu0
  %v10313 = vadd.f32 0.0, %v10312
  %v10314 = vpop.f32.mrf.mxu0
  %10315 = vmatprep.mubr.bf16.mxu0 0
  %10316 = vmatmul.mubr.bf16.gmra.mxu0 %v10065
  %v10317 = vpop.f32.mrf.mxu0
  %v10318 = vadd.f32 0.0, %v10317
  %v10319 = vpop.f32.mrf.mxu0
  %v10320 = vpop.f32.mrf.mxu0
  %v10321 = vadd.f32 0.0, %v10320
  %v10322 = vpop.f32.mrf.mxu0
  %10323 = vmatprep.mubr.bf16.mxu0 0
  %10324 = vmatmul.mubr.bf16.gmra.mxu0 %v10068
  %v10325 = vpop.f32.mrf.mxu0
  %v10326 = vadd.f32 0.0, %v10325
  %v10327 = vpop.f32.mrf.mxu0
  %v10328 = vpop.f32.mrf.mxu0
  %v10329 = vadd.f32 0.0, %v10328
  %v10330 = vpop.f32.mrf.mxu0
  %10331 = vmatprep.mubr.bf16.mxu0 0
  %10332 = vmatmul.mubr.bf16.gmra.mxu0 %v10071
  %v10333 = vpop.f32.mrf.mxu0
  %v10334 = vadd.f32 0.0, %v10333
  %v10335 = vpop.f32.mrf.mxu0
  %v10336 = vpop.f32.mrf.mxu0
  %v10337 = vadd.f32 0.0, %v10336
  %v10338 = vpop.f32.mrf.mxu0
  %10339 = vmatprep.mubr.bf16.mxu0 0
  %10340 = vmatmul.mubr.bf16.gmra.mxu0 %v10074
  %v10341 = vpop.f32.mrf.mxu0
  %v10342 = vadd.f32 0.0, %v10341
  %v10343 = vpop.f32.mrf.mxu0
  %v10344 = vpop.f32.mrf.mxu0
  %v10345 = vadd.f32 0.0, %v10344
  %v10346 = vpop.f32.mrf.mxu0
  %10347 = vmatprep.mubr.bf16.mxu0 0
  %10348 = vmatmul.mubr.bf16.gmra.mxu0 %v10077
  %v10349 = vpop.f32.mrf.mxu0
  %v10350 = vadd.f32 0.0, %v10349
  %v10351 = vpop.f32.mrf.mxu0
  %v10352 = vpop.f32.mrf.mxu0
  %v10353 = vadd.f32 0.0, %v10352
  %v10354 = vpop.f32.mrf.mxu0
  %10355 = vmatprep.mubr.bf16.mxu0 0
  %10356 = vmatmul.mubr.bf16.gmra.mxu0 %v10080
  %v10357 = vpop.f32.mrf.mxu0
  %v10358 = vadd.f32 0.0, %v10357
  %v10359 = vpop.f32.mrf.mxu0
  %v10360 = vpop.f32.mrf.mxu0
  %v10361 = vadd.f32 0.0, %v10360
  %v10362 = vpop.f32.mrf.mxu0
  %10363 = vmatprep.mubr.bf16.mxu0 0
  %10364 = vmatmul.mubr.bf16.gmra.mxu0 %v10083
  %v10365 = vpop.f32.mrf.mxu0
  %v10366 = vadd.f32 0.0, %v10365
  %v10367 = vpop.f32.mrf.mxu0
  %v10368 = vpop.f32.mrf.mxu0
  %v10369 = vadd.f32 0.0, %v10368
  %v10370 = vpop.f32.mrf.mxu0
  %10371 = vmatprep.mubr.bf16.mxu0 0
  %10372 = vmatmul.mubr.bf16.gmra.mxu0 %v10086
  %v10373 = vpop.f32.mrf.mxu0
  %v10374 = vadd.f32 0.0, %v10373
  %v10375 = vpop.f32.mrf.mxu0
  %v10376 = vpop.f32.mrf.mxu0
  %v10377 = vadd.f32 0.0, %v10376
  %v10378 = vpop.f32.mrf.mxu0
  %10379 = vdwg.mxu0
  %v10380 = vadd.f32 %v9830, %v10126
  %v10381 = vadd.f32 %v9831, %v10129
  %v10382 = vadd.f32 %v9832, %v10134
  %v10383 = vadd.f32 %v9833, %v10137
  %v10384 = vadd.f32 %v9834, %v10142
  %v10385 = vadd.f32 %v9835, %v10145
  %v10386 = vadd.f32 %v9836, %v10150
  %v10387 = vadd.f32 %v9837, %v10153
  %v10388 = vadd.f32 %v9838, %v10158
  %v10389 = vadd.f32 %v9839, %v10161
  %v10390 = vadd.f32 %v9840, %v10166
  %v10391 = vadd.f32 %v9841, %v10169
  %v10392 = vadd.f32 %v9842, %v10174
  %v10393 = vadd.f32 %v9843, %v10177
  %v10394 = vadd.f32 %v9844, %v10182
  %v10395 = vadd.f32 %v9845, %v10185
  %v10396 = vadd.f32 %v9846, %v10190
  %v10397 = vadd.f32 %v9847, %v10193
  %v10398 = vadd.f32 %v9848, %v10198
  %v10399 = vadd.f32 %v9849, %v10201
  %v10400 = vadd.f32 %v9850, %v10206
  %v10401 = vadd.f32 %v9851, %v10209
  %v10402 = vadd.f32 %v9852, %v10214
  %v10403 = vadd.f32 %v9853, %v10217
  %v10404 = vadd.f32 %v9854, %v10222
  %v10405 = vadd.f32 %v9855, %v10225
  %v10406 = vadd.f32 %v9856, %v10230
  %v10407 = vadd.f32 %v9857, %v10233
  %v10408 = vadd.f32 %v9858, %v10238
  %v10409 = vadd.f32 %v9859, %v10241
  %v10410 = vadd.f32 %v9860, %v10246
  %v10411 = vadd.f32 %v9861, %v10249
  %v10412 = vadd.f32 %v9862, %v10254
  %v10413 = vadd.f32 %v9863, %v10257
  %v10414 = vadd.f32 %v9864, %v10262
  %v10415 = vadd.f32 %v9865, %v10265
  %v10416 = vadd.f32 %v9866, %v10270
  %v10417 = vadd.f32 %v9867, %v10273
  %v10418 = vadd.f32 %v9868, %v10278
  %v10419 = vadd.f32 %v9869, %v10281
  %v10420 = vadd.f32 %v9870, %v10286
  %v10421 = vadd.f32 %v9871, %v10289
  %v10422 = vadd.f32 %v9872, %v10294
  %v10423 = vadd.f32 %v9873, %v10297
  %v10424 = vadd.f32 %v9874, %v10302
  %v10425 = vadd.f32 %v9875, %v10305
  %v10426 = vadd.f32 %v9876, %v10310
  %v10427 = vadd.f32 %v9877, %v10313
  %v10428 = vadd.f32 %v9878, %v10318
  %v10429 = vadd.f32 %v9879, %v10321
  %v10430 = vadd.f32 %v9880, %v10326
  %v10431 = vadd.f32 %v9881, %v10329
  %v10432 = vadd.f32 %v9882, %v10334
  %v10433 = vadd.f32 %v9883, %v10337
  %v10434 = vadd.f32 %v9884, %v10342
  %v10435 = vadd.f32 %v9885, %v10345
  %v10436 = vadd.f32 %v9886, %v10350
  %v10437 = vadd.f32 %v9887, %v10353
  %v10438 = vadd.f32 %v9888, %v10358
  %v10439 = vadd.f32 %v9889, %v10361
  %v10440 = vadd.f32 %v9890, %v10366
  %v10441 = vadd.f32 %v9891, %v10369
  %v10442 = vadd.f32 %v9892, %v10374
  %v10443 = vadd.f32 %v9893, %v10377
  %v10444 = vadd.f32 %v10380, %v10381
  %v10445 = vadd.f32 %v10444, %v10382
  %v10446 = vadd.f32 %v10445, %v10383
  %v10447 = vadd.f32 %v10446, %v10384
  %v10448 = vadd.f32 %v10447, %v10385
  %v10449 = vadd.f32 %v10448, %v10386
  %v10450 = vadd.f32 %v10449, %v10387
  %v10451 = vadd.f32 %v10450, %v10388
  %v10452 = vadd.f32 %v10451, %v10389
  %v10453 = vadd.f32 %v10452, %v10390
  %v10454 = vadd.f32 %v10453, %v10391
  %v10455 = vadd.f32 %v10454, %v10392
  %v10456 = vadd.f32 %v10455, %v10393
  %v10457 = vadd.f32 %v10456, %v10394
  %v10458 = vadd.f32 %v10457, %v10395
  %v10459 = vadd.f32 %v10458, %v10396
  %v10460 = vadd.f32 %v10459, %v10397
  %v10461 = vadd.f32 %v10460, %v10398
  %v10462 = vadd.f32 %v10461, %v10399
  %v10463 = vadd.f32 %v10462, %v10400
  %v10464 = vadd.f32 %v10463, %v10401
  %v10465 = vadd.f32 %v10464, %v10402
  %v10466 = vadd.f32 %v10465, %v10403
  %v10467 = vadd.f32 %v10466, %v10404
  %v10468 = vadd.f32 %v10467, %v10405
  %v10469 = vadd.f32 %v10468, %v10406
  %v10470 = vadd.f32 %v10469, %v10407
  %v10471 = vadd.f32 %v10470, %v10408
  %v10472 = vadd.f32 %v10471, %v10409
  %v10473 = vadd.f32 %v10472, %v10410
  %v10474 = vadd.f32 %v10473, %v10411
  %v10475 = vadd.f32 %v10474, %v10412
  %v10476 = vadd.f32 %v10475, %v10413
  %v10477 = vadd.f32 %v10476, %v10414
  %v10478 = vadd.f32 %v10477, %v10415
  %v10479 = vadd.f32 %v10478, %v10416
  %v10480 = vadd.f32 %v10479, %v10417
  %v10481 = vadd.f32 %v10480, %v10418
  %v10482 = vadd.f32 %v10481, %v10419
  %v10483 = vadd.f32 %v10482, %v10420
  %v10484 = vadd.f32 %v10483, %v10421
  %v10485 = vadd.f32 %v10484, %v10422
  %v10486 = vadd.f32 %v10485, %v10423
  %v10487 = vadd.f32 %v10486, %v10424
  %v10488 = vadd.f32 %v10487, %v10425
  %v10489 = vadd.f32 %v10488, %v10426
  %v10490 = vadd.f32 %v10489, %v10427
  %v10491 = vadd.f32 %v10490, %v10428
  %v10492 = vadd.f32 %v10491, %v10429
  %v10493 = vadd.f32 %v10492, %v10430
  %v10494 = vadd.f32 %v10493, %v10431
  %v10495 = vadd.f32 %v10494, %v10432
  %v10496 = vadd.f32 %v10495, %v10433
  %v10497 = vadd.f32 %v10496, %v10434
  %v10498 = vadd.f32 %v10497, %v10435
  %v10499 = vadd.f32 %v10498, %v10436
  %v10500 = vadd.f32 %v10499, %v10437
  %v10501 = vadd.f32 %v10500, %v10438
  %v10502 = vadd.f32 %v10501, %v10439
  %v10503 = vadd.f32 %v10502, %v10440
  %v10504 = vadd.f32 %v10503, %v10441
  %v10505 = vadd.f32 %v10504, %v10442
  %v10506 = vadd.f32 %v10505, %v10443
  %v10507 = vrot.slane %v10506, 4
  %v10508 = vadd.f32 %v10506, %v10507
  %v10509 = vrot.slane %v10508, 2
  %v10510 = vadd.f32 %v10508, %v10509
  %v10511 = vrot.slane %v10510, 1
  %v10512 = vadd.f32 %v10510, %v10511
  %v10513 = vmul.f32 %v10512, 0.001953125
  %v10514 = vmul.f32 %v10380, %v10380
  %v10515 = vmul.f32 %v10381, %v10381
  %v10516 = vmul.f32 %v10382, %v10382
  %v10517 = vmul.f32 %v10383, %v10383
  %v10518 = vmul.f32 %v10384, %v10384
  %v10519 = vmul.f32 %v10385, %v10385
  %v10520 = vmul.f32 %v10386, %v10386
  %v10521 = vmul.f32 %v10387, %v10387
  %v10522 = vmul.f32 %v10388, %v10388
  %v10523 = vmul.f32 %v10389, %v10389
  %v10524 = vmul.f32 %v10390, %v10390
  %v10525 = vmul.f32 %v10391, %v10391
  %v10526 = vmul.f32 %v10392, %v10392
  %v10527 = vmul.f32 %v10393, %v10393
  %v10528 = vmul.f32 %v10394, %v10394
  %v10529 = vmul.f32 %v10395, %v10395
  %v10530 = vmul.f32 %v10396, %v10396
  %v10531 = vmul.f32 %v10397, %v10397
  %v10532 = vmul.f32 %v10398, %v10398
  %v10533 = vmul.f32 %v10399, %v10399
  %v10534 = vmul.f32 %v10400, %v10400
  %v10535 = vmul.f32 %v10401, %v10401
  %v10536 = vmul.f32 %v10402, %v10402
  %v10537 = vmul.f32 %v10403, %v10403
  %v10538 = vmul.f32 %v10404, %v10404
  %v10539 = vmul.f32 %v10405, %v10405
  %v10540 = vmul.f32 %v10406, %v10406
  %v10541 = vmul.f32 %v10407, %v10407
  %v10542 = vmul.f32 %v10408, %v10408
  %v10543 = vmul.f32 %v10409, %v10409
  %v10544 = vmul.f32 %v10410, %v10410
  %v10545 = vmul.f32 %v10411, %v10411
  %v10546 = vmul.f32 %v10412, %v10412
  %v10547 = vmul.f32 %v10413, %v10413
  %v10548 = vmul.f32 %v10414, %v10414
  %v10549 = vmul.f32 %v10415, %v10415
  %v10550 = vmul.f32 %v10416, %v10416
  %v10551 = vmul.f32 %v10417, %v10417
  %v10552 = vmul.f32 %v10418, %v10418
  %v10553 = vmul.f32 %v10419, %v10419
  %v10554 = vmul.f32 %v10420, %v10420
  %v10555 = vmul.f32 %v10421, %v10421
  %v10556 = vmul.f32 %v10422, %v10422
  %v10557 = vmul.f32 %v10423, %v10423
  %v10558 = vmul.f32 %v10424, %v10424
  %v10559 = vmul.f32 %v10425, %v10425
  %v10560 = vmul.f32 %v10426, %v10426
  %v10561 = vmul.f32 %v10427, %v10427
  %v10562 = vmul.f32 %v10428, %v10428
  %v10563 = vmul.f32 %v10429, %v10429
  %v10564 = vmul.f32 %v10430, %v10430
  %v10565 = vmul.f32 %v10431, %v10431
  %v10566 = vmul.f32 %v10432, %v10432
  %v10567 = vmul.f32 %v10433, %v10433
  %v10568 = vmul.f32 %v10434, %v10434
  %v10569 = vmul.f32 %v10435, %v10435
  %v10570 = vmul.f32 %v10436, %v10436
  %v10571 = vmul.f32 %v10437, %v10437
  %v10572 = vmul.f32 %v10438, %v10438
  %v10573 = vmul.f32 %v10439, %v10439
  %v10574 = vmul.f32 %v10440, %v10440
  %v10575 = vmul.f32 %v10441, %v10441
  %v10576 = vmul.f32 %v10442, %v10442
  %v10577 = vmul.f32 %v10443, %v10443
  %v10578 = vadd.f32 %v10514, %v10515
  %v10579 = vadd.f32 %v10578, %v10516
  %v10580 = vadd.f32 %v10579, %v10517
  %v10581 = vadd.f32 %v10580, %v10518
  %v10582 = vadd.f32 %v10581, %v10519
  %v10583 = vadd.f32 %v10582, %v10520
  %v10584 = vadd.f32 %v10583, %v10521
  %v10585 = vadd.f32 %v10584, %v10522
  %v10586 = vadd.f32 %v10585, %v10523
  %v10587 = vadd.f32 %v10586, %v10524
  %v10588 = vadd.f32 %v10587, %v10525
  %v10589 = vadd.f32 %v10588, %v10526
  %v10590 = vadd.f32 %v10589, %v10527
  %v10591 = vadd.f32 %v10590, %v10528
  %v10592 = vadd.f32 %v10591, %v10529
  %v10593 = vadd.f32 %v10592, %v10530
  %v10594 = vadd.f32 %v10593, %v10531
  %v10595 = vadd.f32 %v10594, %v10532
  %v10596 = vadd.f32 %v10595, %v10533
  %v10597 = vadd.f32 %v10596, %v10534
  %v10598 = vadd.f32 %v10597, %v10535
  %v10599 = vadd.f32 %v10598, %v10536
  %v10600 = vadd.f32 %v10599, %v10537
  %v10601 = vadd.f32 %v10600, %v10538
  %v10602 = vadd.f32 %v10601, %v10539
  %v10603 = vadd.f32 %v10602, %v10540
  %v10604 = vadd.f32 %v10603, %v10541
  %v10605 = vadd.f32 %v10604, %v10542
  %v10606 = vadd.f32 %v10605, %v10543
  %v10607 = vadd.f32 %v10606, %v10544
  %v10608 = vadd.f32 %v10607, %v10545
  %v10609 = vadd.f32 %v10608, %v10546
  %v10610 = vadd.f32 %v10609, %v10547
  %v10611 = vadd.f32 %v10610, %v10548
  %v10612 = vadd.f32 %v10611, %v10549
  %v10613 = vadd.f32 %v10612, %v10550
  %v10614 = vadd.f32 %v10613, %v10551
  %v10615 = vadd.f32 %v10614, %v10552
  %v10616 = vadd.f32 %v10615, %v10553
  %v10617 = vadd.f32 %v10616, %v10554
  %v10618 = vadd.f32 %v10617, %v10555
  %v10619 = vadd.f32 %v10618, %v10556
  %v10620 = vadd.f32 %v10619, %v10557
  %v10621 = vadd.f32 %v10620, %v10558
  %v10622 = vadd.f32 %v10621, %v10559
  %v10623 = vadd.f32 %v10622, %v10560
  %v10624 = vadd.f32 %v10623, %v10561
  %v10625 = vadd.f32 %v10624, %v10562
  %v10626 = vadd.f32 %v10625, %v10563
  %v10627 = vadd.f32 %v10626, %v10564
  %v10628 = vadd.f32 %v10627, %v10565
  %v10629 = vadd.f32 %v10628, %v10566
  %v10630 = vadd.f32 %v10629, %v10567
  %v10631 = vadd.f32 %v10630, %v10568
  %v10632 = vadd.f32 %v10631, %v10569
  %v10633 = vadd.f32 %v10632, %v10570
  %v10634 = vadd.f32 %v10633, %v10571
  %v10635 = vadd.f32 %v10634, %v10572
  %v10636 = vadd.f32 %v10635, %v10573
  %v10637 = vadd.f32 %v10636, %v10574
  %v10638 = vadd.f32 %v10637, %v10575
  %v10639 = vadd.f32 %v10638, %v10576
  %v10640 = vadd.f32 %v10639, %v10577
  %v10641 = vrot.slane %v10640, 4
  %v10642 = vadd.f32 %v10640, %v10641
  %v10643 = vrot.slane %v10642, 2
  %v10644 = vadd.f32 %v10642, %v10643
  %v10645 = vrot.slane %v10644, 1
  %v10646 = vadd.f32 %v10644, %v10645
  %v10647 = vmul.f32 %v10646, 0.001953125
  %v10648 = vmul.f32 %v10513, %v10513
  %v10649 = vsub.f32 %v10647, %v10648
  %v10650 = vmax.f32 %v10649, 0.0
  %v10651 = vsub.f32 %v10380, %v10513
  %v10652 = vsub.f32 %v10381, %v10513
  %v10653 = vsub.f32 %v10382, %v10513
  %v10654 = vsub.f32 %v10383, %v10513
  %v10655 = vsub.f32 %v10384, %v10513
  %v10656 = vsub.f32 %v10385, %v10513
  %v10657 = vsub.f32 %v10386, %v10513
  %v10658 = vsub.f32 %v10387, %v10513
  %v10659 = vsub.f32 %v10388, %v10513
  %v10660 = vsub.f32 %v10389, %v10513
  %v10661 = vsub.f32 %v10390, %v10513
  %v10662 = vsub.f32 %v10391, %v10513
  %v10663 = vsub.f32 %v10392, %v10513
  %v10664 = vsub.f32 %v10393, %v10513
  %v10665 = vsub.f32 %v10394, %v10513
  %v10666 = vsub.f32 %v10395, %v10513
  %v10667 = vsub.f32 %v10396, %v10513
  %v10668 = vsub.f32 %v10397, %v10513
  %v10669 = vsub.f32 %v10398, %v10513
  %v10670 = vsub.f32 %v10399, %v10513
  %v10671 = vsub.f32 %v10400, %v10513
  %v10672 = vsub.f32 %v10401, %v10513
  %v10673 = vsub.f32 %v10402, %v10513
  %v10674 = vsub.f32 %v10403, %v10513
  %v10675 = vsub.f32 %v10404, %v10513
  %v10676 = vsub.f32 %v10405, %v10513
  %v10677 = vsub.f32 %v10406, %v10513
  %v10678 = vsub.f32 %v10407, %v10513
  %v10679 = vsub.f32 %v10408, %v10513
  %v10680 = vsub.f32 %v10409, %v10513
  %v10681 = vsub.f32 %v10410, %v10513
  %v10682 = vsub.f32 %v10411, %v10513
  %v10683 = vsub.f32 %v10412, %v10513
  %v10684 = vsub.f32 %v10413, %v10513
  %v10685 = vsub.f32 %v10414, %v10513
  %v10686 = vsub.f32 %v10415, %v10513
  %v10687 = vsub.f32 %v10416, %v10513
  %v10688 = vsub.f32 %v10417, %v10513
  %v10689 = vsub.f32 %v10418, %v10513
  %v10690 = vsub.f32 %v10419, %v10513
  %v10691 = vsub.f32 %v10420, %v10513
  %v10692 = vsub.f32 %v10421, %v10513
  %v10693 = vsub.f32 %v10422, %v10513
  %v10694 = vsub.f32 %v10423, %v10513
  %v10695 = vsub.f32 %v10424, %v10513
  %v10696 = vsub.f32 %v10425, %v10513
  %v10697 = vsub.f32 %v10426, %v10513
  %v10698 = vsub.f32 %v10427, %v10513
  %v10699 = vsub.f32 %v10428, %v10513
  %v10700 = vsub.f32 %v10429, %v10513
  %v10701 = vsub.f32 %v10430, %v10513
  %v10702 = vsub.f32 %v10431, %v10513
  %v10703 = vsub.f32 %v10432, %v10513
  %v10704 = vsub.f32 %v10433, %v10513
  %v10705 = vsub.f32 %v10434, %v10513
  %v10706 = vsub.f32 %v10435, %v10513
  %v10707 = vsub.f32 %v10436, %v10513
  %v10708 = vsub.f32 %v10437, %v10513
  %v10709 = vsub.f32 %v10438, %v10513
  %v10710 = vsub.f32 %v10439, %v10513
  %v10711 = vsub.f32 %v10440, %v10513
  %v10712 = vsub.f32 %v10441, %v10513
  %v10713 = vsub.f32 %v10442, %v10513
  %v10714 = vsub.f32 %v10443, %v10513
  %v10715 = vadd.f32 %v10650, 1e-05
  %v10716 = vrsqrt.pop %v10715
  %v10717 = vmul.f32 %v10651, %v10716
  %v10718 = vmul.f32 %v10652, %v10716
  %v10719 = vmul.f32 %v10653, %v10716
  %v10720 = vmul.f32 %v10654, %v10716
  %v10721 = vmul.f32 %v10655, %v10716
  %v10722 = vmul.f32 %v10656, %v10716
  %v10723 = vmul.f32 %v10657, %v10716
  %v10724 = vmul.f32 %v10658, %v10716
  %v10725 = vmul.f32 %v10659, %v10716
  %v10726 = vmul.f32 %v10660, %v10716
  %v10727 = vmul.f32 %v10661, %v10716
  %v10728 = vmul.f32 %v10662, %v10716
  %v10729 = vmul.f32 %v10663, %v10716
  %v10730 = vmul.f32 %v10664, %v10716
  %v10731 = vmul.f32 %v10665, %v10716
  %v10732 = vmul.f32 %v10666, %v10716
  %v10733 = vmul.f32 %v10667, %v10716
  %v10734 = vmul.f32 %v10668, %v10716
  %v10735 = vmul.f32 %v10669, %v10716
  %v10736 = vmul.f32 %v10670, %v10716
  %v10737 = vmul.f32 %v10671, %v10716
  %v10738 = vmul.f32 %v10672, %v10716
  %v10739 = vmul.f32 %v10673, %v10716
  %v10740 = vmul.f32 %v10674, %v10716
  %v10741 = vmul.f32 %v10675, %v10716
  %v10742 = vmul.f32 %v10676, %v10716
  %v10743 = vmul.f32 %v10677, %v10716
  %v10744 = vmul.f32 %v10678, %v10716
  %v10745 = vmul.f32 %v10679, %v10716
  %v10746 = vmul.f32 %v10680, %v10716
  %v10747 = vmul.f32 %v10681, %v10716
  %v10748 = vmul.f32 %v10682, %v10716
  %v10749 = vmul.f32 %v10683, %v10716
  %v10750 = vmul.f32 %v10684, %v10716
  %v10751 = vmul.f32 %v10685, %v10716
  %v10752 = vmul.f32 %v10686, %v10716
  %v10753 = vmul.f32 %v10687, %v10716
  %v10754 = vmul.f32 %v10688, %v10716
  %v10755 = vmul.f32 %v10689, %v10716
  %v10756 = vmul.f32 %v10690, %v10716
  %v10757 = vmul.f32 %v10691, %v10716
  %v10758 = vmul.f32 %v10692, %v10716
  %v10759 = vmul.f32 %v10693, %v10716
  %v10760 = vmul.f32 %v10694, %v10716
  %v10761 = vmul.f32 %v10695, %v10716
  %v10762 = vmul.f32 %v10696, %v10716
  %v10763 = vmul.f32 %v10697, %v10716
  %v10764 = vmul.f32 %v10698, %v10716
  %v10765 = vmul.f32 %v10699, %v10716
  %v10766 = vmul.f32 %v10700, %v10716
  %v10767 = vmul.f32 %v10701, %v10716
  %v10768 = vmul.f32 %v10702, %v10716
  %v10769 = vmul.f32 %v10703, %v10716
  %v10770 = vmul.f32 %v10704, %v10716
  %v10771 = vmul.f32 %v10705, %v10716
  %v10772 = vmul.f32 %v10706, %v10716
  %v10773 = vmul.f32 %v10707, %v10716
  %v10774 = vmul.f32 %v10708, %v10716
  %v10775 = vmul.f32 %v10709, %v10716
  %v10776 = vmul.f32 %v10710, %v10716
  %v10777 = vmul.f32 %v10711, %v10716
  %v10778 = vmul.f32 %v10712, %v10716
  %v10779 = vmul.f32 %v10713, %v10716
  %v10780 = vmul.f32 %v10714, %v10716
  %v10781 = vld [vmem:[%s6] sm:$0x1]
  %v10783 = vlaneseq
  %v10784 = vshrl.u32 %v10783, 7
  %v10785 = vsub.s32 0, %v10784
  %v10786 = vrot.slane %v10781, %v10785
  %v10788 = vmul.f32 %v10717, %v10786
  %v10789 = vmul.f32 %v10718, %v10786
  %v10790 = vmul.f32 %v10719, %v10786
  %v10791 = vmul.f32 %v10720, %v10786
  %v10792 = vmul.f32 %v10721, %v10786
  %v10793 = vmul.f32 %v10722, %v10786
  %v10794 = vmul.f32 %v10723, %v10786
  %v10795 = vmul.f32 %v10724, %v10786
  %v10796 = vmul.f32 %v10725, %v10786
  %v10797 = vmul.f32 %v10726, %v10786
  %v10798 = vmul.f32 %v10727, %v10786
  %v10799 = vmul.f32 %v10728, %v10786
  %v10800 = vmul.f32 %v10729, %v10786
  %v10801 = vmul.f32 %v10730, %v10786
  %v10802 = vmul.f32 %v10731, %v10786
  %v10803 = vmul.f32 %v10732, %v10786
  %v10804 = vmul.f32 %v10733, %v10786
  %v10805 = vmul.f32 %v10734, %v10786
  %v10806 = vmul.f32 %v10735, %v10786
  %v10807 = vmul.f32 %v10736, %v10786
  %v10808 = vmul.f32 %v10737, %v10786
  %v10809 = vmul.f32 %v10738, %v10786
  %v10810 = vmul.f32 %v10739, %v10786
  %v10811 = vmul.f32 %v10740, %v10786
  %v10812 = vmul.f32 %v10741, %v10786
  %v10813 = vmul.f32 %v10742, %v10786
  %v10814 = vmul.f32 %v10743, %v10786
  %v10815 = vmul.f32 %v10744, %v10786
  %v10816 = vmul.f32 %v10745, %v10786
  %v10817 = vmul.f32 %v10746, %v10786
  %v10818 = vmul.f32 %v10747, %v10786
  %v10819 = vmul.f32 %v10748, %v10786
  %v10820 = vmul.f32 %v10749, %v10786
  %v10821 = vmul.f32 %v10750, %v10786
  %v10822 = vmul.f32 %v10751, %v10786
  %v10823 = vmul.f32 %v10752, %v10786
  %v10824 = vmul.f32 %v10753, %v10786
  %v10825 = vmul.f32 %v10754, %v10786
  %v10826 = vmul.f32 %v10755, %v10786
  %v10827 = vmul.f32 %v10756, %v10786
  %v10828 = vmul.f32 %v10757, %v10786
  %v10829 = vmul.f32 %v10758, %v10786
  %v10830 = vmul.f32 %v10759, %v10786
  %v10831 = vmul.f32 %v10760, %v10786
  %v10832 = vmul.f32 %v10761, %v10786
  %v10833 = vmul.f32 %v10762, %v10786
  %v10834 = vmul.f32 %v10763, %v10786
  %v10835 = vmul.f32 %v10764, %v10786
  %v10836 = vmul.f32 %v10765, %v10786
  %v10837 = vmul.f32 %v10766, %v10786
  %v10838 = vmul.f32 %v10767, %v10786
  %v10839 = vmul.f32 %v10768, %v10786
  %v10840 = vmul.f32 %v10769, %v10786
  %v10841 = vmul.f32 %v10770, %v10786
  %v10842 = vmul.f32 %v10771, %v10786
  %v10843 = vmul.f32 %v10772, %v10786
  %v10844 = vmul.f32 %v10773, %v10786
  %v10845 = vmul.f32 %v10774, %v10786
  %v10846 = vmul.f32 %v10775, %v10786
  %v10847 = vmul.f32 %v10776, %v10786
  %v10848 = vmul.f32 %v10777, %v10786
  %v10849 = vmul.f32 %v10778, %v10786
  %v10850 = vmul.f32 %v10779, %v10786
  %v10851 = vmul.f32 %v10780, %v10786
  %v10852 = vld [vmem:[%s7] sm:$0x1]
  %v10854 = vlaneseq
  %v10855 = vshrl.u32 %v10854, 7
  %v10856 = vsub.s32 0, %v10855
  %v10857 = vrot.slane %v10852, %v10856
  %v10859 = vadd.f32 %v10788, %v10857
  %v10860 = vadd.f32 %v10789, %v10857
  %v10861 = vadd.f32 %v10790, %v10857
  %v10862 = vadd.f32 %v10791, %v10857
  %v10863 = vadd.f32 %v10792, %v10857
  %v10864 = vadd.f32 %v10793, %v10857
  %v10865 = vadd.f32 %v10794, %v10857
  %v10866 = vadd.f32 %v10795, %v10857
  %v10867 = vadd.f32 %v10796, %v10857
  %v10868 = vadd.f32 %v10797, %v10857
  %v10869 = vadd.f32 %v10798, %v10857
  %v10870 = vadd.f32 %v10799, %v10857
  %v10871 = vadd.f32 %v10800, %v10857
  %v10872 = vadd.f32 %v10801, %v10857
  %v10873 = vadd.f32 %v10802, %v10857
  %v10874 = vadd.f32 %v10803, %v10857
  %v10875 = vadd.f32 %v10804, %v10857
  %v10876 = vadd.f32 %v10805, %v10857
  %v10877 = vadd.f32 %v10806, %v10857
  %v10878 = vadd.f32 %v10807, %v10857
  %v10879 = vadd.f32 %v10808, %v10857
  %v10880 = vadd.f32 %v10809, %v10857
  %v10881 = vadd.f32 %v10810, %v10857
  %v10882 = vadd.f32 %v10811, %v10857
  %v10883 = vadd.f32 %v10812, %v10857
  %v10884 = vadd.f32 %v10813, %v10857
  %v10885 = vadd.f32 %v10814, %v10857
  %v10886 = vadd.f32 %v10815, %v10857
  %v10887 = vadd.f32 %v10816, %v10857
  %v10888 = vadd.f32 %v10817, %v10857
  %v10889 = vadd.f32 %v10818, %v10857
  %v10890 = vadd.f32 %v10819, %v10857
  %v10891 = vadd.f32 %v10820, %v10857
  %v10892 = vadd.f32 %v10821, %v10857
  %v10893 = vadd.f32 %v10822, %v10857
  %v10894 = vadd.f32 %v10823, %v10857
  %v10895 = vadd.f32 %v10824, %v10857
  %v10896 = vadd.f32 %v10825, %v10857
  %v10897 = vadd.f32 %v10826, %v10857
  %v10898 = vadd.f32 %v10827, %v10857
  %v10899 = vadd.f32 %v10828, %v10857
  %v10900 = vadd.f32 %v10829, %v10857
  %v10901 = vadd.f32 %v10830, %v10857
  %v10902 = vadd.f32 %v10831, %v10857
  %v10903 = vadd.f32 %v10832, %v10857
  %v10904 = vadd.f32 %v10833, %v10857
  %v10905 = vadd.f32 %v10834, %v10857
  %v10906 = vadd.f32 %v10835, %v10857
  %v10907 = vadd.f32 %v10836, %v10857
  %v10908 = vadd.f32 %v10837, %v10857
  %v10909 = vadd.f32 %v10838, %v10857
  %v10910 = vadd.f32 %v10839, %v10857
  %v10911 = vadd.f32 %v10840, %v10857
  %v10912 = vadd.f32 %v10841, %v10857
  %v10913 = vadd.f32 %v10842, %v10857
  %v10914 = vadd.f32 %v10843, %v10857
  %v10915 = vadd.f32 %v10844, %v10857
  %v10916 = vadd.f32 %v10845, %v10857
  %v10917 = vadd.f32 %v10846, %v10857
  %v10918 = vadd.f32 %v10847, %v10857
  %v10919 = vadd.f32 %v10848, %v10857
  %v10920 = vadd.f32 %v10849, %v10857
  %v10921 = vadd.f32 %v10850, %v10857
  %v10922 = vadd.f32 %v10851, %v10857
  %v10923 = vld [vmem:[%s0] sm:$0xff]
  %v10924 = vld [vmem:[%s0 + $0x8] sm:$0xff]
  %v10925 = vld [vmem:[%s0 + $0x10] sm:$0xff]
  %v10926 = vld [vmem:[%s0 + $0x18] sm:$0xff]
  %v10927 = vld [vmem:[%s0 + $0x20] sm:$0xff]
  %v10928 = vld [vmem:[%s0 + $0x28] sm:$0xff]
  %v10929 = vld [vmem:[%s0 + $0x30] sm:$0xff]
  %v10930 = vld [vmem:[%s0 + $0x38] sm:$0xff]
  %v10931 = vld [vmem:[%s0 + $0x40] sm:$0xff]
  %v10932 = vld [vmem:[%s0 + $0x48] sm:$0xff]
  %v10933 = vld [vmem:[%s0 + $0x50] sm:$0xff]
  %v10934 = vld [vmem:[%s0 + $0x58] sm:$0xff]
  %v10935 = vld [vmem:[%s0 + $0x60] sm:$0xff]
  %v10936 = vld [vmem:[%s0 + $0x68] sm:$0xff]
  %v10937 = vld [vmem:[%s0 + $0x70] sm:$0xff]
  %v10938 = vld [vmem:[%s0 + $0x78] sm:$0xff]
  %v10939 = vld [vmem:[%s0 + $0x80] sm:$0xff]
  %v10940 = vld [vmem:[%s0 + $0x88] sm:$0xff]
  %v10941 = vld [vmem:[%s0 + $0x90] sm:$0xff]
  %v10942 = vld [vmem:[%s0 + $0x98] sm:$0xff]
  %v10943 = vld [vmem:[%s0 + $0xa0] sm:$0xff]
  %v10944 = vld [vmem:[%s0 + $0xa8] sm:$0xff]
  %v10945 = vld [vmem:[%s0 + $0xb0] sm:$0xff]
  %v10946 = vld [vmem:[%s0 + $0xb8] sm:$0xff]
  %v10947 = vld [vmem:[%s0 + $0xc0] sm:$0xff]
  %v10948 = vld [vmem:[%s0 + $0xc8] sm:$0xff]
  %v10949 = vld [vmem:[%s0 + $0xd0] sm:$0xff]
  %v10950 = vld [vmem:[%s0 + $0xd8] sm:$0xff]
  %v10951 = vld [vmem:[%s0 + $0xe0] sm:$0xff]
  %v10952 = vld [vmem:[%s0 + $0xe8] sm:$0xff]
  %v10953 = vld [vmem:[%s0 + $0xf0] sm:$0xff]
  %v10954 = vld [vmem:[%s0 + $0xf8] sm:$0xff]
  %v10955 = vld [vmem:[%s0 + $0x100] sm:$0xff]
  %v10956 = vld [vmem:[%s0 + $0x108] sm:$0xff]
  %v10957 = vld [vmem:[%s0 + $0x110] sm:$0xff]
  %v10958 = vld [vmem:[%s0 + $0x118] sm:$0xff]
  %v10959 = vld [vmem:[%s0 + $0x120] sm:$0xff]
  %v10960 = vld [vmem:[%s0 + $0x128] sm:$0xff]
  %v10961 = vld [vmem:[%s0 + $0x130] sm:$0xff]
  %v10962 = vld [vmem:[%s0 + $0x138] sm:$0xff]
  %v10963 = vld [vmem:[%s0 + $0x140] sm:$0xff]
  %v10964 = vld [vmem:[%s0 + $0x148] sm:$0xff]
  %v10965 = vld [vmem:[%s0 + $0x150] sm:$0xff]
  %v10966 = vld [vmem:[%s0 + $0x158] sm:$0xff]
  %v10967 = vld [vmem:[%s0 + $0x160] sm:$0xff]
  %v10968 = vld [vmem:[%s0 + $0x168] sm:$0xff]
  %v10969 = vld [vmem:[%s0 + $0x170] sm:$0xff]
  %v10970 = vld [vmem:[%s0 + $0x178] sm:$0xff]
  %v10971 = vld [vmem:[%s0 + $0x180] sm:$0xff]
  %v10972 = vld [vmem:[%s0 + $0x188] sm:$0xff]
  %v10973 = vld [vmem:[%s0 + $0x190] sm:$0xff]
  %v10974 = vld [vmem:[%s0 + $0x198] sm:$0xff]
  %v10975 = vld [vmem:[%s0 + $0x1a0] sm:$0xff]
  %v10976 = vld [vmem:[%s0 + $0x1a8] sm:$0xff]
  %v10977 = vld [vmem:[%s0 + $0x1b0] sm:$0xff]
  %v10978 = vld [vmem:[%s0 + $0x1b8] sm:$0xff]
  %v10979 = vld [vmem:[%s0 + $0x1c0] sm:$0xff]
  %v10980 = vld [vmem:[%s0 + $0x1c8] sm:$0xff]
  %v10981 = vld [vmem:[%s0 + $0x1d0] sm:$0xff]
  %v10982 = vld [vmem:[%s0 + $0x1d8] sm:$0xff]
  %v10983 = vld [vmem:[%s0 + $0x1e0] sm:$0xff]
  %v10984 = vld [vmem:[%s0 + $0x1e8] sm:$0xff]
  %v10985 = vld [vmem:[%s0 + $0x1f0] sm:$0xff]
  %v10986 = vld [vmem:[%s0 + $0x1f8] sm:$0xff]
  %v10987 = vadd.f32 %v10859, %v10923
  %v10988 = vadd.f32 %v10860, %v10924
  %v10989 = vadd.f32 %v10861, %v10925
  %v10990 = vadd.f32 %v10862, %v10926
  %v10991 = vadd.f32 %v10863, %v10927
  %v10992 = vadd.f32 %v10864, %v10928
  %v10993 = vadd.f32 %v10865, %v10929
  %v10994 = vadd.f32 %v10866, %v10930
  %v10995 = vadd.f32 %v10867, %v10931
  %v10996 = vadd.f32 %v10868, %v10932
  %v10997 = vadd.f32 %v10869, %v10933
  %v10998 = vadd.f32 %v10870, %v10934
  %v10999 = vadd.f32 %v10871, %v10935
  %v11000 = vadd.f32 %v10872, %v10936
  %v11001 = vadd.f32 %v10873, %v10937
  %v11002 = vadd.f32 %v10874, %v10938
  %v11003 = vadd.f32 %v10875, %v10939
  %v11004 = vadd.f32 %v10876, %v10940
  %v11005 = vadd.f32 %v10877, %v10941
  %v11006 = vadd.f32 %v10878, %v10942
  %v11007 = vadd.f32 %v10879, %v10943
  %v11008 = vadd.f32 %v10880, %v10944
  %v11009 = vadd.f32 %v10881, %v10945
  %v11010 = vadd.f32 %v10882, %v10946
  %v11011 = vadd.f32 %v10883, %v10947
  %v11012 = vadd.f32 %v10884, %v10948
  %v11013 = vadd.f32 %v10885, %v10949
  %v11014 = vadd.f32 %v10886, %v10950
  %v11015 = vadd.f32 %v10887, %v10951
  %v11016 = vadd.f32 %v10888, %v10952
  %v11017 = vadd.f32 %v10889, %v10953
  %v11018 = vadd.f32 %v10890, %v10954
  %v11019 = vadd.f32 %v10891, %v10955
  %v11020 = vadd.f32 %v10892, %v10956
  %v11021 = vadd.f32 %v10893, %v10957
  %v11022 = vadd.f32 %v10894, %v10958
  %v11023 = vadd.f32 %v10895, %v10959
  %v11024 = vadd.f32 %v10896, %v10960
  %v11025 = vadd.f32 %v10897, %v10961
  %v11026 = vadd.f32 %v10898, %v10962
  %v11027 = vadd.f32 %v10899, %v10963
  %v11028 = vadd.f32 %v10900, %v10964
  %v11029 = vadd.f32 %v10901, %v10965
  %v11030 = vadd.f32 %v10902, %v10966
  %v11031 = vadd.f32 %v10903, %v10967
  %v11032 = vadd.f32 %v10904, %v10968
  %v11033 = vadd.f32 %v10905, %v10969
  %v11034 = vadd.f32 %v10906, %v10970
  %v11035 = vadd.f32 %v10907, %v10971
  %v11036 = vadd.f32 %v10908, %v10972
  %v11037 = vadd.f32 %v10909, %v10973
  %v11038 = vadd.f32 %v10910, %v10974
  %v11039 = vadd.f32 %v10911, %v10975
  %v11040 = vadd.f32 %v10912, %v10976
  %v11041 = vadd.f32 %v10913, %v10977
  %v11042 = vadd.f32 %v10914, %v10978
  %v11043 = vadd.f32 %v10915, %v10979
  %v11044 = vadd.f32 %v10916, %v10980
  %v11045 = vadd.f32 %v10917, %v10981
  %v11046 = vadd.f32 %v10918, %v10982
  %v11047 = vadd.f32 %v10919, %v10983
  %v11048 = vadd.f32 %v10920, %v10984
  %v11049 = vadd.f32 %v10921, %v10985
  %v11050 = vadd.f32 %v10922, %v10986
  %v11051 = vmul.f32 %v10859, %v10923
  %v11052 = vmul.f32 %v10860, %v10924
  %v11053 = vmul.f32 %v10861, %v10925
  %v11054 = vmul.f32 %v10862, %v10926
  %v11055 = vmul.f32 %v10863, %v10927
  %v11056 = vmul.f32 %v10864, %v10928
  %v11057 = vmul.f32 %v10865, %v10929
  %v11058 = vmul.f32 %v10866, %v10930
  %v11059 = vmul.f32 %v10867, %v10931
  %v11060 = vmul.f32 %v10868, %v10932
  %v11061 = vmul.f32 %v10869, %v10933
  %v11062 = vmul.f32 %v10870, %v10934
  %v11063 = vmul.f32 %v10871, %v10935
  %v11064 = vmul.f32 %v10872, %v10936
  %v11065 = vmul.f32 %v10873, %v10937
  %v11066 = vmul.f32 %v10874, %v10938
  %v11067 = vmul.f32 %v10875, %v10939
  %v11068 = vmul.f32 %v10876, %v10940
  %v11069 = vmul.f32 %v10877, %v10941
  %v11070 = vmul.f32 %v10878, %v10942
  %v11071 = vmul.f32 %v10879, %v10943
  %v11072 = vmul.f32 %v10880, %v10944
  %v11073 = vmul.f32 %v10881, %v10945
  %v11074 = vmul.f32 %v10882, %v10946
  %v11075 = vmul.f32 %v10883, %v10947
  %v11076 = vmul.f32 %v10884, %v10948
  %v11077 = vmul.f32 %v10885, %v10949
  %v11078 = vmul.f32 %v10886, %v10950
  %v11079 = vmul.f32 %v10887, %v10951
  %v11080 = vmul.f32 %v10888, %v10952
  %v11081 = vmul.f32 %v10889, %v10953
  %v11082 = vmul.f32 %v10890, %v10954
  %v11083 = vmul.f32 %v10891, %v10955
  %v11084 = vmul.f32 %v10892, %v10956
  %v11085 = vmul.f32 %v10893, %v10957
  %v11086 = vmul.f32 %v10894, %v10958
  %v11087 = vmul.f32 %v10895, %v10959
  %v11088 = vmul.f32 %v10896, %v10960
  %v11089 = vmul.f32 %v10897, %v10961
  %v11090 = vmul.f32 %v10898, %v10962
  %v11091 = vmul.f32 %v10899, %v10963
  %v11092 = vmul.f32 %v10900, %v10964
  %v11093 = vmul.f32 %v10901, %v10965
  %v11094 = vmul.f32 %v10902, %v10966
  %v11095 = vmul.f32 %v10903, %v10967
  %v11096 = vmul.f32 %v10904, %v10968
  %v11097 = vmul.f32 %v10905, %v10969
  %v11098 = vmul.f32 %v10906, %v10970
  %v11099 = vmul.f32 %v10907, %v10971
  %v11100 = vmul.f32 %v10908, %v10972
  %v11101 = vmul.f32 %v10909, %v10973
  %v11102 = vmul.f32 %v10910, %v10974
  %v11103 = vmul.f32 %v10911, %v10975
  %v11104 = vmul.f32 %v10912, %v10976
  %v11105 = vmul.f32 %v10913, %v10977
  %v11106 = vmul.f32 %v10914, %v10978
  %v11107 = vmul.f32 %v10915, %v10979
  %v11108 = vmul.f32 %v10916, %v10980
  %v11109 = vmul.f32 %v10917, %v10981
  %v11110 = vmul.f32 %v10918, %v10982
  %v11111 = vmul.f32 %v10919, %v10983
  %v11112 = vmul.f32 %v10920, %v10984
  %v11113 = vmul.f32 %v10921, %v10985
  %v11114 = vmul.f32 %v10922, %v10986
  %v11115 = vpack.c.bf16 %v11052, %v11051
  %v11116 = vpack.c.bf16 %v11054, %v11053
  %v11117 = vpack.c.bf16 %v11056, %v11055
  %v11118 = vpack.c.bf16 %v11058, %v11057
  %v11119 = vpack.c.bf16 %v11060, %v11059
  %v11120 = vpack.c.bf16 %v11062, %v11061
  %v11121 = vpack.c.bf16 %v11064, %v11063
  %v11122 = vpack.c.bf16 %v11066, %v11065
  %v11123 = vpack.c.bf16 %v11068, %v11067
  %v11124 = vpack.c.bf16 %v11070, %v11069
  %v11125 = vpack.c.bf16 %v11072, %v11071
  %v11126 = vpack.c.bf16 %v11074, %v11073
  %v11127 = vpack.c.bf16 %v11076, %v11075
  %v11128 = vpack.c.bf16 %v11078, %v11077
  %v11129 = vpack.c.bf16 %v11080, %v11079
  %v11130 = vpack.c.bf16 %v11082, %v11081
  %v11131 = vpack.c.bf16 %v11084, %v11083
  %v11132 = vpack.c.bf16 %v11086, %v11085
  %v11133 = vpack.c.bf16 %v11088, %v11087
  %v11134 = vpack.c.bf16 %v11090, %v11089
  %v11135 = vpack.c.bf16 %v11092, %v11091
  %v11136 = vpack.c.bf16 %v11094, %v11093
  %v11137 = vpack.c.bf16 %v11096, %v11095
  %v11138 = vpack.c.bf16 %v11098, %v11097
  %v11139 = vpack.c.bf16 %v11100, %v11099
  %v11140 = vpack.c.bf16 %v11102, %v11101
  %v11141 = vpack.c.bf16 %v11104, %v11103
  %v11142 = vpack.c.bf16 %v11106, %v11105
  %v11143 = vpack.c.bf16 %v11108, %v11107
  %v11144 = vpack.c.bf16 %v11110, %v11109
  %v11145 = vpack.c.bf16 %v11112, %v11111
  %v11146 = vpack.c.bf16 %v11114, %v11113
  %v11147 = vld [vmem:[%s3] sm:$0x3]
  %v11149 = vsel %vm40, %v11115, 0
  %v11152 = vsel %vm40, %v11116, 0
  %v11155 = vsel %vm40, %v11117, 0
  %v11158 = vsel %vm40, %v11118, 0
  %v11161 = vsel %vm40, %v11119, 0
  %v11164 = vsel %vm40, %v11120, 0
  %v11167 = vsel %vm40, %v11121, 0
  %v11170 = vsel %vm40, %v11122, 0
  %v11173 = vsel %vm40, %v11123, 0
  %v11176 = vsel %vm40, %v11124, 0
  %v11179 = vsel %vm40, %v11125, 0
  %v11182 = vsel %vm40, %v11126, 0
  %v11185 = vsel %vm40, %v11127, 0
  %v11188 = vsel %vm40, %v11128, 0
  %v11191 = vsel %vm40, %v11129, 0
  %v11194 = vsel %vm40, %v11130, 0
  %v11197 = vsel %vm40, %v11131, 0
  %v11200 = vsel %vm40, %v11132, 0
  %v11203 = vsel %vm40, %v11133, 0
  %v11206 = vsel %vm40, %v11134, 0
  %v11209 = vsel %vm40, %v11135, 0
  %v11212 = vsel %vm40, %v11136, 0
  %v11215 = vsel %vm40, %v11137, 0
  %v11218 = vsel %vm40, %v11138, 0
  %v11221 = vsel %vm40, %v11139, 0
  %v11224 = vsel %vm40, %v11140, 0
  %v11227 = vsel %vm40, %v11141, 0
  %v11230 = vsel %vm40, %v11142, 0
  %v11233 = vsel %vm40, %v11143, 0
  %v11236 = vsel %vm40, %v11144, 0
  %v11239 = vsel %vm40, %v11145, 0
  %v11242 = vsel %vm40, %v11146, 0
  %v11245 = vsel %vm548, %v11147, 0
  %11247 = vmatprep.subr.bf16.mxu0 0
  %11248 = vmatpush1.bf16.msra.mxu0 0
  %11249 = vmatprep.subr.bf16.mxu0 0
  %11250 = vmatpush1.bf16.msra.mxu0 0
  %11251 = vmatprep.subr.bf16.mxu0 0
  %11252 = vmatpush1.bf16.msra.mxu0 0
  %11253 = vmatprep.subr.bf16.mxu0 0
  %11254 = vmatpush1.bf16.msra.mxu0 0
  %11255 = vmatprep.subr.bf16.mxu0 0
  %11256 = vmatpush1.bf16.msra.mxu0 0
  %11257 = vmatprep.subr.bf16.mxu0 0
  %11258 = vmatpush1.bf16.msra.mxu0 0
  %11259 = vmatprep.subr.bf16.mxu0 0
  %11260 = vmatpush1.bf16.msra.mxu0 0
  %11261 = vmatprep.subr.bf16.mxu0 0
  %11262 = vmatpush1.bf16.msra.mxu0 %v11245
  %11263 = vmatprep.subr.bf16.mxu0 0
  %11264 = vmatpush2.bf16.msra.mxu0 0
  %11265 = vmatprep.subr.bf16.mxu0 0
  %11266 = vmatpush2.bf16.msra.mxu0 0
  %11267 = vmatprep.subr.bf16.mxu0 0
  %11268 = vmatpush2.bf16.msra.mxu0 0
  %11269 = vmatprep.subr.bf16.mxu0 0
  %11270 = vmatpush2.bf16.msra.mxu0 0
  %11271 = vmatprep.subr.bf16.mxu0 0
  %11272 = vmatpush2.bf16.msra.mxu0 0
  %11273 = vmatprep.subr.bf16.mxu0 0
  %11274 = vmatpush2.bf16.msra.mxu0 0
  %11275 = vmatprep.subr.bf16.mxu0 0
  %11276 = vmatpush2.bf16.msra.mxu0 0
  %11277 = vmatprep.subr.bf16.mxu0 0
  %11278 = vmatpush2.bf16.msra.mxu0 0
  %11279 = vmatprep.mubr.bf16.mxu0 0
  %11280 = vmatmul.mubr.bf16.gmra.mxu0 %v11149
  %v11281 = vpop.f32.mrf.mxu0
  %v11282 = vadd.f32 0.0, %v11281
  %v11283 = vpop.f32.mrf.mxu0
  %v11284 = vpop.f32.mrf.mxu0
  %v11285 = vadd.f32 0.0, %v11284
  %v11286 = vpop.f32.mrf.mxu0
  %11287 = vmatprep.mubr.bf16.mxu0 0
  %11288 = vmatmul.mubr.bf16.gmra.mxu0 %v11152
  %v11289 = vpop.f32.mrf.mxu0
  %v11290 = vadd.f32 0.0, %v11289
  %v11291 = vpop.f32.mrf.mxu0
  %v11292 = vpop.f32.mrf.mxu0
  %v11293 = vadd.f32 0.0, %v11292
  %v11294 = vpop.f32.mrf.mxu0
  %11295 = vmatprep.mubr.bf16.mxu0 0
  %11296 = vmatmul.mubr.bf16.gmra.mxu0 %v11155
  %v11297 = vpop.f32.mrf.mxu0
  %v11298 = vadd.f32 0.0, %v11297
  %v11299 = vpop.f32.mrf.mxu0
  %v11300 = vpop.f32.mrf.mxu0
  %v11301 = vadd.f32 0.0, %v11300
  %v11302 = vpop.f32.mrf.mxu0
  %11303 = vmatprep.mubr.bf16.mxu0 0
  %11304 = vmatmul.mubr.bf16.gmra.mxu0 %v11158
  %v11305 = vpop.f32.mrf.mxu0
  %v11306 = vadd.f32 0.0, %v11305
  %v11307 = vpop.f32.mrf.mxu0
  %v11308 = vpop.f32.mrf.mxu0
  %v11309 = vadd.f32 0.0, %v11308
  %v11310 = vpop.f32.mrf.mxu0
  %11311 = vmatprep.mubr.bf16.mxu0 0
  %11312 = vmatmul.mubr.bf16.gmra.mxu0 %v11161
  %v11313 = vpop.f32.mrf.mxu0
  %v11314 = vadd.f32 0.0, %v11313
  %v11315 = vpop.f32.mrf.mxu0
  %v11316 = vpop.f32.mrf.mxu0
  %v11317 = vadd.f32 0.0, %v11316
  %v11318 = vpop.f32.mrf.mxu0
  %11319 = vmatprep.mubr.bf16.mxu0 0
  %11320 = vmatmul.mubr.bf16.gmra.mxu0 %v11164
  %v11321 = vpop.f32.mrf.mxu0
  %v11322 = vadd.f32 0.0, %v11321
  %v11323 = vpop.f32.mrf.mxu0
  %v11324 = vpop.f32.mrf.mxu0
  %v11325 = vadd.f32 0.0, %v11324
  %v11326 = vpop.f32.mrf.mxu0
  %11327 = vmatprep.mubr.bf16.mxu0 0
  %11328 = vmatmul.mubr.bf16.gmra.mxu0 %v11167
  %v11329 = vpop.f32.mrf.mxu0
  %v11330 = vadd.f32 0.0, %v11329
  %v11331 = vpop.f32.mrf.mxu0
  %v11332 = vpop.f32.mrf.mxu0
  %v11333 = vadd.f32 0.0, %v11332
  %v11334 = vpop.f32.mrf.mxu0
  %11335 = vmatprep.mubr.bf16.mxu0 0
  %11336 = vmatmul.mubr.bf16.gmra.mxu0 %v11170
  %v11337 = vpop.f32.mrf.mxu0
  %v11338 = vadd.f32 0.0, %v11337
  %v11339 = vpop.f32.mrf.mxu0
  %v11340 = vpop.f32.mrf.mxu0
  %v11341 = vadd.f32 0.0, %v11340
  %v11342 = vpop.f32.mrf.mxu0
  %11343 = vmatprep.mubr.bf16.mxu0 0
  %11344 = vmatmul.mubr.bf16.gmra.mxu0 %v11173
  %v11345 = vpop.f32.mrf.mxu0
  %v11346 = vadd.f32 0.0, %v11345
  %v11347 = vpop.f32.mrf.mxu0
  %v11348 = vpop.f32.mrf.mxu0
  %v11349 = vadd.f32 0.0, %v11348
  %v11350 = vpop.f32.mrf.mxu0
  %11351 = vmatprep.mubr.bf16.mxu0 0
  %11352 = vmatmul.mubr.bf16.gmra.mxu0 %v11176
  %v11353 = vpop.f32.mrf.mxu0
  %v11354 = vadd.f32 0.0, %v11353
  %v11355 = vpop.f32.mrf.mxu0
  %v11356 = vpop.f32.mrf.mxu0
  %v11357 = vadd.f32 0.0, %v11356
  %v11358 = vpop.f32.mrf.mxu0
  %11359 = vmatprep.mubr.bf16.mxu0 0
  %11360 = vmatmul.mubr.bf16.gmra.mxu0 %v11179
  %v11361 = vpop.f32.mrf.mxu0
  %v11362 = vadd.f32 0.0, %v11361
  %v11363 = vpop.f32.mrf.mxu0
  %v11364 = vpop.f32.mrf.mxu0
  %v11365 = vadd.f32 0.0, %v11364
  %v11366 = vpop.f32.mrf.mxu0
  %11367 = vmatprep.mubr.bf16.mxu0 0
  %11368 = vmatmul.mubr.bf16.gmra.mxu0 %v11182
  %v11369 = vpop.f32.mrf.mxu0
  %v11370 = vadd.f32 0.0, %v11369
  %v11371 = vpop.f32.mrf.mxu0
  %v11372 = vpop.f32.mrf.mxu0
  %v11373 = vadd.f32 0.0, %v11372
  %v11374 = vpop.f32.mrf.mxu0
  %11375 = vmatprep.mubr.bf16.mxu0 0
  %11376 = vmatmul.mubr.bf16.gmra.mxu0 %v11185
  %v11377 = vpop.f32.mrf.mxu0
  %v11378 = vadd.f32 0.0, %v11377
  %v11379 = vpop.f32.mrf.mxu0
  %v11380 = vpop.f32.mrf.mxu0
  %v11381 = vadd.f32 0.0, %v11380
  %v11382 = vpop.f32.mrf.mxu0
  %11383 = vmatprep.mubr.bf16.mxu0 0
  %11384 = vmatmul.mubr.bf16.gmra.mxu0 %v11188
  %v11385 = vpop.f32.mrf.mxu0
  %v11386 = vadd.f32 0.0, %v11385
  %v11387 = vpop.f32.mrf.mxu0
  %v11388 = vpop.f32.mrf.mxu0
  %v11389 = vadd.f32 0.0, %v11388
  %v11390 = vpop.f32.mrf.mxu0
  %11391 = vmatprep.mubr.bf16.mxu0 0
  %11392 = vmatmul.mubr.bf16.gmra.mxu0 %v11191
  %v11393 = vpop.f32.mrf.mxu0
  %v11394 = vadd.f32 0.0, %v11393
  %v11395 = vpop.f32.mrf.mxu0
  %v11396 = vpop.f32.mrf.mxu0
  %v11397 = vadd.f32 0.0, %v11396
  %v11398 = vpop.f32.mrf.mxu0
  %11399 = vmatprep.mubr.bf16.mxu0 0
  %11400 = vmatmul.mubr.bf16.gmra.mxu0 %v11194
  %v11401 = vpop.f32.mrf.mxu0
  %v11402 = vadd.f32 0.0, %v11401
  %v11403 = vpop.f32.mrf.mxu0
  %v11404 = vpop.f32.mrf.mxu0
  %v11405 = vadd.f32 0.0, %v11404
  %v11406 = vpop.f32.mrf.mxu0
  %11407 = vmatprep.mubr.bf16.mxu0 0
  %11408 = vmatmul.mubr.bf16.gmra.mxu0 %v11197
  %v11409 = vpop.f32.mrf.mxu0
  %v11410 = vadd.f32 0.0, %v11409
  %v11411 = vpop.f32.mrf.mxu0
  %v11412 = vpop.f32.mrf.mxu0
  %v11413 = vadd.f32 0.0, %v11412
  %v11414 = vpop.f32.mrf.mxu0
  %11415 = vmatprep.mubr.bf16.mxu0 0
  %11416 = vmatmul.mubr.bf16.gmra.mxu0 %v11200
  %v11417 = vpop.f32.mrf.mxu0
  %v11418 = vadd.f32 0.0, %v11417
  %v11419 = vpop.f32.mrf.mxu0
  %v11420 = vpop.f32.mrf.mxu0
  %v11421 = vadd.f32 0.0, %v11420
  %v11422 = vpop.f32.mrf.mxu0
  %11423 = vmatprep.mubr.bf16.mxu0 0
  %11424 = vmatmul.mubr.bf16.gmra.mxu0 %v11203
  %v11425 = vpop.f32.mrf.mxu0
  %v11426 = vadd.f32 0.0, %v11425
  %v11427 = vpop.f32.mrf.mxu0
  %v11428 = vpop.f32.mrf.mxu0
  %v11429 = vadd.f32 0.0, %v11428
  %v11430 = vpop.f32.mrf.mxu0
  %11431 = vmatprep.mubr.bf16.mxu0 0
  %11432 = vmatmul.mubr.bf16.gmra.mxu0 %v11206
  %v11433 = vpop.f32.mrf.mxu0
  %v11434 = vadd.f32 0.0, %v11433
  %v11435 = vpop.f32.mrf.mxu0
  %v11436 = vpop.f32.mrf.mxu0
  %v11437 = vadd.f32 0.0, %v11436
  %v11438 = vpop.f32.mrf.mxu0
  %11439 = vmatprep.mubr.bf16.mxu0 0
  %11440 = vmatmul.mubr.bf16.gmra.mxu0 %v11209
  %v11441 = vpop.f32.mrf.mxu0
  %v11442 = vadd.f32 0.0, %v11441
  %v11443 = vpop.f32.mrf.mxu0
  %v11444 = vpop.f32.mrf.mxu0
  %v11445 = vadd.f32 0.0, %v11444
  %v11446 = vpop.f32.mrf.mxu0
  %11447 = vmatprep.mubr.bf16.mxu0 0
  %11448 = vmatmul.mubr.bf16.gmra.mxu0 %v11212
  %v11449 = vpop.f32.mrf.mxu0
  %v11450 = vadd.f32 0.0, %v11449
  %v11451 = vpop.f32.mrf.mxu0
  %v11452 = vpop.f32.mrf.mxu0
  %v11453 = vadd.f32 0.0, %v11452
  %v11454 = vpop.f32.mrf.mxu0
  %11455 = vmatprep.mubr.bf16.mxu0 0
  %11456 = vmatmul.mubr.bf16.gmra.mxu0 %v11215
  %v11457 = vpop.f32.mrf.mxu0
  %v11458 = vadd.f32 0.0, %v11457
  %v11459 = vpop.f32.mrf.mxu0
  %v11460 = vpop.f32.mrf.mxu0
  %v11461 = vadd.f32 0.0, %v11460
  %v11462 = vpop.f32.mrf.mxu0
  %11463 = vmatprep.mubr.bf16.mxu0 0
  %11464 = vmatmul.mubr.bf16.gmra.mxu0 %v11218
  %v11465 = vpop.f32.mrf.mxu0
  %v11466 = vadd.f32 0.0, %v11465
  %v11467 = vpop.f32.mrf.mxu0
  %v11468 = vpop.f32.mrf.mxu0
  %v11469 = vadd.f32 0.0, %v11468
  %v11470 = vpop.f32.mrf.mxu0
  %11471 = vmatprep.mubr.bf16.mxu0 0
  %11472 = vmatmul.mubr.bf16.gmra.mxu0 %v11221
  %v11473 = vpop.f32.mrf.mxu0
  %v11474 = vadd.f32 0.0, %v11473
  %v11475 = vpop.f32.mrf.mxu0
  %v11476 = vpop.f32.mrf.mxu0
  %v11477 = vadd.f32 0.0, %v11476
  %v11478 = vpop.f32.mrf.mxu0
  %11479 = vmatprep.mubr.bf16.mxu0 0
  %11480 = vmatmul.mubr.bf16.gmra.mxu0 %v11224
  %v11481 = vpop.f32.mrf.mxu0
  %v11482 = vadd.f32 0.0, %v11481
  %v11483 = vpop.f32.mrf.mxu0
  %v11484 = vpop.f32.mrf.mxu0
  %v11485 = vadd.f32 0.0, %v11484
  %v11486 = vpop.f32.mrf.mxu0
  %11487 = vmatprep.mubr.bf16.mxu0 0
  %11488 = vmatmul.mubr.bf16.gmra.mxu0 %v11227
  %v11489 = vpop.f32.mrf.mxu0
  %v11490 = vadd.f32 0.0, %v11489
  %v11491 = vpop.f32.mrf.mxu0
  %v11492 = vpop.f32.mrf.mxu0
  %v11493 = vadd.f32 0.0, %v11492
  %v11494 = vpop.f32.mrf.mxu0
  %11495 = vmatprep.mubr.bf16.mxu0 0
  %11496 = vmatmul.mubr.bf16.gmra.mxu0 %v11230
  %v11497 = vpop.f32.mrf.mxu0
  %v11498 = vadd.f32 0.0, %v11497
  %v11499 = vpop.f32.mrf.mxu0
  %v11500 = vpop.f32.mrf.mxu0
  %v11501 = vadd.f32 0.0, %v11500
  %v11502 = vpop.f32.mrf.mxu0
  %11503 = vmatprep.mubr.bf16.mxu0 0
  %11504 = vmatmul.mubr.bf16.gmra.mxu0 %v11233
  %v11505 = vpop.f32.mrf.mxu0
  %v11506 = vadd.f32 0.0, %v11505
  %v11507 = vpop.f32.mrf.mxu0
  %v11508 = vpop.f32.mrf.mxu0
  %v11509 = vadd.f32 0.0, %v11508
  %v11510 = vpop.f32.mrf.mxu0
  %11511 = vmatprep.mubr.bf16.mxu0 0
  %11512 = vmatmul.mubr.bf16.gmra.mxu0 %v11236
  %v11513 = vpop.f32.mrf.mxu0
  %v11514 = vadd.f32 0.0, %v11513
  %v11515 = vpop.f32.mrf.mxu0
  %v11516 = vpop.f32.mrf.mxu0
  %v11517 = vadd.f32 0.0, %v11516
  %v11518 = vpop.f32.mrf.mxu0
  %11519 = vmatprep.mubr.bf16.mxu0 0
  %11520 = vmatmul.mubr.bf16.gmra.mxu0 %v11239
  %v11521 = vpop.f32.mrf.mxu0
  %v11522 = vadd.f32 0.0, %v11521
  %v11523 = vpop.f32.mrf.mxu0
  %v11524 = vpop.f32.mrf.mxu0
  %v11525 = vadd.f32 0.0, %v11524
  %v11526 = vpop.f32.mrf.mxu0
  %11527 = vmatprep.mubr.bf16.mxu0 0
  %11528 = vmatmul.mubr.bf16.gmra.mxu0 %v11242
  %v11529 = vpop.f32.mrf.mxu0
  %v11530 = vadd.f32 0.0, %v11529
  %v11531 = vpop.f32.mrf.mxu0
  %v11532 = vpop.f32.mrf.mxu0
  %v11533 = vadd.f32 0.0, %v11532
  %v11534 = vpop.f32.mrf.mxu0
  %11535 = vdwg.mxu0
  %v11536 = vadd.f32 %v11282, %v11285
  %v11537 = vadd.f32 %v11536, %v11290
  %v11538 = vadd.f32 %v11537, %v11293
  %v11539 = vadd.f32 %v11538, %v11298
  %v11540 = vadd.f32 %v11539, %v11301
  %v11541 = vadd.f32 %v11540, %v11306
  %v11542 = vadd.f32 %v11541, %v11309
  %v11543 = vadd.f32 %v11542, %v11314
  %v11544 = vadd.f32 %v11543, %v11317
  %v11545 = vadd.f32 %v11544, %v11322
  %v11546 = vadd.f32 %v11545, %v11325
  %v11547 = vadd.f32 %v11546, %v11330
  %v11548 = vadd.f32 %v11547, %v11333
  %v11549 = vadd.f32 %v11548, %v11338
  %v11550 = vadd.f32 %v11549, %v11341
  %v11551 = vadd.f32 %v11550, %v11346
  %v11552 = vadd.f32 %v11551, %v11349
  %v11553 = vadd.f32 %v11552, %v11354
  %v11554 = vadd.f32 %v11553, %v11357
  %v11555 = vadd.f32 %v11554, %v11362
  %v11556 = vadd.f32 %v11555, %v11365
  %v11557 = vadd.f32 %v11556, %v11370
  %v11558 = vadd.f32 %v11557, %v11373
  %v11559 = vadd.f32 %v11558, %v11378
  %v11560 = vadd.f32 %v11559, %v11381
  %v11561 = vadd.f32 %v11560, %v11386
  %v11562 = vadd.f32 %v11561, %v11389
  %v11563 = vadd.f32 %v11562, %v11394
  %v11564 = vadd.f32 %v11563, %v11397
  %v11565 = vadd.f32 %v11564, %v11402
  %v11566 = vadd.f32 %v11565, %v11405
  %v11567 = vadd.f32 %v11566, %v11410
  %v11568 = vadd.f32 %v11567, %v11413
  %v11569 = vadd.f32 %v11568, %v11418
  %v11570 = vadd.f32 %v11569, %v11421
  %v11571 = vadd.f32 %v11570, %v11426
  %v11572 = vadd.f32 %v11571, %v11429
  %v11573 = vadd.f32 %v11572, %v11434
  %v11574 = vadd.f32 %v11573, %v11437
  %v11575 = vadd.f32 %v11574, %v11442
  %v11576 = vadd.f32 %v11575, %v11445
  %v11577 = vadd.f32 %v11576, %v11450
  %v11578 = vadd.f32 %v11577, %v11453
  %v11579 = vadd.f32 %v11578, %v11458
  %v11580 = vadd.f32 %v11579, %v11461
  %v11581 = vadd.f32 %v11580, %v11466
  %v11582 = vadd.f32 %v11581, %v11469
  %v11583 = vadd.f32 %v11582, %v11474
  %v11584 = vadd.f32 %v11583, %v11477
  %v11585 = vadd.f32 %v11584, %v11482
  %v11586 = vadd.f32 %v11585, %v11485
  %v11587 = vadd.f32 %v11586, %v11490
  %v11588 = vadd.f32 %v11587, %v11493
  %v11589 = vadd.f32 %v11588, %v11498
  %v11590 = vadd.f32 %v11589, %v11501
  %v11591 = vadd.f32 %v11590, %v11506
  %v11592 = vadd.f32 %v11591, %v11509
  %v11593 = vadd.f32 %v11592, %v11514
  %v11594 = vadd.f32 %v11593, %v11517
  %v11595 = vadd.f32 %v11594, %v11522
  %v11596 = vadd.f32 %v11595, %v11525
  %v11597 = vadd.f32 %v11596, %v11530
  %v11598 = vadd.f32 %v11597, %v11533
  %v11599 = vrot.slane %v11598, 4
  %v11600 = vadd.f32 %v11598, %v11599
  %v11601 = vrot.slane %v11600, 2
  %v11602 = vadd.f32 %v11600, %v11601
  %v11603 = vrot.slane %v11602, 1
  %v11604 = vadd.f32 %v11602, %v11603
  %v11605 = vmul.f32 %v11604, 0.001953125
  %v11606 = vmul.f32 %v11282, %v11282
  %v11607 = vmul.f32 %v11285, %v11285
  %v11608 = vmul.f32 %v11290, %v11290
  %v11609 = vmul.f32 %v11293, %v11293
  %v11610 = vmul.f32 %v11298, %v11298
  %v11611 = vmul.f32 %v11301, %v11301
  %v11612 = vmul.f32 %v11306, %v11306
  %v11613 = vmul.f32 %v11309, %v11309
  %v11614 = vmul.f32 %v11314, %v11314
  %v11615 = vmul.f32 %v11317, %v11317
  %v11616 = vmul.f32 %v11322, %v11322
  %v11617 = vmul.f32 %v11325, %v11325
  %v11618 = vmul.f32 %v11330, %v11330
  %v11619 = vmul.f32 %v11333, %v11333
  %v11620 = vmul.f32 %v11338, %v11338
  %v11621 = vmul.f32 %v11341, %v11341
  %v11622 = vmul.f32 %v11346, %v11346
  %v11623 = vmul.f32 %v11349, %v11349
  %v11624 = vmul.f32 %v11354, %v11354
  %v11625 = vmul.f32 %v11357, %v11357
  %v11626 = vmul.f32 %v11362, %v11362
  %v11627 = vmul.f32 %v11365, %v11365
  %v11628 = vmul.f32 %v11370, %v11370
  %v11629 = vmul.f32 %v11373, %v11373
  %v11630 = vmul.f32 %v11378, %v11378
  %v11631 = vmul.f32 %v11381, %v11381
  %v11632 = vmul.f32 %v11386, %v11386
  %v11633 = vmul.f32 %v11389, %v11389
  %v11634 = vmul.f32 %v11394, %v11394
  %v11635 = vmul.f32 %v11397, %v11397
  %v11636 = vmul.f32 %v11402, %v11402
  %v11637 = vmul.f32 %v11405, %v11405
  %v11638 = vmul.f32 %v11410, %v11410
  %v11639 = vmul.f32 %v11413, %v11413
  %v11640 = vmul.f32 %v11418, %v11418
  %v11641 = vmul.f32 %v11421, %v11421
  %v11642 = vmul.f32 %v11426, %v11426
  %v11643 = vmul.f32 %v11429, %v11429
  %v11644 = vmul.f32 %v11434, %v11434
  %v11645 = vmul.f32 %v11437, %v11437
  %v11646 = vmul.f32 %v11442, %v11442
  %v11647 = vmul.f32 %v11445, %v11445
  %v11648 = vmul.f32 %v11450, %v11450
  %v11649 = vmul.f32 %v11453, %v11453
  %v11650 = vmul.f32 %v11458, %v11458
  %v11651 = vmul.f32 %v11461, %v11461
  %v11652 = vmul.f32 %v11466, %v11466
  %v11653 = vmul.f32 %v11469, %v11469
  %v11654 = vmul.f32 %v11474, %v11474
  %v11655 = vmul.f32 %v11477, %v11477
  %v11656 = vmul.f32 %v11482, %v11482
  %v11657 = vmul.f32 %v11485, %v11485
  %v11658 = vmul.f32 %v11490, %v11490
  %v11659 = vmul.f32 %v11493, %v11493
  %v11660 = vmul.f32 %v11498, %v11498
  %v11661 = vmul.f32 %v11501, %v11501
  %v11662 = vmul.f32 %v11506, %v11506
  %v11663 = vmul.f32 %v11509, %v11509
  %v11664 = vmul.f32 %v11514, %v11514
  %v11665 = vmul.f32 %v11517, %v11517
  %v11666 = vmul.f32 %v11522, %v11522
  %v11667 = vmul.f32 %v11525, %v11525
  %v11668 = vmul.f32 %v11530, %v11530
  %v11669 = vmul.f32 %v11533, %v11533
  %v11670 = vadd.f32 %v11606, %v11607
  %v11671 = vadd.f32 %v11670, %v11608
  %v11672 = vadd.f32 %v11671, %v11609
  %v11673 = vadd.f32 %v11672, %v11610
  %v11674 = vadd.f32 %v11673, %v11611
  %v11675 = vadd.f32 %v11674, %v11612
  %v11676 = vadd.f32 %v11675, %v11613
  %v11677 = vadd.f32 %v11676, %v11614
  %v11678 = vadd.f32 %v11677, %v11615
  %v11679 = vadd.f32 %v11678, %v11616
  %v11680 = vadd.f32 %v11679, %v11617
  %v11681 = vadd.f32 %v11680, %v11618
  %v11682 = vadd.f32 %v11681, %v11619
  %v11683 = vadd.f32 %v11682, %v11620
  %v11684 = vadd.f32 %v11683, %v11621
  %v11685 = vadd.f32 %v11684, %v11622
  %v11686 = vadd.f32 %v11685, %v11623
  %v11687 = vadd.f32 %v11686, %v11624
  %v11688 = vadd.f32 %v11687, %v11625
  %v11689 = vadd.f32 %v11688, %v11626
  %v11690 = vadd.f32 %v11689, %v11627
  %v11691 = vadd.f32 %v11690, %v11628
  %v11692 = vadd.f32 %v11691, %v11629
  %v11693 = vadd.f32 %v11692, %v11630
  %v11694 = vadd.f32 %v11693, %v11631
  %v11695 = vadd.f32 %v11694, %v11632
  %v11696 = vadd.f32 %v11695, %v11633
  %v11697 = vadd.f32 %v11696, %v11634
  %v11698 = vadd.f32 %v11697, %v11635
  %v11699 = vadd.f32 %v11698, %v11636
  %v11700 = vadd.f32 %v11699, %v11637
  %v11701 = vadd.f32 %v11700, %v11638
  %v11702 = vadd.f32 %v11701, %v11639
  %v11703 = vadd.f32 %v11702, %v11640
  %v11704 = vadd.f32 %v11703, %v11641
  %v11705 = vadd.f32 %v11704, %v11642
  %v11706 = vadd.f32 %v11705, %v11643
  %v11707 = vadd.f32 %v11706, %v11644
  %v11708 = vadd.f32 %v11707, %v11645
  %v11709 = vadd.f32 %v11708, %v11646
  %v11710 = vadd.f32 %v11709, %v11647
  %v11711 = vadd.f32 %v11710, %v11648
  %v11712 = vadd.f32 %v11711, %v11649
  %v11713 = vadd.f32 %v11712, %v11650
  %v11714 = vadd.f32 %v11713, %v11651
  %v11715 = vadd.f32 %v11714, %v11652
  %v11716 = vadd.f32 %v11715, %v11653
  %v11717 = vadd.f32 %v11716, %v11654
  %v11718 = vadd.f32 %v11717, %v11655
  %v11719 = vadd.f32 %v11718, %v11656
  %v11720 = vadd.f32 %v11719, %v11657
  %v11721 = vadd.f32 %v11720, %v11658
  %v11722 = vadd.f32 %v11721, %v11659
  %v11723 = vadd.f32 %v11722, %v11660
  %v11724 = vadd.f32 %v11723, %v11661
  %v11725 = vadd.f32 %v11724, %v11662
  %v11726 = vadd.f32 %v11725, %v11663
  %v11727 = vadd.f32 %v11726, %v11664
  %v11728 = vadd.f32 %v11727, %v11665
  %v11729 = vadd.f32 %v11728, %v11666
  %v11730 = vadd.f32 %v11729, %v11667
  %v11731 = vadd.f32 %v11730, %v11668
  %v11732 = vadd.f32 %v11731, %v11669
  %v11733 = vrot.slane %v11732, 4
  %v11734 = vadd.f32 %v11732, %v11733
  %v11735 = vrot.slane %v11734, 2
  %v11736 = vadd.f32 %v11734, %v11735
  %v11737 = vrot.slane %v11736, 1
  %v11738 = vadd.f32 %v11736, %v11737
  %v11739 = vmul.f32 %v11738, 0.001953125
  %v11740 = vmul.f32 %v11605, %v11605
  %v11741 = vsub.f32 %v11739, %v11740
  %v11742 = vmax.f32 %v11741, 0.0
  %v11743 = vsub.f32 %v11282, %v11605
  %v11744 = vsub.f32 %v11285, %v11605
  %v11745 = vsub.f32 %v11290, %v11605
  %v11746 = vsub.f32 %v11293, %v11605
  %v11747 = vsub.f32 %v11298, %v11605
  %v11748 = vsub.f32 %v11301, %v11605
  %v11749 = vsub.f32 %v11306, %v11605
  %v11750 = vsub.f32 %v11309, %v11605
  %v11751 = vsub.f32 %v11314, %v11605
  %v11752 = vsub.f32 %v11317, %v11605
  %v11753 = vsub.f32 %v11322, %v11605
  %v11754 = vsub.f32 %v11325, %v11605
  %v11755 = vsub.f32 %v11330, %v11605
  %v11756 = vsub.f32 %v11333, %v11605
  %v11757 = vsub.f32 %v11338, %v11605
  %v11758 = vsub.f32 %v11341, %v11605
  %v11759 = vsub.f32 %v11346, %v11605
  %v11760 = vsub.f32 %v11349, %v11605
  %v11761 = vsub.f32 %v11354, %v11605
  %v11762 = vsub.f32 %v11357, %v11605
  %v11763 = vsub.f32 %v11362, %v11605
  %v11764 = vsub.f32 %v11365, %v11605
  %v11765 = vsub.f32 %v11370, %v11605
  %v11766 = vsub.f32 %v11373, %v11605
  %v11767 = vsub.f32 %v11378, %v11605
  %v11768 = vsub.f32 %v11381, %v11605
  %v11769 = vsub.f32 %v11386, %v11605
  %v11770 = vsub.f32 %v11389, %v11605
  %v11771 = vsub.f32 %v11394, %v11605
  %v11772 = vsub.f32 %v11397, %v11605
  %v11773 = vsub.f32 %v11402, %v11605
  %v11774 = vsub.f32 %v11405, %v11605
  %v11775 = vsub.f32 %v11410, %v11605
  %v11776 = vsub.f32 %v11413, %v11605
  %v11777 = vsub.f32 %v11418, %v11605
  %v11778 = vsub.f32 %v11421, %v11605
  %v11779 = vsub.f32 %v11426, %v11605
  %v11780 = vsub.f32 %v11429, %v11605
  %v11781 = vsub.f32 %v11434, %v11605
  %v11782 = vsub.f32 %v11437, %v11605
  %v11783 = vsub.f32 %v11442, %v11605
  %v11784 = vsub.f32 %v11445, %v11605
  %v11785 = vsub.f32 %v11450, %v11605
  %v11786 = vsub.f32 %v11453, %v11605
  %v11787 = vsub.f32 %v11458, %v11605
  %v11788 = vsub.f32 %v11461, %v11605
  %v11789 = vsub.f32 %v11466, %v11605
  %v11790 = vsub.f32 %v11469, %v11605
  %v11791 = vsub.f32 %v11474, %v11605
  %v11792 = vsub.f32 %v11477, %v11605
  %v11793 = vsub.f32 %v11482, %v11605
  %v11794 = vsub.f32 %v11485, %v11605
  %v11795 = vsub.f32 %v11490, %v11605
  %v11796 = vsub.f32 %v11493, %v11605
  %v11797 = vsub.f32 %v11498, %v11605
  %v11798 = vsub.f32 %v11501, %v11605
  %v11799 = vsub.f32 %v11506, %v11605
  %v11800 = vsub.f32 %v11509, %v11605
  %v11801 = vsub.f32 %v11514, %v11605
  %v11802 = vsub.f32 %v11517, %v11605
  %v11803 = vsub.f32 %v11522, %v11605
  %v11804 = vsub.f32 %v11525, %v11605
  %v11805 = vsub.f32 %v11530, %v11605
  %v11806 = vsub.f32 %v11533, %v11605
  %v11807 = vadd.f32 %v11742, 1e-05
  %v11808 = vrsqrt.pop %v11807
  %v11809 = vmul.f32 %v11743, %v11808
  %v11810 = vmul.f32 %v11744, %v11808
  %v11811 = vmul.f32 %v11745, %v11808
  %v11812 = vmul.f32 %v11746, %v11808
  %v11813 = vmul.f32 %v11747, %v11808
  %v11814 = vmul.f32 %v11748, %v11808
  %v11815 = vmul.f32 %v11749, %v11808
  %v11816 = vmul.f32 %v11750, %v11808
  %v11817 = vmul.f32 %v11751, %v11808
  %v11818 = vmul.f32 %v11752, %v11808
  %v11819 = vmul.f32 %v11753, %v11808
  %v11820 = vmul.f32 %v11754, %v11808
  %v11821 = vmul.f32 %v11755, %v11808
  %v11822 = vmul.f32 %v11756, %v11808
  %v11823 = vmul.f32 %v11757, %v11808
  %v11824 = vmul.f32 %v11758, %v11808
  %v11825 = vmul.f32 %v11759, %v11808
  %v11826 = vmul.f32 %v11760, %v11808
  %v11827 = vmul.f32 %v11761, %v11808
  %v11828 = vmul.f32 %v11762, %v11808
  %v11829 = vmul.f32 %v11763, %v11808
  %v11830 = vmul.f32 %v11764, %v11808
  %v11831 = vmul.f32 %v11765, %v11808
  %v11832 = vmul.f32 %v11766, %v11808
  %v11833 = vmul.f32 %v11767, %v11808
  %v11834 = vmul.f32 %v11768, %v11808
  %v11835 = vmul.f32 %v11769, %v11808
  %v11836 = vmul.f32 %v11770, %v11808
  %v11837 = vmul.f32 %v11771, %v11808
  %v11838 = vmul.f32 %v11772, %v11808
  %v11839 = vmul.f32 %v11773, %v11808
  %v11840 = vmul.f32 %v11774, %v11808
  %v11841 = vmul.f32 %v11775, %v11808
  %v11842 = vmul.f32 %v11776, %v11808
  %v11843 = vmul.f32 %v11777, %v11808
  %v11844 = vmul.f32 %v11778, %v11808
  %v11845 = vmul.f32 %v11779, %v11808
  %v11846 = vmul.f32 %v11780, %v11808
  %v11847 = vmul.f32 %v11781, %v11808
  %v11848 = vmul.f32 %v11782, %v11808
  %v11849 = vmul.f32 %v11783, %v11808
  %v11850 = vmul.f32 %v11784, %v11808
  %v11851 = vmul.f32 %v11785, %v11808
  %v11852 = vmul.f32 %v11786, %v11808
  %v11853 = vmul.f32 %v11787, %v11808
  %v11854 = vmul.f32 %v11788, %v11808
  %v11855 = vmul.f32 %v11789, %v11808
  %v11856 = vmul.f32 %v11790, %v11808
  %v11857 = vmul.f32 %v11791, %v11808
  %v11858 = vmul.f32 %v11792, %v11808
  %v11859 = vmul.f32 %v11793, %v11808
  %v11860 = vmul.f32 %v11794, %v11808
  %v11861 = vmul.f32 %v11795, %v11808
  %v11862 = vmul.f32 %v11796, %v11808
  %v11863 = vmul.f32 %v11797, %v11808
  %v11864 = vmul.f32 %v11798, %v11808
  %v11865 = vmul.f32 %v11799, %v11808
  %v11866 = vmul.f32 %v11800, %v11808
  %v11867 = vmul.f32 %v11801, %v11808
  %v11868 = vmul.f32 %v11802, %v11808
  %v11869 = vmul.f32 %v11803, %v11808
  %v11870 = vmul.f32 %v11804, %v11808
  %v11871 = vmul.f32 %v11805, %v11808
  %v11872 = vmul.f32 %v11806, %v11808
  %v11873 = vld [vmem:[%s8] sm:$0x1]
  %v11875 = vlaneseq
  %v11876 = vshrl.u32 %v11875, 7
  %v11877 = vsub.s32 0, %v11876
  %v11878 = vrot.slane %v11873, %v11877
  %v11880 = vmul.f32 %v11809, %v11878
  %v11881 = vmul.f32 %v11810, %v11878
  %v11882 = vmul.f32 %v11811, %v11878
  %v11883 = vmul.f32 %v11812, %v11878
  %v11884 = vmul.f32 %v11813, %v11878
  %v11885 = vmul.f32 %v11814, %v11878
  %v11886 = vmul.f32 %v11815, %v11878
  %v11887 = vmul.f32 %v11816, %v11878
  %v11888 = vmul.f32 %v11817, %v11878
  %v11889 = vmul.f32 %v11818, %v11878
  %v11890 = vmul.f32 %v11819, %v11878
  %v11891 = vmul.f32 %v11820, %v11878
  %v11892 = vmul.f32 %v11821, %v11878
  %v11893 = vmul.f32 %v11822, %v11878
  %v11894 = vmul.f32 %v11823, %v11878
  %v11895 = vmul.f32 %v11824, %v11878
  %v11896 = vmul.f32 %v11825, %v11878
  %v11897 = vmul.f32 %v11826, %v11878
  %v11898 = vmul.f32 %v11827, %v11878
  %v11899 = vmul.f32 %v11828, %v11878
  %v11900 = vmul.f32 %v11829, %v11878
  %v11901 = vmul.f32 %v11830, %v11878
  %v11902 = vmul.f32 %v11831, %v11878
  %v11903 = vmul.f32 %v11832, %v11878
  %v11904 = vmul.f32 %v11833, %v11878
  %v11905 = vmul.f32 %v11834, %v11878
  %v11906 = vmul.f32 %v11835, %v11878
  %v11907 = vmul.f32 %v11836, %v11878
  %v11908 = vmul.f32 %v11837, %v11878
  %v11909 = vmul.f32 %v11838, %v11878
  %v11910 = vmul.f32 %v11839, %v11878
  %v11911 = vmul.f32 %v11840, %v11878
  %v11912 = vmul.f32 %v11841, %v11878
  %v11913 = vmul.f32 %v11842, %v11878
  %v11914 = vmul.f32 %v11843, %v11878
  %v11915 = vmul.f32 %v11844, %v11878
  %v11916 = vmul.f32 %v11845, %v11878
  %v11917 = vmul.f32 %v11846, %v11878
  %v11918 = vmul.f32 %v11847, %v11878
  %v11919 = vmul.f32 %v11848, %v11878
  %v11920 = vmul.f32 %v11849, %v11878
  %v11921 = vmul.f32 %v11850, %v11878
  %v11922 = vmul.f32 %v11851, %v11878
  %v11923 = vmul.f32 %v11852, %v11878
  %v11924 = vmul.f32 %v11853, %v11878
  %v11925 = vmul.f32 %v11854, %v11878
  %v11926 = vmul.f32 %v11855, %v11878
  %v11927 = vmul.f32 %v11856, %v11878
  %v11928 = vmul.f32 %v11857, %v11878
  %v11929 = vmul.f32 %v11858, %v11878
  %v11930 = vmul.f32 %v11859, %v11878
  %v11931 = vmul.f32 %v11860, %v11878
  %v11932 = vmul.f32 %v11861, %v11878
  %v11933 = vmul.f32 %v11862, %v11878
  %v11934 = vmul.f32 %v11863, %v11878
  %v11935 = vmul.f32 %v11864, %v11878
  %v11936 = vmul.f32 %v11865, %v11878
  %v11937 = vmul.f32 %v11866, %v11878
  %v11938 = vmul.f32 %v11867, %v11878
  %v11939 = vmul.f32 %v11868, %v11878
  %v11940 = vmul.f32 %v11869, %v11878
  %v11941 = vmul.f32 %v11870, %v11878
  %v11942 = vmul.f32 %v11871, %v11878
  %v11943 = vmul.f32 %v11872, %v11878
  %v11944 = vld [vmem:[%s9] sm:$0x1]
  %v11946 = vlaneseq
  %v11947 = vshrl.u32 %v11946, 7
  %v11948 = vsub.s32 0, %v11947
  %v11949 = vrot.slane %v11944, %v11948
  %v11951 = vadd.f32 %v11880, %v11949
  %v11952 = vadd.f32 %v11881, %v11949
  %v11953 = vadd.f32 %v11882, %v11949
  %v11954 = vadd.f32 %v11883, %v11949
  %v11955 = vadd.f32 %v11884, %v11949
  %v11956 = vadd.f32 %v11885, %v11949
  %v11957 = vadd.f32 %v11886, %v11949
  %v11958 = vadd.f32 %v11887, %v11949
  %v11959 = vadd.f32 %v11888, %v11949
  %v11960 = vadd.f32 %v11889, %v11949
  %v11961 = vadd.f32 %v11890, %v11949
  %v11962 = vadd.f32 %v11891, %v11949
  %v11963 = vadd.f32 %v11892, %v11949
  %v11964 = vadd.f32 %v11893, %v11949
  %v11965 = vadd.f32 %v11894, %v11949
  %v11966 = vadd.f32 %v11895, %v11949
  %v11967 = vadd.f32 %v11896, %v11949
  %v11968 = vadd.f32 %v11897, %v11949
  %v11969 = vadd.f32 %v11898, %v11949
  %v11970 = vadd.f32 %v11899, %v11949
  %v11971 = vadd.f32 %v11900, %v11949
  %v11972 = vadd.f32 %v11901, %v11949
  %v11973 = vadd.f32 %v11902, %v11949
  %v11974 = vadd.f32 %v11903, %v11949
  %v11975 = vadd.f32 %v11904, %v11949
  %v11976 = vadd.f32 %v11905, %v11949
  %v11977 = vadd.f32 %v11906, %v11949
  %v11978 = vadd.f32 %v11907, %v11949
  %v11979 = vadd.f32 %v11908, %v11949
  %v11980 = vadd.f32 %v11909, %v11949
  %v11981 = vadd.f32 %v11910, %v11949
  %v11982 = vadd.f32 %v11911, %v11949
  %v11983 = vadd.f32 %v11912, %v11949
  %v11984 = vadd.f32 %v11913, %v11949
  %v11985 = vadd.f32 %v11914, %v11949
  %v11986 = vadd.f32 %v11915, %v11949
  %v11987 = vadd.f32 %v11916, %v11949
  %v11988 = vadd.f32 %v11917, %v11949
  %v11989 = vadd.f32 %v11918, %v11949
  %v11990 = vadd.f32 %v11919, %v11949
  %v11991 = vadd.f32 %v11920, %v11949
  %v11992 = vadd.f32 %v11921, %v11949
  %v11993 = vadd.f32 %v11922, %v11949
  %v11994 = vadd.f32 %v11923, %v11949
  %v11995 = vadd.f32 %v11924, %v11949
  %v11996 = vadd.f32 %v11925, %v11949
  %v11997 = vadd.f32 %v11926, %v11949
  %v11998 = vadd.f32 %v11927, %v11949
  %v11999 = vadd.f32 %v11928, %v11949
  %v12000 = vadd.f32 %v11929, %v11949
  %v12001 = vadd.f32 %v11930, %v11949
  %v12002 = vadd.f32 %v11931, %v11949
  %v12003 = vadd.f32 %v11932, %v11949
  %v12004 = vadd.f32 %v11933, %v11949
  %v12005 = vadd.f32 %v11934, %v11949
  %v12006 = vadd.f32 %v11935, %v11949
  %v12007 = vadd.f32 %v11936, %v11949
  %v12008 = vadd.f32 %v11937, %v11949
  %v12009 = vadd.f32 %v11938, %v11949
  %v12010 = vadd.f32 %v11939, %v11949
  %v12011 = vadd.f32 %v11940, %v11949
  %v12012 = vadd.f32 %v11941, %v11949
  %v12013 = vadd.f32 %v11942, %v11949
  %v12014 = vadd.f32 %v11943, %v11949
  %s12015 = sld [smem:[#allocation3]]
  %v12016 = vstv %s12015
  %v12017 = vmul.f32 %v12016, %v11951
  %v12018 = vmul.f32 %v12016, %v11952
  %v12019 = vmul.f32 %v12016, %v11953
  %v12020 = vmul.f32 %v12016, %v11954
  %v12021 = vmul.f32 %v12016, %v11955
  %v12022 = vmul.f32 %v12016, %v11956
  %v12023 = vmul.f32 %v12016, %v11957
  %v12024 = vmul.f32 %v12016, %v11958
  %v12025 = vmul.f32 %v12016, %v11959
  %v12026 = vmul.f32 %v12016, %v11960
  %v12027 = vmul.f32 %v12016, %v11961
  %v12028 = vmul.f32 %v12016, %v11962
  %v12029 = vmul.f32 %v12016, %v11963
  %v12030 = vmul.f32 %v12016, %v11964
  %v12031 = vmul.f32 %v12016, %v11965
  %v12032 = vmul.f32 %v12016, %v11966
  %v12033 = vmul.f32 %v12016, %v11967
  %v12034 = vmul.f32 %v12016, %v11968
  %v12035 = vmul.f32 %v12016, %v11969
  %v12036 = vmul.f32 %v12016, %v11970
  %v12037 = vmul.f32 %v12016, %v11971
  %v12038 = vmul.f32 %v12016, %v11972
  %v12039 = vmul.f32 %v12016, %v11973
  %v12040 = vmul.f32 %v12016, %v11974
  %v12041 = vmul.f32 %v12016, %v11975
  %v12042 = vmul.f32 %v12016, %v11976
  %v12043 = vmul.f32 %v12016, %v11977
  %v12044 = vmul.f32 %v12016, %v11978
  %v12045 = vmul.f32 %v12016, %v11979
  %v12046 = vmul.f32 %v12016, %v11980
  %v12047 = vmul.f32 %v12016, %v11981
  %v12048 = vmul.f32 %v12016, %v11982
  %v12049 = vmul.f32 %v12016, %v11983
  %v12050 = vmul.f32 %v12016, %v11984
  %v12051 = vmul.f32 %v12016, %v11985
  %v12052 = vmul.f32 %v12016, %v11986
  %v12053 = vmul.f32 %v12016, %v11987
  %v12054 = vmul.f32 %v12016, %v11988
  %v12055 = vmul.f32 %v12016, %v11989
  %v12056 = vmul.f32 %v12016, %v11990
  %v12057 = vmul.f32 %v12016, %v11991
  %v12058 = vmul.f32 %v12016, %v11992
  %v12059 = vmul.f32 %v12016, %v11993
  %v12060 = vmul.f32 %v12016, %v11994
  %v12061 = vmul.f32 %v12016, %v11995
  %v12062 = vmul.f32 %v12016, %v11996
  %v12063 = vmul.f32 %v12016, %v11997
  %v12064 = vmul.f32 %v12016, %v11998
  %v12065 = vmul.f32 %v12016, %v11999
  %v12066 = vmul.f32 %v12016, %v12000
  %v12067 = vmul.f32 %v12016, %v12001
  %v12068 = vmul.f32 %v12016, %v12002
  %v12069 = vmul.f32 %v12016, %v12003
  %v12070 = vmul.f32 %v12016, %v12004
  %v12071 = vmul.f32 %v12016, %v12005
  %v12072 = vmul.f32 %v12016, %v12006
  %v12073 = vmul.f32 %v12016, %v12007
  %v12074 = vmul.f32 %v12016, %v12008
  %v12075 = vmul.f32 %v12016, %v12009
  %v12076 = vmul.f32 %v12016, %v12010
  %v12077 = vmul.f32 %v12016, %v12011
  %v12078 = vmul.f32 %v12016, %v12012
  %v12079 = vmul.f32 %v12016, %v12013
  %v12080 = vmul.f32 %v12016, %v12014
  %v12081 = vadd.f32 %v10987, %v12017
  %v12082 = vadd.f32 %v10988, %v12018
  %v12083 = vadd.f32 %v10989, %v12019
  %v12084 = vadd.f32 %v10990, %v12020
  %v12085 = vadd.f32 %v10991, %v12021
  %v12086 = vadd.f32 %v10992, %v12022
  %v12087 = vadd.f32 %v10993, %v12023
  %v12088 = vadd.f32 %v10994, %v12024
  %v12089 = vadd.f32 %v10995, %v12025
  %v12090 = vadd.f32 %v10996, %v12026
  %v12091 = vadd.f32 %v10997, %v12027
  %v12092 = vadd.f32 %v10998, %v12028
  %v12093 = vadd.f32 %v10999, %v12029
  %v12094 = vadd.f32 %v11000, %v12030
  %v12095 = vadd.f32 %v11001, %v12031
  %v12096 = vadd.f32 %v11002, %v12032
  %v12097 = vadd.f32 %v11003, %v12033
  %v12098 = vadd.f32 %v11004, %v12034
  %v12099 = vadd.f32 %v11005, %v12035
  %v12100 = vadd.f32 %v11006, %v12036
  %v12101 = vadd.f32 %v11007, %v12037
  %v12102 = vadd.f32 %v11008, %v12038
  %v12103 = vadd.f32 %v11009, %v12039
  %v12104 = vadd.f32 %v11010, %v12040
  %v12105 = vadd.f32 %v11011, %v12041
  %v12106 = vadd.f32 %v11012, %v12042
  %v12107 = vadd.f32 %v11013, %v12043
  %v12108 = vadd.f32 %v11014, %v12044
  %v12109 = vadd.f32 %v11015, %v12045
  %v12110 = vadd.f32 %v11016, %v12046
  %v12111 = vadd.f32 %v11017, %v12047
  %v12112 = vadd.f32 %v11018, %v12048
  %v12113 = vadd.f32 %v11019, %v12049
  %v12114 = vadd.f32 %v11020, %v12050
  %v12115 = vadd.f32 %v11021, %v12051
  %v12116 = vadd.f32 %v11022, %v12052
  %v12117 = vadd.f32 %v11023, %v12053
  %v12118 = vadd.f32 %v11024, %v12054
  %v12119 = vadd.f32 %v11025, %v12055
  %v12120 = vadd.f32 %v11026, %v12056
  %v12121 = vadd.f32 %v11027, %v12057
  %v12122 = vadd.f32 %v11028, %v12058
  %v12123 = vadd.f32 %v11029, %v12059
  %v12124 = vadd.f32 %v11030, %v12060
  %v12125 = vadd.f32 %v11031, %v12061
  %v12126 = vadd.f32 %v11032, %v12062
  %v12127 = vadd.f32 %v11033, %v12063
  %v12128 = vadd.f32 %v11034, %v12064
  %v12129 = vadd.f32 %v11035, %v12065
  %v12130 = vadd.f32 %v11036, %v12066
  %v12131 = vadd.f32 %v11037, %v12067
  %v12132 = vadd.f32 %v11038, %v12068
  %v12133 = vadd.f32 %v11039, %v12069
  %v12134 = vadd.f32 %v11040, %v12070
  %v12135 = vadd.f32 %v11041, %v12071
  %v12136 = vadd.f32 %v11042, %v12072
  %v12137 = vadd.f32 %v11043, %v12073
  %v12138 = vadd.f32 %v11044, %v12074
  %v12139 = vadd.f32 %v11045, %v12075
  %v12140 = vadd.f32 %v11046, %v12076
  %v12141 = vadd.f32 %v11047, %v12077
  %v12142 = vadd.f32 %v11048, %v12078
  %v12143 = vadd.f32 %v11049, %v12079
  %v12144 = vadd.f32 %v11050, %v12080
  %12145 = vst.msk [vmem:[%s11] sm:$0xff] %vm40, %v12081
  %12146 = vst.msk [vmem:[%s11 + $0x8] sm:$0xff] %vm40, %v12082
  %12147 = vst.msk [vmem:[%s11 + $0x10] sm:$0xff] %vm40, %v12083
  %12148 = vst.msk [vmem:[%s11 + $0x18] sm:$0xff] %vm40, %v12084
  %12149 = vst.msk [vmem:[%s11 + $0x20] sm:$0xff] %vm40, %v12085
  %12150 = vst.msk [vmem:[%s11 + $0x28] sm:$0xff] %vm40, %v12086
  %12151 = vst.msk [vmem:[%s11 + $0x30] sm:$0xff] %vm40, %v12087
  %12152 = vst.msk [vmem:[%s11 + $0x38] sm:$0xff] %vm40, %v12088
  %12153 = vst.msk [vmem:[%s11 + $0x40] sm:$0xff] %vm40, %v12089
  %12154 = vst.msk [vmem:[%s11 + $0x48] sm:$0xff] %vm40, %v12090
  %12155 = vst.msk [vmem:[%s11 + $0x50] sm:$0xff] %vm40, %v12091
  %12156 = vst.msk [vmem:[%s11 + $0x58] sm:$0xff] %vm40, %v12092
  %12157 = vst.msk [vmem:[%s11 + $0x60] sm:$0xff] %vm40, %v12093
  %12158 = vst.msk [vmem:[%s11 + $0x68] sm:$0xff] %vm40, %v12094
  %12159 = vst.msk [vmem:[%s11 + $0x70] sm:$0xff] %vm40, %v12095
  %12160 = vst.msk [vmem:[%s11 + $0x78] sm:$0xff] %vm40, %v12096
  %12161 = vst.msk [vmem:[%s11 + $0x80] sm:$0xff] %vm40, %v12097
  %12162 = vst.msk [vmem:[%s11 + $0x88] sm:$0xff] %vm40, %v12098
  %12163 = vst.msk [vmem:[%s11 + $0x90] sm:$0xff] %vm40, %v12099
  %12164 = vst.msk [vmem:[%s11 + $0x98] sm:$0xff] %vm40, %v12100
  %12165 = vst.msk [vmem:[%s11 + $0xa0] sm:$0xff] %vm40, %v12101
  %12166 = vst.msk [vmem:[%s11 + $0xa8] sm:$0xff] %vm40, %v12102
  %12167 = vst.msk [vmem:[%s11 + $0xb0] sm:$0xff] %vm40, %v12103
  %12168 = vst.msk [vmem:[%s11 + $0xb8] sm:$0xff] %vm40, %v12104
  %12169 = vst.msk [vmem:[%s11 + $0xc0] sm:$0xff] %vm40, %v12105
  %12170 = vst.msk [vmem:[%s11 + $0xc8] sm:$0xff] %vm40, %v12106
  %12171 = vst.msk [vmem:[%s11 + $0xd0] sm:$0xff] %vm40, %v12107
  %12172 = vst.msk [vmem:[%s11 + $0xd8] sm:$0xff] %vm40, %v12108
  %12173 = vst.msk [vmem:[%s11 + $0xe0] sm:$0xff] %vm40, %v12109
  %12174 = vst.msk [vmem:[%s11 + $0xe8] sm:$0xff] %vm40, %v12110
  %12175 = vst.msk [vmem:[%s11 + $0xf0] sm:$0xff] %vm40, %v12111
  %12176 = vst.msk [vmem:[%s11 + $0xf8] sm:$0xff] %vm40, %v12112
  %12177 = vst.msk [vmem:[%s11 + $0x100] sm:$0xff] %vm40, %v12113
  %12178 = vst.msk [vmem:[%s11 + $0x108] sm:$0xff] %vm40, %v12114
  %12179 = vst.msk [vmem:[%s11 + $0x110] sm:$0xff] %vm40, %v12115
  %12180 = vst.msk [vmem:[%s11 + $0x118] sm:$0xff] %vm40, %v12116
  %12181 = vst.msk [vmem:[%s11 + $0x120] sm:$0xff] %vm40, %v12117
  %12182 = vst.msk [vmem:[%s11 + $0x128] sm:$0xff] %vm40, %v12118
  %12183 = vst.msk [vmem:[%s11 + $0x130] sm:$0xff] %vm40, %v12119
  %12184 = vst.msk [vmem:[%s11 + $0x138] sm:$0xff] %vm40, %v12120
  %12185 = vst.msk [vmem:[%s11 + $0x140] sm:$0xff] %vm40, %v12121
  %12186 = vst.msk [vmem:[%s11 + $0x148] sm:$0xff] %vm40, %v12122
  %12187 = vst.msk [vmem:[%s11 + $0x150] sm:$0xff] %vm40, %v12123
  %12188 = vst.msk [vmem:[%s11 + $0x158] sm:$0xff] %vm40, %v12124
  %12189 = vst.msk [vmem:[%s11 + $0x160] sm:$0xff] %vm40, %v12125
  %12190 = vst.msk [vmem:[%s11 + $0x168] sm:$0xff] %vm40, %v12126
  %12191 = vst.msk [vmem:[%s11 + $0x170] sm:$0xff] %vm40, %v12127
  %12192 = vst.msk [vmem:[%s11 + $0x178] sm:$0xff] %vm40, %v12128
  %12193 = vst.msk [vmem:[%s11 + $0x180] sm:$0xff] %vm40, %v12129
  %12194 = vst.msk [vmem:[%s11 + $0x188] sm:$0xff] %vm40, %v12130
  %12195 = vst.msk [vmem:[%s11 + $0x190] sm:$0xff] %vm40, %v12131
  %12196 = vst.msk [vmem:[%s11 + $0x198] sm:$0xff] %vm40, %v12132
  %12197 = vst.msk [vmem:[%s11 + $0x1a0] sm:$0xff] %vm40, %v12133
  %12198 = vst.msk [vmem:[%s11 + $0x1a8] sm:$0xff] %vm40, %v12134
  %12199 = vst.msk [vmem:[%s11 + $0x1b0] sm:$0xff] %vm40, %v12135
  %12200 = vst.msk [vmem:[%s11 + $0x1b8] sm:$0xff] %vm40, %v12136
  %12201 = vst.msk [vmem:[%s11 + $0x1c0] sm:$0xff] %vm40, %v12137
  %12202 = vst.msk [vmem:[%s11 + $0x1c8] sm:$0xff] %vm40, %v12138
  %12203 = vst.msk [vmem:[%s11 + $0x1d0] sm:$0xff] %vm40, %v12139
  %12204 = vst.msk [vmem:[%s11 + $0x1d8] sm:$0xff] %vm40, %v12140
  %12205 = vst.msk [vmem:[%s11 + $0x1e0] sm:$0xff] %vm40, %v12141
  %12206 = vst.msk [vmem:[%s11 + $0x1e8] sm:$0xff] %vm40, %v12142
  %12207 = vst.msk [vmem:[%s11 + $0x1f0] sm:$0xff] %vm40, %v12143
  %12208 = vst.msk [vmem:[%s11 + $0x1f8] sm:$0xff] %vm40, %v12144
  // Predicated region
  $region46: #{tpu_custom_call.1} parent=0 // pred_check
    _
  $region47: #{tpu_custom_call.1} parent=0 // pred_check_branch
    %12210 = sbr.rel (0) target = $region49
  $region48: #{tpu_custom_call.1} parent=0 // pred_region
    _
  $region49: #{tpu_custom_call.1} parent=0 // pred_fallthru
    _
  // Predicated region
  $region50: #{tpu_custom_call.1} parent=0 // pred_check
    _
  $region51: #{tpu_custom_call.1} parent=0 // pred_check_branch
    %12212 = sbr.rel (0) target = $region53
  $region52: #{tpu_custom_call.1} parent=0 // pred_region
    _
  $region53: #{tpu_custom_call.1} parent=0 // pred_fallthru
    _

</llo_original>
